<compile_context>
chip_gen: v7x
topology: tpu7x:2x2x1
jax: 0.10.0
libtpu: 0.0.40
codegen_flags: <defaults>
</compile_context>

<pallas_src>
import functools
import math

import numpy as np
import jax
import jax.numpy as jnp
from jax.experimental import pallas as pl
from jax.experimental.pallas import tpu as pltpu


def _round_up(a, b):
    return (a + b - 1) // b * b


# --------------------------------------------------------------------------- #
# Kernel 1: pointwise (1x1) conv == matmul + folded-BN affine + SiLU.
# Accepts several (x_i, w_i) pairs accumulated into one output so that
# cv3(torch.cat((y1, y2), dim=1)) needs no materialized channel concat.
# --------------------------------------------------------------------------- #
def _pw_conv_kernel(*refs, n_in, act):
    o_ref = refs[-1]
    s_ref = refs[2 * n_in]
    b_ref = refs[2 * n_in + 1]
    acc = jnp.zeros(o_ref.shape, jnp.float32)
    for i in range(n_in):
        acc = acc + jnp.dot(refs[i][...], refs[n_in + i][...],
                            preferred_element_type=jnp.float32)
    y = acc * s_ref[...] + b_ref[...]
    if act:
        y = y * jax.nn.sigmoid(y)              # SiLU
    o_ref[...] = y.astype(o_ref.dtype)


def pointwise_conv_bn_silu(xs, ws, scale, bias, *, act=True, tile_m=256):
    """xs: list of (M, K_i) activations; ws: list of (K_i, Cout) weights."""
    M = xs[0].shape[0]
    Cout = ws[0].shape[1]
    tm = min(tile_m, _round_up(M, 8))
    Mp = _round_up(M, tm)
    xs_p = [jnp.pad(x, ((0, Mp - M), (0, 0))).astype(jnp.bfloat16) for x in xs]
    ws_b = [w.astype(jnp.bfloat16) for w in ws]

    in_specs = (
        [pl.BlockSpec((tm, x.shape[1]), lambda i: (i, 0)) for x in xs_p]
        + [pl.BlockSpec(w.shape, lambda i: (0, 0)) for w in ws_b]
        + [pl.BlockSpec((1, Cout), lambda i: (0, 0)),
           pl.BlockSpec((1, Cout), lambda i: (0, 0))]
    )
    out = pl.pallas_call(
        functools.partial(_pw_conv_kernel, n_in=len(xs_p), act=act),
        out_shape=jax.ShapeDtypeStruct((Mp, Cout), jnp.float32),
        grid_spec=pltpu.PrefetchScalarGridSpec(
            num_scalar_prefetch=0,
            grid=(Mp // tm,),
            in_specs=in_specs,
            out_specs=pl.BlockSpec((tm, Cout), lambda i: (i, 0)),
        ),
        compiler_params=pltpu.CompilerParams(dimension_semantics=("parallel",)),
    )(*xs_p, *ws_b, scale.reshape(1, Cout), bias.reshape(1, Cout))
    return out[:M]


# --------------------------------------------------------------------------- #
# Kernel 2: one full SwinV2 window attention per grid point:
#   qkv linear -> per-head cosine attention * logit_scale + rel-pos bias
#   (+ shift mask) -> softmax -> attn @ v -> output projection.
# --------------------------------------------------------------------------- #
def _window_attn_kernel(x_ref, mask_ref, wqkv_ref, bqkv_ref, ls_ref, rb_ref,
                        wproj_ref, bproj_ref, o_ref, *, num_heads, head_dim):
    C = num_heads * head_dim
    x = x_ref[...]                                            # (N, C) bf16
    qkv = jnp.dot(x, wqkv_ref[...],
                  preferred_element_type=jnp.float32) + bqkv_ref[...]   # (N, 3C)
    mask = mask_ref[...]                                      # (N, N) f32

    ctx_heads = []
    for h in range(num_heads):
        q = qkv[:, h * head_dim:(h + 1) * head_dim]
        k = qkv[:, C + h * head_dim:C + (h + 1) * head_dim]
        v = qkv[:, 2 * C + h * head_dim:2 * C + (h + 1) * head_dim]
        qn = q / jnp.maximum(jnp.sqrt(jnp.sum(q * q, -1, keepdims=True)), 1e-12)
        kn = k / jnp.maximum(jnp.sqrt(jnp.sum(k * k, -1, keepdims=True)), 1e-12)
        attn = jax.lax.dot_general(
            qn.astype(jnp.bfloat16), kn.astype(jnp.bfloat16),
            (((1,), (1,)), ((), ())),
            preferred_element_type=jnp.float32)               # (N, N)
        attn = attn * ls_ref[h] + rb_ref[h] + mask
        attn = jax.nn.softmax(attn, axis=-1)
        ctx_heads.append(
            jnp.dot(attn.astype(jnp.bfloat16), v.astype(jnp.bfloat16),
                    preferred_element_type=jnp.float32))      # (N, hd)
    ctx = ctx_heads[0] if num_heads == 1 else jnp.concatenate(ctx_heads, axis=-1)
    out = jnp.dot(ctx.astype(jnp.bfloat16), wproj_ref[...],
                  preferred_element_type=jnp.float32) + bproj_ref[...]
    o_ref[...] = out.astype(o_ref.dtype)


def window_attention(xw, mask, lp, *, num_heads, rel_bias):
    B, nwin, N, C = xw.shape
    head_dim = C // num_heads
    bqkv = jnp.concatenate(
        [lp["q_bias"], jnp.zeros_like(lp["v_bias"]), lp["v_bias"]]).reshape(1, 3 * C)
    logit_scale = jnp.exp(
        jnp.minimum(lp["logit_scale"], math.log(100.0))).reshape(num_heads, 1, 1)

    return pl.pallas_call(
        functools.partial(_window_attn_kernel,
                          num_heads=num_heads, head_dim=head_dim),
        out_shape=jax.ShapeDtypeStruct((B, nwin, N, C), jnp.float32),
        grid_spec=pltpu.PrefetchScalarGridSpec(
            num_scalar_prefetch=0,
            grid=(B, nwin),
            in_specs=[
                pl.BlockSpec((None, None, N, C), lambda b, w: (b, w, 0, 0)),
                pl.BlockSpec((None, N, N), lambda b, w: (w, 0, 0)),
                pl.BlockSpec((C, 3 * C), lambda b, w: (0, 0)),
                pl.BlockSpec((1, 3 * C), lambda b, w: (0, 0)),
                pl.BlockSpec((num_heads, 1, 1), lambda b, w: (0, 0, 0)),
                pl.BlockSpec((num_heads, N, N), lambda b, w: (0, 0, 0)),
                pl.BlockSpec((C, C), lambda b, w: (0, 0)),
                pl.BlockSpec((1, C), lambda b, w: (0, 0)),
            ],
            out_specs=pl.BlockSpec((None, None, N, C), lambda b, w: (b, w, 0, 0)),
        ),
        compiler_params=pltpu.CompilerParams(
            dimension_semantics=("parallel", "parallel")),
    )(xw.astype(jnp.bfloat16), mask,
      lp["wqkv"].astype(jnp.bfloat16), bqkv, logit_scale, rel_bias,
      lp["wproj"].astype(jnp.bfloat16), lp["bproj"].reshape(1, C))


# --------------------------------------------------------------------------- #
# Kernel 3: fused post-attention block, per token tile:
#   x = shortcut + LN1(attn);  out = x + LN2(SiLU(x@W1+b1)@W2+b2)
# --------------------------------------------------------------------------- #
def _swin_ffn_kernel(short_ref, attn_ref, g1_ref, be1_ref,
                     w1_ref, b1_ref, w2_ref, b2_ref, g2_ref, be2_ref,
                     o_ref, *, eps):
    attn = attn_ref[...]
    mu = jnp.mean(attn, axis=-1, keepdims=True)
    ac = attn - mu
    var = jnp.mean(ac * ac, axis=-1, keepdims=True)
    ln1 = ac * jax.lax.rsqrt(var + eps) * g1_ref[...] + be1_ref[...]
    x = short_ref[...] + ln1                                   # (TM, C) f32

    h = jnp.dot(x.astype(jnp.bfloat16), w1_ref[...],
                preferred_element_type=jnp.float32) + b1_ref[...]
    h = h * jax.nn.sigmoid(h)                                  # SiLU
    o = jnp.dot(h.astype(jnp.bfloat16), w2_ref[...],
                preferred_element_type=jnp.float32) + b2_ref[...]
    mu2 = jnp.mean(o, axis=-1, keepdims=True)
    oc = o - mu2
    var2 = jnp.mean(oc * oc, axis=-1, keepdims=True)
    ln2 = oc * jax.lax.rsqrt(var2 + eps) * g2_ref[...] + be2_ref[...]
    o_ref[...] = (x + ln2).astype(o_ref.dtype)


def swin_ffn(shortcut, attn, lp, *, tile_m=256, eps=1e-5):
    M, C = shortcut.shape
    hidden = lp["mlp_w1"].shape[1]
    tm = min(tile_m, _round_up(M, 8))
    Mp = _round_up(M, tm)
    pad = ((0, Mp - M), (0, 0))
    out = pl.pallas_call(
        functools.partial(_swin_ffn_kernel, eps=eps),
        out_shape=jax.ShapeDtypeStruct((Mp, C), jnp.float32),
        grid_spec=pltpu.PrefetchScalarGridSpec(
            num_scalar_prefetch=0,
            grid=(Mp // tm,),
            in_specs=[
                pl.BlockSpec((tm, C), lambda i: (i, 0)),
                pl.BlockSpec((tm, C), lambda i: (i, 0)),
                pl.BlockSpec((1, C), lambda i: (0, 0)),
                pl.BlockSpec((1, C), lambda i: (0, 0)),
                pl.BlockSpec((C, hidden), lambda i: (0, 0)),
                pl.BlockSpec((1, hidden), lambda i: (0, 0)),
                pl.BlockSpec((hidden, C), lambda i: (0, 0)),
                pl.BlockSpec((1, C), lambda i: (0, 0)),
                pl.BlockSpec((1, C), lambda i: (0, 0)),
                pl.BlockSpec((1, C), lambda i: (0, 0)),
            ],
            out_specs=pl.BlockSpec((tm, C), lambda i: (i, 0)),
        ),
        compiler_params=pltpu.CompilerParams(dimension_semantics=("parallel",)),
    )(jnp.pad(shortcut, pad), jnp.pad(attn, pad),
      lp["ln1_g"].reshape(1, C), lp["ln1_b"].reshape(1, C),
      lp["mlp_w1"].astype(jnp.bfloat16), lp["mlp_b1"].reshape(1, hidden),
      lp["mlp_w2"].astype(jnp.bfloat16), lp["mlp_b2"].reshape(1, C),
      lp["ln2_g"].reshape(1, C), lp["ln2_b"].reshape(1, C))
    return out[:M]


# ------------------------- static (parameter-only) glue --------------------- #

def compute_rel_bias(lp, window_size, num_heads):
    """16*sigmoid(cpb_mlp(log-coords))[rel_pos_index] -> (nH, N, N)."""
    ws = window_size
    rng = np.arange(-(ws - 1), ws, dtype=np.float32)
    table = np.stack(np.meshgrid(rng, rng, indexing="ij"), axis=-1)
    table = table / max(ws - 1, 1) * 8.0
    table = np.sign(table) * np.log2(np.abs(table) + 1.0) / np.log2(8.0)
    table = jnp.asarray(table.reshape(-1, 2))                     # ((2ws-1)^2, 2)

    h = jnp.maximum(table @ lp["cpb_w1"] + lp["cpb_b1"], 0.0)
    tbl = h @ lp["cpb_w2"]                                        # ((2ws-1)^2, nH)

    coords = np.stack(np.meshgrid(np.arange(ws), np.arange(ws), indexing="ij"))
    cf = coords.reshape(2, -1)
    rel = (cf[:, :, None] - cf[:, None, :]).transpose(1, 2, 0) + np.array([ws - 1, ws - 1])
    idx = (rel[..., 0] * (2 * ws - 1) + rel[..., 1]).reshape(-1)   # (N*N,)

    bias = tbl[jnp.asarray(idx)].reshape(ws * ws, ws * ws, num_heads)
    return 16.0 * jax.nn.sigmoid(jnp.transpose(bias, (2, 0, 1)))


def make_attn_mask(H, W, ws, shift):
    img = np.zeros((H, W), np.float32)
    slices = (slice(0, -ws), slice(-ws, -shift), slice(-shift, None))
    cnt = 0
    for hs in slices:
        for wsl in slices:
            img[hs, wsl] = cnt
            cnt += 1
    mw = img.reshape(H // ws, ws, W // ws, ws).transpose(0, 2, 1, 3).reshape(-1, ws * ws)
    am = mw[:, None, :] - mw[:, :, None]
    return jnp.asarray(np.where(am != 0, -100.0, 0.0).astype(np.float32))


# ------------------------------ SwinV2 layer -------------------------------- #

def swin_layer(lp, x, *, window_size, shift_size, num_heads):
    B, H0, W0, C = x.shape
    ws = window_size
    pad_b = (ws - H0 % ws) % ws
    pad_r = (ws - W0 % ws) % ws
    if pad_b or pad_r:
        x = jnp.pad(x, ((0, 0), (0, pad_b), (0, pad_r), (0, 0)))
    B, H, W, C = x.shape
    L, N = H * W, ws * ws
    nh, nw = H // ws, W // ws
    nwin = nh * nw

    shortcut = x.reshape(B, L, C)
    if shift_size > 0:
        xs = jnp.roll(x, shift=(-shift_size, -shift_size), axis=(1, 2))
        mask = make_attn_mask(H, W, ws, shift_size)
    else:
        xs = x
        mask = jnp.zeros((nwin, N, N), jnp.float32)

    xw = xs.reshape(B, nh, ws, nw, ws, C).transpose(0, 1, 3, 2, 4, 5)
    xw = xw.reshape(B, nwin, N, C)

    rel_bias = compute_rel_bias(lp, ws, num_heads)
    attn = window_attention(xw, mask, lp, num_heads=num_heads, rel_bias=rel_bias)

    xr = attn.reshape(B, nh, nw, ws, ws, C).transpose(0, 1, 3, 2, 4, 5)
    xr = xr.reshape(B, H, W, C)
    if shift_size > 0:
        xr = jnp.roll(xr, shift=(shift_size, shift_size), axis=(1, 2))

    out = swin_ffn(shortcut.reshape(B * L, C), xr.reshape(B * L, C), lp)
    out = out.reshape(B, H, W, C)
    if pad_b or pad_r:
        out = out[:, :H0, :W0, :]
    return out


# ------------------------------ parameters ---------------------------------- #

def init_params(key, c1, c2, n=1, window_size=7):
    c_ = int(c2)
    num_heads = c_ // 32
    assert num_heads >= 1, "c2 must be >= 32 (num_heads = c2 // 32)"
    hidden = int(c_ * 4.0)
    keys = iter(jax.random.split(key, 8 + 8 * n))

    def dense(shape, fan_in):
        return jax.random.normal(next(keys), shape, jnp.float32) / math.sqrt(fan_in)

    def small_bias(shape, fan_in):
        b = 1.0 / math.sqrt(fan_in)
        return jax.random.uniform(next(keys), shape, jnp.float32, -b, b)

    def conv_bn(cin, cout):
        w = dense((cin, cout), cin)
        eps = 1e-5
        gamma = jnp.ones((cout,), jnp.float32)
        beta = jnp.zeros((cout,), jnp.float32)
        rm = jnp.zeros((cout,), jnp.float32)
        rv = jnp.ones((cout,), jnp.float32)
        scale = gamma / jnp.sqrt(rv + eps)
        bias = beta - rm * scale
        return (w, scale, bias)

    params = {
        "cv1": conv_bn(c1, c_),
        "cv2": conv_bn(c_, c_),
        "cv3": conv_bn(2 * c_, int(c2)),
        "layers": [],
    }
    for _ in range(n):
        lp = {
            "wqkv": dense((c_, 3 * c_), c_),
            "q_bias": jnp.zeros((c_,), jnp.float32),
            "v_bias": jnp.zeros((c_,), jnp.float32),
            "logit_scale": jnp.full((num_heads, 1, 1), math.log(10.0), jnp.float32),
            "cpb_w1": dense((2, 512), 2),
            "cpb_b1": jnp.zeros((512,), jnp.float32),
            "cpb_w2": dense((512, num_heads), 512),
            "wproj": dense((c_, c_), c_),
            "bproj": small_bias((c_,), c_),
            "ln1_g": jnp.ones((c_,), jnp.float32),
            "ln1_b": jnp.zeros((c_,), jnp.float32),
            "ln2_g": jnp.ones((c_,), jnp.float32),
            "ln2_b": jnp.zeros((c_,), jnp.float32),
            "mlp_w1": dense((c_, hidden), c_),
            "mlp_b1": small_bias((hidden,), c_),
            "mlp_w2": dense((hidden, c_), hidden),
            "mlp_b2": small_bias((c_,), hidden),
        }
        params["layers"].append(lp)
    return params


# -------------------------------- forward ----------------------------------- #

def forward(cfg, params, x_nchw):
    ws = cfg["window_size"]
    c_ = cfg["c_"]
    c2 = cfg["c2"]
    num_heads = cfg["num_heads"]
    B, c1, H, W = x_nchw.shape

    x = jnp.transpose(x_nchw, (0, 2, 3, 1)).reshape(B * H * W, c1)   # NHWC flat

    w1, s1, b1 = params["cv1"]
    x1 = pointwise_conv_bn_silu([x], [w1], s1, b1)                   # (BHW, c_)

    # Swin transformer block (c1 == c2 inside, so no extra conv)
    y1 = x1.reshape(B, H, W, c_)
    for i, lp in enumerate(params["layers"]):
        shift = 0 if i % 2 == 0 else ws // 2
        y1 = swin_layer(lp, y1, window_size=ws, shift_size=shift,
                        num_heads=num_heads)

    w2, s2, b2 = params["cv2"]
    y2 = pointwise_conv_bn_silu([x1], [w2], s2, b2)                  # (BHW, c_)

    # cv3(concat(y1, y2)) as two accumulating matmuls (no concat in HBM)
    w3, s3, b3 = params["cv3"]
    out = pointwise_conv_bn_silu([y1.reshape(B * H * W, c_), y2],
                                 [w3[:c_], w3[c_:]], s3, b3)         # (BHW, c2)
    return out.reshape(B, H, W, c2).transpose(0, 3, 1, 2)            # NCHW


# ---------------------------------- main ------------------------------------ #

if __name__ == "__main__":
    key = jax.random.PRNGKey(0)
    kx, kp = jax.random.split(key)

    # ST2CSPB(c1=16, c2=32, n=1): window_size=7, 14x14 input (2x2 windows).
    B, c1, c2, H, W, n = 2, 16, 32, 14, 14, 1
    cfg = dict(window_size=7, c_=int(c2), c2=int(c2), num_heads=int(c2) // 32)

    x = jax.random.normal(kx, (B, c1, H, W), jnp.float32)
    params = init_params(kp, c1, c2, n=n, window_size=cfg["window_size"])

    fwd = jax.jit(functools.partial(forward, cfg))
    out = jax.block_until_ready(fwd(params, x))

    assert out.shape == (B, c2, H, W), out.shape
    assert bool(jnp.all(jnp.isfinite(out)))
    print("KERNEL_OK")
</pallas_src>

<mosaic_0001>
module attributes {stable_mosaic.version = 11 : i64} {
  func.func @_pw_conv_kernel(%arg0: i32, %arg1: memref<256x16xbf16, #tpu.memory_space<vmem>>, %arg2: memref<16x32xbf16, #tpu.memory_space<vmem>>, %arg3: memref<1x32xf32, #tpu.memory_space<vmem>>, %arg4: memref<1x32xf32, #tpu.memory_space<vmem>>, %arg5: memref<256x32xf32, #tpu.memory_space<vmem>>) attributes {dimension_semantics = [#tpu.dimension_semantics<parallel>], iteration_bounds = array<i64: 2>, scalar_prefetch = 0 : i64, scratch_operands = 0 : i64, tpu.core_type = #tpu.core_type<tc>, window_params = [{transform_indices = @transform_0, window_bounds = array<i64: 256, 16>}, {pipeline_mode = #tpu.pipeline_mode<synchronous>, transform_indices = @transform_1, window_bounds = array<i64: 16, 32>}, {pipeline_mode = #tpu.pipeline_mode<synchronous>, transform_indices = @transform_2, window_bounds = array<i64: 1, 32>}, {pipeline_mode = #tpu.pipeline_mode<synchronous>, transform_indices = @transform_3, window_bounds = array<i64: 1, 32>}, {transform_indices = @transform_4, window_bounds = array<i64: 256, 32>}]} {
    %cst = arith.constant 0.000000e+00 : f32
    %0 = vector.broadcast %cst : f32 to vector<256x32xf32>
    %c0 = arith.constant 0 : index
    %c0_0 = arith.constant 0 : index
    %1 = vector.load %arg1[%c0, %c0_0] : memref<256x16xbf16, #tpu.memory_space<vmem>>, vector<256x16xbf16>
    %c0_1 = arith.constant 0 : index
    %c0_2 = arith.constant 0 : index
    %2 = vector.load %arg2[%c0_1, %c0_2] : memref<16x32xbf16, #tpu.memory_space<vmem>>, vector<16x32xbf16>
    %cst_3 = arith.constant dense<0.000000e+00> : vector<256x32xf32>
    %3 = tpu.matmul %1, %2, %cst_3 {dimension_numbers = #tpu.dot_dimension_numbers<[1], [0], [0], [1], [0, 0, 1, 1], [], []>} : vector<256x16xbf16>, vector<16x32xbf16>, vector<256x32xf32> -> vector<256x32xf32>
    %4 = arith.addf %0, %3 : vector<256x32xf32>
    %c0_4 = arith.constant 0 : index
    %c0_5 = arith.constant 0 : index
    %5 = vector.load %arg3[%c0_4, %c0_5] : memref<1x32xf32, #tpu.memory_space<vmem>>, vector<1x32xf32>
    %6 = vector.broadcast %5 : vector<1x32xf32> to vector<256x32xf32>
    %7 = arith.mulf %4, %6 : vector<256x32xf32>
    %c0_6 = arith.constant 0 : index
    %c0_7 = arith.constant 0 : index
    %8 = vector.load %arg4[%c0_6, %c0_7] : memref<1x32xf32, #tpu.memory_space<vmem>>, vector<1x32xf32>
    %9 = vector.broadcast %8 : vector<1x32xf32> to vector<256x32xf32>
    %10 = arith.addf %7, %9 : vector<256x32xf32>
    %11 = arith.negf %10 : vector<256x32xf32>
    %12 = math.exp %11 : vector<256x32xf32>
    %cst_8 = arith.constant 1.000000e+00 : f32
    %13 = vector.broadcast %cst_8 : f32 to vector<256x32xf32>
    %14 = arith.addf %13, %12 : vector<256x32xf32>
    %15 = arith.divf %13, %14 : vector<256x32xf32>
    %16 = arith.mulf %10, %15 : vector<256x32xf32>
    %c0_9 = arith.constant 0 : index
    %c0_10 = arith.constant 0 : index
    %17 = vector.load %arg5[%c0_9, %c0_10] : memref<256x32xf32, #tpu.memory_space<vmem>>, vector<256x32xf32>
    tpu.vector_store %arg5[%c0_9, %c0_10], %16 {strides = array<i32>} : memref<256x32xf32, #tpu.memory_space<vmem>>, vector<256x32xf32>,
    return
  }
  func.func @transform_0(%arg0: i32) -> (i32, i32) {
    %c0_i32 = arith.constant 0 : i32
    %c0_i32_0 = arith.constant 0 : i32
    return %arg0, %c0_i32 : i32, i32
  }
  func.func @transform_1(%arg0: i32) -> (i32, i32) {
    %c0_i32 = arith.constant 0 : i32
    %c0_i32_0 = arith.constant 0 : i32
    %c0_i32_1 = arith.constant 0 : i32
    return %c0_i32, %c0_i32_0 : i32, i32
  }
  func.func @transform_2(%arg0: i32) -> (i32, i32) {
    %c0_i32 = arith.constant 0 : i32
    %c0_i32_0 = arith.constant 0 : i32
    %c0_i32_1 = arith.constant 0 : i32
    return %c0_i32, %c0_i32_0 : i32, i32
  }
  func.func @transform_3(%arg0: i32) -> (i32, i32) {
    %c0_i32 = arith.constant 0 : i32
    %c0_i32_0 = arith.constant 0 : i32
    %c0_i32_1 = arith.constant 0 : i32
    return %c0_i32, %c0_i32_0 : i32, i32
  }
  func.func @transform_4(%arg0: i32) -> (i32, i32) {
    %c0_i32 = arith.constant 0 : i32
    %c0_i32_0 = arith.constant 0 : i32
    return %arg0, %c0_i32 : i32, i32
  }
}

module attributes {stable_mosaic.version = 11 : i64} {
  func.func @_window_attn_kernel(%arg0: i32, %arg1: i32, %arg2: memref<1x1x49x32xbf16, #tpu.memory_space<vmem>>, %arg3: memref<1x49x49xf32, #tpu.memory_space<vmem>>, %arg4: memref<32x96xbf16, #tpu.memory_space<vmem>>, %arg5: memref<1x96xf32, #tpu.memory_space<vmem>>, %arg6: memref<1x1x1xf32, #tpu.memory_space<vmem>>, %arg7: memref<1x49x49xf32, #tpu.memory_space<vmem>>, %arg8: memref<32x32xbf16, #tpu.memory_space<vmem>>, %arg9: memref<1x32xf32, #tpu.memory_space<vmem>>, %arg10: memref<1x1x49x32xf32, #tpu.memory_space<vmem>>) attributes {dimension_semantics = [#tpu.dimension_semantics<parallel>, #tpu.dimension_semantics<parallel>], iteration_bounds = array<i64: 2, 4>, scalar_prefetch = 0 : i64, scratch_operands = 0 : i64, tpu.core_type = #tpu.core_type<tc>, window_params = [{transform_indices = @transform_0, window_bounds = array<i64: 1, 1, 49, 32>}, {transform_indices = @transform_1, window_bounds = array<i64: 1, 49, 49>}, {pipeline_mode = #tpu.pipeline_mode<synchronous>, transform_indices = @transform_2, window_bounds = array<i64: 32, 96>}, {pipeline_mode = #tpu.pipeline_mode<synchronous>, transform_indices = @transform_3, window_bounds = array<i64: 1, 96>}, {pipeline_mode = #tpu.pipeline_mode<synchronous>, transform_indices = @transform_4, window_bounds = array<i64: 1, 1, 1>}, {pipeline_mode = #tpu.pipeline_mode<synchronous>, transform_indices = @transform_5, window_bounds = array<i64: 1, 49, 49>}, {pipeline_mode = #tpu.pipeline_mode<synchronous>, transform_indices = @transform_6, window_bounds = array<i64: 32, 32>}, {pipeline_mode = #tpu.pipeline_mode<synchronous>, transform_indices = @transform_7, window_bounds = array<i64: 1, 32>}, {transform_indices = @transform_8, window_bounds = array<i64: 1, 1, 49, 32>}]} {
    %c0 = arith.constant 0 : index
    %c0_0 = arith.constant 0 : index
    %c0_1 = arith.constant 0 : index
    %c0_2 = arith.constant 0 : index
    %0 = vector.load %arg2[%c0, %c0_0, %c0_1, %c0_2] : memref<1x1x49x32xbf16, #tpu.memory_space<vmem>>, vector<1x1x49x32xbf16>
    %1 = vector.shape_cast %0 : vector<1x1x49x32xbf16> to vector<49x32xbf16>
    %c0_3 = arith.constant 0 : index
    %c0_4 = arith.constant 0 : index
    %2 = vector.load %arg4[%c0_3, %c0_4] : memref<32x96xbf16, #tpu.memory_space<vmem>>, vector<32x96xbf16>
    %cst = arith.constant dense<0.000000e+00> : vector<49x96xf32>
    %3 = tpu.matmul %1, %2, %cst {dimension_numbers = #tpu.dot_dimension_numbers<[1], [0], [0], [1], [0, 0, 1, 1], [], []>} : vector<49x32xbf16>, vector<32x96xbf16>, vector<49x96xf32> -> vector<49x96xf32>
    %c0_5 = arith.constant 0 : index
    %c0_6 = arith.constant 0 : index
    %4 = vector.load %arg5[%c0_5, %c0_6] : memref<1x96xf32, #tpu.memory_space<vmem>>, vector<1x96xf32>
    %5 = vector.broadcast %4 : vector<1x96xf32> to vector<49x96xf32>
    %6 = arith.addf %3, %5 : vector<49x96xf32>
    %c0_7 = arith.constant 0 : index
    %c0_8 = arith.constant 0 : index
    %c0_9 = arith.constant 0 : index
    %7 = vector.load %arg3[%c0_7, %c0_8, %c0_9] : memref<1x49x49xf32, #tpu.memory_space<vmem>>, vector<1x49x49xf32>
    %8 = vector.shape_cast %7 : vector<1x49x49xf32> to vector<49x49xf32>
    %9 = vector.extract_strided_slice %6 {offsets = [0, 0], sizes = [49, 32], strides = [1, 1]} : vector<49x96xf32> to vector<49x32xf32>
    %10 = vector.extract_strided_slice %6 {offsets = [0, 32], sizes = [49, 32], strides = [1, 1]} : vector<49x96xf32> to vector<49x32xf32>
    %11 = vector.extract_strided_slice %6 {offsets = [0, 64], sizes = [49, 32], strides = [1, 1]} : vector<49x96xf32> to vector<49x32xf32>
    %12 = arith.mulf %9, %9 : vector<49x32xf32>
    %cst_10 = arith.constant dense<0.000000e+00> : vector<49xf32>
    %13 = vector.multi_reduction <add>, %12, %cst_10 [1] : vector<49x32xf32> to vector<49xf32>
    %14 = vector.shape_cast %13 : vector<49xf32> to vector<49x1xf32>
    %15 = math.sqrt %14 : vector<49x1xf32>
    %cst_11 = arith.constant 9.99999996E-13 : f32
    %16 = vector.broadcast %cst_11 : f32 to vector<49x1xf32>
    %17 = arith.maximumf %15, %16 : vector<49x1xf32>
    %18 = vector.broadcast %17 : vector<49x1xf32> to vector<49x32xf32>
    %19 = arith.divf %9, %18 : vector<49x32xf32>
    %20 = arith.mulf %10, %10 : vector<49x32xf32>
    %cst_12 = arith.constant dense<0.000000e+00> : vector<49xf32>
    %21 = vector.multi_reduction <add>, %20, %cst_12 [1] : vector<49x32xf32> to vector<49xf32>
    %22 = vector.shape_cast %21 : vector<49xf32> to vector<49x1xf32>
    %23 = math.sqrt %22 : vector<49x1xf32>
    %cst_13 = arith.constant 9.99999996E-13 : f32
    %24 = vector.broadcast %cst_13 : f32 to vector<49x1xf32>
    %25 = arith.maximumf %23, %24 : vector<49x1xf32>
    %26 = vector.broadcast %25 : vector<49x1xf32> to vector<49x32xf32>
    %27 = arith.divf %10, %26 : vector<49x32xf32>
    %28 = arith.truncf %19 : vector<49x32xf32> to vector<49x32xbf16>
    %29 = arith.truncf %27 : vector<49x32xf32> to vector<49x32xbf16>
    %cst_14 = arith.constant dense<0.000000e+00> : vector<49x49xf32>
    %30 = tpu.matmul %28, %29, %cst_14 {dimension_numbers = #tpu.dot_dimension_numbers<[1], [1], [0], [0], [0, 0, 1, 0], [], []>} : vector<49x32xbf16>, vector<49x32xbf16>, vector<49x49xf32> -> vector<49x49xf32>
    %c0_15 = arith.constant 0 : index
    %c0_16 = arith.constant 0 : index
    %c0_17 = arith.constant 0 : index
    %31 = vector.load %arg6[%c0_15, %c0_16, %c0_17] : memref<1x1x1xf32, #tpu.memory_space<vmem>>, vector<1x1x1xf32>
    %32 = vector.shape_cast %31 : vector<1x1x1xf32> to vector<1x1xf32>
    %33 = vector.broadcast %32 : vector<1x1xf32> to vector<49x49xf32>
    %34 = arith.mulf %30, %33 : vector<49x49xf32>
    %c0_18 = arith.constant 0 : index
    %c0_19 = arith.constant 0 : index
    %c0_20 = arith.constant 0 : index
    %35 = vector.load %arg7[%c0_18, %c0_19, %c0_20] : memref<1x49x49xf32, #tpu.memory_space<vmem>>, vector<1x49x49xf32>
    %36 = vector.shape_cast %35 : vector<1x49x49xf32> to vector<49x49xf32>
    %37 = arith.addf %34, %36 : vector<49x49xf32>
    %38 = arith.addf %37, %8 : vector<49x49xf32>
    %cst_21 = arith.constant dense<0xFF800000> : vector<49xf32>
    %39 = vector.multi_reduction <maximumf>, %38, %cst_21 [1] : vector<49x49xf32> to vector<49xf32>
    %cst_22 = arith.constant 0xFF800000 : f32
    %40 = vector.broadcast %cst_22 : f32 to vector<49xf32>
    %41 = arith.maximumf %40, %39 : vector<49xf32>
    %42 = vector.shape_cast %41 : vector<49xf32> to vector<49x1xf32>
    %43 = vector.broadcast %42 : vector<49x1xf32> to vector<49x49xf32>
    %44 = arith.subf %38, %43 : vector<49x49xf32>
    %45 = math.exp %44 : vector<49x49xf32>
    %cst_23 = arith.constant dense<0.000000e+00> : vector<49xf32>
    %46 = vector.multi_reduction <add>, %45, %cst_23 [1] : vector<49x49xf32> to vector<49xf32>
    %47 = vector.shape_cast %46 : vector<49xf32> to vector<49x1xf32>
    %48 = vector.broadcast %47 : vector<49x1xf32> to vector<49x49xf32>
    %49 = arith.divf %45, %48 : vector<49x49xf32>
    %50 = arith.truncf %49 : vector<49x49xf32> to vector<49x49xbf16>
    %51 = arith.truncf %11 : vector<49x32xf32> to vector<49x32xbf16>
    %cst_24 = arith.constant dense<0.000000e+00> : vector<49x32xf32>
    %52 = tpu.matmul %50, %51, %cst_24 {dimension_numbers = #tpu.dot_dimension_numbers<[1], [0], [0], [1], [0, 0, 1, 1], [], []>} : vector<49x49xbf16>, vector<49x32xbf16>, vector<49x32xf32> -> vector<49x32xf32>
    %53 = arith.truncf %52 : vector<49x32xf32> to vector<49x32xbf16>
    %c0_25 = arith.constant 0 : index
    %c0_26 = arith.constant 0 : index
    %54 = vector.load %arg8[%c0_25, %c0_26] : memref<32x32xbf16, #tpu.memory_space<vmem>>, vector<32x32xbf16>
    %cst_27 = arith.constant dense<0.000000e+00> : vector<49x32xf32>
    %55 = tpu.matmul %53, %54, %cst_27 {dimension_numbers = #tpu.dot_dimension_numbers<[1], [0], [0], [1], [0, 0, 1, 1], [], []>} : vector<49x32xbf16>, vector<32x32xbf16>, vector<49x32xf32> -> vector<49x32xf32>
    %c0_28 = arith.constant 0 : index
    %c0_29 = arith.constant 0 : index
    %56 = vector.load %arg9[%c0_28, %c0_29] : memref<1x32xf32, #tpu.memory_space<vmem>>, vector<1x32xf32>
    %57 = vector.broadcast %56 : vector<1x32xf32> to vector<49x32xf32>
    %58 = arith.addf %55, %57 : vector<49x32xf32>
    %c0_30 = arith.constant 0 : index
    %c0_31 = arith.constant 0 : index
    %c0_32 = arith.constant 0 : index
    %c0_33 = arith.constant 0 : index
    %59 = vector.load %arg10[%c0_30, %c0_31, %c0_32, %c0_33] : memref<1x1x49x32xf32, #tpu.memory_space<vmem>>, vector<1x1x49x32xf32>
    %60 = vector.shape_cast %59 : vector<1x1x49x32xf32> to vector<49x32xf32>
    %61 = vector.shape_cast %58 : vector<49x32xf32> to vector<1x1x49x32xf32>
    tpu.vector_store %arg10[%c0_30, %c0_31, %c0_32, %c0_33], %61 {strides = array<i32>} : memref<1x1x49x32xf32, #tpu.memory_space<vmem>>, vector<1x1x49x32xf32>,
    return
  }
  func.func @transform_0(%arg0: i32, %arg1: i32) -> (i32, i32, i32, i32) {
    %c0_i32 = arith.constant 0 : i32
    %c0_i32_0 = arith.constant 0 : i32
    %c0_i32_1 = arith.constant 0 : i32
    return %arg0, %arg1, %c0_i32, %c0_i32_0 : i32, i32, i32, i32
  }
  func.func @transform_1(%arg0: i32, %arg1: i32) -> (i32, i32, i32) {
    %c0_i32 = arith.constant 0 : i32
    %c0_i32_0 = arith.constant 0 : i32
    %c0_i32_1 = arith.constant 0 : i32
    return %arg1, %c0_i32, %c0_i32_0 : i32, i32, i32
  }
  func.func @transform_2(%arg0: i32, %arg1: i32) -> (i32, i32) {
    %c0_i32 = arith.constant 0 : i32
    %c0_i32_0 = arith.constant 0 : i32
    %c0_i32_1 = arith.constant 0 : i32
    return %c0_i32, %c0_i32_0 : i32, i32
  }
  func.func @transform_3(%arg0: i32, %arg1: i32) -> (i32, i32) {
    %c0_i32 = arith.constant 0 : i32
    %c0_i32_0 = arith.constant 0 : i32
    %c0_i32_1 = arith.constant 0 : i32
    return %c0_i32, %c0_i32_0 : i32, i32
  }
  func.func @transform_4(%arg0: i32, %arg1: i32) -> (i32, i32, i32) {
    %c0_i32 = arith.constant 0 : i32
    %c0_i32_0 = arith.constant 0 : i32
    %c0_i32_1 = arith.constant 0 : i32
    %c0_i32_2 = arith.constant 0 : i32
    return %c0_i32, %c0_i32_0, %c0_i32_1 : i32, i32, i32
  }
  func.func @transform_5(%arg0: i32, %arg1: i32) -> (i32, i32, i32) {
    %c0_i32 = arith.constant 0 : i32
    %c0_i32_0 = arith.constant 0 : i32
    %c0_i32_1 = arith.constant 0 : i32
    %c0_i32_2 = arith.constant 0 : i32
    return %c0_i32, %c0_i32_0, %c0_i32_1 : i32, i32, i32
  }
  func.func @transform_6(%arg0: i32, %arg1: i32) -> (i32, i32) {
    %c0_i32 = arith.constant 0 : i32
    %c0_i32_0 = arith.constant 0 : i32
    %c0_i32_1 = arith.constant 0 : i32
    return %c0_i32, %c0_i32_0 : i32, i32
  }
  func.func @transform_7(%arg0: i32, %arg1: i32) -> (i32, i32) {
    %c0_i32 = arith.constant 0 : i32
    %c0_i32_0 = arith.constant 0 : i32
    %c0_i32_1 = arith.constant 0 : i32
    return %c0_i32, %c0_i32_0 : i32, i32
  }
  func.func @transform_8(%arg0: i32, %arg1: i32) -> (i32, i32, i32, i32) {
    %c0_i32 = arith.constant 0 : i32
    %c0_i32_0 = arith.constant 0 : i32
    %c0_i32_1 = arith.constant 0 : i32
    return %arg0, %arg1, %c0_i32, %c0_i32_0 : i32, i32, i32, i32
  }
}

module attributes {stable_mosaic.version = 11 : i64} {
  func.func @_swin_ffn_kernel(%arg0: i32, %arg1: memref<256x32xf32, #tpu.memory_space<vmem>>, %arg2: memref<256x32xf32, #tpu.memory_space<vmem>>, %arg3: memref<1x32xf32, #tpu.memory_space<vmem>>, %arg4: memref<1x32xf32, #tpu.memory_space<vmem>>, %arg5: memref<32x128xbf16, #tpu.memory_space<vmem>>, %arg6: memref<1x128xf32, #tpu.memory_space<vmem>>, %arg7: memref<128x32xbf16, #tpu.memory_space<vmem>>, %arg8: memref<1x32xf32, #tpu.memory_space<vmem>>, %arg9: memref<1x32xf32, #tpu.memory_space<vmem>>, %arg10: memref<1x32xf32, #tpu.memory_space<vmem>>, %arg11: memref<256x32xf32, #tpu.memory_space<vmem>>) attributes {dimension_semantics = [#tpu.dimension_semantics<parallel>], iteration_bounds = array<i64: 2>, scalar_prefetch = 0 : i64, scratch_operands = 0 : i64, tpu.core_type = #tpu.core_type<tc>, window_params = [{transform_indices = @transform_0, window_bounds = array<i64: 256, 32>}, {transform_indices = @transform_1, window_bounds = array<i64: 256, 32>}, {pipeline_mode = #tpu.pipeline_mode<synchronous>, transform_indices = @transform_2, window_bounds = array<i64: 1, 32>}, {pipeline_mode = #tpu.pipeline_mode<synchronous>, transform_indices = @transform_3, window_bounds = array<i64: 1, 32>}, {pipeline_mode = #tpu.pipeline_mode<synchronous>, transform_indices = @transform_4, window_bounds = array<i64: 32, 128>}, {pipeline_mode = #tpu.pipeline_mode<synchronous>, transform_indices = @transform_5, window_bounds = array<i64: 1, 128>}, {pipeline_mode = #tpu.pipeline_mode<synchronous>, transform_indices = @transform_6, window_bounds = array<i64: 128, 32>}, {pipeline_mode = #tpu.pipeline_mode<synchronous>, transform_indices = @transform_7, window_bounds = array<i64: 1, 32>}, {pipeline_mode = #tpu.pipeline_mode<synchronous>, transform_indices = @transform_8, window_bounds = array<i64: 1, 32>}, {pipeline_mode = #tpu.pipeline_mode<synchronous>, transform_indices = @transform_9, window_bounds = array<i64: 1, 32>}, {transform_indices = @transform_10, window_bounds = array<i64: 256, 32>}]} {
    %c0 = arith.constant 0 : index
    %c0_0 = arith.constant 0 : index
    %0 = vector.load %arg2[%c0, %c0_0] : memref<256x32xf32, #tpu.memory_space<vmem>>, vector<256x32xf32>
    %cst = arith.constant dense<0.000000e+00> : vector<256xf32>
    %1 = vector.multi_reduction <add>, %0, %cst [1] : vector<256x32xf32> to vector<256xf32>
    %2 = vector.shape_cast %1 : vector<256xf32> to vector<256x1xf32>
    %cst_1 = arith.constant 3.200000e+01 : f32
    %3 = vector.broadcast %cst_1 : f32 to vector<256x1xf32>
    %4 = arith.divf %2, %3 : vector<256x1xf32>
    %5 = vector.broadcast %4 : vector<256x1xf32> to vector<256x32xf32>
    %6 = arith.subf %0, %5 : vector<256x32xf32>
    %7 = arith.mulf %6, %6 : vector<256x32xf32>
    %cst_2 = arith.constant dense<0.000000e+00> : vector<256xf32>
    %8 = vector.multi_reduction <add>, %7, %cst_2 [1] : vector<256x32xf32> to vector<256xf32>
    %9 = vector.shape_cast %8 : vector<256xf32> to vector<256x1xf32>
    %cst_3 = arith.constant 3.200000e+01 : f32
    %10 = vector.broadcast %cst_3 : f32 to vector<256x1xf32>
    %11 = arith.divf %9, %10 : vector<256x1xf32>
    %cst_4 = arith.constant 9.99999974E-6 : f32
    %12 = vector.broadcast %cst_4 : f32 to vector<256x1xf32>
    %13 = arith.addf %11, %12 : vector<256x1xf32>
    %14 = math.rsqrt %13 : vector<256x1xf32>
    %15 = vector.broadcast %14 : vector<256x1xf32> to vector<256x32xf32>
    %16 = arith.mulf %6, %15 : vector<256x32xf32>
    %c0_5 = arith.constant 0 : index
    %c0_6 = arith.constant 0 : index
    %17 = vector.load %arg3[%c0_5, %c0_6] : memref<1x32xf32, #tpu.memory_space<vmem>>, vector<1x32xf32>
    %18 = vector.broadcast %17 : vector<1x32xf32> to vector<256x32xf32>
    %19 = arith.mulf %16, %18 : vector<256x32xf32>
    %c0_7 = arith.constant 0 : index
    %c0_8 = arith.constant 0 : index
    %20 = vector.load %arg4[%c0_7, %c0_8] : memref<1x32xf32, #tpu.memory_space<vmem>>, vector<1x32xf32>
    %21 = vector.broadcast %20 : vector<1x32xf32> to vector<256x32xf32>
    %22 = arith.addf %19, %21 : vector<256x32xf32>
    %c0_9 = arith.constant 0 : index
    %c0_10 = arith.constant 0 : index
    %23 = vector.load %arg1[%c0_9, %c0_10] : memref<256x32xf32, #tpu.memory_space<vmem>>, vector<256x32xf32>
    %24 = arith.addf %23, %22 : vector<256x32xf32>
    %25 = arith.truncf %24 : vector<256x32xf32> to vector<256x32xbf16>
    %c0_11 = arith.constant 0 : index
    %c0_12 = arith.constant 0 : index
    %26 = vector.load %arg5[%c0_11, %c0_12] : memref<32x128xbf16, #tpu.memory_space<vmem>>, vector<32x128xbf16>
    %cst_13 = arith.constant dense<0.000000e+00> : vector<256x128xf32>
    %27 = tpu.matmul %25, %26, %cst_13 {dimension_numbers = #tpu.dot_dimension_numbers<[1], [0], [0], [1], [0, 0, 1, 1], [], []>} : vector<256x32xbf16>, vector<32x128xbf16>, vector<256x128xf32> -> vector<256x128xf32>
    %c0_14 = arith.constant 0 : index
    %c0_15 = arith.constant 0 : index
    %28 = vector.load %arg6[%c0_14, %c0_15] : memref<1x128xf32, #tpu.memory_space<vmem>>, vector<1x128xf32>
    %29 = vector.broadcast %28 : vector<1x128xf32> to vector<256x128xf32>
    %30 = arith.addf %27, %29 : vector<256x128xf32>
    %31 = arith.negf %30 : vector<256x128xf32>
    %32 = math.exp %31 : vector<256x128xf32>
    %cst_16 = arith.constant 1.000000e+00 : f32
    %33 = vector.broadcast %cst_16 : f32 to vector<256x128xf32>
    %34 = arith.addf %33, %32 : vector<256x128xf32>
    %35 = arith.divf %33, %34 : vector<256x128xf32>
    %36 = arith.mulf %30, %35 : vector<256x128xf32>
    %37 = arith.truncf %36 : vector<256x128xf32> to vector<256x128xbf16>
    %c0_17 = arith.constant 0 : index
    %c0_18 = arith.constant 0 : index
    %38 = vector.load %arg7[%c0_17, %c0_18] : memref<128x32xbf16, #tpu.memory_space<vmem>>, vector<128x32xbf16>
    %cst_19 = arith.constant dense<0.000000e+00> : vector<256x32xf32>
    %39 = tpu.matmul %37, %38, %cst_19 {dimension_numbers = #tpu.dot_dimension_numbers<[1], [0], [0], [1], [0, 0, 1, 1], [], []>} : vector<256x128xbf16>, vector<128x32xbf16>, vector<256x32xf32> -> vector<256x32xf32>
    %c0_20 = arith.constant 0 : index
    %c0_21 = arith.constant 0 : index
    %40 = vector.load %arg8[%c0_20, %c0_21] : memref<1x32xf32, #tpu.memory_space<vmem>>, vector<1x32xf32>
    %41 = vector.broadcast %40 : vector<1x32xf32> to vector<256x32xf32>
    %42 = arith.addf %39, %41 : vector<256x32xf32>
    %cst_22 = arith.constant dense<0.000000e+00> : vector<256xf32>
    %43 = vector.multi_reduction <add>, %42, %cst_22 [1] : vector<256x32xf32> to vector<256xf32>
    %44 = vector.shape_cast %43 : vector<256xf32> to vector<256x1xf32>
    %cst_23 = arith.constant 3.200000e+01 : f32
    %45 = vector.broadcast %cst_23 : f32 to vector<256x1xf32>
    %46 = arith.divf %44, %45 : vector<256x1xf32>
    %47 = vector.broadcast %46 : vector<256x1xf32> to vector<256x32xf32>
    %48 = arith.subf %42, %47 : vector<256x32xf32>
    %49 = arith.mulf %48, %48 : vector<256x32xf32>
    %cst_24 = arith.constant dense<0.000000e+00> : vector<256xf32>
    %50 = vector.multi_reduction <add>, %49, %cst_24 [1] : vector<256x32xf32> to vector<256xf32>
    %51 = vector.shape_cast %50 : vector<256xf32> to vector<256x1xf32>
    %cst_25 = arith.constant 3.200000e+01 : f32
    %52 = vector.broadcast %cst_25 : f32 to vector<256x1xf32>
    %53 = arith.divf %51, %52 : vector<256x1xf32>
    %cst_26 = arith.constant 9.99999974E-6 : f32
    %54 = vector.broadcast %cst_26 : f32 to vector<256x1xf32>
    %55 = arith.addf %53, %54 : vector<256x1xf32>
    %56 = math.rsqrt %55 : vector<256x1xf32>
    %57 = vector.broadcast %56 : vector<256x1xf32> to vector<256x32xf32>
    %58 = arith.mulf %48, %57 : vector<256x32xf32>
    %c0_27 = arith.constant 0 : index
    %c0_28 = arith.constant 0 : index
    %59 = vector.load %arg9[%c0_27, %c0_28] : memref<1x32xf32, #tpu.memory_space<vmem>>, vector<1x32xf32>
    %60 = vector.broadcast %59 : vector<1x32xf32> to vector<256x32xf32>
    %61 = arith.mulf %58, %60 : vector<256x32xf32>
    %c0_29 = arith.constant 0 : index
    %c0_30 = arith.constant 0 : index
    %62 = vector.load %arg10[%c0_29, %c0_30] : memref<1x32xf32, #tpu.memory_space<vmem>>, vector<1x32xf32>
    %63 = vector.broadcast %62 : vector<1x32xf32> to vector<256x32xf32>
    %64 = arith.addf %61, %63 : vector<256x32xf32>
    %65 = arith.addf %24, %64 : vector<256x32xf32>
    %c0_31 = arith.constant 0 : index
    %c0_32 = arith.constant 0 : index
    %66 = vector.load %arg11[%c0_31, %c0_32] : memref<256x32xf32, #tpu.memory_space<vmem>>, vector<256x32xf32>
    tpu.vector_store %arg11[%c0_31, %c0_32], %65 {strides = array<i32>} : memref<256x32xf32, #tpu.memory_space<vmem>>, vector<256x32xf32>,
    return
  }
  func.func @transform_0(%arg0: i32) -> (i32, i32) {
    %c0_i32 = arith.constant 0 : i32
    %c0_i32_0 = arith.constant 0 : i32
    return %arg0, %c0_i32 : i32, i32
  }
  func.func @transform_1(%arg0: i32) -> (i32, i32) {
    %c0_i32 = arith.constant 0 : i32
    %c0_i32_0 = arith.constant 0 : i32
    return %arg0, %c0_i32 : i32, i32
  }
  func.func @transform_2(%arg0: i32) -> (i32, i32) {
    %c0_i32 = arith.constant 0 : i32
    %c0_i32_0 = arith.constant 0 : i32
    %c0_i32_1 = arith.constant 0 : i32
    return %c0_i32, %c0_i32_0 : i32, i32
  }
  func.func @transform_3(%arg0: i32) -> (i32, i32) {
    %c0_i32 = arith.constant 0 : i32
    %c0_i32_0 = arith.constant 0 : i32
    %c0_i32_1 = arith.constant 0 : i32
    return %c0_i32, %c0_i32_0 : i32, i32
  }
  func.func @transform_4(%arg0: i32) -> (i32, i32) {
    %c0_i32 = arith.constant 0 : i32
    %c0_i32_0 = arith.constant 0 : i32
    %c0_i32_1 = arith.constant 0 : i32
    return %c0_i32, %c0_i32_0 : i32, i32
  }
  func.func @transform_5(%arg0: i32) -> (i32, i32) {
    %c0_i32 = arith.constant 0 : i32
    %c0_i32_0 = arith.constant 0 : i32
    %c0_i32_1 = arith.constant 0 : i32
    return %c0_i32, %c0_i32_0 : i32, i32
  }
  func.func @transform_6(%arg0: i32) -> (i32, i32) {
    %c0_i32 = arith.constant 0 : i32
    %c0_i32_0 = arith.constant 0 : i32
    %c0_i32_1 = arith.constant 0 : i32
    return %c0_i32, %c0_i32_0 : i32, i32
  }
  func.func @transform_7(%arg0: i32) -> (i32, i32) {
    %c0_i32 = arith.constant 0 : i32
    %c0_i32_0 = arith.constant 0 : i32
    %c0_i32_1 = arith.constant 0 : i32
    return %c0_i32, %c0_i32_0 : i32, i32
  }
  func.func @transform_8(%arg0: i32) -> (i32, i32) {
    %c0_i32 = arith.constant 0 : i32
    %c0_i32_0 = arith.constant 0 : i32
    %c0_i32_1 = arith.constant 0 : i32
    return %c0_i32, %c0_i32_0 : i32, i32
  }
  func.func @transform_9(%arg0: i32) -> (i32, i32) {
    %c0_i32 = arith.constant 0 : i32
    %c0_i32_0 = arith.constant 0 : i32
    %c0_i32_1 = arith.constant 0 : i32
    return %c0_i32, %c0_i32_0 : i32, i32
  }
  func.func @transform_10(%arg0: i32) -> (i32, i32) {
    %c0_i32 = arith.constant 0 : i32
    %c0_i32_0 = arith.constant 0 : i32
    return %arg0, %c0_i32 : i32, i32
  }
}

module attributes {stable_mosaic.version = 11 : i64} {
  func.func @_pw_conv_kernel(%arg0: i32, %arg1: memref<256x32xbf16, #tpu.memory_space<vmem>>, %arg2: memref<32x32xbf16, #tpu.memory_space<vmem>>, %arg3: memref<1x32xf32, #tpu.memory_space<vmem>>, %arg4: memref<1x32xf32, #tpu.memory_space<vmem>>, %arg5: memref<256x32xf32, #tpu.memory_space<vmem>>) attributes {dimension_semantics = [#tpu.dimension_semantics<parallel>], iteration_bounds = array<i64: 2>, scalar_prefetch = 0 : i64, scratch_operands = 0 : i64, tpu.core_type = #tpu.core_type<tc>, window_params = [{transform_indices = @transform_0, window_bounds = array<i64: 256, 32>}, {pipeline_mode = #tpu.pipeline_mode<synchronous>, transform_indices = @transform_1, window_bounds = array<i64: 32, 32>}, {pipeline_mode = #tpu.pipeline_mode<synchronous>, transform_indices = @transform_2, window_bounds = array<i64: 1, 32>}, {pipeline_mode = #tpu.pipeline_mode<synchronous>, transform_indices = @transform_3, window_bounds = array<i64: 1, 32>}, {transform_indices = @transform_4, window_bounds = array<i64: 256, 32>}]} {
    %cst = arith.constant 0.000000e+00 : f32
    %0 = vector.broadcast %cst : f32 to vector<256x32xf32>
    %c0 = arith.constant 0 : index
    %c0_0 = arith.constant 0 : index
    %1 = vector.load %arg1[%c0, %c0_0] : memref<256x32xbf16, #tpu.memory_space<vmem>>, vector<256x32xbf16>
    %c0_1 = arith.constant 0 : index
    %c0_2 = arith.constant 0 : index
    %2 = vector.load %arg2[%c0_1, %c0_2] : memref<32x32xbf16, #tpu.memory_space<vmem>>, vector<32x32xbf16>
    %cst_3 = arith.constant dense<0.000000e+00> : vector<256x32xf32>
    %3 = tpu.matmul %1, %2, %cst_3 {dimension_numbers = #tpu.dot_dimension_numbers<[1], [0], [0], [1], [0, 0, 1, 1], [], []>} : vector<256x32xbf16>, vector<32x32xbf16>, vector<256x32xf32> -> vector<256x32xf32>
    %4 = arith.addf %0, %3 : vector<256x32xf32>
    %c0_4 = arith.constant 0 : index
    %c0_5 = arith.constant 0 : index
    %5 = vector.load %arg3[%c0_4, %c0_5] : memref<1x32xf32, #tpu.memory_space<vmem>>, vector<1x32xf32>
    %6 = vector.broadcast %5 : vector<1x32xf32> to vector<256x32xf32>
    %7 = arith.mulf %4, %6 : vector<256x32xf32>
    %c0_6 = arith.constant 0 : index
    %c0_7 = arith.constant 0 : index
    %8 = vector.load %arg4[%c0_6, %c0_7] : memref<1x32xf32, #tpu.memory_space<vmem>>, vector<1x32xf32>
    %9 = vector.broadcast %8 : vector<1x32xf32> to vector<256x32xf32>
    %10 = arith.addf %7, %9 : vector<256x32xf32>
    %11 = arith.negf %10 : vector<256x32xf32>
    %12 = math.exp %11 : vector<256x32xf32>
    %cst_8 = arith.constant 1.000000e+00 : f32
    %13 = vector.broadcast %cst_8 : f32 to vector<256x32xf32>
    %14 = arith.addf %13, %12 : vector<256x32xf32>
    %15 = arith.divf %13, %14 : vector<256x32xf32>
    %16 = arith.mulf %10, %15 : vector<256x32xf32>
    %c0_9 = arith.constant 0 : index
    %c0_10 = arith.constant 0 : index
    %17 = vector.load %arg5[%c0_9, %c0_10] : memref<256x32xf32, #tpu.memory_space<vmem>>, vector<256x32xf32>
    tpu.vector_store %arg5[%c0_9, %c0_10], %16 {strides = array<i32>} : memref<256x32xf32, #tpu.memory_space<vmem>>, vector<256x32xf32>,
    return
  }
  func.func @transform_0(%arg0: i32) -> (i32, i32) {
    %c0_i32 = arith.constant 0 : i32
    %c0_i32_0 = arith.constant 0 : i32
    return %arg0, %c0_i32 : i32, i32
  }
  func.func @transform_1(%arg0: i32) -> (i32, i32) {
    %c0_i32 = arith.constant 0 : i32
    %c0_i32_0 = arith.constant 0 : i32
    %c0_i32_1 = arith.constant 0 : i32
    return %c0_i32, %c0_i32_0 : i32, i32
  }
  func.func @transform_2(%arg0: i32) -> (i32, i32) {
    %c0_i32 = arith.constant 0 : i32
    %c0_i32_0 = arith.constant 0 : i32
    %c0_i32_1 = arith.constant 0 : i32
    return %c0_i32, %c0_i32_0 : i32, i32
  }
  func.func @transform_3(%arg0: i32) -> (i32, i32) {
    %c0_i32 = arith.constant 0 : i32
    %c0_i32_0 = arith.constant 0 : i32
    %c0_i32_1 = arith.constant 0 : i32
    return %c0_i32, %c0_i32_0 : i32, i32
  }
  func.func @transform_4(%arg0: i32) -> (i32, i32) {
    %c0_i32 = arith.constant 0 : i32
    %c0_i32_0 = arith.constant 0 : i32
    return %arg0, %c0_i32 : i32, i32
  }
}

module attributes {stable_mosaic.version = 11 : i64} {
  func.func @_pw_conv_kernel(%arg0: i32, %arg1: memref<256x32xbf16, #tpu.memory_space<vmem>>, %arg2: memref<256x32xbf16, #tpu.memory_space<vmem>>, %arg3: memref<32x32xbf16, #tpu.memory_space<vmem>>, %arg4: memref<32x32xbf16, #tpu.memory_space<vmem>>, %arg5: memref<1x32xf32, #tpu.memory_space<vmem>>, %arg6: memref<1x32xf32, #tpu.memory_space<vmem>>, %arg7: memref<256x32xf32, #tpu.memory_space<vmem>>) attributes {dimension_semantics = [#tpu.dimension_semantics<parallel>], iteration_bounds = array<i64: 2>, scalar_prefetch = 0 : i64, scratch_operands = 0 : i64, tpu.core_type = #tpu.core_type<tc>, window_params = [{transform_indices = @transform_0, window_bounds = array<i64: 256, 32>}, {transform_indices = @transform_1, window_bounds = array<i64: 256, 32>}, {pipeline_mode = #tpu.pipeline_mode<synchronous>, transform_indices = @transform_2, window_bounds = array<i64: 32, 32>}, {pipeline_mode = #tpu.pipeline_mode<synchronous>, transform_indices = @transform_3, window_bounds = array<i64: 32, 32>}, {pipeline_mode = #tpu.pipeline_mode<synchronous>, transform_indices = @transform_4, window_bounds = array<i64: 1, 32>}, {pipeline_mode = #tpu.pipeline_mode<synchronous>, transform_indices = @transform_5, window_bounds = array<i64: 1, 32>}, {transform_indices = @transform_6, window_bounds = array<i64: 256, 32>}]} {
    %cst = arith.constant 0.000000e+00 : f32
    %0 = vector.broadcast %cst : f32 to vector<256x32xf32>
    %c0 = arith.constant 0 : index
    %c0_0 = arith.constant 0 : index
    %1 = vector.load %arg1[%c0, %c0_0] : memref<256x32xbf16, #tpu.memory_space<vmem>>, vector<256x32xbf16>
    %c0_1 = arith.constant 0 : index
    %c0_2 = arith.constant 0 : index
    %2 = vector.load %arg3[%c0_1, %c0_2] : memref<32x32xbf16, #tpu.memory_space<vmem>>, vector<32x32xbf16>
    %cst_3 = arith.constant dense<0.000000e+00> : vector<256x32xf32>
    %3 = tpu.matmul %1, %2, %cst_3 {dimension_numbers = #tpu.dot_dimension_numbers<[1], [0], [0], [1], [0, 0, 1, 1], [], []>} : vector<256x32xbf16>, vector<32x32xbf16>, vector<256x32xf32> -> vector<256x32xf32>
    %4 = arith.addf %0, %3 : vector<256x32xf32>
    %c0_4 = arith.constant 0 : index
    %c0_5 = arith.constant 0 : index
    %5 = vector.load %arg2[%c0_4, %c0_5] : memref<256x32xbf16, #tpu.memory_space<vmem>>, vector<256x32xbf16>
    %c0_6 = arith.constant 0 : index
    %c0_7 = arith.constant 0 : index
    %6 = vector.load %arg4[%c0_6, %c0_7] : memref<32x32xbf16, #tpu.memory_space<vmem>>, vector<32x32xbf16>
    %cst_8 = arith.constant dense<0.000000e+00> : vector<256x32xf32>
    %7 = tpu.matmul %5, %6, %cst_8 {dimension_numbers = #tpu.dot_dimension_numbers<[1], [0], [0], [1], [0, 0, 1, 1], [], []>} : vector<256x32xbf16>, vector<32x32xbf16>, vector<256x32xf32> -> vector<256x32xf32>
    %8 = arith.addf %4, %7 : vector<256x32xf32>
    %c0_9 = arith.constant 0 : index
    %c0_10 = arith.constant 0 : index
    %9 = vector.load %arg5[%c0_9, %c0_10] : memref<1x32xf32, #tpu.memory_space<vmem>>, vector<1x32xf32>
    %10 = vector.broadcast %9 : vector<1x32xf32> to vector<256x32xf32>
    %11 = arith.mulf %8, %10 : vector<256x32xf32>
    %c0_11 = arith.constant 0 : index
    %c0_12 = arith.constant 0 : index
    %12 = vector.load %arg6[%c0_11, %c0_12] : memref<1x32xf32, #tpu.memory_space<vmem>>, vector<1x32xf32>
    %13 = vector.broadcast %12 : vector<1x32xf32> to vector<256x32xf32>
    %14 = arith.addf %11, %13 : vector<256x32xf32>
    %15 = arith.negf %14 : vector<256x32xf32>
    %16 = math.exp %15 : vector<256x32xf32>
    %cst_13 = arith.constant 1.000000e+00 : f32
    %17 = vector.broadcast %cst_13 : f32 to vector<256x32xf32>
    %18 = arith.addf %17, %16 : vector<256x32xf32>
    %19 = arith.divf %17, %18 : vector<256x32xf32>
    %20 = arith.mulf %14, %19 : vector<256x32xf32>
    %c0_14 = arith.constant 0 : index
    %c0_15 = arith.constant 0 : index
    %21 = vector.load %arg7[%c0_14, %c0_15] : memref<256x32xf32, #tpu.memory_space<vmem>>, vector<256x32xf32>
    tpu.vector_store %arg7[%c0_14, %c0_15], %20 {strides = array<i32>} : memref<256x32xf32, #tpu.memory_space<vmem>>, vector<256x32xf32>,
    return
  }
  func.func @transform_0(%arg0: i32) -> (i32, i32) {
    %c0_i32 = arith.constant 0 : i32
    %c0_i32_0 = arith.constant 0 : i32
    return %arg0, %c0_i32 : i32, i32
  }
  func.func @transform_1(%arg0: i32) -> (i32, i32) {
    %c0_i32 = arith.constant 0 : i32
    %c0_i32_0 = arith.constant 0 : i32
    return %arg0, %c0_i32 : i32, i32
  }
  func.func @transform_2(%arg0: i32) -> (i32, i32) {
    %c0_i32 = arith.constant 0 : i32
    %c0_i32_0 = arith.constant 0 : i32
    %c0_i32_1 = arith.constant 0 : i32
    return %c0_i32, %c0_i32_0 : i32, i32
  }
  func.func @transform_3(%arg0: i32) -> (i32, i32) {
    %c0_i32 = arith.constant 0 : i32
    %c0_i32_0 = arith.constant 0 : i32
    %c0_i32_1 = arith.constant 0 : i32
    return %c0_i32, %c0_i32_0 : i32, i32
  }
  func.func @transform_4(%arg0: i32) -> (i32, i32) {
    %c0_i32 = arith.constant 0 : i32
    %c0_i32_0 = arith.constant 0 : i32
    %c0_i32_1 = arith.constant 0 : i32
    return %c0_i32, %c0_i32_0 : i32, i32
  }
  func.func @transform_5(%arg0: i32) -> (i32, i32) {
    %c0_i32 = arith.constant 0 : i32
    %c0_i32_0 = arith.constant 0 : i32
    %c0_i32_1 = arith.constant 0 : i32
    return %c0_i32, %c0_i32_0 : i32, i32
  }
  func.func @transform_6(%arg0: i32) -> (i32, i32) {
    %c0_i32 = arith.constant 0 : i32
    %c0_i32_0 = arith.constant 0 : i32
    return %arg0, %c0_i32 : i32, i32
  }
}

</mosaic_0001>

<llo_original>
// kernel: forward.5
$region0: #{forward.5}
  #allocation0 [shape = 'u32[]', space=smem, size = 0x4, offset = 0x4, fixed_abs, tag = 'smem constant byte address 0x4 - core index']
  #allocation1 [shape = 'u32[144,128]{1,0:T(1,128)}', space=vmem, size = 0x12000, scoped, tag = 'internal scratch']
  %s0 = inlined_call_operand.vmem [shape: bf16[512,16], index: 0, kind: input, shape index: {}]
  %s1 = inlined_call_operand.vmem [shape: bf16[16,32], index: 1, kind: input, shape index: {}]
  %s2 = inlined_call_operand.vmem [shape: f32[1,32], index: 2, kind: input, shape index: {}]
  %s3 = inlined_call_operand.vmem [shape: f32[1,32], index: 3, kind: input, shape index: {}]
  %s4 = inlined_call_operand.vmem [shape: f32[512,32], index: 4, kind: output, shape index: {}]
  %s5 = sld [smem:[#allocation0]]
  $region49: #{forward.5} parent=0
    _
  %s7 = ssub.s32 1, %s5
  %s8 = scalar_select 0, %s7, %s5
  loop: start=0, step=1, limit=4
  $region2: #{forward.5} parent=0 // loop_pre_header
    _
  $region3: #{forward.5} parent=0 // loop_header
    %s10 = sphi 0, %s14
    %p11 = scmp.ge.s32.totalorder %s10, 4
    %s20 = sphi 0, %s22
    %s23 = sphi 0, %s20
    %s24 = sphi 0, %s23
    %s40 = sphi 0, %s24
    %s44 = sphi 0, %s44
    %s46 = sphi 0, %s44
    %s47 = sphi 0, %s46
    %s61 = sphi 0, %s47
    %s65 = sphi 0, %s65
    %s67 = sphi 0, %s65
    %s68 = sphi 0, %s67
    %s82 = sphi 0, %s68
    %s86 = sphi 0, %s86
    %s88 = sphi 0, %s86
    %s89 = sphi 0, %s88
    %s103 = sphi 0, %s89
    %s109 = sphi 0, %s111
    %s112 = sphi 0, %s109
    %s113 = sphi 0, %s112
    %s129 = sphi 0, %s113
  $region4: #{forward.5} parent=0 // loop_header_branch
    %13 = sbr.rel (%p11) target = $region8
  $region5: #{forward.5} parent=0 // loop_body
    %s15 = ssub.s32 %s10, 1
    %s16 = ssub.s32 %s10, 2
    %s17 = sadd.s32 %s10, 1
    %s18 = ssub.s32 %s10, %s17
    %p19 = scmp.eq.s32.totalorder %s18, 0
    %s21 = sadd.s32 %s20, 1
    %s22 = scalar_select %p19, %s20, %s21
    %p25 = pneg %p19
    %p26 = scmp.eq.s32.totalorder %s10, 1
    %p27 = por %p25, %p26
    %p28 = scmp.ne.s32.totalorder %s20, %s23
    %p29 = scmp.eq.s32.totalorder %s10, 0
    %p30 = por %p28, %p29
    %p31 = scmp.ne.s32.totalorder %s20, %s23
    %p32 = scmp.eq.s32.totalorder %s15, 1
    %p33 = por %p31, %p32
    %p34 = scmp.ne.s32.totalorder %s23, %s24
    %p35 = scmp.eq.s32.totalorder %s15, 0
    %p36 = por %p34, %p35
    %p37 = scmp.ne.s32.totalorder %s23, %s24
    %p38 = scmp.eq.s32.totalorder %s16, 1
    %p39 = por %p37, %p38
    %p41 = scmp.ne.s32.totalorder %s24, %s40
    %p42 = scmp.eq.s32.totalorder %s16, 0
    %p43 = por %p41, %p42
    %s45 = sadd.s32 %s44, 1
    %p48 = scmp.eq.s32.totalorder %s10, 1
    %p49 = scmp.ne.s32.totalorder %s44, %s46
    %p50 = scmp.eq.s32.totalorder %s10, 0
    %p51 = por %p49, %p50
    %p52 = scmp.ne.s32.totalorder %s44, %s46
    %p53 = scmp.eq.s32.totalorder %s15, 1
    %p54 = por %p52, %p53
    %p55 = scmp.ne.s32.totalorder %s46, %s47
    %p56 = scmp.eq.s32.totalorder %s15, 0
    %p57 = por %p55, %p56
    %p58 = scmp.ne.s32.totalorder %s46, %s47
    %p59 = scmp.eq.s32.totalorder %s16, 1
    %p60 = por %p58, %p59
    %p62 = scmp.ne.s32.totalorder %s47, %s61
    %p63 = scmp.eq.s32.totalorder %s16, 0
    %p64 = por %p62, %p63
    %s66 = sadd.s32 %s65, 1
    %p69 = scmp.eq.s32.totalorder %s10, 1
    %p70 = scmp.ne.s32.totalorder %s65, %s67
    %p71 = scmp.eq.s32.totalorder %s10, 0
    %p72 = por %p70, %p71
    %p73 = scmp.ne.s32.totalorder %s65, %s67
    %p74 = scmp.eq.s32.totalorder %s15, 1
    %p75 = por %p73, %p74
    %p76 = scmp.ne.s32.totalorder %s67, %s68
    %p77 = scmp.eq.s32.totalorder %s15, 0
    %p78 = por %p76, %p77
    %p79 = scmp.ne.s32.totalorder %s67, %s68
    %p80 = scmp.eq.s32.totalorder %s16, 1
    %p81 = por %p79, %p80
    %p83 = scmp.ne.s32.totalorder %s68, %s82
    %p84 = scmp.eq.s32.totalorder %s16, 0
    %p85 = por %p83, %p84
    %s87 = sadd.s32 %s86, 1
    %p90 = scmp.eq.s32.totalorder %s10, 1
    %p91 = scmp.ne.s32.totalorder %s86, %s88
    %p92 = scmp.eq.s32.totalorder %s10, 0
    %p93 = por %p91, %p92
    %p94 = scmp.ne.s32.totalorder %s86, %s88
    %p95 = scmp.eq.s32.totalorder %s15, 1
    %p96 = por %p94, %p95
    %p97 = scmp.ne.s32.totalorder %s88, %s89
    %p98 = scmp.eq.s32.totalorder %s15, 0
    %p99 = por %p97, %p98
    %p100 = scmp.ne.s32.totalorder %s88, %s89
    %p101 = scmp.eq.s32.totalorder %s16, 1
    %p102 = por %p100, %p101
    %p104 = scmp.ne.s32.totalorder %s89, %s103
    %p105 = scmp.eq.s32.totalorder %s16, 0
    %p106 = por %p104, %p105
    %s107 = ssub.s32 %s10, %s17
    %p108 = scmp.eq.s32.totalorder %s107, 0
    %s110 = sadd.s32 %s109, 1
    %s111 = scalar_select %p108, %s109, %s110
    %p114 = pneg %p108
    %p115 = scmp.eq.s32.totalorder %s10, 1
    %p116 = por %p114, %p115
    %p117 = scmp.ne.s32.totalorder %s109, %s112
    %p118 = scmp.eq.s32.totalorder %s10, 0
    %p119 = por %p117, %p118
    %p120 = scmp.ne.s32.totalorder %s109, %s112
    %p121 = scmp.eq.s32.totalorder %s15, 1
    %p122 = por %p120, %p121
    %p123 = scmp.ne.s32.totalorder %s112, %s113
    %p124 = scmp.eq.s32.totalorder %s15, 0
    %p125 = por %p123, %p124
    %p126 = scmp.ne.s32.totalorder %s112, %s113
    %p127 = scmp.eq.s32.totalorder %s16, 1
    %p128 = por %p126, %p127
    %p130 = scmp.ne.s32.totalorder %s113, %s129
    %p131 = scmp.eq.s32.totalorder %s16, 0
    %p132 = por %p130, %p131
    %p133 = scmp.le.s32.totalorder 1, %s10
    %p134 = scmp.lt.s32.totalorder %s10, 3
    %p135 = pnand %p133, %p134
    %p136 = pneg %p135
    // Predicated region
    $region9: #{forward.5} parent=5 // pred_check
      _
    $region10: #{forward.5} parent=5 // pred_check_branch
      %138 = sbr.rel (%p135) target = $region12
    $region11: #{forward.5} parent=5 // pred_region
      %s139 = ssub.s32 %s10, 1
      // Predicated region
      $region13: #{forward.5} parent=11 // pred_check
        %p140 = pneg %p57
      $region14: #{forward.5} parent=11 // pred_check_branch
        %142 = sbr.rel (%p140) target = $region16
      $region15: #{forward.5} parent=11 // pred_region
        _
      $region16: #{forward.5} parent=11 // pred_fallthru
        _
      // Predicated region
      $region17: #{forward.5} parent=11 // pred_check
        %p143 = pneg %p78
      $region18: #{forward.5} parent=11 // pred_check_branch
        %145 = sbr.rel (%p143) target = $region20
      $region19: #{forward.5} parent=11 // pred_region
        _
      $region20: #{forward.5} parent=11 // pred_fallthru
        _
      // Predicated region
      $region21: #{forward.5} parent=11 // pred_check
        %p146 = pneg %p99
      $region22: #{forward.5} parent=11 // pred_check_branch
        %148 = sbr.rel (%p146) target = $region24
      $region23: #{forward.5} parent=11 // pred_region
        _
      $region24: #{forward.5} parent=11 // pred_fallthru
        _
    $region12: #{forward.5} parent=5 // pred_fallthru
      _
    %p149 = scmp.lt.s32.totalorder %s10, 2
    // Predicated region
    $region25: #{forward.5} parent=5 // pred_check
      %p150 = pneg %p149
    $region26: #{forward.5} parent=5 // pred_check_branch
      %152 = sbr.rel (%p150) target = $region28
    $region27: #{forward.5} parent=5 // pred_region
      // Predicated region
      $region29: #{forward.5} parent=27 // pred_check
        %p153 = pneg %p30
      $region30: #{forward.5} parent=27 // pred_check_branch
        %155 = sbr.rel (%p153) target = $region32
      $region31: #{forward.5} parent=27 // pred_region
        %s156 = smul.u32 32, %s10
        %p157 = scmp.lt.s32.totalorder %s156, 63
        %s158 = scalar_select %p157, %s156, 63
        %s159 = smul.addr %s158, 4
        %s160 = scalar_lea.vmem %s0, %s159
        %s161 = smul.u32 32, %s10
      $region32: #{forward.5} parent=27 // pred_fallthru
        _
    $region28: #{forward.5} parent=5 // pred_fallthru
      _
    %p162 = scmp.le.s32.totalorder 1, %s10
    %p163 = scmp.lt.s32.totalorder %s10, 3
    %p164 = pnand %p162, %p163
    %p165 = pneg %p164
    // Predicated region
    $region33: #{forward.5} parent=5 // pred_check
      _
    $region34: #{forward.5} parent=5 // pred_check_branch
      %167 = sbr.rel (%p164) target = $region36
    $region35: #{forward.5} parent=5 // pred_region
      %s168 = ssub.s32 %s10, 1
      %s169 = smul.u32 32, %s15
      %p170 = scmp.lt.s32.totalorder %s169, 63
      %s171 = scalar_select %p170, %s169, 63
      %s172 = smul.addr %s171, 4
      %s173 = scalar_lea.vmem %s0, %s172
      %p174 = pneg %p36
      %p175 = pneg %p33
      %p176 = pneg %p57
      %p177 = pneg %p54
      %p178 = pneg %p78
      %p179 = pneg %p75
      %p180 = pneg %p99
      %p181 = pneg %p96
      %p182 = pneg %p125
      %p183 = pneg %p122
      %s184 = smul.u32 32, %s15
      %p185 = scmp.lt.s32.totalorder %s184, 63
      %s186 = scalar_select %p185, %s184, 63
      %s187 = smul.addr %s186, 8
      %s188 = scalar_lea.vmem %s4, %s187
      %s189 = smul.u32 32, %s15
      %p190 = scmp.lt.s32.totalorder %s189, 63
      %s191 = scalar_select %p190, %s189, 63
      %s192 = smul.addr %s191, 4
      %s193 = scalar_lea.vmem %s0, %s192
      %s194 = smul.u32 32, %s15
      %s195 = smul.u32 32, %s15
      %p196 = scmp.lt.s32.totalorder %s195, 63
      %s197 = scalar_select %p196, %s195, 63
      %s198 = smul.addr %s197, 8
      %s199 = scalar_lea.vmem %s4, %s198
      %s200 = smul.u32 32, %s15
      %v202 = vld [vmem:[%s193] sm:$0xf]
      %v203 = vld [vmem:[%s193 + $0x4] sm:$0xf]
      %v204 = vld [vmem:[%s193 + $0x8] sm:$0xf]
      %v205 = vld [vmem:[%s193 + $0xc] sm:$0xf]
      %v206 = vld [vmem:[%s193 + $0x10] sm:$0xf]
      %v207 = vld [vmem:[%s193 + $0x14] sm:$0xf]
      %v208 = vld [vmem:[%s193 + $0x18] sm:$0xf]
      %v209 = vld [vmem:[%s193 + $0x1c] sm:$0xf]
      %v210 = vld [vmem:[%s193 + $0x20] sm:$0xf]
      %v211 = vld [vmem:[%s193 + $0x24] sm:$0xf]
      %v212 = vld [vmem:[%s193 + $0x28] sm:$0xf]
      %v213 = vld [vmem:[%s193 + $0x2c] sm:$0xf]
      %v214 = vld [vmem:[%s193 + $0x30] sm:$0xf]
      %v215 = vld [vmem:[%s193 + $0x34] sm:$0xf]
      %v216 = vld [vmem:[%s193 + $0x38] sm:$0xf]
      %v217 = vld [vmem:[%s193 + $0x3c] sm:$0xf]
      %v218 = vld [vmem:[%s193 + $0x40] sm:$0xf]
      %v219 = vld [vmem:[%s193 + $0x44] sm:$0xf]
      %v220 = vld [vmem:[%s193 + $0x48] sm:$0xf]
      %v221 = vld [vmem:[%s193 + $0x4c] sm:$0xf]
      %v222 = vld [vmem:[%s193 + $0x50] sm:$0xf]
      %v223 = vld [vmem:[%s193 + $0x54] sm:$0xf]
      %v224 = vld [vmem:[%s193 + $0x58] sm:$0xf]
      %v225 = vld [vmem:[%s193 + $0x5c] sm:$0xf]
      %v226 = vld [vmem:[%s193 + $0x60] sm:$0xf]
      %v227 = vld [vmem:[%s193 + $0x64] sm:$0xf]
      %v228 = vld [vmem:[%s193 + $0x68] sm:$0xf]
      %v229 = vld [vmem:[%s193 + $0x6c] sm:$0xf]
      %v230 = vld [vmem:[%s193 + $0x70] sm:$0xf]
      %v231 = vld [vmem:[%s193 + $0x74] sm:$0xf]
      %v232 = vld [vmem:[%s193 + $0x78] sm:$0xf]
      %v233 = vld [vmem:[%s193 + $0x7c] sm:$0xf]
      %v234 = vld [vmem:[%s1] sm:$0xf]
      %v235 = vld [vmem:[%s1 + $0x4] sm:$0xf]
      %v268 = vunpack.c.l.b16 %v202
      %v269 = vunpack.c.l.b16 %v203
      %v270 = vunpack.c.l.b16 %v204
      %v271 = vunpack.c.l.b16 %v205
      %v272 = vunpack.c.l.b16 %v206
      %v273 = vunpack.c.l.b16 %v207
      %v274 = vunpack.c.l.b16 %v208
      %v275 = vunpack.c.l.b16 %v209
      %v276 = vunpack.c.l.b16 %v210
      %v277 = vunpack.c.l.b16 %v211
      %v278 = vunpack.c.l.b16 %v212
      %v279 = vunpack.c.l.b16 %v213
      %v280 = vunpack.c.l.b16 %v214
      %v281 = vunpack.c.l.b16 %v215
      %v282 = vunpack.c.l.b16 %v216
      %v283 = vunpack.c.l.b16 %v217
      %v284 = vunpack.c.l.b16 %v218
      %v285 = vunpack.c.l.b16 %v219
      %v286 = vunpack.c.l.b16 %v220
      %v287 = vunpack.c.l.b16 %v221
      %v288 = vunpack.c.l.b16 %v222
      %v289 = vunpack.c.l.b16 %v223
      %v290 = vunpack.c.l.b16 %v224
      %v291 = vunpack.c.l.b16 %v225
      %v292 = vunpack.c.l.b16 %v226
      %v293 = vunpack.c.l.b16 %v227
      %v294 = vunpack.c.l.b16 %v228
      %v295 = vunpack.c.l.b16 %v229
      %v296 = vunpack.c.l.b16 %v230
      %v297 = vunpack.c.l.b16 %v231
      %v298 = vunpack.c.l.b16 %v232
      %v299 = vunpack.c.l.b16 %v233
      %v300 = vpack.c.b16 %v269, %v268
      %v301 = vpack.c.b16 %v271, %v270
      %v302 = vpack.c.b16 %v273, %v272
      %v303 = vpack.c.b16 %v275, %v274
      %v304 = vpack.c.b16 %v277, %v276
      %v305 = vpack.c.b16 %v279, %v278
      %v306 = vpack.c.b16 %v281, %v280
      %v307 = vpack.c.b16 %v283, %v282
      %v308 = vpack.c.b16 %v285, %v284
      %v309 = vpack.c.b16 %v287, %v286
      %v310 = vpack.c.b16 %v289, %v288
      %v311 = vpack.c.b16 %v291, %v290
      %v312 = vpack.c.b16 %v293, %v292
      %v313 = vpack.c.b16 %v295, %v294
      %v314 = vpack.c.b16 %v297, %v296
      %v315 = vpack.c.b16 %v299, %v298
      %v318 = vunpack.c.l.b16 %v234
      %v319 = vunpack.c.l.b16 %v235
      %v320 = vpack.c.b16 %v319, %v318
      %vm322 = vcmask 130048
      %v324 = vsel %vm322, %v300, 0
      %v327 = vsel %vm322, %v301, 0
      %v330 = vsel %vm322, %v302, 0
      %v333 = vsel %vm322, %v303, 0
      %v336 = vsel %vm322, %v304, 0
      %v339 = vsel %vm322, %v305, 0
      %v342 = vsel %vm322, %v306, 0
      %v345 = vsel %vm322, %v307, 0
      %v348 = vsel %vm322, %v308, 0
      %v351 = vsel %vm322, %v309, 0
      %v354 = vsel %vm322, %v310, 0
      %v357 = vsel %vm322, %v311, 0
      %v360 = vsel %vm322, %v312, 0
      %v363 = vsel %vm322, %v313, 0
      %v366 = vsel %vm322, %v314, 0
      %v369 = vsel %vm322, %v315, 0
      %371 = vmatprep.subr.bf16.mxu0 0
      %372 = vmatpush1.bf16.msra.mxu0 %v320
      %373 = vmatprep.subr.bf16.mxu0 0
      %374 = vmatpush1.bf16.msra.mxu0 0
      %375 = vmatprep.subr.bf16.mxu0 0
      %376 = vmatpush1.bf16.msra.mxu0 0
      %377 = vmatprep.subr.bf16.mxu0 0
      %378 = vmatpush1.bf16.msra.mxu0 0
      %379 = vmatprep.subr.bf16.mxu0 0
      %380 = vmatpush1.bf16.msra.mxu0 0
      %381 = vmatprep.subr.bf16.mxu0 0
      %382 = vmatpush1.bf16.msra.mxu0 0
      %383 = vmatprep.subr.bf16.mxu0 0
      %384 = vmatpush1.bf16.msra.mxu0 0
      %385 = vmatprep.subr.bf16.mxu0 0
      %386 = vmatpush1.bf16.msra.mxu0 0
      %387 = vmatprep.subr.bf16.mxu0 0
      %388 = vmatpush1.bf16.msra.mxu0 0
      %389 = vmatprep.subr.bf16.mxu0 0
      %390 = vmatpush1.bf16.msra.mxu0 0
      %391 = vmatprep.subr.bf16.mxu0 0
      %392 = vmatpush1.bf16.msra.mxu0 0
      %393 = vmatprep.subr.bf16.mxu0 0
      %394 = vmatpush1.bf16.msra.mxu0 0
      %395 = vmatprep.subr.bf16.mxu0 0
      %396 = vmatpush1.bf16.msra.mxu0 0
      %397 = vmatprep.subr.bf16.mxu0 0
      %398 = vmatpush1.bf16.msra.mxu0 0
      %399 = vmatprep.subr.bf16.mxu0 0
      %400 = vmatpush1.bf16.msra.mxu0 0
      %401 = vmatprep.subr.bf16.mxu0 0
      %402 = vmatpush1.bf16.msra.mxu0 0
      %403 = vmatprep.mubr.bf16.mxu0 0
      %404 = vmatmul.mubr.bf16.gmra.mrb[0].mxu0 %v324
      %v405 = vpop.f32.mrb[0].mxu0
      %v406 = vadd.f32 0.0, %v405
      %v407 = vpop.f32.mrb[0].mxu0
      %v408 = vpop.f32.mrb[0].mxu0
      %v409 = vadd.f32 0.0, %v408
      %v410 = vpop.f32.mrb[0].mxu0
      %411 = vmatprep.mubr.bf16.mxu0 0
      %412 = vmatmul.mubr.bf16.gmra.mrb[0].mxu0 %v327
      %v413 = vpop.f32.mrb[0].mxu0
      %v414 = vadd.f32 0.0, %v413
      %v415 = vpop.f32.mrb[0].mxu0
      %v416 = vpop.f32.mrb[0].mxu0
      %v417 = vadd.f32 0.0, %v416
      %v418 = vpop.f32.mrb[0].mxu0
      %419 = vmatprep.mubr.bf16.mxu0 0
      %420 = vmatmul.mubr.bf16.gmra.mrb[0].mxu0 %v330
      %v421 = vpop.f32.mrb[0].mxu0
      %v422 = vadd.f32 0.0, %v421
      %v423 = vpop.f32.mrb[0].mxu0
      %v424 = vpop.f32.mrb[0].mxu0
      %v425 = vadd.f32 0.0, %v424
      %v426 = vpop.f32.mrb[0].mxu0
      %427 = vmatprep.mubr.bf16.mxu0 0
      %428 = vmatmul.mubr.bf16.gmra.mrb[0].mxu0 %v333
      %v429 = vpop.f32.mrb[0].mxu0
      %v430 = vadd.f32 0.0, %v429
      %v431 = vpop.f32.mrb[0].mxu0
      %v432 = vpop.f32.mrb[0].mxu0
      %v433 = vadd.f32 0.0, %v432
      %v434 = vpop.f32.mrb[0].mxu0
      %435 = vmatprep.mubr.bf16.mxu0 0
      %436 = vmatmul.mubr.bf16.gmra.mrb[0].mxu0 %v336
      %v437 = vpop.f32.mrb[0].mxu0
      %v438 = vadd.f32 0.0, %v437
      %v439 = vpop.f32.mrb[0].mxu0
      %v440 = vpop.f32.mrb[0].mxu0
      %v441 = vadd.f32 0.0, %v440
      %v442 = vpop.f32.mrb[0].mxu0
      %443 = vmatprep.mubr.bf16.mxu0 0
      %444 = vmatmul.mubr.bf16.gmra.mrb[0].mxu0 %v339
      %v445 = vpop.f32.mrb[0].mxu0
      %v446 = vadd.f32 0.0, %v445
      %v447 = vpop.f32.mrb[0].mxu0
      %v448 = vpop.f32.mrb[0].mxu0
      %v449 = vadd.f32 0.0, %v448
      %v450 = vpop.f32.mrb[0].mxu0
      %451 = vmatprep.mubr.bf16.mxu0 0
      %452 = vmatmul.mubr.bf16.gmra.mrb[0].mxu0 %v342
      %v453 = vpop.f32.mrb[0].mxu0
      %v454 = vadd.f32 0.0, %v453
      %v455 = vpop.f32.mrb[0].mxu0
      %v456 = vpop.f32.mrb[0].mxu0
      %v457 = vadd.f32 0.0, %v456
      %v458 = vpop.f32.mrb[0].mxu0
      %459 = vmatprep.mubr.bf16.mxu0 0
      %460 = vmatmul.mubr.bf16.gmra.mrb[0].mxu0 %v345
      %v461 = vpop.f32.mrb[0].mxu0
      %v462 = vadd.f32 0.0, %v461
      %v463 = vpop.f32.mrb[0].mxu0
      %v464 = vpop.f32.mrb[0].mxu0
      %v465 = vadd.f32 0.0, %v464
      %v466 = vpop.f32.mrb[0].mxu0
      %467 = vmatprep.mubr.bf16.mxu0 0
      %468 = vmatmul.mubr.bf16.gmra.mrb[0].mxu0 %v348
      %v469 = vpop.f32.mrb[0].mxu0
      %v470 = vadd.f32 0.0, %v469
      %v471 = vpop.f32.mrb[0].mxu0
      %v472 = vpop.f32.mrb[0].mxu0
      %v473 = vadd.f32 0.0, %v472
      %v474 = vpop.f32.mrb[0].mxu0
      %475 = vmatprep.mubr.bf16.mxu0 0
      %476 = vmatmul.mubr.bf16.gmra.mrb[0].mxu0 %v351
      %v477 = vpop.f32.mrb[0].mxu0
      %v478 = vadd.f32 0.0, %v477
      %v479 = vpop.f32.mrb[0].mxu0
      %v480 = vpop.f32.mrb[0].mxu0
      %v481 = vadd.f32 0.0, %v480
      %v482 = vpop.f32.mrb[0].mxu0
      %483 = vmatprep.mubr.bf16.mxu0 0
      %484 = vmatmul.mubr.bf16.gmra.mrb[0].mxu0 %v354
      %v485 = vpop.f32.mrb[0].mxu0
      %v486 = vadd.f32 0.0, %v485
      %v487 = vpop.f32.mrb[0].mxu0
      %v488 = vpop.f32.mrb[0].mxu0
      %v489 = vadd.f32 0.0, %v488
      %v490 = vpop.f32.mrb[0].mxu0
      %491 = vmatprep.mubr.bf16.mxu0 0
      %492 = vmatmul.mubr.bf16.gmra.mrb[0].mxu0 %v357
      %v493 = vpop.f32.mrb[0].mxu0
      %v494 = vadd.f32 0.0, %v493
      %v495 = vpop.f32.mrb[0].mxu0
      %v496 = vpop.f32.mrb[0].mxu0
      %v497 = vadd.f32 0.0, %v496
      %v498 = vpop.f32.mrb[0].mxu0
      %499 = vmatprep.mubr.bf16.mxu0 0
      %500 = vmatmul.mubr.bf16.gmra.mrb[0].mxu0 %v360
      %v501 = vpop.f32.mrb[0].mxu0
      %v502 = vadd.f32 0.0, %v501
      %v503 = vpop.f32.mrb[0].mxu0
      %v504 = vpop.f32.mrb[0].mxu0
      %v505 = vadd.f32 0.0, %v504
      %v506 = vpop.f32.mrb[0].mxu0
      %507 = vmatprep.mubr.bf16.mxu0 0
      %508 = vmatmul.mubr.bf16.gmra.mrb[0].mxu0 %v363
      %v509 = vpop.f32.mrb[0].mxu0
      %v510 = vadd.f32 0.0, %v509
      %v511 = vpop.f32.mrb[0].mxu0
      %v512 = vpop.f32.mrb[0].mxu0
      %v513 = vadd.f32 0.0, %v512
      %v514 = vpop.f32.mrb[0].mxu0
      %515 = vmatprep.mubr.bf16.mxu0 0
      %516 = vmatmul.mubr.bf16.gmra.mrb[0].mxu0 %v366
      %v517 = vpop.f32.mrb[0].mxu0
      %v518 = vadd.f32 0.0, %v517
      %v519 = vpop.f32.mrb[0].mxu0
      %v520 = vpop.f32.mrb[0].mxu0
      %v521 = vadd.f32 0.0, %v520
      %v522 = vpop.f32.mrb[0].mxu0
      %523 = vmatprep.mubr.bf16.mxu0 0
      %524 = vmatmul.mubr.bf16.gmra.mrb[0].mxu0 %v369
      %v525 = vpop.f32.mrb[0].mxu0
      %v526 = vadd.f32 0.0, %v525
      %v527 = vpop.f32.mrb[0].mxu0
      %v528 = vpop.f32.mrb[0].mxu0
      %v529 = vadd.f32 0.0, %v528
      %v530 = vpop.f32.mrb[0].mxu0
      %531 = vdwg.mxu0
      %v532 = vld [vmem:[%s2] sm:$0x1]
      %v534 = vlaneseq
      %v535 = vshrl.u32 %v534, 7
      %v536 = vsub.s32 0, %v535
      %v537 = vrot.slane %v532, %v536
      %v539 = vmul.f32 %v406, %v537
      %v540 = vmul.f32 %v409, %v537
      %v541 = vmul.f32 %v414, %v537
      %v542 = vmul.f32 %v417, %v537
      %v543 = vmul.f32 %v422, %v537
      %v544 = vmul.f32 %v425, %v537
      %v545 = vmul.f32 %v430, %v537
      %v546 = vmul.f32 %v433, %v537
      %v547 = vmul.f32 %v438, %v537
      %v548 = vmul.f32 %v441, %v537
      %v549 = vmul.f32 %v446, %v537
      %v550 = vmul.f32 %v449, %v537
      %v551 = vmul.f32 %v454, %v537
      %v552 = vmul.f32 %v457, %v537
      %v553 = vmul.f32 %v462, %v537
      %v554 = vmul.f32 %v465, %v537
      %v555 = vmul.f32 %v470, %v537
      %v556 = vmul.f32 %v473, %v537
      %v557 = vmul.f32 %v478, %v537
      %v558 = vmul.f32 %v481, %v537
      %v559 = vmul.f32 %v486, %v537
      %v560 = vmul.f32 %v489, %v537
      %v561 = vmul.f32 %v494, %v537
      %v562 = vmul.f32 %v497, %v537
      %v563 = vmul.f32 %v502, %v537
      %v564 = vmul.f32 %v505, %v537
      %v565 = vmul.f32 %v510, %v537
      %v566 = vmul.f32 %v513, %v537
      %v567 = vmul.f32 %v518, %v537
      %v568 = vmul.f32 %v521, %v537
      %v569 = vmul.f32 %v526, %v537
      %v570 = vmul.f32 %v529, %v537
      %v571 = vld [vmem:[%s3] sm:$0x1]
      %v573 = vlaneseq
      %v574 = vshrl.u32 %v573, 7
      %v575 = vsub.s32 0, %v574
      %v576 = vrot.slane %v571, %v575
      %v578 = vadd.f32 %v539, %v576
      %v579 = vadd.f32 %v540, %v576
      %v580 = vadd.f32 %v541, %v576
      %v581 = vadd.f32 %v542, %v576
      %v582 = vadd.f32 %v543, %v576
      %v583 = vadd.f32 %v544, %v576
      %v584 = vadd.f32 %v545, %v576
      %v585 = vadd.f32 %v546, %v576
      %v586 = vadd.f32 %v547, %v576
      %v587 = vadd.f32 %v548, %v576
      %v588 = vadd.f32 %v549, %v576
      %v589 = vadd.f32 %v550, %v576
      %v590 = vadd.f32 %v551, %v576
      %v591 = vadd.f32 %v552, %v576
      %v592 = vadd.f32 %v553, %v576
      %v593 = vadd.f32 %v554, %v576
      %v594 = vadd.f32 %v555, %v576
      %v595 = vadd.f32 %v556, %v576
      %v596 = vadd.f32 %v557, %v576
      %v597 = vadd.f32 %v558, %v576
      %v598 = vadd.f32 %v559, %v576
      %v599 = vadd.f32 %v560, %v576
      %v600 = vadd.f32 %v561, %v576
      %v601 = vadd.f32 %v562, %v576
      %v602 = vadd.f32 %v563, %v576
      %v603 = vadd.f32 %v564, %v576
      %v604 = vadd.f32 %v565, %v576
      %v605 = vadd.f32 %v566, %v576
      %v606 = vadd.f32 %v567, %v576
      %v607 = vadd.f32 %v568, %v576
      %v608 = vadd.f32 %v569, %v576
      %v609 = vadd.f32 %v570, %v576
      %v610 = vxor.u32 %v578, 2147483648
      %v611 = vxor.u32 %v579, 2147483648
      %v612 = vxor.u32 %v580, 2147483648
      %v613 = vxor.u32 %v581, 2147483648
      %v614 = vxor.u32 %v582, 2147483648
      %v615 = vxor.u32 %v583, 2147483648
      %v616 = vxor.u32 %v584, 2147483648
      %v617 = vxor.u32 %v585, 2147483648
      %v618 = vxor.u32 %v586, 2147483648
      %v619 = vxor.u32 %v587, 2147483648
      %v620 = vxor.u32 %v588, 2147483648
      %v621 = vxor.u32 %v589, 2147483648
      %v622 = vxor.u32 %v590, 2147483648
      %v623 = vxor.u32 %v591, 2147483648
      %v624 = vxor.u32 %v592, 2147483648
      %v625 = vxor.u32 %v593, 2147483648
      %v626 = vxor.u32 %v594, 2147483648
      %v627 = vxor.u32 %v595, 2147483648
      %v628 = vxor.u32 %v596, 2147483648
      %v629 = vxor.u32 %v597, 2147483648
      %v630 = vxor.u32 %v598, 2147483648
      %v631 = vxor.u32 %v599, 2147483648
      %v632 = vxor.u32 %v600, 2147483648
      %v633 = vxor.u32 %v601, 2147483648
      %v634 = vxor.u32 %v602, 2147483648
      %v635 = vxor.u32 %v603, 2147483648
      %v636 = vxor.u32 %v604, 2147483648
      %v637 = vxor.u32 %v605, 2147483648
      %v638 = vxor.u32 %v606, 2147483648
      %v639 = vxor.u32 %v607, 2147483648
      %v640 = vxor.u32 %v608, 2147483648
      %v641 = vxor.u32 %v609, 2147483648
      %v642 = vmul.f32 %v610, 1.442695
      %v643 = vpow.pop %v642
      %v644 = vmul.f32 %v611, 1.442695
      %v645 = vpow.pop %v644
      %v646 = vmul.f32 %v612, 1.442695
      %v647 = vpow.pop %v646
      %v648 = vmul.f32 %v613, 1.442695
      %v649 = vpow.pop %v648
      %v650 = vmul.f32 %v614, 1.442695
      %v651 = vpow.pop %v650
      %v652 = vmul.f32 %v615, 1.442695
      %v653 = vpow.pop %v652
      %v654 = vmul.f32 %v616, 1.442695
      %v655 = vpow.pop %v654
      %v656 = vmul.f32 %v617, 1.442695
      %v657 = vpow.pop %v656
      %v658 = vmul.f32 %v618, 1.442695
      %v659 = vpow.pop %v658
      %v660 = vmul.f32 %v619, 1.442695
      %v661 = vpow.pop %v660
      %v662 = vmul.f32 %v620, 1.442695
      %v663 = vpow.pop %v662
      %v664 = vmul.f32 %v621, 1.442695
      %v665 = vpow.pop %v664
      %v666 = vmul.f32 %v622, 1.442695
      %v667 = vpow.pop %v666
      %v668 = vmul.f32 %v623, 1.442695
      %v669 = vpow.pop %v668
      %v670 = vmul.f32 %v624, 1.442695
      %v671 = vpow.pop %v670
      %v672 = vmul.f32 %v625, 1.442695
      %v673 = vpow.pop %v672
      %v674 = vmul.f32 %v626, 1.442695
      %v675 = vpow.pop %v674
      %v676 = vmul.f32 %v627, 1.442695
      %v677 = vpow.pop %v676
      %v678 = vmul.f32 %v628, 1.442695
      %v679 = vpow.pop %v678
      %v680 = vmul.f32 %v629, 1.442695
      %v681 = vpow.pop %v680
      %v682 = vmul.f32 %v630, 1.442695
      %v683 = vpow.pop %v682
      %v684 = vmul.f32 %v631, 1.442695
      %v685 = vpow.pop %v684
      %v686 = vmul.f32 %v632, 1.442695
      %v687 = vpow.pop %v686
      %v688 = vmul.f32 %v633, 1.442695
      %v689 = vpow.pop %v688
      %v690 = vmul.f32 %v634, 1.442695
      %v691 = vpow.pop %v690
      %v692 = vmul.f32 %v635, 1.442695
      %v693 = vpow.pop %v692
      %v694 = vmul.f32 %v636, 1.442695
      %v695 = vpow.pop %v694
      %v696 = vmul.f32 %v637, 1.442695
      %v697 = vpow.pop %v696
      %v698 = vmul.f32 %v638, 1.442695
      %v699 = vpow.pop %v698
      %v700 = vmul.f32 %v639, 1.442695
      %v701 = vpow.pop %v700
      %v702 = vmul.f32 %v640, 1.442695
      %v703 = vpow.pop %v702
      %v704 = vmul.f32 %v641, 1.442695
      %v705 = vpow.pop %v704
      %v706 = vadd.f32 %v643, 1.0
      %v707 = vadd.f32 %v645, 1.0
      %v708 = vadd.f32 %v647, 1.0
      %v709 = vadd.f32 %v649, 1.0
      %v710 = vadd.f32 %v651, 1.0
      %v711 = vadd.f32 %v653, 1.0
      %v712 = vadd.f32 %v655, 1.0
      %v713 = vadd.f32 %v657, 1.0
      %v714 = vadd.f32 %v659, 1.0
      %v715 = vadd.f32 %v661, 1.0
      %v716 = vadd.f32 %v663, 1.0
      %v717 = vadd.f32 %v665, 1.0
      %v718 = vadd.f32 %v667, 1.0
      %v719 = vadd.f32 %v669, 1.0
      %v720 = vadd.f32 %v671, 1.0
      %v721 = vadd.f32 %v673, 1.0
      %v722 = vadd.f32 %v675, 1.0
      %v723 = vadd.f32 %v677, 1.0
      %v724 = vadd.f32 %v679, 1.0
      %v725 = vadd.f32 %v681, 1.0
      %v726 = vadd.f32 %v683, 1.0
      %v727 = vadd.f32 %v685, 1.0
      %v728 = vadd.f32 %v687, 1.0
      %v729 = vadd.f32 %v689, 1.0
      %v730 = vadd.f32 %v691, 1.0
      %v731 = vadd.f32 %v693, 1.0
      %v732 = vadd.f32 %v695, 1.0
      %v733 = vadd.f32 %v697, 1.0
      %v734 = vadd.f32 %v699, 1.0
      %v735 = vadd.f32 %v701, 1.0
      %v736 = vadd.f32 %v703, 1.0
      %v737 = vadd.f32 %v705, 1.0
      %v738 = vrcp.pop %v706
      %v739 = vmul.f32 1.0, %v738
      %v740 = vrcp.pop %v707
      %v741 = vmul.f32 1.0, %v740
      %v742 = vrcp.pop %v708
      %v743 = vmul.f32 1.0, %v742
      %v744 = vrcp.pop %v709
      %v745 = vmul.f32 1.0, %v744
      %v746 = vrcp.pop %v710
      %v747 = vmul.f32 1.0, %v746
      %v748 = vrcp.pop %v711
      %v749 = vmul.f32 1.0, %v748
      %v750 = vrcp.pop %v712
      %v751 = vmul.f32 1.0, %v750
      %v752 = vrcp.pop %v713
      %v753 = vmul.f32 1.0, %v752
      %v754 = vrcp.pop %v714
      %v755 = vmul.f32 1.0, %v754
      %v756 = vrcp.pop %v715
      %v757 = vmul.f32 1.0, %v756
      %v758 = vrcp.pop %v716
      %v759 = vmul.f32 1.0, %v758
      %v760 = vrcp.pop %v717
      %v761 = vmul.f32 1.0, %v760
      %v762 = vrcp.pop %v718
      %v763 = vmul.f32 1.0, %v762
      %v764 = vrcp.pop %v719
      %v765 = vmul.f32 1.0, %v764
      %v766 = vrcp.pop %v720
      %v767 = vmul.f32 1.0, %v766
      %v768 = vrcp.pop %v721
      %v769 = vmul.f32 1.0, %v768
      %v770 = vrcp.pop %v722
      %v771 = vmul.f32 1.0, %v770
      %v772 = vrcp.pop %v723
      %v773 = vmul.f32 1.0, %v772
      %v774 = vrcp.pop %v724
      %v775 = vmul.f32 1.0, %v774
      %v776 = vrcp.pop %v725
      %v777 = vmul.f32 1.0, %v776
      %v778 = vrcp.pop %v726
      %v779 = vmul.f32 1.0, %v778
      %v780 = vrcp.pop %v727
      %v781 = vmul.f32 1.0, %v780
      %v782 = vrcp.pop %v728
      %v783 = vmul.f32 1.0, %v782
      %v784 = vrcp.pop %v729
      %v785 = vmul.f32 1.0, %v784
      %v786 = vrcp.pop %v730
      %v787 = vmul.f32 1.0, %v786
      %v788 = vrcp.pop %v731
      %v789 = vmul.f32 1.0, %v788
      %v790 = vrcp.pop %v732
      %v791 = vmul.f32 1.0, %v790
      %v792 = vrcp.pop %v733
      %v793 = vmul.f32 1.0, %v792
      %v794 = vrcp.pop %v734
      %v795 = vmul.f32 1.0, %v794
      %v796 = vrcp.pop %v735
      %v797 = vmul.f32 1.0, %v796
      %v798 = vrcp.pop %v736
      %v799 = vmul.f32 1.0, %v798
      %v800 = vrcp.pop %v737
      %v801 = vmul.f32 1.0, %v800
      %v802 = vmul.f32 %v578, %v739
      %v803 = vmul.f32 %v579, %v741
      %v804 = vmul.f32 %v580, %v743
      %v805 = vmul.f32 %v581, %v745
      %v806 = vmul.f32 %v582, %v747
      %v807 = vmul.f32 %v583, %v749
      %v808 = vmul.f32 %v584, %v751
      %v809 = vmul.f32 %v585, %v753
      %v810 = vmul.f32 %v586, %v755
      %v811 = vmul.f32 %v587, %v757
      %v812 = vmul.f32 %v588, %v759
      %v813 = vmul.f32 %v589, %v761
      %v814 = vmul.f32 %v590, %v763
      %v815 = vmul.f32 %v591, %v765
      %v816 = vmul.f32 %v592, %v767
      %v817 = vmul.f32 %v593, %v769
      %v818 = vmul.f32 %v594, %v771
      %v819 = vmul.f32 %v595, %v773
      %v820 = vmul.f32 %v596, %v775
      %v821 = vmul.f32 %v597, %v777
      %v822 = vmul.f32 %v598, %v779
      %v823 = vmul.f32 %v599, %v781
      %v824 = vmul.f32 %v600, %v783
      %v825 = vmul.f32 %v601, %v785
      %v826 = vmul.f32 %v602, %v787
      %v827 = vmul.f32 %v603, %v789
      %v828 = vmul.f32 %v604, %v791
      %v829 = vmul.f32 %v605, %v793
      %v830 = vmul.f32 %v606, %v795
      %v831 = vmul.f32 %v607, %v797
      %v832 = vmul.f32 %v608, %v799
      %v833 = vmul.f32 %v609, %v801
      %vm834 = vcmask 261120
      %835 = vst.msk [vmem:[%s199] sm:$0xff] %vm834, %v802
      %836 = vst.msk [vmem:[%s199 + $0x8] sm:$0xff] %vm834, %v803
      %837 = vst.msk [vmem:[%s199 + $0x10] sm:$0xff] %vm834, %v804
      %838 = vst.msk [vmem:[%s199 + $0x18] sm:$0xff] %vm834, %v805
      %839 = vst.msk [vmem:[%s199 + $0x20] sm:$0xff] %vm834, %v806
      %840 = vst.msk [vmem:[%s199 + $0x28] sm:$0xff] %vm834, %v807
      %841 = vst.msk [vmem:[%s199 + $0x30] sm:$0xff] %vm834, %v808
      %842 = vst.msk [vmem:[%s199 + $0x38] sm:$0xff] %vm834, %v809
      %843 = vst.msk [vmem:[%s199 + $0x40] sm:$0xff] %vm834, %v810
      %844 = vst.msk [vmem:[%s199 + $0x48] sm:$0xff] %vm834, %v811
      %845 = vst.msk [vmem:[%s199 + $0x50] sm:$0xff] %vm834, %v812
      %846 = vst.msk [vmem:[%s199 + $0x58] sm:$0xff] %vm834, %v813
      %847 = vst.msk [vmem:[%s199 + $0x60] sm:$0xff] %vm834, %v814
      %848 = vst.msk [vmem:[%s199 + $0x68] sm:$0xff] %vm834, %v815
      %849 = vst.msk [vmem:[%s199 + $0x70] sm:$0xff] %vm834, %v816
      %850 = vst.msk [vmem:[%s199 + $0x78] sm:$0xff] %vm834, %v817
      %851 = vst.msk [vmem:[%s199 + $0x80] sm:$0xff] %vm834, %v818
      %852 = vst.msk [vmem:[%s199 + $0x88] sm:$0xff] %vm834, %v819
      %853 = vst.msk [vmem:[%s199 + $0x90] sm:$0xff] %vm834, %v820
      %854 = vst.msk [vmem:[%s199 + $0x98] sm:$0xff] %vm834, %v821
      %855 = vst.msk [vmem:[%s199 + $0xa0] sm:$0xff] %vm834, %v822
      %856 = vst.msk [vmem:[%s199 + $0xa8] sm:$0xff] %vm834, %v823
      %857 = vst.msk [vmem:[%s199 + $0xb0] sm:$0xff] %vm834, %v824
      %858 = vst.msk [vmem:[%s199 + $0xb8] sm:$0xff] %vm834, %v825
      %859 = vst.msk [vmem:[%s199 + $0xc0] sm:$0xff] %vm834, %v826
      %860 = vst.msk [vmem:[%s199 + $0xc8] sm:$0xff] %vm834, %v827
      %861 = vst.msk [vmem:[%s199 + $0xd0] sm:$0xff] %vm834, %v828
      %862 = vst.msk [vmem:[%s199 + $0xd8] sm:$0xff] %vm834, %v829
      %863 = vst.msk [vmem:[%s199 + $0xe0] sm:$0xff] %vm834, %v830
      %864 = vst.msk [vmem:[%s199 + $0xe8] sm:$0xff] %vm834, %v831
      %865 = vst.msk [vmem:[%s199 + $0xf0] sm:$0xff] %vm834, %v832
      %866 = vst.msk [vmem:[%s199 + $0xf8] sm:$0xff] %vm834, %v833
      %s867 = smul.u32 32, %s15
      %p868 = scmp.lt.s32.totalorder %s867, 63
      %s869 = scalar_select %p868, %s867, 63
      %s870 = smul.addr %s869, 8
      %s871 = scalar_lea.vmem %s4, %s870
      // Predicated region
      $region37: #{forward.5} parent=35 // pred_check
        %p872 = pneg %p122
      $region38: #{forward.5} parent=35 // pred_check_branch
        %874 = sbr.rel (%p872) target = $region40
      $region39: #{forward.5} parent=35 // pred_region
        %s875 = smul.u32 32, %s15
      $region40: #{forward.5} parent=35 // pred_fallthru
        _
    $region36: #{forward.5} parent=5 // pred_fallthru
      _
    %p876 = scmp.le.s32.totalorder 2, %s10
    // Predicated region
    $region41: #{forward.5} parent=5 // pred_check
      %p877 = pneg %p876
    $region42: #{forward.5} parent=5 // pred_check_branch
      %879 = sbr.rel (%p877) target = $region44
    $region43: #{forward.5} parent=5 // pred_region
      %s880 = ssub.s32 %s10, 2
      // Predicated region
      $region45: #{forward.5} parent=43 // pred_check
        %p881 = pneg %p128
      $region46: #{forward.5} parent=43 // pred_check_branch
        %883 = sbr.rel (%p881) target = $region48
      $region47: #{forward.5} parent=43 // pred_region
        %s884 = smul.u32 32, %s16
        %p885 = scmp.lt.s32.totalorder %s884, 63
        %s886 = scalar_select %p885, %s884, 63
        %s887 = smul.addr %s886, 8
        %s888 = scalar_lea.vmem %s4, %s887
      $region48: #{forward.5} parent=43 // pred_fallthru
        _
    $region44: #{forward.5} parent=5 // pred_fallthru
      _
  $region6: #{forward.5} parent=0 // loop_footer
    %s14 = sadd.s32 1, %s10
  $region7: #{forward.5} parent=0 // loop_footer_branch
    %9 = sbr.rel target = $region3
  $region8: #{forward.5} parent=0 // loop_exit
    _

// kernel: forward.6
$region0: #{forward.6}
  #allocation0 [shape = 'u32[]', space=smem, size = 0x4, offset = 0x4, fixed_abs, tag = 'smem constant byte address 0x4 - core index']
  #allocation1 [shape = 'u32[144,128]{1,0:T(1,128)}', space=vmem, size = 0x12000, scoped, tag = 'internal scratch']
  #allocation2 [shape = 'f32[1,1,1]{2,1,0:T(1,128)S(1)}', space=vmem, size = 0x200, scoped, tag = 'scoped memory for forward.6']
  %s0 = inlined_call_operand.vmem [shape: bf16[2,4,49,32], index: 0, kind: input, shape index: {}]
  %s1 = inlined_call_operand.vmem [shape: f32[4,49,49], index: 1, kind: input, shape index: {}]
  %s2 = inlined_call_operand.vmem [shape: bf16[32,96], index: 2, kind: input, shape index: {}]
  %s3 = inlined_call_operand.vmem [shape: f32[1,96], index: 3, kind: input, shape index: {}]
  %s4 = inlined_call_operand.<no memory space> [shape: f32[1,1,1], index: 4, kind: input, shape index: {}]
  %s5 = inlined_call_operand.vmem [shape: f32[1,49,49], index: 5, kind: input, shape index: {}]
  %s6 = inlined_call_operand.vmem [shape: bf16[32,32], index: 6, kind: input, shape index: {}]
  %s7 = inlined_call_operand.vmem [shape: f32[1,32], index: 7, kind: input, shape index: {}]
  %s8 = inlined_call_operand.vmem [shape: f32[2,4,49,32], index: 8, kind: output, shape index: {}]
  %s9 = sld [smem:[#allocation0]]
  $region65: #{forward.6} parent=0
    _
  %s11 = ssub.s32 1, %s9
  %s12 = scalar_select 0, %s11, %s9
  %v13 = vstv %s4
  %14 = vst [vmem:[#allocation2] sm:$0x1] %v13
  loop: start=0, step=1, limit=10
  $region2: #{forward.6} parent=0 // loop_pre_header
    _
  $region3: #{forward.6} parent=0 // loop_header
    %s16 = sphi 0, %s20
    %p17 = scmp.ge.s32.totalorder %s16, 10
    %s23 = sphi 0, %s35
    %s24 = sphi 0, %s31
    %s25 = sphi 0, %s23
    %s26 = sphi 0, %s24
    %s27 = sphi 0, %s25
    %s28 = sphi 0, %s26
    %s40 = sphi 0, %s42
    %s43 = sphi 0, %s40
    %s44 = sphi 0, %s43
    %s60 = sphi 0, %s44
    %s66 = sphi 0, %s68
    %s69 = sphi 0, %s66
    %s70 = sphi 0, %s69
    %s86 = sphi 0, %s70
    %s90 = sphi 0, %s90
    %s92 = sphi 0, %s90
    %s93 = sphi 0, %s92
    %s107 = sphi 0, %s93
    %s111 = sphi 0, %s111
    %s113 = sphi 0, %s111
    %s114 = sphi 0, %s113
    %s128 = sphi 0, %s114
    %s132 = sphi 0, %s132
    %s134 = sphi 0, %s132
    %s135 = sphi 0, %s134
    %s149 = sphi 0, %s135
    %s153 = sphi 0, %s153
    %s155 = sphi 0, %s153
    %s156 = sphi 0, %s155
    %s170 = sphi 0, %s156
    %s174 = sphi 0, %s174
    %s176 = sphi 0, %s174
    %s177 = sphi 0, %s176
    %s191 = sphi 0, %s177
    %s195 = sphi 0, %s195
    %s197 = sphi 0, %s195
    %s198 = sphi 0, %s197
    %s212 = sphi 0, %s198
    %s220 = sphi 0, %s222
    %s223 = sphi 0, %s220
    %s224 = sphi 0, %s223
    %s240 = sphi 0, %s224
  $region4: #{forward.6} parent=0 // loop_header_branch
    %19 = sbr.rel (%p17) target = $region8
  $region5: #{forward.6} parent=0 // loop_body
    %s21 = ssub.s32 %s16, 1
    %s22 = ssub.s32 %s16, 2
    %s29 = sadd.s32 1, %s24
    %p30 = scmp.ge.s32.totalorder %s29, 4
    %s31 = scalar_select %p30, 0, %s29
    %s32 = sadd.s32 1, %s23
    %s33 = scalar_select %p30, %s32, %s23
    %p34 = scmp.ge.s32.totalorder %s33, 2
    %s35 = scalar_select %p34, 0, %s33
    %s36 = ssub.s32 %s23, %s35
    %s37 = ssub.s32 %s24, %s31
    %s38 = sor.u32 %s36, %s37
    %p39 = scmp.eq.s32.totalorder %s38, 0
    %s41 = sadd.s32 %s40, 1
    %s42 = scalar_select %p39, %s40, %s41
    %p45 = pneg %p39
    %p46 = scmp.eq.s32.totalorder %s16, 7
    %p47 = por %p45, %p46
    %p48 = scmp.ne.s32.totalorder %s40, %s43
    %p49 = scmp.eq.s32.totalorder %s16, 0
    %p50 = por %p48, %p49
    %p51 = scmp.ne.s32.totalorder %s40, %s43
    %p52 = scmp.eq.s32.totalorder %s21, 7
    %p53 = por %p51, %p52
    %p54 = scmp.ne.s32.totalorder %s43, %s44
    %p55 = scmp.eq.s32.totalorder %s21, 0
    %p56 = por %p54, %p55
    %p57 = scmp.ne.s32.totalorder %s43, %s44
    %p58 = scmp.eq.s32.totalorder %s22, 7
    %p59 = por %p57, %p58
    %p61 = scmp.ne.s32.totalorder %s44, %s60
    %p62 = scmp.eq.s32.totalorder %s22, 0
    %p63 = por %p61, %p62
    %s64 = ssub.s32 %s24, %s31
    %p65 = scmp.eq.s32.totalorder %s64, 0
    %s67 = sadd.s32 %s66, 1
    %s68 = scalar_select %p65, %s66, %s67
    %p71 = pneg %p65
    %p72 = scmp.eq.s32.totalorder %s16, 7
    %p73 = por %p71, %p72
    %p74 = scmp.ne.s32.totalorder %s66, %s69
    %p75 = scmp.eq.s32.totalorder %s16, 0
    %p76 = por %p74, %p75
    %p77 = scmp.ne.s32.totalorder %s66, %s69
    %p78 = scmp.eq.s32.totalorder %s21, 7
    %p79 = por %p77, %p78
    %p80 = scmp.ne.s32.totalorder %s69, %s70
    %p81 = scmp.eq.s32.totalorder %s21, 0
    %p82 = por %p80, %p81
    %p83 = scmp.ne.s32.totalorder %s69, %s70
    %p84 = scmp.eq.s32.totalorder %s22, 7
    %p85 = por %p83, %p84
    %p87 = scmp.ne.s32.totalorder %s70, %s86
    %p88 = scmp.eq.s32.totalorder %s22, 0
    %p89 = por %p87, %p88
    %s91 = sadd.s32 %s90, 1
    %p94 = scmp.eq.s32.totalorder %s16, 7
    %p95 = scmp.ne.s32.totalorder %s90, %s92
    %p96 = scmp.eq.s32.totalorder %s16, 0
    %p97 = por %p95, %p96
    %p98 = scmp.ne.s32.totalorder %s90, %s92
    %p99 = scmp.eq.s32.totalorder %s21, 7
    %p100 = por %p98, %p99
    %p101 = scmp.ne.s32.totalorder %s92, %s93
    %p102 = scmp.eq.s32.totalorder %s21, 0
    %p103 = por %p101, %p102
    %p104 = scmp.ne.s32.totalorder %s92, %s93
    %p105 = scmp.eq.s32.totalorder %s22, 7
    %p106 = por %p104, %p105
    %p108 = scmp.ne.s32.totalorder %s93, %s107
    %p109 = scmp.eq.s32.totalorder %s22, 0
    %p110 = por %p108, %p109
    %s112 = sadd.s32 %s111, 1
    %p115 = scmp.eq.s32.totalorder %s16, 7
    %p116 = scmp.ne.s32.totalorder %s111, %s113
    %p117 = scmp.eq.s32.totalorder %s16, 0
    %p118 = por %p116, %p117
    %p119 = scmp.ne.s32.totalorder %s111, %s113
    %p120 = scmp.eq.s32.totalorder %s21, 7
    %p121 = por %p119, %p120
    %p122 = scmp.ne.s32.totalorder %s113, %s114
    %p123 = scmp.eq.s32.totalorder %s21, 0
    %p124 = por %p122, %p123
    %p125 = scmp.ne.s32.totalorder %s113, %s114
    %p126 = scmp.eq.s32.totalorder %s22, 7
    %p127 = por %p125, %p126
    %p129 = scmp.ne.s32.totalorder %s114, %s128
    %p130 = scmp.eq.s32.totalorder %s22, 0
    %p131 = por %p129, %p130
    %s133 = sadd.s32 %s132, 1
    %p136 = scmp.eq.s32.totalorder %s16, 7
    %p137 = scmp.ne.s32.totalorder %s132, %s134
    %p138 = scmp.eq.s32.totalorder %s16, 0
    %p139 = por %p137, %p138
    %p140 = scmp.ne.s32.totalorder %s132, %s134
    %p141 = scmp.eq.s32.totalorder %s21, 7
    %p142 = por %p140, %p141
    %p143 = scmp.ne.s32.totalorder %s134, %s135
    %p144 = scmp.eq.s32.totalorder %s21, 0
    %p145 = por %p143, %p144
    %p146 = scmp.ne.s32.totalorder %s134, %s135
    %p147 = scmp.eq.s32.totalorder %s22, 7
    %p148 = por %p146, %p147
    %p150 = scmp.ne.s32.totalorder %s135, %s149
    %p151 = scmp.eq.s32.totalorder %s22, 0
    %p152 = por %p150, %p151
    %s154 = sadd.s32 %s153, 1
    %p157 = scmp.eq.s32.totalorder %s16, 7
    %p158 = scmp.ne.s32.totalorder %s153, %s155
    %p159 = scmp.eq.s32.totalorder %s16, 0
    %p160 = por %p158, %p159
    %p161 = scmp.ne.s32.totalorder %s153, %s155
    %p162 = scmp.eq.s32.totalorder %s21, 7
    %p163 = por %p161, %p162
    %p164 = scmp.ne.s32.totalorder %s155, %s156
    %p165 = scmp.eq.s32.totalorder %s21, 0
    %p166 = por %p164, %p165
    %p167 = scmp.ne.s32.totalorder %s155, %s156
    %p168 = scmp.eq.s32.totalorder %s22, 7
    %p169 = por %p167, %p168
    %p171 = scmp.ne.s32.totalorder %s156, %s170
    %p172 = scmp.eq.s32.totalorder %s22, 0
    %p173 = por %p171, %p172
    %s175 = sadd.s32 %s174, 1
    %p178 = scmp.eq.s32.totalorder %s16, 7
    %p179 = scmp.ne.s32.totalorder %s174, %s176
    %p180 = scmp.eq.s32.totalorder %s16, 0
    %p181 = por %p179, %p180
    %p182 = scmp.ne.s32.totalorder %s174, %s176
    %p183 = scmp.eq.s32.totalorder %s21, 7
    %p184 = por %p182, %p183
    %p185 = scmp.ne.s32.totalorder %s176, %s177
    %p186 = scmp.eq.s32.totalorder %s21, 0
    %p187 = por %p185, %p186
    %p188 = scmp.ne.s32.totalorder %s176, %s177
    %p189 = scmp.eq.s32.totalorder %s22, 7
    %p190 = por %p188, %p189
    %p192 = scmp.ne.s32.totalorder %s177, %s191
    %p193 = scmp.eq.s32.totalorder %s22, 0
    %p194 = por %p192, %p193
    %s196 = sadd.s32 %s195, 1
    %p199 = scmp.eq.s32.totalorder %s16, 7
    %p200 = scmp.ne.s32.totalorder %s195, %s197
    %p201 = scmp.eq.s32.totalorder %s16, 0
    %p202 = por %p200, %p201
    %p203 = scmp.ne.s32.totalorder %s195, %s197
    %p204 = scmp.eq.s32.totalorder %s21, 7
    %p205 = por %p203, %p204
    %p206 = scmp.ne.s32.totalorder %s197, %s198
    %p207 = scmp.eq.s32.totalorder %s21, 0
    %p208 = por %p206, %p207
    %p209 = scmp.ne.s32.totalorder %s197, %s198
    %p210 = scmp.eq.s32.totalorder %s22, 7
    %p211 = por %p209, %p210
    %p213 = scmp.ne.s32.totalorder %s198, %s212
    %p214 = scmp.eq.s32.totalorder %s22, 0
    %p215 = por %p213, %p214
    %s216 = ssub.s32 %s23, %s35
    %s217 = ssub.s32 %s24, %s31
    %s218 = sor.u32 %s216, %s217
    %p219 = scmp.eq.s32.totalorder %s218, 0
    %s221 = sadd.s32 %s220, 1
    %s222 = scalar_select %p219, %s220, %s221
    %p225 = pneg %p219
    %p226 = scmp.eq.s32.totalorder %s16, 7
    %p227 = por %p225, %p226
    %p228 = scmp.ne.s32.totalorder %s220, %s223
    %p229 = scmp.eq.s32.totalorder %s16, 0
    %p230 = por %p228, %p229
    %p231 = scmp.ne.s32.totalorder %s220, %s223
    %p232 = scmp.eq.s32.totalorder %s21, 7
    %p233 = por %p231, %p232
    %p234 = scmp.ne.s32.totalorder %s223, %s224
    %p235 = scmp.eq.s32.totalorder %s21, 0
    %p236 = por %p234, %p235
    %p237 = scmp.ne.s32.totalorder %s223, %s224
    %p238 = scmp.eq.s32.totalorder %s22, 7
    %p239 = por %p237, %p238
    %p241 = scmp.ne.s32.totalorder %s224, %s240
    %p242 = scmp.eq.s32.totalorder %s22, 0
    %p243 = por %p241, %p242
    %p244 = scmp.le.s32.totalorder 1, %s16
    %p245 = scmp.lt.s32.totalorder %s16, 9
    %p246 = pnand %p244, %p245
    %p247 = pneg %p246
    // Predicated region
    $region9: #{forward.6} parent=5 // pred_check
      _
    $region10: #{forward.6} parent=5 // pred_check_branch
      %249 = sbr.rel (%p246) target = $region12
    $region11: #{forward.6} parent=5 // pred_region
      %s250 = ssub.s32 %s16, 1
      // Predicated region
      $region13: #{forward.6} parent=11 // pred_check
        %p251 = pneg %p103
      $region14: #{forward.6} parent=11 // pred_check_branch
        %253 = sbr.rel (%p251) target = $region16
      $region15: #{forward.6} parent=11 // pred_region
        _
      $region16: #{forward.6} parent=11 // pred_fallthru
        _
      // Predicated region
      $region17: #{forward.6} parent=11 // pred_check
        %p254 = pneg %p124
      $region18: #{forward.6} parent=11 // pred_check_branch
        %256 = sbr.rel (%p254) target = $region20
      $region19: #{forward.6} parent=11 // pred_region
        _
      $region20: #{forward.6} parent=11 // pred_fallthru
        _
      // Predicated region
      $region21: #{forward.6} parent=11 // pred_check
        %p257 = pneg %p145
      $region22: #{forward.6} parent=11 // pred_check_branch
        %259 = sbr.rel (%p257) target = $region24
      $region23: #{forward.6} parent=11 // pred_region
        _
      $region24: #{forward.6} parent=11 // pred_fallthru
        _
      // Predicated region
      $region25: #{forward.6} parent=11 // pred_check
        %p260 = pneg %p166
      $region26: #{forward.6} parent=11 // pred_check_branch
        %262 = sbr.rel (%p260) target = $region28
      $region27: #{forward.6} parent=11 // pred_region
        _
      $region28: #{forward.6} parent=11 // pred_fallthru
        _
      // Predicated region
      $region29: #{forward.6} parent=11 // pred_check
        %p263 = pneg %p187
      $region30: #{forward.6} parent=11 // pred_check_branch
        %265 = sbr.rel (%p263) target = $region32
      $region31: #{forward.6} parent=11 // pred_region
        _
      $region32: #{forward.6} parent=11 // pred_fallthru
        _
      // Predicated region
      $region33: #{forward.6} parent=11 // pred_check
        %p266 = pneg %p208
      $region34: #{forward.6} parent=11 // pred_check_branch
        %268 = sbr.rel (%p266) target = $region36
      $region35: #{forward.6} parent=11 // pred_region
        _
      $region36: #{forward.6} parent=11 // pred_fallthru
        _
    $region12: #{forward.6} parent=5 // pred_fallthru
      _
    %p269 = scmp.lt.s32.totalorder %s16, 8
    // Predicated region
    $region37: #{forward.6} parent=5 // pred_check
      %p270 = pneg %p269
    $region38: #{forward.6} parent=5 // pred_check_branch
      %272 = sbr.rel (%p270) target = $region40
    $region39: #{forward.6} parent=5 // pred_region
      // Predicated region
      $region41: #{forward.6} parent=39 // pred_check
        %p273 = pneg %p50
      $region42: #{forward.6} parent=39 // pred_check_branch
        %275 = sbr.rel (%p273) target = $region44
      $region43: #{forward.6} parent=39 // pred_region
        %p276 = scmp.lt.s32.totalorder %s23, 1
        %s277 = scalar_select %p276, %s23, 1
        %p278 = scmp.lt.s32.totalorder %s24, 3
        %s279 = scalar_select %p278, %s24, 3
        %s280 = smul.addr %s279, 7
        %s281 = smul.addr %s277, 28
        %s282 = sadd.s32 %s280, %s281
        %s283 = smul.addr %s282, 4
        %s284 = scalar_lea.vmem %s0, %s283
      $region44: #{forward.6} parent=39 // pred_fallthru
        _
      // Predicated region
      $region45: #{forward.6} parent=39 // pred_check
        %p285 = pneg %p76
      $region46: #{forward.6} parent=39 // pred_check_branch
        %287 = sbr.rel (%p285) target = $region48
      $region47: #{forward.6} parent=39 // pred_region
        %p288 = scmp.lt.s32.totalorder %s24, 3
        %s289 = scalar_select %p288, %s24, 3
        %s290 = smul.addr %s289, 7
        %s291 = smul.addr %s290, 8
        %s292 = scalar_lea.vmem %s1, %s291
      $region48: #{forward.6} parent=39 // pred_fallthru
        _
    $region40: #{forward.6} parent=5 // pred_fallthru
      _
    %p293 = scmp.le.s32.totalorder 1, %s16
    %p294 = scmp.lt.s32.totalorder %s16, 9
    %p295 = pnand %p293, %p294
    %p296 = pneg %p295
    // Predicated region
    $region49: #{forward.6} parent=5 // pred_check
      _
    $region50: #{forward.6} parent=5 // pred_check_branch
      %298 = sbr.rel (%p295) target = $region52
    $region51: #{forward.6} parent=5 // pred_region
      %s299 = ssub.s32 %s16, 1
      %p300 = scmp.lt.s32.totalorder %s25, 1
      %s301 = scalar_select %p300, %s25, 1
      %p302 = scmp.lt.s32.totalorder %s26, 3
      %s303 = scalar_select %p302, %s26, 3
      %s304 = smul.addr %s303, 7
      %s305 = smul.addr %s301, 28
      %s306 = sadd.s32 %s304, %s305
      %s307 = smul.addr %s306, 4
      %s308 = scalar_lea.vmem %s0, %s307
      %p309 = pneg %p56
      %p310 = pneg %p53
      %p311 = scmp.lt.s32.totalorder %s26, 3
      %s312 = scalar_select %p311, %s26, 3
      %s313 = smul.addr %s312, 7
      %s314 = smul.addr %s313, 8
      %s315 = scalar_lea.vmem %s1, %s314
      %p316 = pneg %p82
      %p317 = pneg %p79
      %p318 = pneg %p103
      %p319 = pneg %p100
      %p320 = pneg %p124
      %p321 = pneg %p121
      %p322 = pneg %p145
      %p323 = pneg %p142
      %p324 = pneg %p166
      %p325 = pneg %p163
      %p326 = pneg %p187
      %p327 = pneg %p184
      %p328 = pneg %p208
      %p329 = pneg %p205
      %p330 = pneg %p236
      %p331 = pneg %p233
      %p332 = scmp.lt.s32.totalorder %s25, 1
      %s333 = scalar_select %p332, %s25, 1
      %p334 = scmp.lt.s32.totalorder %s26, 3
      %s335 = scalar_select %p334, %s26, 3
      %s336 = smul.addr %s335, 7
      %s337 = smul.addr %s333, 28
      %s338 = sadd.s32 %s336, %s337
      %s339 = smul.addr %s338, 8
      %s340 = scalar_lea.vmem %s8, %s339
      %p341 = scmp.lt.s32.totalorder %s25, 1
      %s342 = scalar_select %p341, %s25, 1
      %p343 = scmp.lt.s32.totalorder %s26, 3
      %s344 = scalar_select %p343, %s26, 3
      %s345 = smul.addr %s344, 7
      %s346 = smul.addr %s342, 28
      %s347 = sadd.s32 %s345, %s346
      %s348 = smul.addr %s347, 4
      %s349 = scalar_lea.vmem %s0, %s348
      %p350 = scmp.lt.s32.totalorder %s26, 3
      %s351 = scalar_select %p350, %s26, 3
      %s352 = smul.addr %s351, 7
      %s353 = smul.addr %s352, 8
      %s354 = scalar_lea.vmem %s1, %s353
      %p355 = scmp.lt.s32.totalorder %s25, 1
      %s356 = scalar_select %p355, %s25, 1
      %p357 = scmp.lt.s32.totalorder %s26, 3
      %s358 = scalar_select %p357, %s26, 3
      %s359 = smul.addr %s358, 7
      %s360 = smul.addr %s356, 28
      %s361 = sadd.s32 %s359, %s360
      %s362 = smul.addr %s361, 8
      %s363 = scalar_lea.vmem %s8, %s362
      %v365 = vld [vmem:[%s349] sm:$0xf]
      %v366 = vld [vmem:[%s349 + $0x4] sm:$0xf]
      %v367 = vld [vmem:[%s349 + $0x8] sm:$0xf]
      %v368 = vld [vmem:[%s349 + $0xc] sm:$0xf]
      %v369 = vld [vmem:[%s349 + $0x10] sm:$0xf]
      %v370 = vld [vmem:[%s349 + $0x14] sm:$0xf]
      %v371 = vld [vmem:[%s349 + $0x18] sm:$0x1]
      %v372 = vld [vmem:[%s2] sm:$0xf]
      %v373 = vld [vmem:[%s2 + $0x4] sm:$0xf]
      %v374 = vld [vmem:[%s2 + $0x8] sm:$0xf]
      %v375 = vld [vmem:[%s2 + $0xc] sm:$0xf]
      %v376 = vld [vmem:[%s3] sm:$0x1]
      %v378 = vlaneseq
      %v379 = vshrl.u32 %v378, 7
      %v380 = vsub.s32 0, %v379
      %v381 = vrot.slane %v376, %v380
      %v390 = vunpack.c.l.b16 %v365
      %v391 = vunpack.c.l.b16 %v366
      %v392 = vunpack.c.l.b16 %v367
      %v393 = vunpack.c.l.b16 %v368
      %v394 = vunpack.c.l.b16 %v369
      %v395 = vunpack.c.l.b16 %v370
      %v396 = vunpack.c.l.b16 %v371
      %v397 = vpack.c.b16 %v391, %v390
      %v398 = vpack.c.b16 %v393, %v392
      %v399 = vpack.c.b16 %v395, %v394
      %v400 = vpack.c.b16 %v396, %v396
      %v405 = vunpack.c.l.b16 %v372
      %v406 = vunpack.c.l.b16 %v373
      %v407 = vunpack.c.l.b16 %v374
      %v408 = vunpack.c.l.b16 %v375
      %v409 = vpack.c.b16 %v406, %v405
      %v410 = vpack.c.b16 %v408, %v407
      %vm413 = vcmask 261120
      %v415 = vsel %vm413, %v397, 0
      %v418 = vsel %vm413, %v398, 0
      %v421 = vsel %vm413, %v399, 0
      %v424 = vsel %vm413, %v400, 0
      %426 = vmatprep.subr.bf16.mxu0 0
      %427 = vmatpush1.bf16.msra.mxu0 %v409
      %428 = vmatprep.subr.bf16.mxu0 0
      %429 = vmatpush1.bf16.msra.mxu0 %v410
      %430 = vmatprep.subr.bf16.mxu0 0
      %431 = vmatpush1.bf16.msra.mxu0 0
      %432 = vmatprep.subr.bf16.mxu0 0
      %433 = vmatpush1.bf16.msra.mxu0 0
      %434 = vmatprep.subr.bf16.mxu0 0
      %435 = vmatpush1.bf16.msra.mxu0 0
      %436 = vmatprep.subr.bf16.mxu0 0
      %437 = vmatpush1.bf16.msra.mxu0 0
      %438 = vmatprep.subr.bf16.mxu0 0
      %439 = vmatpush1.bf16.msra.mxu0 0
      %440 = vmatprep.subr.bf16.mxu0 0
      %441 = vmatpush1.bf16.msra.mxu0 0
      %442 = vmatprep.subr.bf16.mxu0 0
      %443 = vmatpush1.bf16.msra.mxu0 0
      %444 = vmatprep.subr.bf16.mxu0 0
      %445 = vmatpush1.bf16.msra.mxu0 0
      %446 = vmatprep.subr.bf16.mxu0 0
      %447 = vmatpush1.bf16.msra.mxu0 0
      %448 = vmatprep.subr.bf16.mxu0 0
      %449 = vmatpush1.bf16.msra.mxu0 0
      %450 = vmatprep.subr.bf16.mxu0 0
      %451 = vmatpush1.bf16.msra.mxu0 0
      %452 = vmatprep.subr.bf16.mxu0 0
      %453 = vmatpush1.bf16.msra.mxu0 0
      %454 = vmatprep.subr.bf16.mxu0 0
      %455 = vmatpush1.bf16.msra.mxu0 0
      %456 = vmatprep.subr.bf16.mxu0 0
      %457 = vmatpush1.bf16.msra.mxu0 0
      %458 = vmatprep.mubr.bf16.mxu0 0
      %459 = vmatmul.mubr.bf16.gmra.mrb[0].mxu0 %v415
      %v460 = vpop.f32.mrb[0].mxu0
      %v461 = vadd.f32 %v381, %v460
      %v462 = vpop.f32.mrb[0].mxu0
      %v463 = vpop.f32.mrb[0].mxu0
      %v464 = vadd.f32 %v381, %v463
      %v465 = vpop.f32.mrb[0].mxu0
      %466 = vmatprep.mubr.bf16.mxu0 0
      %467 = vmatmul.mubr.bf16.gmra.mrb[0].mxu0 %v418
      %v468 = vpop.f32.mrb[0].mxu0
      %v469 = vadd.f32 %v381, %v468
      %v470 = vpop.f32.mrb[0].mxu0
      %v471 = vpop.f32.mrb[0].mxu0
      %v472 = vadd.f32 %v381, %v471
      %v473 = vpop.f32.mrb[0].mxu0
      %474 = vmatprep.mubr.bf16.mxu0 0
      %475 = vmatmul.mubr.bf16.gmra.mrb[0].mxu0 %v421
      %v476 = vpop.f32.mrb[0].mxu0
      %v477 = vadd.f32 %v381, %v476
      %v478 = vpop.f32.mrb[0].mxu0
      %v479 = vpop.f32.mrb[0].mxu0
      %v480 = vadd.f32 %v381, %v479
      %v481 = vpop.f32.mrb[0].mxu0
      %482 = vmatprep.mubr.bf16.mxu0 0
      %483 = vmatmul.mubr.bf16.gmra.mrb[0].mxu0 %v424
      %v484 = vpop.f32.mrb[0].mxu0
      %v485 = vadd.f32 %v381, %v484
      %v486 = vpop.f32.mrb[0].mxu0
      %v487 = vpop.f32.mrb[0].mxu0
      %v488 = vpop.f32.mrb[0].mxu0
      %489 = vdwg.mxu0
      %v490 = vld [vmem:[%s354] sm:$0xff]
      %v491 = vld [vmem:[%s354 + $0x8] sm:$0xff]
      %v492 = vld [vmem:[%s354 + $0x10] sm:$0xff]
      %v493 = vld [vmem:[%s354 + $0x18] sm:$0xff]
      %v494 = vld [vmem:[%s354 + $0x20] sm:$0xff]
      %v495 = vld [vmem:[%s354 + $0x28] sm:$0xff]
      %v496 = vld [vmem:[%s354 + $0x30] sm:$0x1]
      %v497 = vmul.f32 %v461, %v461
      %v498 = vmul.f32 %v464, %v464
      %v499 = vmul.f32 %v469, %v469
      %v500 = vmul.f32 %v472, %v472
      %v501 = vmul.f32 %v477, %v477
      %v502 = vmul.f32 %v480, %v480
      %v503 = vmul.f32 %v485, %v485
      %v504 = vsel %vm413, %v497, 0.0
      %505 = vadd.xlane.f32.xlu0 %v504
      %v506 = vpop.xlane.xlu0 %505
      %v507 = vsel %vm413, %v498, 0.0
      %508 = vadd.xlane.f32.xlu0 %v507
      %v509 = vpop.xlane.xlu0 %508
      %v510 = vsel %vm413, %v499, 0.0
      %511 = vadd.xlane.f32.xlu0 %v510
      %v512 = vpop.xlane.xlu0 %511
      %v513 = vsel %vm413, %v500, 0.0
      %514 = vadd.xlane.f32.xlu0 %v513
      %v515 = vpop.xlane.xlu0 %514
      %v516 = vsel %vm413, %v501, 0.0
      %517 = vadd.xlane.f32.xlu0 %v516
      %v518 = vpop.xlane.xlu0 %517
      %v519 = vsel %vm413, %v502, 0.0
      %520 = vadd.xlane.f32.xlu0 %v519
      %v521 = vpop.xlane.xlu0 %520
      %vm522 = vcmask 253952
      %v523 = vsel %vm522, %v503, 0.0
      %524 = vadd.xlane.f32.xlu0 %v523
      %v525 = vpop.xlane.xlu0 %524
      %v526 = vrsqrt.pop %v506
      %v527 = vmul.f32 %v506, %v526
      %vm528 = vcmp.eq.f32.partialorder %v506, inf
      %v529 = vsel %vm528, %v506, %v527
      %vm530 = vcmp.eq.f32.partialorder %v506, 0.0
      %v531 = vand.u32 %v506, 2147483648
      %v532 = vsel %vm530, %v531, %v529
      %v533 = vrsqrt.pop %v509
      %v534 = vmul.f32 %v509, %v533
      %vm535 = vcmp.eq.f32.partialorder %v509, inf
      %v536 = vsel %vm535, %v509, %v534
      %vm537 = vcmp.eq.f32.partialorder %v509, 0.0
      %v538 = vand.u32 %v509, 2147483648
      %v539 = vsel %vm537, %v538, %v536
      %v540 = vrsqrt.pop %v512
      %v541 = vmul.f32 %v512, %v540
      %vm542 = vcmp.eq.f32.partialorder %v512, inf
      %v543 = vsel %vm542, %v512, %v541
      %vm544 = vcmp.eq.f32.partialorder %v512, 0.0
      %v545 = vand.u32 %v512, 2147483648
      %v546 = vsel %vm544, %v545, %v543
      %v547 = vrsqrt.pop %v515
      %v548 = vmul.f32 %v515, %v547
      %vm549 = vcmp.eq.f32.partialorder %v515, inf
      %v550 = vsel %vm549, %v515, %v548
      %vm551 = vcmp.eq.f32.partialorder %v515, 0.0
      %v552 = vand.u32 %v515, 2147483648
      %v553 = vsel %vm551, %v552, %v550
      %v554 = vrsqrt.pop %v518
      %v555 = vmul.f32 %v518, %v554
      %vm556 = vcmp.eq.f32.partialorder %v518, inf
      %v557 = vsel %vm556, %v518, %v555
      %vm558 = vcmp.eq.f32.partialorder %v518, 0.0
      %v559 = vand.u32 %v518, 2147483648
      %v560 = vsel %vm558, %v559, %v557
      %v561 = vrsqrt.pop %v521
      %v562 = vmul.f32 %v521, %v561
      %vm563 = vcmp.eq.f32.partialorder %v521, inf
      %v564 = vsel %vm563, %v521, %v562
      %vm565 = vcmp.eq.f32.partialorder %v521, 0.0
      %v566 = vand.u32 %v521, 2147483648
      %v567 = vsel %vm565, %v566, %v564
      %v568 = vrsqrt.pop %v525
      %v569 = vmul.f32 %v525, %v568
      %vm570 = vcmp.eq.f32.partialorder %v525, inf
      %v571 = vsel %vm570, %v525, %v569
      %vm572 = vcmp.eq.f32.partialorder %v525, 0.0
      %v573 = vand.u32 %v525, 2147483648
      %v574 = vsel %vm572, %v573, %v571
      %v575 = vmax.f32 %v532, 1e-12
      %v576 = vmax.f32 %v539, 1e-12
      %v577 = vmax.f32 %v546, 1e-12
      %v578 = vmax.f32 %v553, 1e-12
      %v579 = vmax.f32 %v560, 1e-12
      %v580 = vmax.f32 %v567, 1e-12
      %v581 = vmax.f32 %v574, 1e-12
      %v582 = vrcp.pop %v575
      %v583 = vmul.f32 %v461, %v582
      %v584 = vrcp.pop %v576
      %v585 = vmul.f32 %v464, %v584
      %v586 = vrcp.pop %v577
      %v587 = vmul.f32 %v469, %v586
      %v588 = vrcp.pop %v578
      %v589 = vmul.f32 %v472, %v588
      %v590 = vrcp.pop %v579
      %v591 = vmul.f32 %v477, %v590
      %v592 = vrcp.pop %v580
      %v593 = vmul.f32 %v480, %v592
      %v594 = vrcp.pop %v581
      %v595 = vmul.f32 %v485, %v594
      %603 = vrot.lane.b32.xlu0 %v497, 96
      %v604 = vpop.permute.xlu0 %603
      %605 = vrot.lane.b32.xlu0 %v498, 96
      %v606 = vpop.permute.xlu0 %605
      %607 = vrot.lane.b32.xlu0 %v499, 96
      %v608 = vpop.permute.xlu0 %607
      %609 = vrot.lane.b32.xlu0 %v500, 96
      %v610 = vpop.permute.xlu0 %609
      %611 = vrot.lane.b32.xlu0 %v501, 96
      %v612 = vpop.permute.xlu0 %611
      %613 = vrot.lane.b32.xlu0 %v502, 96
      %v614 = vpop.permute.xlu0 %613
      %615 = vrot.lane.b32.xlu0 %v503, 96
      %v616 = vpop.permute.xlu0 %615
      %v624 = vsel %vm413, %v604, 0.0
      %625 = vadd.xlane.f32.xlu0 %v624
      %v626 = vpop.xlane.xlu0 %625
      %v627 = vsel %vm413, %v606, 0.0
      %628 = vadd.xlane.f32.xlu0 %v627
      %v629 = vpop.xlane.xlu0 %628
      %v630 = vsel %vm413, %v608, 0.0
      %631 = vadd.xlane.f32.xlu0 %v630
      %v632 = vpop.xlane.xlu0 %631
      %v633 = vsel %vm413, %v610, 0.0
      %634 = vadd.xlane.f32.xlu0 %v633
      %v635 = vpop.xlane.xlu0 %634
      %v636 = vsel %vm413, %v612, 0.0
      %637 = vadd.xlane.f32.xlu0 %v636
      %v638 = vpop.xlane.xlu0 %637
      %v639 = vsel %vm413, %v614, 0.0
      %640 = vadd.xlane.f32.xlu0 %v639
      %v641 = vpop.xlane.xlu0 %640
      %v642 = vsel %vm522, %v616, 0.0
      %643 = vadd.xlane.f32.xlu0 %v642
      %v644 = vpop.xlane.xlu0 %643
      %v645 = vrsqrt.pop %v626
      %v646 = vmul.f32 %v626, %v645
      %vm647 = vcmp.eq.f32.partialorder %v626, inf
      %v648 = vsel %vm647, %v626, %v646
      %vm649 = vcmp.eq.f32.partialorder %v626, 0.0
      %v650 = vand.u32 %v626, 2147483648
      %v651 = vsel %vm649, %v650, %v648
      %v652 = vrsqrt.pop %v629
      %v653 = vmul.f32 %v629, %v652
      %vm654 = vcmp.eq.f32.partialorder %v629, inf
      %v655 = vsel %vm654, %v629, %v653
      %vm656 = vcmp.eq.f32.partialorder %v629, 0.0
      %v657 = vand.u32 %v629, 2147483648
      %v658 = vsel %vm656, %v657, %v655
      %v659 = vrsqrt.pop %v632
      %v660 = vmul.f32 %v632, %v659
      %vm661 = vcmp.eq.f32.partialorder %v632, inf
      %v662 = vsel %vm661, %v632, %v660
      %vm663 = vcmp.eq.f32.partialorder %v632, 0.0
      %v664 = vand.u32 %v632, 2147483648
      %v665 = vsel %vm663, %v664, %v662
      %v666 = vrsqrt.pop %v635
      %v667 = vmul.f32 %v635, %v666
      %vm668 = vcmp.eq.f32.partialorder %v635, inf
      %v669 = vsel %vm668, %v635, %v667
      %vm670 = vcmp.eq.f32.partialorder %v635, 0.0
      %v671 = vand.u32 %v635, 2147483648
      %v672 = vsel %vm670, %v671, %v669
      %v673 = vrsqrt.pop %v638
      %v674 = vmul.f32 %v638, %v673
      %vm675 = vcmp.eq.f32.partialorder %v638, inf
      %v676 = vsel %vm675, %v638, %v674
      %vm677 = vcmp.eq.f32.partialorder %v638, 0.0
      %v678 = vand.u32 %v638, 2147483648
      %v679 = vsel %vm677, %v678, %v676
      %v680 = vrsqrt.pop %v641
      %v681 = vmul.f32 %v641, %v680
      %vm682 = vcmp.eq.f32.partialorder %v641, inf
      %v683 = vsel %vm682, %v641, %v681
      %vm684 = vcmp.eq.f32.partialorder %v641, 0.0
      %v685 = vand.u32 %v641, 2147483648
      %v686 = vsel %vm684, %v685, %v683
      %v687 = vrsqrt.pop %v644
      %v688 = vmul.f32 %v644, %v687
      %vm689 = vcmp.eq.f32.partialorder %v644, inf
      %v690 = vsel %vm689, %v644, %v688
      %vm691 = vcmp.eq.f32.partialorder %v644, 0.0
      %v692 = vand.u32 %v644, 2147483648
      %v693 = vsel %vm691, %v692, %v690
      %v694 = vmax.f32 %v651, 1e-12
      %v695 = vmax.f32 %v658, 1e-12
      %v696 = vmax.f32 %v665, 1e-12
      %v697 = vmax.f32 %v672, 1e-12
      %v698 = vmax.f32 %v679, 1e-12
      %v699 = vmax.f32 %v686, 1e-12
      %v700 = vmax.f32 %v693, 1e-12
      %v701 = vrcp.pop %v694
      %v702 = vmul.f32 %v461, %v701
      %v703 = vrcp.pop %v695
      %v704 = vmul.f32 %v464, %v703
      %v705 = vrcp.pop %v696
      %v706 = vmul.f32 %v469, %v705
      %v707 = vrcp.pop %v697
      %v708 = vmul.f32 %v472, %v707
      %v709 = vrcp.pop %v698
      %v710 = vmul.f32 %v477, %v709
      %v711 = vrcp.pop %v699
      %v712 = vmul.f32 %v480, %v711
      %v713 = vrcp.pop %v700
      %v714 = vmul.f32 %v485, %v713
      %v715 = vpack.c.bf16 %v585, %v583
      %v716 = vpack.c.bf16 %v589, %v587
      %v717 = vpack.c.bf16 %v593, %v591
      %v718 = vpack.c.bf16 %v595, %v595
      %v719 = vpack.c.bf16 %v704, %v702
      %v720 = vpack.c.bf16 %v708, %v706
      %v721 = vpack.c.bf16 %v712, %v710
      %v722 = vpack.c.bf16 %v714, %v714
      %727 = vrot.lane.b32.xlu0 %v719, 96
      %v728 = vpop.permute.xlu0 %727
      %729 = vrot.lane.b32.xlu0 %v720, 96
      %v730 = vpop.permute.xlu0 %729
      %731 = vrot.lane.b32.xlu0 %v721, 96
      %v732 = vpop.permute.xlu0 %731
      %733 = vrot.lane.b32.xlu0 %v722, 96
      %v734 = vpop.permute.xlu0 %733
      %v736 = vsel %vm413, %v715, 0
      %v739 = vsel %vm413, %v716, 0
      %v742 = vsel %vm413, %v717, 0
      %v745 = vsel %vm413, %v718, 0
      %v748 = vsel %vm413, %v728, 0
      %v751 = vsel %vm413, %v730, 0
      %v754 = vsel %vm413, %v732, 0
      %v757 = vsel %vm413, %v734, 0
      %759 = vmatprep.subr.bf16.mxu0 0
      %760 = vmatpush1.bf16.xpose.msra.mxu0 %v748
      %761 = vmatprep.subr.bf16.mxu0 0
      %762 = vmatpush1.bf16.xpose.msra.mxu0 %v751
      %763 = vmatprep.subr.bf16.mxu0 0
      %764 = vmatpush1.bf16.xpose.msra.mxu0 %v754
      %765 = vmatprep.subr.bf16.mxu0 0
      %766 = vmatpush1.bf16.xpose.msra.mxu0 %v757
      %767 = vmatprep.subr.bf16.mxu0 0
      %768 = vmatpush1.bf16.xpose.msra.mxu0 0
      %769 = vmatprep.subr.bf16.mxu0 0
      %770 = vmatpush1.bf16.xpose.msra.mxu0 0
      %771 = vmatprep.subr.bf16.mxu0 0
      %772 = vmatpush1.bf16.xpose.msra.mxu0 0
      %773 = vmatprep.subr.bf16.mxu0 0
      %774 = vmatpush1.bf16.xpose.msra.mxu0 0
      %775 = vmatprep.subr.bf16.mxu0 0
      %776 = vmatpush1.bf16.xpose.msra.mxu0 0
      %777 = vmatprep.subr.bf16.mxu0 0
      %778 = vmatpush1.bf16.xpose.msra.mxu0 0
      %779 = vmatprep.subr.bf16.mxu0 0
      %780 = vmatpush1.bf16.xpose.msra.mxu0 0
      %781 = vmatprep.subr.bf16.mxu0 0
      %782 = vmatpush1.bf16.xpose.msra.mxu0 0
      %783 = vmatprep.subr.bf16.mxu0 0
      %784 = vmatpush1.bf16.xpose.msra.mxu0 0
      %785 = vmatprep.subr.bf16.mxu0 0
      %786 = vmatpush1.bf16.xpose.msra.mxu0 0
      %787 = vmatprep.subr.bf16.mxu0 0
      %788 = vmatpush1.bf16.xpose.msra.mxu0 0
      %789 = vmatprep.subr.bf16.mxu0 0
      %790 = vmatpush1.bf16.xpose.msra.mxu0 0
      %791 = vmatprep.mubr.bf16.mxu0 0
      %792 = vmatmul.mubr.bf16.gmra.mrb[0].mxu0 %v736
      %v793 = vpop.f32.mrb[0].mxu0
      %v794 = vadd.f32 0.0, %v793
      %v795 = vpop.f32.mrb[0].mxu0
      %v796 = vpop.f32.mrb[0].mxu0
      %v797 = vadd.f32 0.0, %v796
      %v798 = vpop.f32.mrb[0].mxu0
      %799 = vmatprep.mubr.bf16.mxu0 0
      %800 = vmatmul.mubr.bf16.gmra.mrb[0].mxu0 %v739
      %v801 = vpop.f32.mrb[0].mxu0
      %v802 = vadd.f32 0.0, %v801
      %v803 = vpop.f32.mrb[0].mxu0
      %v804 = vpop.f32.mrb[0].mxu0
      %v805 = vadd.f32 0.0, %v804
      %v806 = vpop.f32.mrb[0].mxu0
      %807 = vmatprep.mubr.bf16.mxu0 0
      %808 = vmatmul.mubr.bf16.gmra.mrb[0].mxu0 %v742
      %v809 = vpop.f32.mrb[0].mxu0
      %v810 = vadd.f32 0.0, %v809
      %v811 = vpop.f32.mrb[0].mxu0
      %v812 = vpop.f32.mrb[0].mxu0
      %v813 = vadd.f32 0.0, %v812
      %v814 = vpop.f32.mrb[0].mxu0
      %815 = vmatprep.mubr.bf16.mxu0 0
      %816 = vmatmul.mubr.bf16.gmra.mrb[0].mxu0 %v745
      %v817 = vpop.f32.mrb[0].mxu0
      %v818 = vadd.f32 0.0, %v817
      %v819 = vpop.f32.mrb[0].mxu0
      %v820 = vpop.f32.mrb[0].mxu0
      %v821 = vpop.f32.mrb[0].mxu0
      %822 = vdwg.mxu0
      %v823 = vld [vmem:[#allocation2] sm:$0x1]
      %v825 = vlaneseq
      %v826 = vshrl.u32 %v825, 7
      %v827 = vsub.s32 0, %v826
      %v828 = vrot.slane %v823, %v827
      %829 = vset.pattern.permute.xlu0 0
      %830 = vperm.xlu0 %829, %v828
      %v831 = vpop.permute.xlu0 %830
      %v833 = vmul.f32 %v794, %v831
      %v834 = vmul.f32 %v797, %v831
      %v835 = vmul.f32 %v802, %v831
      %v836 = vmul.f32 %v805, %v831
      %v837 = vmul.f32 %v810, %v831
      %v838 = vmul.f32 %v813, %v831
      %v839 = vmul.f32 %v818, %v831
      %v840 = vld [vmem:[%s5] sm:$0xff]
      %v841 = vld [vmem:[%s5 + $0x8] sm:$0xff]
      %v842 = vld [vmem:[%s5 + $0x10] sm:$0xff]
      %v843 = vld [vmem:[%s5 + $0x18] sm:$0xff]
      %v844 = vld [vmem:[%s5 + $0x20] sm:$0xff]
      %v845 = vld [vmem:[%s5 + $0x28] sm:$0xff]
      %v846 = vld [vmem:[%s5 + $0x30] sm:$0x1]
      %v847 = vadd.f32 %v833, %v840
      %v848 = vadd.f32 %v834, %v841
      %v849 = vadd.f32 %v835, %v842
      %v850 = vadd.f32 %v836, %v843
      %v851 = vadd.f32 %v837, %v844
      %v852 = vadd.f32 %v838, %v845
      %v853 = vadd.f32 %v839, %v846
      %v854 = vadd.f32 %v847, %v490
      %v855 = vadd.f32 %v848, %v491
      %v856 = vadd.f32 %v849, %v492
      %v857 = vadd.f32 %v850, %v493
      %v858 = vadd.f32 %v851, %v494
      %v859 = vadd.f32 %v852, %v495
      %v860 = vadd.f32 %v853, %v496
      %vm861 = vcmask 400384
      %v862 = vsel %vm861, %v854, -inf
      %863 = vmax.xlane.f32.xlu0 %v862
      %v864 = vpop.xlane.xlu0 %863
      %v865 = vsel %vm861, %v855, -inf
      %866 = vmax.xlane.f32.xlu0 %v865
      %v867 = vpop.xlane.xlu0 %866
      %v868 = vsel %vm861, %v856, -inf
      %869 = vmax.xlane.f32.xlu0 %v868
      %v870 = vpop.xlane.xlu0 %869
      %v871 = vsel %vm861, %v857, -inf
      %872 = vmax.xlane.f32.xlu0 %v871
      %v873 = vpop.xlane.xlu0 %872
      %v874 = vsel %vm861, %v858, -inf
      %875 = vmax.xlane.f32.xlu0 %v874
      %v876 = vpop.xlane.xlu0 %875
      %v877 = vsel %vm861, %v859, -inf
      %878 = vmax.xlane.f32.xlu0 %v877
      %v879 = vpop.xlane.xlu0 %878
      %vm880 = vcmask 393216
      %v881 = vsel %vm880, %v860, -inf
      %882 = vmax.xlane.f32.xlu0 %v881
      %v883 = vpop.xlane.xlu0 %882
      %v884 = vsub.f32 %v854, %v864
      %v885 = vsub.f32 %v855, %v867
      %v886 = vsub.f32 %v856, %v870
      %v887 = vsub.f32 %v857, %v873
      %v888 = vsub.f32 %v858, %v876
      %v889 = vsub.f32 %v859, %v879
      %v890 = vsub.f32 %v860, %v883
      %v891 = vmul.f32 %v884, 1.442695
      %v892 = vpow.pop %v891
      %v893 = vmul.f32 %v885, 1.442695
      %v894 = vpow.pop %v893
      %v895 = vmul.f32 %v886, 1.442695
      %v896 = vpow.pop %v895
      %v897 = vmul.f32 %v887, 1.442695
      %v898 = vpow.pop %v897
      %v899 = vmul.f32 %v888, 1.442695
      %v900 = vpow.pop %v899
      %v901 = vmul.f32 %v889, 1.442695
      %v902 = vpow.pop %v901
      %v903 = vmul.f32 %v890, 1.442695
      %v904 = vpow.pop %v903
      %v905 = vsel %vm861, %v892, 0.0
      %906 = vadd.xlane.f32.xlu0 %v905
      %v907 = vpop.xlane.xlu0 %906
      %v908 = vsel %vm861, %v894, 0.0
      %909 = vadd.xlane.f32.xlu0 %v908
      %v910 = vpop.xlane.xlu0 %909
      %v911 = vsel %vm861, %v896, 0.0
      %912 = vadd.xlane.f32.xlu0 %v911
      %v913 = vpop.xlane.xlu0 %912
      %v914 = vsel %vm861, %v898, 0.0
      %915 = vadd.xlane.f32.xlu0 %v914
      %v916 = vpop.xlane.xlu0 %915
      %v917 = vsel %vm861, %v900, 0.0
      %918 = vadd.xlane.f32.xlu0 %v917
      %v919 = vpop.xlane.xlu0 %918
      %v920 = vsel %vm861, %v902, 0.0
      %921 = vadd.xlane.f32.xlu0 %v920
      %v922 = vpop.xlane.xlu0 %921
      %v923 = vsel %vm880, %v904, 0.0
      %924 = vadd.xlane.f32.xlu0 %v923
      %v925 = vpop.xlane.xlu0 %924
      %v926 = vrcp.pop %v907
      %v927 = vmul.f32 %v892, %v926
      %v928 = vrcp.pop %v910
      %v929 = vmul.f32 %v894, %v928
      %v930 = vrcp.pop %v913
      %v931 = vmul.f32 %v896, %v930
      %v932 = vrcp.pop %v916
      %v933 = vmul.f32 %v898, %v932
      %v934 = vrcp.pop %v919
      %v935 = vmul.f32 %v900, %v934
      %v936 = vrcp.pop %v922
      %v937 = vmul.f32 %v902, %v936
      %v938 = vrcp.pop %v925
      %v939 = vmul.f32 %v904, %v938
      %v940 = vpack.c.bf16 %v929, %v927
      %v941 = vpack.c.bf16 %v933, %v931
      %v942 = vpack.c.bf16 %v937, %v935
      %v943 = vpack.c.bf16 %v939, %v939
      %v944 = vpack.c.bf16 %v464, %v461
      %v945 = vpack.c.bf16 %v472, %v469
      %v946 = vpack.c.bf16 %v480, %v477
      %v947 = vpack.c.bf16 %v485, %v485
      %952 = vrot.lane.b32.xlu0 %v944, 64
      %v953 = vpop.permute.xlu0 %952
      %954 = vrot.lane.b32.xlu0 %v945, 64
      %v955 = vpop.permute.xlu0 %954
      %956 = vrot.lane.b32.xlu0 %v946, 64
      %v957 = vpop.permute.xlu0 %956
      %958 = vrot.lane.b32.xlu0 %v947, 64
      %v959 = vpop.permute.xlu0 %958
      %v964 = vsel %vm861, %v940, 0
      %v967 = vsel %vm861, %v941, 0
      %v970 = vsel %vm861, %v942, 0
      %v973 = vsel %vm861, %v943, 0
      %vm975 = vcmask 1040384
      %v976 = vsel 0, 4294967295, 65535
      %v977 = vsel %vm975, %v976, 0
      %v979 = vand.u32 %v959, %v977
      %981 = vmatprep.subr.bf16.mxu0 0
      %982 = vmatpush1.bf16.msra.mxu0 %v953
      %983 = vmatprep.subr.bf16.mxu0 0
      %984 = vmatpush1.bf16.msra.mxu0 %v955
      %985 = vmatprep.subr.bf16.mxu0 0
      %986 = vmatpush1.bf16.msra.mxu0 %v957
      %987 = vmatprep.subr.bf16.mxu0 0
      %988 = vmatpush1.bf16.msra.mxu0 %v979
      %989 = vmatprep.subr.bf16.mxu0 0
      %990 = vmatpush1.bf16.msra.mxu0 0
      %991 = vmatprep.subr.bf16.mxu0 0
      %992 = vmatpush1.bf16.msra.mxu0 0
      %993 = vmatprep.subr.bf16.mxu0 0
      %994 = vmatpush1.bf16.msra.mxu0 0
      %995 = vmatprep.subr.bf16.mxu0 0
      %996 = vmatpush1.bf16.msra.mxu0 0
      %997 = vmatprep.subr.bf16.mxu0 0
      %998 = vmatpush1.bf16.msra.mxu0 0
      %999 = vmatprep.subr.bf16.mxu0 0
      %1000 = vmatpush1.bf16.msra.mxu0 0
      %1001 = vmatprep.subr.bf16.mxu0 0
      %1002 = vmatpush1.bf16.msra.mxu0 0
      %1003 = vmatprep.subr.bf16.mxu0 0
      %1004 = vmatpush1.bf16.msra.mxu0 0
      %1005 = vmatprep.subr.bf16.mxu0 0
      %1006 = vmatpush1.bf16.msra.mxu0 0
      %1007 = vmatprep.subr.bf16.mxu0 0
      %1008 = vmatpush1.bf16.msra.mxu0 0
      %1009 = vmatprep.subr.bf16.mxu0 0
      %1010 = vmatpush1.bf16.msra.mxu0 0
      %1011 = vmatprep.subr.bf16.mxu0 0
      %1012 = vmatpush1.bf16.msra.mxu0 0
      %1013 = vmatprep.mubr.bf16.mxu0 0
      %1014 = vmatmul.mubr.bf16.gmra.mrb[0].mxu0 %v964
      %v1015 = vpop.f32.mrb[0].mxu0
      %v1016 = vadd.f32 0.0, %v1015
      %v1017 = vpop.f32.mrb[0].mxu0
      %v1018 = vpop.f32.mrb[0].mxu0
      %v1019 = vadd.f32 0.0, %v1018
      %v1020 = vpop.f32.mrb[0].mxu0
      %1021 = vmatprep.mubr.bf16.mxu0 0
      %1022 = vmatmul.mubr.bf16.gmra.mrb[0].mxu0 %v967
      %v1023 = vpop.f32.mrb[0].mxu0
      %v1024 = vadd.f32 0.0, %v1023
      %v1025 = vpop.f32.mrb[0].mxu0
      %v1026 = vpop.f32.mrb[0].mxu0
      %v1027 = vadd.f32 0.0, %v1026
      %v1028 = vpop.f32.mrb[0].mxu0
      %1029 = vmatprep.mubr.bf16.mxu0 0
      %1030 = vmatmul.mubr.bf16.gmra.mrb[0].mxu0 %v970
      %v1031 = vpop.f32.mrb[0].mxu0
      %v1032 = vadd.f32 0.0, %v1031
      %v1033 = vpop.f32.mrb[0].mxu0
      %v1034 = vpop.f32.mrb[0].mxu0
      %v1035 = vadd.f32 0.0, %v1034
      %v1036 = vpop.f32.mrb[0].mxu0
      %1037 = vmatprep.mubr.bf16.mxu0 0
      %1038 = vmatmul.mubr.bf16.gmra.mrb[0].mxu0 %v973
      %v1039 = vpop.f32.mrb[0].mxu0
      %v1040 = vadd.f32 0.0, %v1039
      %v1041 = vpop.f32.mrb[0].mxu0
      %v1042 = vpop.f32.mrb[0].mxu0
      %v1043 = vpop.f32.mrb[0].mxu0
      %1044 = vdwg.mxu0
      %v1045 = vpack.c.bf16 %v1019, %v1016
      %v1046 = vpack.c.bf16 %v1027, %v1024
      %v1047 = vpack.c.bf16 %v1035, %v1032
      %v1048 = vpack.c.bf16 %v1040, %v1040
      %v1049 = vld [vmem:[%s6] sm:$0xf]
      %v1050 = vld [vmem:[%s6 + $0x4] sm:$0xf]
      %v1051 = vld [vmem:[%s6 + $0x8] sm:$0xf]
      %v1052 = vld [vmem:[%s6 + $0xc] sm:$0xf]
      %v1053 = vld [vmem:[%s7] sm:$0x1]
      %v1055 = vlaneseq
      %v1056 = vshrl.u32 %v1055, 7
      %v1057 = vsub.s32 0, %v1056
      %v1058 = vrot.slane %v1053, %v1057
      %v1064 = vunpack.c.l.b16 %v1049
      %v1065 = vunpack.c.l.b16 %v1050
      %v1066 = vunpack.c.l.b16 %v1051
      %v1067 = vunpack.c.l.b16 %v1052
      %v1068 = vpack.c.b16 %v1065, %v1064
      %v1069 = vpack.c.b16 %v1067, %v1066
      %v1073 = vsel %vm413, %v1045, 0
      %v1076 = vsel %vm413, %v1046, 0
      %v1079 = vsel %vm413, %v1047, 0
      %v1082 = vsel %vm413, %v1048, 0
      %1084 = vmatprep.subr.bf16.mxu0 0
      %1085 = vmatpush1.bf16.msra.mxu0 %v1068
      %1086 = vmatprep.subr.bf16.mxu0 0
      %1087 = vmatpush1.bf16.msra.mxu0 %v1069
      %1088 = vmatprep.subr.bf16.mxu0 0
      %1089 = vmatpush1.bf16.msra.mxu0 0
      %1090 = vmatprep.subr.bf16.mxu0 0
      %1091 = vmatpush1.bf16.msra.mxu0 0
      %1092 = vmatprep.subr.bf16.mxu0 0
      %1093 = vmatpush1.bf16.msra.mxu0 0
      %1094 = vmatprep.subr.bf16.mxu0 0
      %1095 = vmatpush1.bf16.msra.mxu0 0
      %1096 = vmatprep.subr.bf16.mxu0 0
      %1097 = vmatpush1.bf16.msra.mxu0 0
      %1098 = vmatprep.subr.bf16.mxu0 0
      %1099 = vmatpush1.bf16.msra.mxu0 0
      %1100 = vmatprep.subr.bf16.mxu0 0
      %1101 = vmatpush1.bf16.msra.mxu0 0
      %1102 = vmatprep.subr.bf16.mxu0 0
      %1103 = vmatpush1.bf16.msra.mxu0 0
      %1104 = vmatprep.subr.bf16.mxu0 0
      %1105 = vmatpush1.bf16.msra.mxu0 0
      %1106 = vmatprep.subr.bf16.mxu0 0
      %1107 = vmatpush1.bf16.msra.mxu0 0
      %1108 = vmatprep.subr.bf16.mxu0 0
      %1109 = vmatpush1.bf16.msra.mxu0 0
      %1110 = vmatprep.subr.bf16.mxu0 0
      %1111 = vmatpush1.bf16.msra.mxu0 0
      %1112 = vmatprep.subr.bf16.mxu0 0
      %1113 = vmatpush1.bf16.msra.mxu0 0
      %1114 = vmatprep.subr.bf16.mxu0 0
      %1115 = vmatpush1.bf16.msra.mxu0 0
      %1116 = vmatprep.mubr.bf16.mxu0 0
      %1117 = vmatmul.mubr.bf16.gmra.mrb[0].mxu0 %v1073
      %v1118 = vpop.f32.mrb[0].mxu0
      %v1119 = vadd.f32 %v1058, %v1118
      %v1120 = vpop.f32.mrb[0].mxu0
      %v1121 = vpop.f32.mrb[0].mxu0
      %v1122 = vadd.f32 %v1058, %v1121
      %v1123 = vpop.f32.mrb[0].mxu0
      %1124 = vmatprep.mubr.bf16.mxu0 0
      %1125 = vmatmul.mubr.bf16.gmra.mrb[0].mxu0 %v1076
      %v1126 = vpop.f32.mrb[0].mxu0
      %v1127 = vadd.f32 %v1058, %v1126
      %v1128 = vpop.f32.mrb[0].mxu0
      %v1129 = vpop.f32.mrb[0].mxu0
      %v1130 = vadd.f32 %v1058, %v1129
      %v1131 = vpop.f32.mrb[0].mxu0
      %1132 = vmatprep.mubr.bf16.mxu0 0
      %1133 = vmatmul.mubr.bf16.gmra.mrb[0].mxu0 %v1079
      %v1134 = vpop.f32.mrb[0].mxu0
      %v1135 = vadd.f32 %v1058, %v1134
      %v1136 = vpop.f32.mrb[0].mxu0
      %v1137 = vpop.f32.mrb[0].mxu0
      %v1138 = vadd.f32 %v1058, %v1137
      %v1139 = vpop.f32.mrb[0].mxu0
      %1140 = vmatprep.mubr.bf16.mxu0 0
      %1141 = vmatmul.mubr.bf16.gmra.mrb[0].mxu0 %v1082
      %v1142 = vpop.f32.mrb[0].mxu0
      %v1143 = vadd.f32 %v1058, %v1142
      %v1144 = vpop.f32.mrb[0].mxu0
      %v1145 = vpop.f32.mrb[0].mxu0
      %v1146 = vpop.f32.mrb[0].mxu0
      %1147 = vdwg.mxu0
      %1148 = vst.msk [vmem:[%s363] sm:$0xff] %vm413, %v1119
      %1149 = vst.msk [vmem:[%s363 + $0x8] sm:$0xff] %vm413, %v1122
      %1150 = vst.msk [vmem:[%s363 + $0x10] sm:$0xff] %vm413, %v1127
      %1151 = vst.msk [vmem:[%s363 + $0x18] sm:$0xff] %vm413, %v1130
      %1152 = vst.msk [vmem:[%s363 + $0x20] sm:$0xff] %vm413, %v1135
      %1153 = vst.msk [vmem:[%s363 + $0x28] sm:$0xff] %vm413, %v1138
      %1154 = vst.msk [vmem:[%s363 + $0x30] sm:$0x1] %vm522, %v1143
      %p1155 = scmp.lt.s32.totalorder %s25, 1
      %s1156 = scalar_select %p1155, %s25, 1
      %p1157 = scmp.lt.s32.totalorder %s26, 3
      %s1158 = scalar_select %p1157, %s26, 3
      %s1159 = smul.addr %s1158, 7
      %s1160 = smul.addr %s1156, 28
      %s1161 = sadd.s32 %s1159, %s1160
      %s1162 = smul.addr %s1161, 8
      %s1163 = scalar_lea.vmem %s8, %s1162
      // Predicated region
      $region53: #{forward.6} parent=51 // pred_check
        %p1164 = pneg %p233
      $region54: #{forward.6} parent=51 // pred_check_branch
        %1166 = sbr.rel (%p1164) target = $region56
      $region55: #{forward.6} parent=51 // pred_region
        _
      $region56: #{forward.6} parent=51 // pred_fallthru
        _
    $region52: #{forward.6} parent=5 // pred_fallthru
      _
    %p1167 = scmp.le.s32.totalorder 2, %s16
    // Predicated region
    $region57: #{forward.6} parent=5 // pred_check
      %p1168 = pneg %p1167
    $region58: #{forward.6} parent=5 // pred_check_branch
      %1170 = sbr.rel (%p1168) target = $region60
    $region59: #{forward.6} parent=5 // pred_region
      %s1171 = ssub.s32 %s16, 2
      // Predicated region
      $region61: #{forward.6} parent=59 // pred_check
        %p1172 = pneg %p239
      $region62: #{forward.6} parent=59 // pred_check_branch
        %1174 = sbr.rel (%p1172) target = $region64
      $region63: #{forward.6} parent=59 // pred_region
        %p1175 = scmp.lt.s32.totalorder %s27, 1
        %s1176 = scalar_select %p1175, %s27, 1
        %p1177 = scmp.lt.s32.totalorder %s28, 3
        %s1178 = scalar_select %p1177, %s28, 3
        %s1179 = smul.addr %s1178, 7
        %s1180 = smul.addr %s1176, 28
        %s1181 = sadd.s32 %s1179, %s1180
        %s1182 = smul.addr %s1181, 8
        %s1183 = scalar_lea.vmem %s8, %s1182
      $region64: #{forward.6} parent=59 // pred_fallthru
        _
    $region60: #{forward.6} parent=5 // pred_fallthru
      _
  $region6: #{forward.6} parent=0 // loop_footer
    %s20 = sadd.s32 1, %s16
  $region7: #{forward.6} parent=0 // loop_footer_branch
    %15 = sbr.rel target = $region3
  $region8: #{forward.6} parent=0 // loop_exit
    _

// kernel: forward.8
$region0: #{forward.8}
  #allocation0 [shape = 'u32[]', space=smem, size = 0x4, offset = 0x4, fixed_abs, tag = 'smem constant byte address 0x4 - core index']
  #allocation1 [shape = 'u32[144,128]{1,0:T(1,128)}', space=vmem, size = 0x12000, scoped, tag = 'internal scratch']
  %s0 = inlined_call_operand.vmem [shape: bf16[512,32], index: 0, kind: input, shape index: {}]
  %s1 = inlined_call_operand.vmem [shape: bf16[32,32], index: 1, kind: input, shape index: {}]
  %s2 = inlined_call_operand.vmem [shape: f32[1,32], index: 2, kind: input, shape index: {}]
  %s3 = inlined_call_operand.vmem [shape: f32[1,32], index: 3, kind: input, shape index: {}]
  %s4 = inlined_call_operand.vmem [shape: f32[512,32], index: 4, kind: output, shape index: {}]
  %s5 = sld [smem:[#allocation0]]
  $region49: #{forward.8} parent=0
    _
  %s7 = ssub.s32 1, %s5
  %s8 = scalar_select 0, %s7, %s5
  loop: start=0, step=1, limit=4
  $region2: #{forward.8} parent=0 // loop_pre_header
    _
  $region3: #{forward.8} parent=0 // loop_header
    %s10 = sphi 0, %s14
    %p11 = scmp.ge.s32.totalorder %s10, 4
    %s20 = sphi 0, %s22
    %s23 = sphi 0, %s20
    %s24 = sphi 0, %s23
    %s40 = sphi 0, %s24
    %s44 = sphi 0, %s44
    %s46 = sphi 0, %s44
    %s47 = sphi 0, %s46
    %s61 = sphi 0, %s47
    %s65 = sphi 0, %s65
    %s67 = sphi 0, %s65
    %s68 = sphi 0, %s67
    %s82 = sphi 0, %s68
    %s86 = sphi 0, %s86
    %s88 = sphi 0, %s86
    %s89 = sphi 0, %s88
    %s103 = sphi 0, %s89
    %s109 = sphi 0, %s111
    %s112 = sphi 0, %s109
    %s113 = sphi 0, %s112
    %s129 = sphi 0, %s113
  $region4: #{forward.8} parent=0 // loop_header_branch
    %13 = sbr.rel (%p11) target = $region8
  $region5: #{forward.8} parent=0 // loop_body
    %s15 = ssub.s32 %s10, 1
    %s16 = ssub.s32 %s10, 2
    %s17 = sadd.s32 %s10, 1
    %s18 = ssub.s32 %s10, %s17
    %p19 = scmp.eq.s32.totalorder %s18, 0
    %s21 = sadd.s32 %s20, 1
    %s22 = scalar_select %p19, %s20, %s21
    %p25 = pneg %p19
    %p26 = scmp.eq.s32.totalorder %s10, 1
    %p27 = por %p25, %p26
    %p28 = scmp.ne.s32.totalorder %s20, %s23
    %p29 = scmp.eq.s32.totalorder %s10, 0
    %p30 = por %p28, %p29
    %p31 = scmp.ne.s32.totalorder %s20, %s23
    %p32 = scmp.eq.s32.totalorder %s15, 1
    %p33 = por %p31, %p32
    %p34 = scmp.ne.s32.totalorder %s23, %s24
    %p35 = scmp.eq.s32.totalorder %s15, 0
    %p36 = por %p34, %p35
    %p37 = scmp.ne.s32.totalorder %s23, %s24
    %p38 = scmp.eq.s32.totalorder %s16, 1
    %p39 = por %p37, %p38
    %p41 = scmp.ne.s32.totalorder %s24, %s40
    %p42 = scmp.eq.s32.totalorder %s16, 0
    %p43 = por %p41, %p42
    %s45 = sadd.s32 %s44, 1
    %p48 = scmp.eq.s32.totalorder %s10, 1
    %p49 = scmp.ne.s32.totalorder %s44, %s46
    %p50 = scmp.eq.s32.totalorder %s10, 0
    %p51 = por %p49, %p50
    %p52 = scmp.ne.s32.totalorder %s44, %s46
    %p53 = scmp.eq.s32.totalorder %s15, 1
    %p54 = por %p52, %p53
    %p55 = scmp.ne.s32.totalorder %s46, %s47
    %p56 = scmp.eq.s32.totalorder %s15, 0
    %p57 = por %p55, %p56
    %p58 = scmp.ne.s32.totalorder %s46, %s47
    %p59 = scmp.eq.s32.totalorder %s16, 1
    %p60 = por %p58, %p59
    %p62 = scmp.ne.s32.totalorder %s47, %s61
    %p63 = scmp.eq.s32.totalorder %s16, 0
    %p64 = por %p62, %p63
    %s66 = sadd.s32 %s65, 1
    %p69 = scmp.eq.s32.totalorder %s10, 1
    %p70 = scmp.ne.s32.totalorder %s65, %s67
    %p71 = scmp.eq.s32.totalorder %s10, 0
    %p72 = por %p70, %p71
    %p73 = scmp.ne.s32.totalorder %s65, %s67
    %p74 = scmp.eq.s32.totalorder %s15, 1
    %p75 = por %p73, %p74
    %p76 = scmp.ne.s32.totalorder %s67, %s68
    %p77 = scmp.eq.s32.totalorder %s15, 0
    %p78 = por %p76, %p77
    %p79 = scmp.ne.s32.totalorder %s67, %s68
    %p80 = scmp.eq.s32.totalorder %s16, 1
    %p81 = por %p79, %p80
    %p83 = scmp.ne.s32.totalorder %s68, %s82
    %p84 = scmp.eq.s32.totalorder %s16, 0
    %p85 = por %p83, %p84
    %s87 = sadd.s32 %s86, 1
    %p90 = scmp.eq.s32.totalorder %s10, 1
    %p91 = scmp.ne.s32.totalorder %s86, %s88
    %p92 = scmp.eq.s32.totalorder %s10, 0
    %p93 = por %p91, %p92
    %p94 = scmp.ne.s32.totalorder %s86, %s88
    %p95 = scmp.eq.s32.totalorder %s15, 1
    %p96 = por %p94, %p95
    %p97 = scmp.ne.s32.totalorder %s88, %s89
    %p98 = scmp.eq.s32.totalorder %s15, 0
    %p99 = por %p97, %p98
    %p100 = scmp.ne.s32.totalorder %s88, %s89
    %p101 = scmp.eq.s32.totalorder %s16, 1
    %p102 = por %p100, %p101
    %p104 = scmp.ne.s32.totalorder %s89, %s103
    %p105 = scmp.eq.s32.totalorder %s16, 0
    %p106 = por %p104, %p105
    %s107 = ssub.s32 %s10, %s17
    %p108 = scmp.eq.s32.totalorder %s107, 0
    %s110 = sadd.s32 %s109, 1
    %s111 = scalar_select %p108, %s109, %s110
    %p114 = pneg %p108
    %p115 = scmp.eq.s32.totalorder %s10, 1
    %p116 = por %p114, %p115
    %p117 = scmp.ne.s32.totalorder %s109, %s112
    %p118 = scmp.eq.s32.totalorder %s10, 0
    %p119 = por %p117, %p118
    %p120 = scmp.ne.s32.totalorder %s109, %s112
    %p121 = scmp.eq.s32.totalorder %s15, 1
    %p122 = por %p120, %p121
    %p123 = scmp.ne.s32.totalorder %s112, %s113
    %p124 = scmp.eq.s32.totalorder %s15, 0
    %p125 = por %p123, %p124
    %p126 = scmp.ne.s32.totalorder %s112, %s113
    %p127 = scmp.eq.s32.totalorder %s16, 1
    %p128 = por %p126, %p127
    %p130 = scmp.ne.s32.totalorder %s113, %s129
    %p131 = scmp.eq.s32.totalorder %s16, 0
    %p132 = por %p130, %p131
    %p133 = scmp.le.s32.totalorder 1, %s10
    %p134 = scmp.lt.s32.totalorder %s10, 3
    %p135 = pnand %p133, %p134
    %p136 = pneg %p135
    // Predicated region
    $region9: #{forward.8} parent=5 // pred_check
      _
    $region10: #{forward.8} parent=5 // pred_check_branch
      %138 = sbr.rel (%p135) target = $region12
    $region11: #{forward.8} parent=5 // pred_region
      %s139 = ssub.s32 %s10, 1
      // Predicated region
      $region13: #{forward.8} parent=11 // pred_check
        %p140 = pneg %p57
      $region14: #{forward.8} parent=11 // pred_check_branch
        %142 = sbr.rel (%p140) target = $region16
      $region15: #{forward.8} parent=11 // pred_region
        _
      $region16: #{forward.8} parent=11 // pred_fallthru
        _
      // Predicated region
      $region17: #{forward.8} parent=11 // pred_check
        %p143 = pneg %p78
      $region18: #{forward.8} parent=11 // pred_check_branch
        %145 = sbr.rel (%p143) target = $region20
      $region19: #{forward.8} parent=11 // pred_region
        _
      $region20: #{forward.8} parent=11 // pred_fallthru
        _
      // Predicated region
      $region21: #{forward.8} parent=11 // pred_check
        %p146 = pneg %p99
      $region22: #{forward.8} parent=11 // pred_check_branch
        %148 = sbr.rel (%p146) target = $region24
      $region23: #{forward.8} parent=11 // pred_region
        _
      $region24: #{forward.8} parent=11 // pred_fallthru
        _
    $region12: #{forward.8} parent=5 // pred_fallthru
      _
    %p149 = scmp.lt.s32.totalorder %s10, 2
    // Predicated region
    $region25: #{forward.8} parent=5 // pred_check
      %p150 = pneg %p149
    $region26: #{forward.8} parent=5 // pred_check_branch
      %152 = sbr.rel (%p150) target = $region28
    $region27: #{forward.8} parent=5 // pred_region
      // Predicated region
      $region29: #{forward.8} parent=27 // pred_check
        %p153 = pneg %p30
      $region30: #{forward.8} parent=27 // pred_check_branch
        %155 = sbr.rel (%p153) target = $region32
      $region31: #{forward.8} parent=27 // pred_region
        %s156 = smul.u32 32, %s10
        %p157 = scmp.lt.s32.totalorder %s156, 63
        %s158 = scalar_select %p157, %s156, 63
        %s159 = smul.addr %s158, 4
        %s160 = scalar_lea.vmem %s0, %s159
        %s161 = smul.u32 32, %s10
      $region32: #{forward.8} parent=27 // pred_fallthru
        _
    $region28: #{forward.8} parent=5 // pred_fallthru
      _
    %p162 = scmp.le.s32.totalorder 1, %s10
    %p163 = scmp.lt.s32.totalorder %s10, 3
    %p164 = pnand %p162, %p163
    %p165 = pneg %p164
    // Predicated region
    $region33: #{forward.8} parent=5 // pred_check
      _
    $region34: #{forward.8} parent=5 // pred_check_branch
      %167 = sbr.rel (%p164) target = $region36
    $region35: #{forward.8} parent=5 // pred_region
      %s168 = ssub.s32 %s10, 1
      %s169 = smul.u32 32, %s15
      %p170 = scmp.lt.s32.totalorder %s169, 63
      %s171 = scalar_select %p170, %s169, 63
      %s172 = smul.addr %s171, 4
      %s173 = scalar_lea.vmem %s0, %s172
      %p174 = pneg %p36
      %p175 = pneg %p33
      %p176 = pneg %p57
      %p177 = pneg %p54
      %p178 = pneg %p78
      %p179 = pneg %p75
      %p180 = pneg %p99
      %p181 = pneg %p96
      %p182 = pneg %p125
      %p183 = pneg %p122
      %s184 = smul.u32 32, %s15
      %p185 = scmp.lt.s32.totalorder %s184, 63
      %s186 = scalar_select %p185, %s184, 63
      %s187 = smul.addr %s186, 8
      %s188 = scalar_lea.vmem %s4, %s187
      %s189 = smul.u32 32, %s15
      %p190 = scmp.lt.s32.totalorder %s189, 63
      %s191 = scalar_select %p190, %s189, 63
      %s192 = smul.addr %s191, 4
      %s193 = scalar_lea.vmem %s0, %s192
      %s194 = smul.u32 32, %s15
      %s195 = smul.u32 32, %s15
      %p196 = scmp.lt.s32.totalorder %s195, 63
      %s197 = scalar_select %p196, %s195, 63
      %s198 = smul.addr %s197, 8
      %s199 = scalar_lea.vmem %s4, %s198
      %s200 = smul.u32 32, %s15
      %v202 = vld [vmem:[%s193] sm:$0xf]
      %v203 = vld [vmem:[%s193 + $0x4] sm:$0xf]
      %v204 = vld [vmem:[%s193 + $0x8] sm:$0xf]
      %v205 = vld [vmem:[%s193 + $0xc] sm:$0xf]
      %v206 = vld [vmem:[%s193 + $0x10] sm:$0xf]
      %v207 = vld [vmem:[%s193 + $0x14] sm:$0xf]
      %v208 = vld [vmem:[%s193 + $0x18] sm:$0xf]
      %v209 = vld [vmem:[%s193 + $0x1c] sm:$0xf]
      %v210 = vld [vmem:[%s193 + $0x20] sm:$0xf]
      %v211 = vld [vmem:[%s193 + $0x24] sm:$0xf]
      %v212 = vld [vmem:[%s193 + $0x28] sm:$0xf]
      %v213 = vld [vmem:[%s193 + $0x2c] sm:$0xf]
      %v214 = vld [vmem:[%s193 + $0x30] sm:$0xf]
      %v215 = vld [vmem:[%s193 + $0x34] sm:$0xf]
      %v216 = vld [vmem:[%s193 + $0x38] sm:$0xf]
      %v217 = vld [vmem:[%s193 + $0x3c] sm:$0xf]
      %v218 = vld [vmem:[%s193 + $0x40] sm:$0xf]
      %v219 = vld [vmem:[%s193 + $0x44] sm:$0xf]
      %v220 = vld [vmem:[%s193 + $0x48] sm:$0xf]
      %v221 = vld [vmem:[%s193 + $0x4c] sm:$0xf]
      %v222 = vld [vmem:[%s193 + $0x50] sm:$0xf]
      %v223 = vld [vmem:[%s193 + $0x54] sm:$0xf]
      %v224 = vld [vmem:[%s193 + $0x58] sm:$0xf]
      %v225 = vld [vmem:[%s193 + $0x5c] sm:$0xf]
      %v226 = vld [vmem:[%s193 + $0x60] sm:$0xf]
      %v227 = vld [vmem:[%s193 + $0x64] sm:$0xf]
      %v228 = vld [vmem:[%s193 + $0x68] sm:$0xf]
      %v229 = vld [vmem:[%s193 + $0x6c] sm:$0xf]
      %v230 = vld [vmem:[%s193 + $0x70] sm:$0xf]
      %v231 = vld [vmem:[%s193 + $0x74] sm:$0xf]
      %v232 = vld [vmem:[%s193 + $0x78] sm:$0xf]
      %v233 = vld [vmem:[%s193 + $0x7c] sm:$0xf]
      %v234 = vld [vmem:[%s1] sm:$0xf]
      %v235 = vld [vmem:[%s1 + $0x4] sm:$0xf]
      %v236 = vld [vmem:[%s1 + $0x8] sm:$0xf]
      %v237 = vld [vmem:[%s1 + $0xc] sm:$0xf]
      %v270 = vunpack.c.l.b16 %v202
      %v271 = vunpack.c.l.b16 %v203
      %v272 = vunpack.c.l.b16 %v204
      %v273 = vunpack.c.l.b16 %v205
      %v274 = vunpack.c.l.b16 %v206
      %v275 = vunpack.c.l.b16 %v207
      %v276 = vunpack.c.l.b16 %v208
      %v277 = vunpack.c.l.b16 %v209
      %v278 = vunpack.c.l.b16 %v210
      %v279 = vunpack.c.l.b16 %v211
      %v280 = vunpack.c.l.b16 %v212
      %v281 = vunpack.c.l.b16 %v213
      %v282 = vunpack.c.l.b16 %v214
      %v283 = vunpack.c.l.b16 %v215
      %v284 = vunpack.c.l.b16 %v216
      %v285 = vunpack.c.l.b16 %v217
      %v286 = vunpack.c.l.b16 %v218
      %v287 = vunpack.c.l.b16 %v219
      %v288 = vunpack.c.l.b16 %v220
      %v289 = vunpack.c.l.b16 %v221
      %v290 = vunpack.c.l.b16 %v222
      %v291 = vunpack.c.l.b16 %v223
      %v292 = vunpack.c.l.b16 %v224
      %v293 = vunpack.c.l.b16 %v225
      %v294 = vunpack.c.l.b16 %v226
      %v295 = vunpack.c.l.b16 %v227
      %v296 = vunpack.c.l.b16 %v228
      %v297 = vunpack.c.l.b16 %v229
      %v298 = vunpack.c.l.b16 %v230
      %v299 = vunpack.c.l.b16 %v231
      %v300 = vunpack.c.l.b16 %v232
      %v301 = vunpack.c.l.b16 %v233
      %v302 = vpack.c.b16 %v271, %v270
      %v303 = vpack.c.b16 %v273, %v272
      %v304 = vpack.c.b16 %v275, %v274
      %v305 = vpack.c.b16 %v277, %v276
      %v306 = vpack.c.b16 %v279, %v278
      %v307 = vpack.c.b16 %v281, %v280
      %v308 = vpack.c.b16 %v283, %v282
      %v309 = vpack.c.b16 %v285, %v284
      %v310 = vpack.c.b16 %v287, %v286
      %v311 = vpack.c.b16 %v289, %v288
      %v312 = vpack.c.b16 %v291, %v290
      %v313 = vpack.c.b16 %v293, %v292
      %v314 = vpack.c.b16 %v295, %v294
      %v315 = vpack.c.b16 %v297, %v296
      %v316 = vpack.c.b16 %v299, %v298
      %v317 = vpack.c.b16 %v301, %v300
      %v322 = vunpack.c.l.b16 %v234
      %v323 = vunpack.c.l.b16 %v235
      %v324 = vunpack.c.l.b16 %v236
      %v325 = vunpack.c.l.b16 %v237
      %v326 = vpack.c.b16 %v323, %v322
      %v327 = vpack.c.b16 %v325, %v324
      %vm330 = vcmask 261120
      %v332 = vsel %vm330, %v302, 0
      %v335 = vsel %vm330, %v303, 0
      %v338 = vsel %vm330, %v304, 0
      %v341 = vsel %vm330, %v305, 0
      %v344 = vsel %vm330, %v306, 0
      %v347 = vsel %vm330, %v307, 0
      %v350 = vsel %vm330, %v308, 0
      %v353 = vsel %vm330, %v309, 0
      %v356 = vsel %vm330, %v310, 0
      %v359 = vsel %vm330, %v311, 0
      %v362 = vsel %vm330, %v312, 0
      %v365 = vsel %vm330, %v313, 0
      %v368 = vsel %vm330, %v314, 0
      %v371 = vsel %vm330, %v315, 0
      %v374 = vsel %vm330, %v316, 0
      %v377 = vsel %vm330, %v317, 0
      %379 = vmatprep.subr.bf16.mxu0 0
      %380 = vmatpush1.bf16.msra.mxu0 %v326
      %381 = vmatprep.subr.bf16.mxu0 0
      %382 = vmatpush1.bf16.msra.mxu0 %v327
      %383 = vmatprep.subr.bf16.mxu0 0
      %384 = vmatpush1.bf16.msra.mxu0 0
      %385 = vmatprep.subr.bf16.mxu0 0
      %386 = vmatpush1.bf16.msra.mxu0 0
      %387 = vmatprep.subr.bf16.mxu0 0
      %388 = vmatpush1.bf16.msra.mxu0 0
      %389 = vmatprep.subr.bf16.mxu0 0
      %390 = vmatpush1.bf16.msra.mxu0 0
      %391 = vmatprep.subr.bf16.mxu0 0
      %392 = vmatpush1.bf16.msra.mxu0 0
      %393 = vmatprep.subr.bf16.mxu0 0
      %394 = vmatpush1.bf16.msra.mxu0 0
      %395 = vmatprep.subr.bf16.mxu0 0
      %396 = vmatpush1.bf16.msra.mxu0 0
      %397 = vmatprep.subr.bf16.mxu0 0
      %398 = vmatpush1.bf16.msra.mxu0 0
      %399 = vmatprep.subr.bf16.mxu0 0
      %400 = vmatpush1.bf16.msra.mxu0 0
      %401 = vmatprep.subr.bf16.mxu0 0
      %402 = vmatpush1.bf16.msra.mxu0 0
      %403 = vmatprep.subr.bf16.mxu0 0
      %404 = vmatpush1.bf16.msra.mxu0 0
      %405 = vmatprep.subr.bf16.mxu0 0
      %406 = vmatpush1.bf16.msra.mxu0 0
      %407 = vmatprep.subr.bf16.mxu0 0
      %408 = vmatpush1.bf16.msra.mxu0 0
      %409 = vmatprep.subr.bf16.mxu0 0
      %410 = vmatpush1.bf16.msra.mxu0 0
      %411 = vmatprep.mubr.bf16.mxu0 0
      %412 = vmatmul.mubr.bf16.gmra.mrb[0].mxu0 %v332
      %v413 = vpop.f32.mrb[0].mxu0
      %v414 = vadd.f32 0.0, %v413
      %v415 = vpop.f32.mrb[0].mxu0
      %v416 = vpop.f32.mrb[0].mxu0
      %v417 = vadd.f32 0.0, %v416
      %v418 = vpop.f32.mrb[0].mxu0
      %419 = vmatprep.mubr.bf16.mxu0 0
      %420 = vmatmul.mubr.bf16.gmra.mrb[0].mxu0 %v335
      %v421 = vpop.f32.mrb[0].mxu0
      %v422 = vadd.f32 0.0, %v421
      %v423 = vpop.f32.mrb[0].mxu0
      %v424 = vpop.f32.mrb[0].mxu0
      %v425 = vadd.f32 0.0, %v424
      %v426 = vpop.f32.mrb[0].mxu0
      %427 = vmatprep.mubr.bf16.mxu0 0
      %428 = vmatmul.mubr.bf16.gmra.mrb[0].mxu0 %v338
      %v429 = vpop.f32.mrb[0].mxu0
      %v430 = vadd.f32 0.0, %v429
      %v431 = vpop.f32.mrb[0].mxu0
      %v432 = vpop.f32.mrb[0].mxu0
      %v433 = vadd.f32 0.0, %v432
      %v434 = vpop.f32.mrb[0].mxu0
      %435 = vmatprep.mubr.bf16.mxu0 0
      %436 = vmatmul.mubr.bf16.gmra.mrb[0].mxu0 %v341
      %v437 = vpop.f32.mrb[0].mxu0
      %v438 = vadd.f32 0.0, %v437
      %v439 = vpop.f32.mrb[0].mxu0
      %v440 = vpop.f32.mrb[0].mxu0
      %v441 = vadd.f32 0.0, %v440
      %v442 = vpop.f32.mrb[0].mxu0
      %443 = vmatprep.mubr.bf16.mxu0 0
      %444 = vmatmul.mubr.bf16.gmra.mrb[0].mxu0 %v344
      %v445 = vpop.f32.mrb[0].mxu0
      %v446 = vadd.f32 0.0, %v445
      %v447 = vpop.f32.mrb[0].mxu0
      %v448 = vpop.f32.mrb[0].mxu0
      %v449 = vadd.f32 0.0, %v448
      %v450 = vpop.f32.mrb[0].mxu0
      %451 = vmatprep.mubr.bf16.mxu0 0
      %452 = vmatmul.mubr.bf16.gmra.mrb[0].mxu0 %v347
      %v453 = vpop.f32.mrb[0].mxu0
      %v454 = vadd.f32 0.0, %v453
      %v455 = vpop.f32.mrb[0].mxu0
      %v456 = vpop.f32.mrb[0].mxu0
      %v457 = vadd.f32 0.0, %v456
      %v458 = vpop.f32.mrb[0].mxu0
      %459 = vmatprep.mubr.bf16.mxu0 0
      %460 = vmatmul.mubr.bf16.gmra.mrb[0].mxu0 %v350
      %v461 = vpop.f32.mrb[0].mxu0
      %v462 = vadd.f32 0.0, %v461
      %v463 = vpop.f32.mrb[0].mxu0
      %v464 = vpop.f32.mrb[0].mxu0
      %v465 = vadd.f32 0.0, %v464
      %v466 = vpop.f32.mrb[0].mxu0
      %467 = vmatprep.mubr.bf16.mxu0 0
      %468 = vmatmul.mubr.bf16.gmra.mrb[0].mxu0 %v353
      %v469 = vpop.f32.mrb[0].mxu0
      %v470 = vadd.f32 0.0, %v469
      %v471 = vpop.f32.mrb[0].mxu0
      %v472 = vpop.f32.mrb[0].mxu0
      %v473 = vadd.f32 0.0, %v472
      %v474 = vpop.f32.mrb[0].mxu0
      %475 = vmatprep.mubr.bf16.mxu0 0
      %476 = vmatmul.mubr.bf16.gmra.mrb[0].mxu0 %v356
      %v477 = vpop.f32.mrb[0].mxu0
      %v478 = vadd.f32 0.0, %v477
      %v479 = vpop.f32.mrb[0].mxu0
      %v480 = vpop.f32.mrb[0].mxu0
      %v481 = vadd.f32 0.0, %v480
      %v482 = vpop.f32.mrb[0].mxu0
      %483 = vmatprep.mubr.bf16.mxu0 0
      %484 = vmatmul.mubr.bf16.gmra.mrb[0].mxu0 %v359
      %v485 = vpop.f32.mrb[0].mxu0
      %v486 = vadd.f32 0.0, %v485
      %v487 = vpop.f32.mrb[0].mxu0
      %v488 = vpop.f32.mrb[0].mxu0
      %v489 = vadd.f32 0.0, %v488
      %v490 = vpop.f32.mrb[0].mxu0
      %491 = vmatprep.mubr.bf16.mxu0 0
      %492 = vmatmul.mubr.bf16.gmra.mrb[0].mxu0 %v362
      %v493 = vpop.f32.mrb[0].mxu0
      %v494 = vadd.f32 0.0, %v493
      %v495 = vpop.f32.mrb[0].mxu0
      %v496 = vpop.f32.mrb[0].mxu0
      %v497 = vadd.f32 0.0, %v496
      %v498 = vpop.f32.mrb[0].mxu0
      %499 = vmatprep.mubr.bf16.mxu0 0
      %500 = vmatmul.mubr.bf16.gmra.mrb[0].mxu0 %v365
      %v501 = vpop.f32.mrb[0].mxu0
      %v502 = vadd.f32 0.0, %v501
      %v503 = vpop.f32.mrb[0].mxu0
      %v504 = vpop.f32.mrb[0].mxu0
      %v505 = vadd.f32 0.0, %v504
      %v506 = vpop.f32.mrb[0].mxu0
      %507 = vmatprep.mubr.bf16.mxu0 0
      %508 = vmatmul.mubr.bf16.gmra.mrb[0].mxu0 %v368
      %v509 = vpop.f32.mrb[0].mxu0
      %v510 = vadd.f32 0.0, %v509
      %v511 = vpop.f32.mrb[0].mxu0
      %v512 = vpop.f32.mrb[0].mxu0
      %v513 = vadd.f32 0.0, %v512
      %v514 = vpop.f32.mrb[0].mxu0
      %515 = vmatprep.mubr.bf16.mxu0 0
      %516 = vmatmul.mubr.bf16.gmra.mrb[0].mxu0 %v371
      %v517 = vpop.f32.mrb[0].mxu0
      %v518 = vadd.f32 0.0, %v517
      %v519 = vpop.f32.mrb[0].mxu0
      %v520 = vpop.f32.mrb[0].mxu0
      %v521 = vadd.f32 0.0, %v520
      %v522 = vpop.f32.mrb[0].mxu0
      %523 = vmatprep.mubr.bf16.mxu0 0
      %524 = vmatmul.mubr.bf16.gmra.mrb[0].mxu0 %v374
      %v525 = vpop.f32.mrb[0].mxu0
      %v526 = vadd.f32 0.0, %v525
      %v527 = vpop.f32.mrb[0].mxu0
      %v528 = vpop.f32.mrb[0].mxu0
      %v529 = vadd.f32 0.0, %v528
      %v530 = vpop.f32.mrb[0].mxu0
      %531 = vmatprep.mubr.bf16.mxu0 0
      %532 = vmatmul.mubr.bf16.gmra.mrb[0].mxu0 %v377
      %v533 = vpop.f32.mrb[0].mxu0
      %v534 = vadd.f32 0.0, %v533
      %v535 = vpop.f32.mrb[0].mxu0
      %v536 = vpop.f32.mrb[0].mxu0
      %v537 = vadd.f32 0.0, %v536
      %v538 = vpop.f32.mrb[0].mxu0
      %539 = vdwg.mxu0
      %v540 = vld [vmem:[%s2] sm:$0x1]
      %v542 = vlaneseq
      %v543 = vshrl.u32 %v542, 7
      %v544 = vsub.s32 0, %v543
      %v545 = vrot.slane %v540, %v544
      %v547 = vmul.f32 %v414, %v545
      %v548 = vmul.f32 %v417, %v545
      %v549 = vmul.f32 %v422, %v545
      %v550 = vmul.f32 %v425, %v545
      %v551 = vmul.f32 %v430, %v545
      %v552 = vmul.f32 %v433, %v545
      %v553 = vmul.f32 %v438, %v545
      %v554 = vmul.f32 %v441, %v545
      %v555 = vmul.f32 %v446, %v545
      %v556 = vmul.f32 %v449, %v545
      %v557 = vmul.f32 %v454, %v545
      %v558 = vmul.f32 %v457, %v545
      %v559 = vmul.f32 %v462, %v545
      %v560 = vmul.f32 %v465, %v545
      %v561 = vmul.f32 %v470, %v545
      %v562 = vmul.f32 %v473, %v545
      %v563 = vmul.f32 %v478, %v545
      %v564 = vmul.f32 %v481, %v545
      %v565 = vmul.f32 %v486, %v545
      %v566 = vmul.f32 %v489, %v545
      %v567 = vmul.f32 %v494, %v545
      %v568 = vmul.f32 %v497, %v545
      %v569 = vmul.f32 %v502, %v545
      %v570 = vmul.f32 %v505, %v545
      %v571 = vmul.f32 %v510, %v545
      %v572 = vmul.f32 %v513, %v545
      %v573 = vmul.f32 %v518, %v545
      %v574 = vmul.f32 %v521, %v545
      %v575 = vmul.f32 %v526, %v545
      %v576 = vmul.f32 %v529, %v545
      %v577 = vmul.f32 %v534, %v545
      %v578 = vmul.f32 %v537, %v545
      %v579 = vld [vmem:[%s3] sm:$0x1]
      %v581 = vlaneseq
      %v582 = vshrl.u32 %v581, 7
      %v583 = vsub.s32 0, %v582
      %v584 = vrot.slane %v579, %v583
      %v586 = vadd.f32 %v547, %v584
      %v587 = vadd.f32 %v548, %v584
      %v588 = vadd.f32 %v549, %v584
      %v589 = vadd.f32 %v550, %v584
      %v590 = vadd.f32 %v551, %v584
      %v591 = vadd.f32 %v552, %v584
      %v592 = vadd.f32 %v553, %v584
      %v593 = vadd.f32 %v554, %v584
      %v594 = vadd.f32 %v555, %v584
      %v595 = vadd.f32 %v556, %v584
      %v596 = vadd.f32 %v557, %v584
      %v597 = vadd.f32 %v558, %v584
      %v598 = vadd.f32 %v559, %v584
      %v599 = vadd.f32 %v560, %v584
      %v600 = vadd.f32 %v561, %v584
      %v601 = vadd.f32 %v562, %v584
      %v602 = vadd.f32 %v563, %v584
      %v603 = vadd.f32 %v564, %v584
      %v604 = vadd.f32 %v565, %v584
      %v605 = vadd.f32 %v566, %v584
      %v606 = vadd.f32 %v567, %v584
      %v607 = vadd.f32 %v568, %v584
      %v608 = vadd.f32 %v569, %v584
      %v609 = vadd.f32 %v570, %v584
      %v610 = vadd.f32 %v571, %v584
      %v611 = vadd.f32 %v572, %v584
      %v612 = vadd.f32 %v573, %v584
      %v613 = vadd.f32 %v574, %v584
      %v614 = vadd.f32 %v575, %v584
      %v615 = vadd.f32 %v576, %v584
      %v616 = vadd.f32 %v577, %v584
      %v617 = vadd.f32 %v578, %v584
      %v618 = vxor.u32 %v586, 2147483648
      %v619 = vxor.u32 %v587, 2147483648
      %v620 = vxor.u32 %v588, 2147483648
      %v621 = vxor.u32 %v589, 2147483648
      %v622 = vxor.u32 %v590, 2147483648
      %v623 = vxor.u32 %v591, 2147483648
      %v624 = vxor.u32 %v592, 2147483648
      %v625 = vxor.u32 %v593, 2147483648
      %v626 = vxor.u32 %v594, 2147483648
      %v627 = vxor.u32 %v595, 2147483648
      %v628 = vxor.u32 %v596, 2147483648
      %v629 = vxor.u32 %v597, 2147483648
      %v630 = vxor.u32 %v598, 2147483648
      %v631 = vxor.u32 %v599, 2147483648
      %v632 = vxor.u32 %v600, 2147483648
      %v633 = vxor.u32 %v601, 2147483648
      %v634 = vxor.u32 %v602, 2147483648
      %v635 = vxor.u32 %v603, 2147483648
      %v636 = vxor.u32 %v604, 2147483648
      %v637 = vxor.u32 %v605, 2147483648
      %v638 = vxor.u32 %v606, 2147483648
      %v639 = vxor.u32 %v607, 2147483648
      %v640 = vxor.u32 %v608, 2147483648
      %v641 = vxor.u32 %v609, 2147483648
      %v642 = vxor.u32 %v610, 2147483648
      %v643 = vxor.u32 %v611, 2147483648
      %v644 = vxor.u32 %v612, 2147483648
      %v645 = vxor.u32 %v613, 2147483648
      %v646 = vxor.u32 %v614, 2147483648
      %v647 = vxor.u32 %v615, 2147483648
      %v648 = vxor.u32 %v616, 2147483648
      %v649 = vxor.u32 %v617, 2147483648
      %v650 = vmul.f32 %v618, 1.442695
      %v651 = vpow.pop %v650
      %v652 = vmul.f32 %v619, 1.442695
      %v653 = vpow.pop %v652
      %v654 = vmul.f32 %v620, 1.442695
      %v655 = vpow.pop %v654
      %v656 = vmul.f32 %v621, 1.442695
      %v657 = vpow.pop %v656
      %v658 = vmul.f32 %v622, 1.442695
      %v659 = vpow.pop %v658
      %v660 = vmul.f32 %v623, 1.442695
      %v661 = vpow.pop %v660
      %v662 = vmul.f32 %v624, 1.442695
      %v663 = vpow.pop %v662
      %v664 = vmul.f32 %v625, 1.442695
      %v665 = vpow.pop %v664
      %v666 = vmul.f32 %v626, 1.442695
      %v667 = vpow.pop %v666
      %v668 = vmul.f32 %v627, 1.442695
      %v669 = vpow.pop %v668
      %v670 = vmul.f32 %v628, 1.442695
      %v671 = vpow.pop %v670
      %v672 = vmul.f32 %v629, 1.442695
      %v673 = vpow.pop %v672
      %v674 = vmul.f32 %v630, 1.442695
      %v675 = vpow.pop %v674
      %v676 = vmul.f32 %v631, 1.442695
      %v677 = vpow.pop %v676
      %v678 = vmul.f32 %v632, 1.442695
      %v679 = vpow.pop %v678
      %v680 = vmul.f32 %v633, 1.442695
      %v681 = vpow.pop %v680
      %v682 = vmul.f32 %v634, 1.442695
      %v683 = vpow.pop %v682
      %v684 = vmul.f32 %v635, 1.442695
      %v685 = vpow.pop %v684
      %v686 = vmul.f32 %v636, 1.442695
      %v687 = vpow.pop %v686
      %v688 = vmul.f32 %v637, 1.442695
      %v689 = vpow.pop %v688
      %v690 = vmul.f32 %v638, 1.442695
      %v691 = vpow.pop %v690
      %v692 = vmul.f32 %v639, 1.442695
      %v693 = vpow.pop %v692
      %v694 = vmul.f32 %v640, 1.442695
      %v695 = vpow.pop %v694
      %v696 = vmul.f32 %v641, 1.442695
      %v697 = vpow.pop %v696
      %v698 = vmul.f32 %v642, 1.442695
      %v699 = vpow.pop %v698
      %v700 = vmul.f32 %v643, 1.442695
      %v701 = vpow.pop %v700
      %v702 = vmul.f32 %v644, 1.442695
      %v703 = vpow.pop %v702
      %v704 = vmul.f32 %v645, 1.442695
      %v705 = vpow.pop %v704
      %v706 = vmul.f32 %v646, 1.442695
      %v707 = vpow.pop %v706
      %v708 = vmul.f32 %v647, 1.442695
      %v709 = vpow.pop %v708
      %v710 = vmul.f32 %v648, 1.442695
      %v711 = vpow.pop %v710
      %v712 = vmul.f32 %v649, 1.442695
      %v713 = vpow.pop %v712
      %v714 = vadd.f32 %v651, 1.0
      %v715 = vadd.f32 %v653, 1.0
      %v716 = vadd.f32 %v655, 1.0
      %v717 = vadd.f32 %v657, 1.0
      %v718 = vadd.f32 %v659, 1.0
      %v719 = vadd.f32 %v661, 1.0
      %v720 = vadd.f32 %v663, 1.0
      %v721 = vadd.f32 %v665, 1.0
      %v722 = vadd.f32 %v667, 1.0
      %v723 = vadd.f32 %v669, 1.0
      %v724 = vadd.f32 %v671, 1.0
      %v725 = vadd.f32 %v673, 1.0
      %v726 = vadd.f32 %v675, 1.0
      %v727 = vadd.f32 %v677, 1.0
      %v728 = vadd.f32 %v679, 1.0
      %v729 = vadd.f32 %v681, 1.0
      %v730 = vadd.f32 %v683, 1.0
      %v731 = vadd.f32 %v685, 1.0
      %v732 = vadd.f32 %v687, 1.0
      %v733 = vadd.f32 %v689, 1.0
      %v734 = vadd.f32 %v691, 1.0
      %v735 = vadd.f32 %v693, 1.0
      %v736 = vadd.f32 %v695, 1.0
      %v737 = vadd.f32 %v697, 1.0
      %v738 = vadd.f32 %v699, 1.0
      %v739 = vadd.f32 %v701, 1.0
      %v740 = vadd.f32 %v703, 1.0
      %v741 = vadd.f32 %v705, 1.0
      %v742 = vadd.f32 %v707, 1.0
      %v743 = vadd.f32 %v709, 1.0
      %v744 = vadd.f32 %v711, 1.0
      %v745 = vadd.f32 %v713, 1.0
      %v746 = vrcp.pop %v714
      %v747 = vmul.f32 1.0, %v746
      %v748 = vrcp.pop %v715
      %v749 = vmul.f32 1.0, %v748
      %v750 = vrcp.pop %v716
      %v751 = vmul.f32 1.0, %v750
      %v752 = vrcp.pop %v717
      %v753 = vmul.f32 1.0, %v752
      %v754 = vrcp.pop %v718
      %v755 = vmul.f32 1.0, %v754
      %v756 = vrcp.pop %v719
      %v757 = vmul.f32 1.0, %v756
      %v758 = vrcp.pop %v720
      %v759 = vmul.f32 1.0, %v758
      %v760 = vrcp.pop %v721
      %v761 = vmul.f32 1.0, %v760
      %v762 = vrcp.pop %v722
      %v763 = vmul.f32 1.0, %v762
      %v764 = vrcp.pop %v723
      %v765 = vmul.f32 1.0, %v764
      %v766 = vrcp.pop %v724
      %v767 = vmul.f32 1.0, %v766
      %v768 = vrcp.pop %v725
      %v769 = vmul.f32 1.0, %v768
      %v770 = vrcp.pop %v726
      %v771 = vmul.f32 1.0, %v770
      %v772 = vrcp.pop %v727
      %v773 = vmul.f32 1.0, %v772
      %v774 = vrcp.pop %v728
      %v775 = vmul.f32 1.0, %v774
      %v776 = vrcp.pop %v729
      %v777 = vmul.f32 1.0, %v776
      %v778 = vrcp.pop %v730
      %v779 = vmul.f32 1.0, %v778
      %v780 = vrcp.pop %v731
      %v781 = vmul.f32 1.0, %v780
      %v782 = vrcp.pop %v732
      %v783 = vmul.f32 1.0, %v782
      %v784 = vrcp.pop %v733
      %v785 = vmul.f32 1.0, %v784
      %v786 = vrcp.pop %v734
      %v787 = vmul.f32 1.0, %v786
      %v788 = vrcp.pop %v735
      %v789 = vmul.f32 1.0, %v788
      %v790 = vrcp.pop %v736
      %v791 = vmul.f32 1.0, %v790
      %v792 = vrcp.pop %v737
      %v793 = vmul.f32 1.0, %v792
      %v794 = vrcp.pop %v738
      %v795 = vmul.f32 1.0, %v794
      %v796 = vrcp.pop %v739
      %v797 = vmul.f32 1.0, %v796
      %v798 = vrcp.pop %v740
      %v799 = vmul.f32 1.0, %v798
      %v800 = vrcp.pop %v741
      %v801 = vmul.f32 1.0, %v800
      %v802 = vrcp.pop %v742
      %v803 = vmul.f32 1.0, %v802
      %v804 = vrcp.pop %v743
      %v805 = vmul.f32 1.0, %v804
      %v806 = vrcp.pop %v744
      %v807 = vmul.f32 1.0, %v806
      %v808 = vrcp.pop %v745
      %v809 = vmul.f32 1.0, %v808
      %v810 = vmul.f32 %v586, %v747
      %v811 = vmul.f32 %v587, %v749
      %v812 = vmul.f32 %v588, %v751
      %v813 = vmul.f32 %v589, %v753
      %v814 = vmul.f32 %v590, %v755
      %v815 = vmul.f32 %v591, %v757
      %v816 = vmul.f32 %v592, %v759
      %v817 = vmul.f32 %v593, %v761
      %v818 = vmul.f32 %v594, %v763
      %v819 = vmul.f32 %v595, %v765
      %v820 = vmul.f32 %v596, %v767
      %v821 = vmul.f32 %v597, %v769
      %v822 = vmul.f32 %v598, %v771
      %v823 = vmul.f32 %v599, %v773
      %v824 = vmul.f32 %v600, %v775
      %v825 = vmul.f32 %v601, %v777
      %v826 = vmul.f32 %v602, %v779
      %v827 = vmul.f32 %v603, %v781
      %v828 = vmul.f32 %v604, %v783
      %v829 = vmul.f32 %v605, %v785
      %v830 = vmul.f32 %v606, %v787
      %v831 = vmul.f32 %v607, %v789
      %v832 = vmul.f32 %v608, %v791
      %v833 = vmul.f32 %v609, %v793
      %v834 = vmul.f32 %v610, %v795
      %v835 = vmul.f32 %v611, %v797
      %v836 = vmul.f32 %v612, %v799
      %v837 = vmul.f32 %v613, %v801
      %v838 = vmul.f32 %v614, %v803
      %v839 = vmul.f32 %v615, %v805
      %v840 = vmul.f32 %v616, %v807
      %v841 = vmul.f32 %v617, %v809
      %842 = vst.msk [vmem:[%s199] sm:$0xff] %vm330, %v810
      %843 = vst.msk [vmem:[%s199 + $0x8] sm:$0xff] %vm330, %v811
      %844 = vst.msk [vmem:[%s199 + $0x10] sm:$0xff] %vm330, %v812
      %845 = vst.msk [vmem:[%s199 + $0x18] sm:$0xff] %vm330, %v813
      %846 = vst.msk [vmem:[%s199 + $0x20] sm:$0xff] %vm330, %v814
      %847 = vst.msk [vmem:[%s199 + $0x28] sm:$0xff] %vm330, %v815
      %848 = vst.msk [vmem:[%s199 + $0x30] sm:$0xff] %vm330, %v816
      %849 = vst.msk [vmem:[%s199 + $0x38] sm:$0xff] %vm330, %v817
      %850 = vst.msk [vmem:[%s199 + $0x40] sm:$0xff] %vm330, %v818
      %851 = vst.msk [vmem:[%s199 + $0x48] sm:$0xff] %vm330, %v819
      %852 = vst.msk [vmem:[%s199 + $0x50] sm:$0xff] %vm330, %v820
      %853 = vst.msk [vmem:[%s199 + $0x58] sm:$0xff] %vm330, %v821
      %854 = vst.msk [vmem:[%s199 + $0x60] sm:$0xff] %vm330, %v822
      %855 = vst.msk [vmem:[%s199 + $0x68] sm:$0xff] %vm330, %v823
      %856 = vst.msk [vmem:[%s199 + $0x70] sm:$0xff] %vm330, %v824
      %857 = vst.msk [vmem:[%s199 + $0x78] sm:$0xff] %vm330, %v825
      %858 = vst.msk [vmem:[%s199 + $0x80] sm:$0xff] %vm330, %v826
      %859 = vst.msk [vmem:[%s199 + $0x88] sm:$0xff] %vm330, %v827
      %860 = vst.msk [vmem:[%s199 + $0x90] sm:$0xff] %vm330, %v828
      %861 = vst.msk [vmem:[%s199 + $0x98] sm:$0xff] %vm330, %v829
      %862 = vst.msk [vmem:[%s199 + $0xa0] sm:$0xff] %vm330, %v830
      %863 = vst.msk [vmem:[%s199 + $0xa8] sm:$0xff] %vm330, %v831
      %864 = vst.msk [vmem:[%s199 + $0xb0] sm:$0xff] %vm330, %v832
      %865 = vst.msk [vmem:[%s199 + $0xb8] sm:$0xff] %vm330, %v833
      %866 = vst.msk [vmem:[%s199 + $0xc0] sm:$0xff] %vm330, %v834
      %867 = vst.msk [vmem:[%s199 + $0xc8] sm:$0xff] %vm330, %v835
      %868 = vst.msk [vmem:[%s199 + $0xd0] sm:$0xff] %vm330, %v836
      %869 = vst.msk [vmem:[%s199 + $0xd8] sm:$0xff] %vm330, %v837
      %870 = vst.msk [vmem:[%s199 + $0xe0] sm:$0xff] %vm330, %v838
      %871 = vst.msk [vmem:[%s199 + $0xe8] sm:$0xff] %vm330, %v839
      %872 = vst.msk [vmem:[%s199 + $0xf0] sm:$0xff] %vm330, %v840
      %873 = vst.msk [vmem:[%s199 + $0xf8] sm:$0xff] %vm330, %v841
      %s874 = smul.u32 32, %s15
      %p875 = scmp.lt.s32.totalorder %s874, 63
      %s876 = scalar_select %p875, %s874, 63
      %s877 = smul.addr %s876, 8
      %s878 = scalar_lea.vmem %s4, %s877
      // Predicated region
      $region37: #{forward.8} parent=35 // pred_check
        %p879 = pneg %p122
      $region38: #{forward.8} parent=35 // pred_check_branch
        %881 = sbr.rel (%p879) target = $region40
      $region39: #{forward.8} parent=35 // pred_region
        %s882 = smul.u32 32, %s15
      $region40: #{forward.8} parent=35 // pred_fallthru
        _
    $region36: #{forward.8} parent=5 // pred_fallthru
      _
    %p883 = scmp.le.s32.totalorder 2, %s10
    // Predicated region
    $region41: #{forward.8} parent=5 // pred_check
      %p884 = pneg %p883
    $region42: #{forward.8} parent=5 // pred_check_branch
      %886 = sbr.rel (%p884) target = $region44
    $region43: #{forward.8} parent=5 // pred_region
      %s887 = ssub.s32 %s10, 2
      // Predicated region
      $region45: #{forward.8} parent=43 // pred_check
        %p888 = pneg %p128
      $region46: #{forward.8} parent=43 // pred_check_branch
        %890 = sbr.rel (%p888) target = $region48
      $region47: #{forward.8} parent=43 // pred_region
        %s891 = smul.u32 32, %s16
        %p892 = scmp.lt.s32.totalorder %s891, 63
        %s893 = scalar_select %p892, %s891, 63
        %s894 = smul.addr %s893, 8
        %s895 = scalar_lea.vmem %s4, %s894
      $region48: #{forward.8} parent=43 // pred_fallthru
        _
    $region44: #{forward.8} parent=5 // pred_fallthru
      _
  $region6: #{forward.8} parent=0 // loop_footer
    %s14 = sadd.s32 1, %s10
  $region7: #{forward.8} parent=0 // loop_footer_branch
    %9 = sbr.rel target = $region3
  $region8: #{forward.8} parent=0 // loop_exit
    _

// kernel: forward.7
$region0: #{forward.7}
  #allocation0 [shape = 'u32[]', space=smem, size = 0x4, offset = 0x4, fixed_abs, tag = 'smem constant byte address 0x4 - core index']
  #allocation1 [shape = 'u32[144,128]{1,0:T(1,128)}', space=vmem, size = 0x12000, scoped, tag = 'internal scratch']
  %s0 = inlined_call_operand.vmem [shape: f32[512,32], index: 0, kind: input, shape index: {}]
  %s1 = inlined_call_operand.vmem [shape: f32[512,32], index: 1, kind: input, shape index: {}]
  %s2 = inlined_call_operand.vmem [shape: f32[1,32], index: 2, kind: input, shape index: {}]
  %s3 = inlined_call_operand.vmem [shape: f32[1,32], index: 3, kind: input, shape index: {}]
  %s4 = inlined_call_operand.vmem [shape: bf16[32,128], index: 4, kind: input, shape index: {}]
  %s5 = inlined_call_operand.vmem [shape: f32[1,128], index: 5, kind: input, shape index: {}]
  %s6 = inlined_call_operand.vmem [shape: bf16[128,32], index: 6, kind: input, shape index: {}]
  %s7 = inlined_call_operand.vmem [shape: f32[1,32], index: 7, kind: input, shape index: {}]
  %s8 = inlined_call_operand.vmem [shape: f32[1,32], index: 8, kind: input, shape index: {}]
  %s9 = inlined_call_operand.vmem [shape: f32[1,32], index: 9, kind: input, shape index: {}]
  %s10 = inlined_call_operand.vmem [shape: f32[512,32], index: 10, kind: output, shape index: {}]
  %s11 = sld [smem:[#allocation0]]
  $region73: #{forward.7} parent=0
    _
  %s13 = ssub.s32 1, %s11
  %s14 = scalar_select 0, %s13, %s11
  loop: start=0, step=1, limit=4
  $region2: #{forward.7} parent=0 // loop_pre_header
    _
  $region3: #{forward.7} parent=0 // loop_header
    %s16 = sphi 0, %s20
    %p17 = scmp.ge.s32.totalorder %s16, 4
    %s26 = sphi 0, %s28
    %s29 = sphi 0, %s26
    %s30 = sphi 0, %s29
    %s46 = sphi 0, %s30
    %s52 = sphi 0, %s54
    %s55 = sphi 0, %s52
    %s56 = sphi 0, %s55
    %s72 = sphi 0, %s56
    %s76 = sphi 0, %s76
    %s78 = sphi 0, %s76
    %s79 = sphi 0, %s78
    %s93 = sphi 0, %s79
    %s97 = sphi 0, %s97
    %s99 = sphi 0, %s97
    %s100 = sphi 0, %s99
    %s114 = sphi 0, %s100
    %s118 = sphi 0, %s118
    %s120 = sphi 0, %s118
    %s121 = sphi 0, %s120
    %s135 = sphi 0, %s121
    %s139 = sphi 0, %s139
    %s141 = sphi 0, %s139
    %s142 = sphi 0, %s141
    %s156 = sphi 0, %s142
    %s160 = sphi 0, %s160
    %s162 = sphi 0, %s160
    %s163 = sphi 0, %s162
    %s177 = sphi 0, %s163
    %s181 = sphi 0, %s181
    %s183 = sphi 0, %s181
    %s184 = sphi 0, %s183
    %s198 = sphi 0, %s184
    %s202 = sphi 0, %s202
    %s204 = sphi 0, %s202
    %s205 = sphi 0, %s204
    %s219 = sphi 0, %s205
    %s223 = sphi 0, %s223
    %s225 = sphi 0, %s223
    %s226 = sphi 0, %s225
    %s240 = sphi 0, %s226
    %s246 = sphi 0, %s248
    %s249 = sphi 0, %s246
    %s250 = sphi 0, %s249
    %s266 = sphi 0, %s250
  $region4: #{forward.7} parent=0 // loop_header_branch
    %19 = sbr.rel (%p17) target = $region8
  $region5: #{forward.7} parent=0 // loop_body
    %s21 = ssub.s32 %s16, 1
    %s22 = ssub.s32 %s16, 2
    %s23 = sadd.s32 %s16, 1
    %s24 = ssub.s32 %s16, %s23
    %p25 = scmp.eq.s32.totalorder %s24, 0
    %s27 = sadd.s32 %s26, 1
    %s28 = scalar_select %p25, %s26, %s27
    %p31 = pneg %p25
    %p32 = scmp.eq.s32.totalorder %s16, 1
    %p33 = por %p31, %p32
    %p34 = scmp.ne.s32.totalorder %s26, %s29
    %p35 = scmp.eq.s32.totalorder %s16, 0
    %p36 = por %p34, %p35
    %p37 = scmp.ne.s32.totalorder %s26, %s29
    %p38 = scmp.eq.s32.totalorder %s21, 1
    %p39 = por %p37, %p38
    %p40 = scmp.ne.s32.totalorder %s29, %s30
    %p41 = scmp.eq.s32.totalorder %s21, 0
    %p42 = por %p40, %p41
    %p43 = scmp.ne.s32.totalorder %s29, %s30
    %p44 = scmp.eq.s32.totalorder %s22, 1
    %p45 = por %p43, %p44
    %p47 = scmp.ne.s32.totalorder %s30, %s46
    %p48 = scmp.eq.s32.totalorder %s22, 0
    %p49 = por %p47, %p48
    %s50 = ssub.s32 %s16, %s23
    %p51 = scmp.eq.s32.totalorder %s50, 0
    %s53 = sadd.s32 %s52, 1
    %s54 = scalar_select %p51, %s52, %s53
    %p57 = pneg %p51
    %p58 = scmp.eq.s32.totalorder %s16, 1
    %p59 = por %p57, %p58
    %p60 = scmp.ne.s32.totalorder %s52, %s55
    %p61 = scmp.eq.s32.totalorder %s16, 0
    %p62 = por %p60, %p61
    %p63 = scmp.ne.s32.totalorder %s52, %s55
    %p64 = scmp.eq.s32.totalorder %s21, 1
    %p65 = por %p63, %p64
    %p66 = scmp.ne.s32.totalorder %s55, %s56
    %p67 = scmp.eq.s32.totalorder %s21, 0
    %p68 = por %p66, %p67
    %p69 = scmp.ne.s32.totalorder %s55, %s56
    %p70 = scmp.eq.s32.totalorder %s22, 1
    %p71 = por %p69, %p70
    %p73 = scmp.ne.s32.totalorder %s56, %s72
    %p74 = scmp.eq.s32.totalorder %s22, 0
    %p75 = por %p73, %p74
    %s77 = sadd.s32 %s76, 1
    %p80 = scmp.eq.s32.totalorder %s16, 1
    %p81 = scmp.ne.s32.totalorder %s76, %s78
    %p82 = scmp.eq.s32.totalorder %s16, 0
    %p83 = por %p81, %p82
    %p84 = scmp.ne.s32.totalorder %s76, %s78
    %p85 = scmp.eq.s32.totalorder %s21, 1
    %p86 = por %p84, %p85
    %p87 = scmp.ne.s32.totalorder %s78, %s79
    %p88 = scmp.eq.s32.totalorder %s21, 0
    %p89 = por %p87, %p88
    %p90 = scmp.ne.s32.totalorder %s78, %s79
    %p91 = scmp.eq.s32.totalorder %s22, 1
    %p92 = por %p90, %p91
    %p94 = scmp.ne.s32.totalorder %s79, %s93
    %p95 = scmp.eq.s32.totalorder %s22, 0
    %p96 = por %p94, %p95
    %s98 = sadd.s32 %s97, 1
    %p101 = scmp.eq.s32.totalorder %s16, 1
    %p102 = scmp.ne.s32.totalorder %s97, %s99
    %p103 = scmp.eq.s32.totalorder %s16, 0
    %p104 = por %p102, %p103
    %p105 = scmp.ne.s32.totalorder %s97, %s99
    %p106 = scmp.eq.s32.totalorder %s21, 1
    %p107 = por %p105, %p106
    %p108 = scmp.ne.s32.totalorder %s99, %s100
    %p109 = scmp.eq.s32.totalorder %s21, 0
    %p110 = por %p108, %p109
    %p111 = scmp.ne.s32.totalorder %s99, %s100
    %p112 = scmp.eq.s32.totalorder %s22, 1
    %p113 = por %p111, %p112
    %p115 = scmp.ne.s32.totalorder %s100, %s114
    %p116 = scmp.eq.s32.totalorder %s22, 0
    %p117 = por %p115, %p116
    %s119 = sadd.s32 %s118, 1
    %p122 = scmp.eq.s32.totalorder %s16, 1
    %p123 = scmp.ne.s32.totalorder %s118, %s120
    %p124 = scmp.eq.s32.totalorder %s16, 0
    %p125 = por %p123, %p124
    %p126 = scmp.ne.s32.totalorder %s118, %s120
    %p127 = scmp.eq.s32.totalorder %s21, 1
    %p128 = por %p126, %p127
    %p129 = scmp.ne.s32.totalorder %s120, %s121
    %p130 = scmp.eq.s32.totalorder %s21, 0
    %p131 = por %p129, %p130
    %p132 = scmp.ne.s32.totalorder %s120, %s121
    %p133 = scmp.eq.s32.totalorder %s22, 1
    %p134 = por %p132, %p133
    %p136 = scmp.ne.s32.totalorder %s121, %s135
    %p137 = scmp.eq.s32.totalorder %s22, 0
    %p138 = por %p136, %p137
    %s140 = sadd.s32 %s139, 1
    %p143 = scmp.eq.s32.totalorder %s16, 1
    %p144 = scmp.ne.s32.totalorder %s139, %s141
    %p145 = scmp.eq.s32.totalorder %s16, 0
    %p146 = por %p144, %p145
    %p147 = scmp.ne.s32.totalorder %s139, %s141
    %p148 = scmp.eq.s32.totalorder %s21, 1
    %p149 = por %p147, %p148
    %p150 = scmp.ne.s32.totalorder %s141, %s142
    %p151 = scmp.eq.s32.totalorder %s21, 0
    %p152 = por %p150, %p151
    %p153 = scmp.ne.s32.totalorder %s141, %s142
    %p154 = scmp.eq.s32.totalorder %s22, 1
    %p155 = por %p153, %p154
    %p157 = scmp.ne.s32.totalorder %s142, %s156
    %p158 = scmp.eq.s32.totalorder %s22, 0
    %p159 = por %p157, %p158
    %s161 = sadd.s32 %s160, 1
    %p164 = scmp.eq.s32.totalorder %s16, 1
    %p165 = scmp.ne.s32.totalorder %s160, %s162
    %p166 = scmp.eq.s32.totalorder %s16, 0
    %p167 = por %p165, %p166
    %p168 = scmp.ne.s32.totalorder %s160, %s162
    %p169 = scmp.eq.s32.totalorder %s21, 1
    %p170 = por %p168, %p169
    %p171 = scmp.ne.s32.totalorder %s162, %s163
    %p172 = scmp.eq.s32.totalorder %s21, 0
    %p173 = por %p171, %p172
    %p174 = scmp.ne.s32.totalorder %s162, %s163
    %p175 = scmp.eq.s32.totalorder %s22, 1
    %p176 = por %p174, %p175
    %p178 = scmp.ne.s32.totalorder %s163, %s177
    %p179 = scmp.eq.s32.totalorder %s22, 0
    %p180 = por %p178, %p179
    %s182 = sadd.s32 %s181, 1
    %p185 = scmp.eq.s32.totalorder %s16, 1
    %p186 = scmp.ne.s32.totalorder %s181, %s183
    %p187 = scmp.eq.s32.totalorder %s16, 0
    %p188 = por %p186, %p187
    %p189 = scmp.ne.s32.totalorder %s181, %s183
    %p190 = scmp.eq.s32.totalorder %s21, 1
    %p191 = por %p189, %p190
    %p192 = scmp.ne.s32.totalorder %s183, %s184
    %p193 = scmp.eq.s32.totalorder %s21, 0
    %p194 = por %p192, %p193
    %p195 = scmp.ne.s32.totalorder %s183, %s184
    %p196 = scmp.eq.s32.totalorder %s22, 1
    %p197 = por %p195, %p196
    %p199 = scmp.ne.s32.totalorder %s184, %s198
    %p200 = scmp.eq.s32.totalorder %s22, 0
    %p201 = por %p199, %p200
    %s203 = sadd.s32 %s202, 1
    %p206 = scmp.eq.s32.totalorder %s16, 1
    %p207 = scmp.ne.s32.totalorder %s202, %s204
    %p208 = scmp.eq.s32.totalorder %s16, 0
    %p209 = por %p207, %p208
    %p210 = scmp.ne.s32.totalorder %s202, %s204
    %p211 = scmp.eq.s32.totalorder %s21, 1
    %p212 = por %p210, %p211
    %p213 = scmp.ne.s32.totalorder %s204, %s205
    %p214 = scmp.eq.s32.totalorder %s21, 0
    %p215 = por %p213, %p214
    %p216 = scmp.ne.s32.totalorder %s204, %s205
    %p217 = scmp.eq.s32.totalorder %s22, 1
    %p218 = por %p216, %p217
    %p220 = scmp.ne.s32.totalorder %s205, %s219
    %p221 = scmp.eq.s32.totalorder %s22, 0
    %p222 = por %p220, %p221
    %s224 = sadd.s32 %s223, 1
    %p227 = scmp.eq.s32.totalorder %s16, 1
    %p228 = scmp.ne.s32.totalorder %s223, %s225
    %p229 = scmp.eq.s32.totalorder %s16, 0
    %p230 = por %p228, %p229
    %p231 = scmp.ne.s32.totalorder %s223, %s225
    %p232 = scmp.eq.s32.totalorder %s21, 1
    %p233 = por %p231, %p232
    %p234 = scmp.ne.s32.totalorder %s225, %s226
    %p235 = scmp.eq.s32.totalorder %s21, 0
    %p236 = por %p234, %p235
    %p237 = scmp.ne.s32.totalorder %s225, %s226
    %p238 = scmp.eq.s32.totalorder %s22, 1
    %p239 = por %p237, %p238
    %p241 = scmp.ne.s32.totalorder %s226, %s240
    %p242 = scmp.eq.s32.totalorder %s22, 0
    %p243 = por %p241, %p242
    %s244 = ssub.s32 %s16, %s23
    %p245 = scmp.eq.s32.totalorder %s244, 0
    %s247 = sadd.s32 %s246, 1
    %s248 = scalar_select %p245, %s246, %s247
    %p251 = pneg %p245
    %p252 = scmp.eq.s32.totalorder %s16, 1
    %p253 = por %p251, %p252
    %p254 = scmp.ne.s32.totalorder %s246, %s249
    %p255 = scmp.eq.s32.totalorder %s16, 0
    %p256 = por %p254, %p255
    %p257 = scmp.ne.s32.totalorder %s246, %s249
    %p258 = scmp.eq.s32.totalorder %s21, 1
    %p259 = por %p257, %p258
    %p260 = scmp.ne.s32.totalorder %s249, %s250
    %p261 = scmp.eq.s32.totalorder %s21, 0
    %p262 = por %p260, %p261
    %p263 = scmp.ne.s32.totalorder %s249, %s250
    %p264 = scmp.eq.s32.totalorder %s22, 1
    %p265 = por %p263, %p264
    %p267 = scmp.ne.s32.totalorder %s250, %s266
    %p268 = scmp.eq.s32.totalorder %s22, 0
    %p269 = por %p267, %p268
    %p270 = scmp.le.s32.totalorder 1, %s16
    %p271 = scmp.lt.s32.totalorder %s16, 3
    %p272 = pnand %p270, %p271
    %p273 = pneg %p272
    // Predicated region
    $region9: #{forward.7} parent=5 // pred_check
      _
    $region10: #{forward.7} parent=5 // pred_check_branch
      %275 = sbr.rel (%p272) target = $region12
    $region11: #{forward.7} parent=5 // pred_region
      %s276 = ssub.s32 %s16, 1
      // Predicated region
      $region13: #{forward.7} parent=11 // pred_check
        %p277 = pneg %p89
      $region14: #{forward.7} parent=11 // pred_check_branch
        %279 = sbr.rel (%p277) target = $region16
      $region15: #{forward.7} parent=11 // pred_region
        _
      $region16: #{forward.7} parent=11 // pred_fallthru
        _
      // Predicated region
      $region17: #{forward.7} parent=11 // pred_check
        %p280 = pneg %p110
      $region18: #{forward.7} parent=11 // pred_check_branch
        %282 = sbr.rel (%p280) target = $region20
      $region19: #{forward.7} parent=11 // pred_region
        _
      $region20: #{forward.7} parent=11 // pred_fallthru
        _
      // Predicated region
      $region21: #{forward.7} parent=11 // pred_check
        %p283 = pneg %p131
      $region22: #{forward.7} parent=11 // pred_check_branch
        %285 = sbr.rel (%p283) target = $region24
      $region23: #{forward.7} parent=11 // pred_region
        _
      $region24: #{forward.7} parent=11 // pred_fallthru
        _
      // Predicated region
      $region25: #{forward.7} parent=11 // pred_check
        %p286 = pneg %p152
      $region26: #{forward.7} parent=11 // pred_check_branch
        %288 = sbr.rel (%p286) target = $region28
      $region27: #{forward.7} parent=11 // pred_region
        _
      $region28: #{forward.7} parent=11 // pred_fallthru
        _
      // Predicated region
      $region29: #{forward.7} parent=11 // pred_check
        %p289 = pneg %p173
      $region30: #{forward.7} parent=11 // pred_check_branch
        %291 = sbr.rel (%p289) target = $region32
      $region31: #{forward.7} parent=11 // pred_region
        _
      $region32: #{forward.7} parent=11 // pred_fallthru
        _
      // Predicated region
      $region33: #{forward.7} parent=11 // pred_check
        %p292 = pneg %p194
      $region34: #{forward.7} parent=11 // pred_check_branch
        %294 = sbr.rel (%p292) target = $region36
      $region35: #{forward.7} parent=11 // pred_region
        _
      $region36: #{forward.7} parent=11 // pred_fallthru
        _
      // Predicated region
      $region37: #{forward.7} parent=11 // pred_check
        %p295 = pneg %p215
      $region38: #{forward.7} parent=11 // pred_check_branch
        %297 = sbr.rel (%p295) target = $region40
      $region39: #{forward.7} parent=11 // pred_region
        _
      $region40: #{forward.7} parent=11 // pred_fallthru
        _
      // Predicated region
      $region41: #{forward.7} parent=11 // pred_check
        %p298 = pneg %p236
      $region42: #{forward.7} parent=11 // pred_check_branch
        %300 = sbr.rel (%p298) target = $region44
      $region43: #{forward.7} parent=11 // pred_region
        _
      $region44: #{forward.7} parent=11 // pred_fallthru
        _
    $region12: #{forward.7} parent=5 // pred_fallthru
      _
    %p301 = scmp.lt.s32.totalorder %s16, 2
    // Predicated region
    $region45: #{forward.7} parent=5 // pred_check
      %p302 = pneg %p301
    $region46: #{forward.7} parent=5 // pred_check_branch
      %304 = sbr.rel (%p302) target = $region48
    $region47: #{forward.7} parent=5 // pred_region
      // Predicated region
      $region49: #{forward.7} parent=47 // pred_check
        %p305 = pneg %p36
      $region50: #{forward.7} parent=47 // pred_check_branch
        %307 = sbr.rel (%p305) target = $region52
      $region51: #{forward.7} parent=47 // pred_region
        %s308 = smul.u32 32, %s16
        %p309 = scmp.lt.s32.totalorder %s308, 63
        %s310 = scalar_select %p309, %s308, 63
        %s311 = smul.addr %s310, 8
        %s312 = scalar_lea.vmem %s0, %s311
        %s313 = smul.u32 32, %s16
      $region52: #{forward.7} parent=47 // pred_fallthru
        _
      // Predicated region
      $region53: #{forward.7} parent=47 // pred_check
        %p314 = pneg %p62
      $region54: #{forward.7} parent=47 // pred_check_branch
        %316 = sbr.rel (%p314) target = $region56
      $region55: #{forward.7} parent=47 // pred_region
        %s317 = smul.u32 32, %s16
        %p318 = scmp.lt.s32.totalorder %s317, 63
        %s319 = scalar_select %p318, %s317, 63
        %s320 = smul.addr %s319, 8
        %s321 = scalar_lea.vmem %s1, %s320
        %s322 = smul.u32 32, %s16
      $region56: #{forward.7} parent=47 // pred_fallthru
        _
    $region48: #{forward.7} parent=5 // pred_fallthru
      _
    %p323 = scmp.le.s32.totalorder 1, %s16
    %p324 = scmp.lt.s32.totalorder %s16, 3
    %p325 = pnand %p323, %p324
    %p326 = pneg %p325
    // Predicated region
    $region57: #{forward.7} parent=5 // pred_check
      _
    $region58: #{forward.7} parent=5 // pred_check_branch
      %328 = sbr.rel (%p325) target = $region60
    $region59: #{forward.7} parent=5 // pred_region
      %s329 = ssub.s32 %s16, 1
      %s330 = smul.u32 32, %s21
      %p331 = scmp.lt.s32.totalorder %s330, 63
      %s332 = scalar_select %p331, %s330, 63
      %s333 = smul.addr %s332, 8
      %s334 = scalar_lea.vmem %s0, %s333
      %p335 = pneg %p42
      %p336 = pneg %p39
      %s337 = smul.u32 32, %s21
      %p338 = scmp.lt.s32.totalorder %s337, 63
      %s339 = scalar_select %p338, %s337, 63
      %s340 = smul.addr %s339, 8
      %s341 = scalar_lea.vmem %s1, %s340
      %p342 = pneg %p68
      %p343 = pneg %p65
      %p344 = pneg %p89
      %p345 = pneg %p86
      %p346 = pneg %p110
      %p347 = pneg %p107
      %p348 = pneg %p131
      %p349 = pneg %p128
      %p350 = pneg %p152
      %p351 = pneg %p149
      %p352 = pneg %p173
      %p353 = pneg %p170
      %p354 = pneg %p194
      %p355 = pneg %p191
      %p356 = pneg %p215
      %p357 = pneg %p212
      %p358 = pneg %p236
      %p359 = pneg %p233
      %p360 = pneg %p262
      %p361 = pneg %p259
      %s362 = smul.u32 32, %s21
      %p363 = scmp.lt.s32.totalorder %s362, 63
      %s364 = scalar_select %p363, %s362, 63
      %s365 = smul.addr %s364, 8
      %s366 = scalar_lea.vmem %s10, %s365
      %s367 = smul.u32 32, %s21
      %p368 = scmp.lt.s32.totalorder %s367, 63
      %s369 = scalar_select %p368, %s367, 63
      %s370 = smul.addr %s369, 8
      %s371 = scalar_lea.vmem %s0, %s370
      %s372 = smul.u32 32, %s21
      %s373 = smul.u32 32, %s21
      %p374 = scmp.lt.s32.totalorder %s373, 63
      %s375 = scalar_select %p374, %s373, 63
      %s376 = smul.addr %s375, 8
      %s377 = scalar_lea.vmem %s1, %s376
      %s378 = smul.u32 32, %s21
      %s379 = smul.u32 32, %s21
      %p380 = scmp.lt.s32.totalorder %s379, 63
      %s381 = scalar_select %p380, %s379, 63
      %s382 = smul.addr %s381, 8
      %s383 = scalar_lea.vmem %s10, %s382
      %s384 = smul.u32 32, %s21
      %v386 = vld [vmem:[%s377] sm:$0xff]
      %v387 = vld [vmem:[%s377 + $0x8] sm:$0xff]
      %v388 = vld [vmem:[%s377 + $0x10] sm:$0xff]
      %v389 = vld [vmem:[%s377 + $0x18] sm:$0xff]
      %v390 = vld [vmem:[%s377 + $0x20] sm:$0xff]
      %v391 = vld [vmem:[%s377 + $0x28] sm:$0xff]
      %v392 = vld [vmem:[%s377 + $0x30] sm:$0xff]
      %v393 = vld [vmem:[%s377 + $0x38] sm:$0xff]
      %v394 = vld [vmem:[%s377 + $0x40] sm:$0xff]
      %v395 = vld [vmem:[%s377 + $0x48] sm:$0xff]
      %v396 = vld [vmem:[%s377 + $0x50] sm:$0xff]
      %v397 = vld [vmem:[%s377 + $0x58] sm:$0xff]
      %v398 = vld [vmem:[%s377 + $0x60] sm:$0xff]
      %v399 = vld [vmem:[%s377 + $0x68] sm:$0xff]
      %v400 = vld [vmem:[%s377 + $0x70] sm:$0xff]
      %v401 = vld [vmem:[%s377 + $0x78] sm:$0xff]
      %v402 = vld [vmem:[%s377 + $0x80] sm:$0xff]
      %v403 = vld [vmem:[%s377 + $0x88] sm:$0xff]
      %v404 = vld [vmem:[%s377 + $0x90] sm:$0xff]
      %v405 = vld [vmem:[%s377 + $0x98] sm:$0xff]
      %v406 = vld [vmem:[%s377 + $0xa0] sm:$0xff]
      %v407 = vld [vmem:[%s377 + $0xa8] sm:$0xff]
      %v408 = vld [vmem:[%s377 + $0xb0] sm:$0xff]
      %v409 = vld [vmem:[%s377 + $0xb8] sm:$0xff]
      %v410 = vld [vmem:[%s377 + $0xc0] sm:$0xff]
      %v411 = vld [vmem:[%s377 + $0xc8] sm:$0xff]
      %v412 = vld [vmem:[%s377 + $0xd0] sm:$0xff]
      %v413 = vld [vmem:[%s377 + $0xd8] sm:$0xff]
      %v414 = vld [vmem:[%s377 + $0xe0] sm:$0xff]
      %v415 = vld [vmem:[%s377 + $0xe8] sm:$0xff]
      %v416 = vld [vmem:[%s377 + $0xf0] sm:$0xff]
      %v417 = vld [vmem:[%s377 + $0xf8] sm:$0xff]
      %vm418 = vcmask 261120
      %v419 = vsel %vm418, %v386, 0.0
      %420 = vadd.xlane.f32.xlu0 %v419
      %v421 = vpop.xlane.xlu0 %420
      %v422 = vsel %vm418, %v387, 0.0
      %423 = vadd.xlane.f32.xlu0 %v422
      %v424 = vpop.xlane.xlu0 %423
      %v425 = vsel %vm418, %v388, 0.0
      %426 = vadd.xlane.f32.xlu0 %v425
      %v427 = vpop.xlane.xlu0 %426
      %v428 = vsel %vm418, %v389, 0.0
      %429 = vadd.xlane.f32.xlu0 %v428
      %v430 = vpop.xlane.xlu0 %429
      %v431 = vsel %vm418, %v390, 0.0
      %432 = vadd.xlane.f32.xlu0 %v431
      %v433 = vpop.xlane.xlu0 %432
      %v434 = vsel %vm418, %v391, 0.0
      %435 = vadd.xlane.f32.xlu0 %v434
      %v436 = vpop.xlane.xlu0 %435
      %v437 = vsel %vm418, %v392, 0.0
      %438 = vadd.xlane.f32.xlu0 %v437
      %v439 = vpop.xlane.xlu0 %438
      %v440 = vsel %vm418, %v393, 0.0
      %441 = vadd.xlane.f32.xlu0 %v440
      %v442 = vpop.xlane.xlu0 %441
      %v443 = vsel %vm418, %v394, 0.0
      %444 = vadd.xlane.f32.xlu0 %v443
      %v445 = vpop.xlane.xlu0 %444
      %v446 = vsel %vm418, %v395, 0.0
      %447 = vadd.xlane.f32.xlu0 %v446
      %v448 = vpop.xlane.xlu0 %447
      %v449 = vsel %vm418, %v396, 0.0
      %450 = vadd.xlane.f32.xlu0 %v449
      %v451 = vpop.xlane.xlu0 %450
      %v452 = vsel %vm418, %v397, 0.0
      %453 = vadd.xlane.f32.xlu0 %v452
      %v454 = vpop.xlane.xlu0 %453
      %v455 = vsel %vm418, %v398, 0.0
      %456 = vadd.xlane.f32.xlu0 %v455
      %v457 = vpop.xlane.xlu0 %456
      %v458 = vsel %vm418, %v399, 0.0
      %459 = vadd.xlane.f32.xlu0 %v458
      %v460 = vpop.xlane.xlu0 %459
      %v461 = vsel %vm418, %v400, 0.0
      %462 = vadd.xlane.f32.xlu0 %v461
      %v463 = vpop.xlane.xlu0 %462
      %v464 = vsel %vm418, %v401, 0.0
      %465 = vadd.xlane.f32.xlu0 %v464
      %v466 = vpop.xlane.xlu0 %465
      %v467 = vsel %vm418, %v402, 0.0
      %468 = vadd.xlane.f32.xlu0 %v467
      %v469 = vpop.xlane.xlu0 %468
      %v470 = vsel %vm418, %v403, 0.0
      %471 = vadd.xlane.f32.xlu0 %v470
      %v472 = vpop.xlane.xlu0 %471
      %v473 = vsel %vm418, %v404, 0.0
      %474 = vadd.xlane.f32.xlu0 %v473
      %v475 = vpop.xlane.xlu0 %474
      %v476 = vsel %vm418, %v405, 0.0
      %477 = vadd.xlane.f32.xlu0 %v476
      %v478 = vpop.xlane.xlu0 %477
      %v479 = vsel %vm418, %v406, 0.0
      %480 = vadd.xlane.f32.xlu0 %v479
      %v481 = vpop.xlane.xlu0 %480
      %v482 = vsel %vm418, %v407, 0.0
      %483 = vadd.xlane.f32.xlu0 %v482
      %v484 = vpop.xlane.xlu0 %483
      %v485 = vsel %vm418, %v408, 0.0
      %486 = vadd.xlane.f32.xlu0 %v485
      %v487 = vpop.xlane.xlu0 %486
      %v488 = vsel %vm418, %v409, 0.0
      %489 = vadd.xlane.f32.xlu0 %v488
      %v490 = vpop.xlane.xlu0 %489
      %v491 = vsel %vm418, %v410, 0.0
      %492 = vadd.xlane.f32.xlu0 %v491
      %v493 = vpop.xlane.xlu0 %492
      %v494 = vsel %vm418, %v411, 0.0
      %495 = vadd.xlane.f32.xlu0 %v494
      %v496 = vpop.xlane.xlu0 %495
      %v497 = vsel %vm418, %v412, 0.0
      %498 = vadd.xlane.f32.xlu0 %v497
      %v499 = vpop.xlane.xlu0 %498
      %v500 = vsel %vm418, %v413, 0.0
      %501 = vadd.xlane.f32.xlu0 %v500
      %v502 = vpop.xlane.xlu0 %501
      %v503 = vsel %vm418, %v414, 0.0
      %504 = vadd.xlane.f32.xlu0 %v503
      %v505 = vpop.xlane.xlu0 %504
      %v506 = vsel %vm418, %v415, 0.0
      %507 = vadd.xlane.f32.xlu0 %v506
      %v508 = vpop.xlane.xlu0 %507
      %v509 = vsel %vm418, %v416, 0.0
      %510 = vadd.xlane.f32.xlu0 %v509
      %v511 = vpop.xlane.xlu0 %510
      %v512 = vsel %vm418, %v417, 0.0
      %513 = vadd.xlane.f32.xlu0 %v512
      %v514 = vpop.xlane.xlu0 %513
      %v515 = vrcp.pop 32.0
      %v516 = vmul.f32 %v421, %v515
      %v517 = vmul.f32 %v424, %v515
      %v518 = vmul.f32 %v427, %v515
      %v519 = vmul.f32 %v430, %v515
      %v520 = vmul.f32 %v433, %v515
      %v521 = vmul.f32 %v436, %v515
      %v522 = vmul.f32 %v439, %v515
      %v523 = vmul.f32 %v442, %v515
      %v524 = vmul.f32 %v445, %v515
      %v525 = vmul.f32 %v448, %v515
      %v526 = vmul.f32 %v451, %v515
      %v527 = vmul.f32 %v454, %v515
      %v528 = vmul.f32 %v457, %v515
      %v529 = vmul.f32 %v460, %v515
      %v530 = vmul.f32 %v463, %v515
      %v531 = vmul.f32 %v466, %v515
      %v532 = vmul.f32 %v469, %v515
      %v533 = vmul.f32 %v472, %v515
      %v534 = vmul.f32 %v475, %v515
      %v535 = vmul.f32 %v478, %v515
      %v536 = vmul.f32 %v481, %v515
      %v537 = vmul.f32 %v484, %v515
      %v538 = vmul.f32 %v487, %v515
      %v539 = vmul.f32 %v490, %v515
      %v540 = vmul.f32 %v493, %v515
      %v541 = vmul.f32 %v496, %v515
      %v542 = vmul.f32 %v499, %v515
      %v543 = vmul.f32 %v502, %v515
      %v544 = vmul.f32 %v505, %v515
      %v545 = vmul.f32 %v508, %v515
      %v546 = vmul.f32 %v511, %v515
      %v547 = vmul.f32 %v514, %v515
      %v548 = vsub.f32 %v386, %v516
      %v549 = vsub.f32 %v387, %v517
      %v550 = vsub.f32 %v388, %v518
      %v551 = vsub.f32 %v389, %v519
      %v552 = vsub.f32 %v390, %v520
      %v553 = vsub.f32 %v391, %v521
      %v554 = vsub.f32 %v392, %v522
      %v555 = vsub.f32 %v393, %v523
      %v556 = vsub.f32 %v394, %v524
      %v557 = vsub.f32 %v395, %v525
      %v558 = vsub.f32 %v396, %v526
      %v559 = vsub.f32 %v397, %v527
      %v560 = vsub.f32 %v398, %v528
      %v561 = vsub.f32 %v399, %v529
      %v562 = vsub.f32 %v400, %v530
      %v563 = vsub.f32 %v401, %v531
      %v564 = vsub.f32 %v402, %v532
      %v565 = vsub.f32 %v403, %v533
      %v566 = vsub.f32 %v404, %v534
      %v567 = vsub.f32 %v405, %v535
      %v568 = vsub.f32 %v406, %v536
      %v569 = vsub.f32 %v407, %v537
      %v570 = vsub.f32 %v408, %v538
      %v571 = vsub.f32 %v409, %v539
      %v572 = vsub.f32 %v410, %v540
      %v573 = vsub.f32 %v411, %v541
      %v574 = vsub.f32 %v412, %v542
      %v575 = vsub.f32 %v413, %v543
      %v576 = vsub.f32 %v414, %v544
      %v577 = vsub.f32 %v415, %v545
      %v578 = vsub.f32 %v416, %v546
      %v579 = vsub.f32 %v417, %v547
      %v580 = vmul.f32 %v548, %v548
      %v581 = vmul.f32 %v549, %v549
      %v582 = vmul.f32 %v550, %v550
      %v583 = vmul.f32 %v551, %v551
      %v584 = vmul.f32 %v552, %v552
      %v585 = vmul.f32 %v553, %v553
      %v586 = vmul.f32 %v554, %v554
      %v587 = vmul.f32 %v555, %v555
      %v588 = vmul.f32 %v556, %v556
      %v589 = vmul.f32 %v557, %v557
      %v590 = vmul.f32 %v558, %v558
      %v591 = vmul.f32 %v559, %v559
      %v592 = vmul.f32 %v560, %v560
      %v593 = vmul.f32 %v561, %v561
      %v594 = vmul.f32 %v562, %v562
      %v595 = vmul.f32 %v563, %v563
      %v596 = vmul.f32 %v564, %v564
      %v597 = vmul.f32 %v565, %v565
      %v598 = vmul.f32 %v566, %v566
      %v599 = vmul.f32 %v567, %v567
      %v600 = vmul.f32 %v568, %v568
      %v601 = vmul.f32 %v569, %v569
      %v602 = vmul.f32 %v570, %v570
      %v603 = vmul.f32 %v571, %v571
      %v604 = vmul.f32 %v572, %v572
      %v605 = vmul.f32 %v573, %v573
      %v606 = vmul.f32 %v574, %v574
      %v607 = vmul.f32 %v575, %v575
      %v608 = vmul.f32 %v576, %v576
      %v609 = vmul.f32 %v577, %v577
      %v610 = vmul.f32 %v578, %v578
      %v611 = vmul.f32 %v579, %v579
      %v612 = vsel %vm418, %v580, 0.0
      %613 = vadd.xlane.f32.xlu0 %v612
      %v614 = vpop.xlane.xlu0 %613
      %v615 = vsel %vm418, %v581, 0.0
      %616 = vadd.xlane.f32.xlu0 %v615
      %v617 = vpop.xlane.xlu0 %616
      %v618 = vsel %vm418, %v582, 0.0
      %619 = vadd.xlane.f32.xlu0 %v618
      %v620 = vpop.xlane.xlu0 %619
      %v621 = vsel %vm418, %v583, 0.0
      %622 = vadd.xlane.f32.xlu0 %v621
      %v623 = vpop.xlane.xlu0 %622
      %v624 = vsel %vm418, %v584, 0.0
      %625 = vadd.xlane.f32.xlu0 %v624
      %v626 = vpop.xlane.xlu0 %625
      %v627 = vsel %vm418, %v585, 0.0
      %628 = vadd.xlane.f32.xlu0 %v627
      %v629 = vpop.xlane.xlu0 %628
      %v630 = vsel %vm418, %v586, 0.0
      %631 = vadd.xlane.f32.xlu0 %v630
      %v632 = vpop.xlane.xlu0 %631
      %v633 = vsel %vm418, %v587, 0.0
      %634 = vadd.xlane.f32.xlu0 %v633
      %v635 = vpop.xlane.xlu0 %634
      %v636 = vsel %vm418, %v588, 0.0
      %637 = vadd.xlane.f32.xlu0 %v636
      %v638 = vpop.xlane.xlu0 %637
      %v639 = vsel %vm418, %v589, 0.0
      %640 = vadd.xlane.f32.xlu0 %v639
      %v641 = vpop.xlane.xlu0 %640
      %v642 = vsel %vm418, %v590, 0.0
      %643 = vadd.xlane.f32.xlu0 %v642
      %v644 = vpop.xlane.xlu0 %643
      %v645 = vsel %vm418, %v591, 0.0
      %646 = vadd.xlane.f32.xlu0 %v645
      %v647 = vpop.xlane.xlu0 %646
      %v648 = vsel %vm418, %v592, 0.0
      %649 = vadd.xlane.f32.xlu0 %v648
      %v650 = vpop.xlane.xlu0 %649
      %v651 = vsel %vm418, %v593, 0.0
      %652 = vadd.xlane.f32.xlu0 %v651
      %v653 = vpop.xlane.xlu0 %652
      %v654 = vsel %vm418, %v594, 0.0
      %655 = vadd.xlane.f32.xlu0 %v654
      %v656 = vpop.xlane.xlu0 %655
      %v657 = vsel %vm418, %v595, 0.0
      %658 = vadd.xlane.f32.xlu0 %v657
      %v659 = vpop.xlane.xlu0 %658
      %v660 = vsel %vm418, %v596, 0.0
      %661 = vadd.xlane.f32.xlu0 %v660
      %v662 = vpop.xlane.xlu0 %661
      %v663 = vsel %vm418, %v597, 0.0
      %664 = vadd.xlane.f32.xlu0 %v663
      %v665 = vpop.xlane.xlu0 %664
      %v666 = vsel %vm418, %v598, 0.0
      %667 = vadd.xlane.f32.xlu0 %v666
      %v668 = vpop.xlane.xlu0 %667
      %v669 = vsel %vm418, %v599, 0.0
      %670 = vadd.xlane.f32.xlu0 %v669
      %v671 = vpop.xlane.xlu0 %670
      %v672 = vsel %vm418, %v600, 0.0
      %673 = vadd.xlane.f32.xlu0 %v672
      %v674 = vpop.xlane.xlu0 %673
      %v675 = vsel %vm418, %v601, 0.0
      %676 = vadd.xlane.f32.xlu0 %v675
      %v677 = vpop.xlane.xlu0 %676
      %v678 = vsel %vm418, %v602, 0.0
      %679 = vadd.xlane.f32.xlu0 %v678
      %v680 = vpop.xlane.xlu0 %679
      %v681 = vsel %vm418, %v603, 0.0
      %682 = vadd.xlane.f32.xlu0 %v681
      %v683 = vpop.xlane.xlu0 %682
      %v684 = vsel %vm418, %v604, 0.0
      %685 = vadd.xlane.f32.xlu0 %v684
      %v686 = vpop.xlane.xlu0 %685
      %v687 = vsel %vm418, %v605, 0.0
      %688 = vadd.xlane.f32.xlu0 %v687
      %v689 = vpop.xlane.xlu0 %688
      %v690 = vsel %vm418, %v606, 0.0
      %691 = vadd.xlane.f32.xlu0 %v690
      %v692 = vpop.xlane.xlu0 %691
      %v693 = vsel %vm418, %v607, 0.0
      %694 = vadd.xlane.f32.xlu0 %v693
      %v695 = vpop.xlane.xlu0 %694
      %v696 = vsel %vm418, %v608, 0.0
      %697 = vadd.xlane.f32.xlu0 %v696
      %v698 = vpop.xlane.xlu0 %697
      %v699 = vsel %vm418, %v609, 0.0
      %700 = vadd.xlane.f32.xlu0 %v699
      %v701 = vpop.xlane.xlu0 %700
      %v702 = vsel %vm418, %v610, 0.0
      %703 = vadd.xlane.f32.xlu0 %v702
      %v704 = vpop.xlane.xlu0 %703
      %v705 = vsel %vm418, %v611, 0.0
      %706 = vadd.xlane.f32.xlu0 %v705
      %v707 = vpop.xlane.xlu0 %706
      %v708 = vmul.f32 %v614, %v515
      %v709 = vmul.f32 %v617, %v515
      %v710 = vmul.f32 %v620, %v515
      %v711 = vmul.f32 %v623, %v515
      %v712 = vmul.f32 %v626, %v515
      %v713 = vmul.f32 %v629, %v515
      %v714 = vmul.f32 %v632, %v515
      %v715 = vmul.f32 %v635, %v515
      %v716 = vmul.f32 %v638, %v515
      %v717 = vmul.f32 %v641, %v515
      %v718 = vmul.f32 %v644, %v515
      %v719 = vmul.f32 %v647, %v515
      %v720 = vmul.f32 %v650, %v515
      %v721 = vmul.f32 %v653, %v515
      %v722 = vmul.f32 %v656, %v515
      %v723 = vmul.f32 %v659, %v515
      %v724 = vmul.f32 %v662, %v515
      %v725 = vmul.f32 %v665, %v515
      %v726 = vmul.f32 %v668, %v515
      %v727 = vmul.f32 %v671, %v515
      %v728 = vmul.f32 %v674, %v515
      %v729 = vmul.f32 %v677, %v515
      %v730 = vmul.f32 %v680, %v515
      %v731 = vmul.f32 %v683, %v515
      %v732 = vmul.f32 %v686, %v515
      %v733 = vmul.f32 %v689, %v515
      %v734 = vmul.f32 %v692, %v515
      %v735 = vmul.f32 %v695, %v515
      %v736 = vmul.f32 %v698, %v515
      %v737 = vmul.f32 %v701, %v515
      %v738 = vmul.f32 %v704, %v515
      %v739 = vmul.f32 %v707, %v515
      %v740 = vadd.f32 %v708, 1e-05
      %v741 = vadd.f32 %v709, 1e-05
      %v742 = vadd.f32 %v710, 1e-05
      %v743 = vadd.f32 %v711, 1e-05
      %v744 = vadd.f32 %v712, 1e-05
      %v745 = vadd.f32 %v713, 1e-05
      %v746 = vadd.f32 %v714, 1e-05
      %v747 = vadd.f32 %v715, 1e-05
      %v748 = vadd.f32 %v716, 1e-05
      %v749 = vadd.f32 %v717, 1e-05
      %v750 = vadd.f32 %v718, 1e-05
      %v751 = vadd.f32 %v719, 1e-05
      %v752 = vadd.f32 %v720, 1e-05
      %v753 = vadd.f32 %v721, 1e-05
      %v754 = vadd.f32 %v722, 1e-05
      %v755 = vadd.f32 %v723, 1e-05
      %v756 = vadd.f32 %v724, 1e-05
      %v757 = vadd.f32 %v725, 1e-05
      %v758 = vadd.f32 %v726, 1e-05
      %v759 = vadd.f32 %v727, 1e-05
      %v760 = vadd.f32 %v728, 1e-05
      %v761 = vadd.f32 %v729, 1e-05
      %v762 = vadd.f32 %v730, 1e-05
      %v763 = vadd.f32 %v731, 1e-05
      %v764 = vadd.f32 %v732, 1e-05
      %v765 = vadd.f32 %v733, 1e-05
      %v766 = vadd.f32 %v734, 1e-05
      %v767 = vadd.f32 %v735, 1e-05
      %v768 = vadd.f32 %v736, 1e-05
      %v769 = vadd.f32 %v737, 1e-05
      %v770 = vadd.f32 %v738, 1e-05
      %v771 = vadd.f32 %v739, 1e-05
      %v772 = vrsqrt.pop %v740
      %v773 = vrsqrt.pop %v741
      %v774 = vrsqrt.pop %v742
      %v775 = vrsqrt.pop %v743
      %v776 = vrsqrt.pop %v744
      %v777 = vrsqrt.pop %v745
      %v778 = vrsqrt.pop %v746
      %v779 = vrsqrt.pop %v747
      %v780 = vrsqrt.pop %v748
      %v781 = vrsqrt.pop %v749
      %v782 = vrsqrt.pop %v750
      %v783 = vrsqrt.pop %v751
      %v784 = vrsqrt.pop %v752
      %v785 = vrsqrt.pop %v753
      %v786 = vrsqrt.pop %v754
      %v787 = vrsqrt.pop %v755
      %v788 = vrsqrt.pop %v756
      %v789 = vrsqrt.pop %v757
      %v790 = vrsqrt.pop %v758
      %v791 = vrsqrt.pop %v759
      %v792 = vrsqrt.pop %v760
      %v793 = vrsqrt.pop %v761
      %v794 = vrsqrt.pop %v762
      %v795 = vrsqrt.pop %v763
      %v796 = vrsqrt.pop %v764
      %v797 = vrsqrt.pop %v765
      %v798 = vrsqrt.pop %v766
      %v799 = vrsqrt.pop %v767
      %v800 = vrsqrt.pop %v768
      %v801 = vrsqrt.pop %v769
      %v802 = vrsqrt.pop %v770
      %v803 = vrsqrt.pop %v771
      %v804 = vmul.f32 %v548, %v772
      %v805 = vmul.f32 %v549, %v773
      %v806 = vmul.f32 %v550, %v774
      %v807 = vmul.f32 %v551, %v775
      %v808 = vmul.f32 %v552, %v776
      %v809 = vmul.f32 %v553, %v777
      %v810 = vmul.f32 %v554, %v778
      %v811 = vmul.f32 %v555, %v779
      %v812 = vmul.f32 %v556, %v780
      %v813 = vmul.f32 %v557, %v781
      %v814 = vmul.f32 %v558, %v782
      %v815 = vmul.f32 %v559, %v783
      %v816 = vmul.f32 %v560, %v784
      %v817 = vmul.f32 %v561, %v785
      %v818 = vmul.f32 %v562, %v786
      %v819 = vmul.f32 %v563, %v787
      %v820 = vmul.f32 %v564, %v788
      %v821 = vmul.f32 %v565, %v789
      %v822 = vmul.f32 %v566, %v790
      %v823 = vmul.f32 %v567, %v791
      %v824 = vmul.f32 %v568, %v792
      %v825 = vmul.f32 %v569, %v793
      %v826 = vmul.f32 %v570, %v794
      %v827 = vmul.f32 %v571, %v795
      %v828 = vmul.f32 %v572, %v796
      %v829 = vmul.f32 %v573, %v797
      %v830 = vmul.f32 %v574, %v798
      %v831 = vmul.f32 %v575, %v799
      %v832 = vmul.f32 %v576, %v800
      %v833 = vmul.f32 %v577, %v801
      %v834 = vmul.f32 %v578, %v802
      %v835 = vmul.f32 %v579, %v803
      %v836 = vld [vmem:[%s2] sm:$0x1]
      %v838 = vlaneseq
      %v839 = vshrl.u32 %v838, 7
      %v840 = vsub.s32 0, %v839
      %v841 = vrot.slane %v836, %v840
      %v843 = vmul.f32 %v804, %v841
      %v844 = vmul.f32 %v805, %v841
      %v845 = vmul.f32 %v806, %v841
      %v846 = vmul.f32 %v807, %v841
      %v847 = vmul.f32 %v808, %v841
      %v848 = vmul.f32 %v809, %v841
      %v849 = vmul.f32 %v810, %v841
      %v850 = vmul.f32 %v811, %v841
      %v851 = vmul.f32 %v812, %v841
      %v852 = vmul.f32 %v813, %v841
      %v853 = vmul.f32 %v814, %v841
      %v854 = vmul.f32 %v815, %v841
      %v855 = vmul.f32 %v816, %v841
      %v856 = vmul.f32 %v817, %v841
      %v857 = vmul.f32 %v818, %v841
      %v858 = vmul.f32 %v819, %v841
      %v859 = vmul.f32 %v820, %v841
      %v860 = vmul.f32 %v821, %v841
      %v861 = vmul.f32 %v822, %v841
      %v862 = vmul.f32 %v823, %v841
      %v863 = vmul.f32 %v824, %v841
      %v864 = vmul.f32 %v825, %v841
      %v865 = vmul.f32 %v826, %v841
      %v866 = vmul.f32 %v827, %v841
      %v867 = vmul.f32 %v828, %v841
      %v868 = vmul.f32 %v829, %v841
      %v869 = vmul.f32 %v830, %v841
      %v870 = vmul.f32 %v831, %v841
      %v871 = vmul.f32 %v832, %v841
      %v872 = vmul.f32 %v833, %v841
      %v873 = vmul.f32 %v834, %v841
      %v874 = vmul.f32 %v835, %v841
      %v875 = vld [vmem:[%s3] sm:$0x1]
      %v877 = vlaneseq
      %v878 = vshrl.u32 %v877, 7
      %v879 = vsub.s32 0, %v878
      %v880 = vrot.slane %v875, %v879
      %v882 = vadd.f32 %v843, %v880
      %v883 = vadd.f32 %v844, %v880
      %v884 = vadd.f32 %v845, %v880
      %v885 = vadd.f32 %v846, %v880
      %v886 = vadd.f32 %v847, %v880
      %v887 = vadd.f32 %v848, %v880
      %v888 = vadd.f32 %v849, %v880
      %v889 = vadd.f32 %v850, %v880
      %v890 = vadd.f32 %v851, %v880
      %v891 = vadd.f32 %v852, %v880
      %v892 = vadd.f32 %v853, %v880
      %v893 = vadd.f32 %v854, %v880
      %v894 = vadd.f32 %v855, %v880
      %v895 = vadd.f32 %v856, %v880
      %v896 = vadd.f32 %v857, %v880
      %v897 = vadd.f32 %v858, %v880
      %v898 = vadd.f32 %v859, %v880
      %v899 = vadd.f32 %v860, %v880
      %v900 = vadd.f32 %v861, %v880
      %v901 = vadd.f32 %v862, %v880
      %v902 = vadd.f32 %v863, %v880
      %v903 = vadd.f32 %v864, %v880
      %v904 = vadd.f32 %v865, %v880
      %v905 = vadd.f32 %v866, %v880
      %v906 = vadd.f32 %v867, %v880
      %v907 = vadd.f32 %v868, %v880
      %v908 = vadd.f32 %v869, %v880
      %v909 = vadd.f32 %v870, %v880
      %v910 = vadd.f32 %v871, %v880
      %v911 = vadd.f32 %v872, %v880
      %v912 = vadd.f32 %v873, %v880
      %v913 = vadd.f32 %v874, %v880
      %v914 = vld [vmem:[%s371] sm:$0xff]
      %v915 = vld [vmem:[%s371 + $0x8] sm:$0xff]
      %v916 = vld [vmem:[%s371 + $0x10] sm:$0xff]
      %v917 = vld [vmem:[%s371 + $0x18] sm:$0xff]
      %v918 = vld [vmem:[%s371 + $0x20] sm:$0xff]
      %v919 = vld [vmem:[%s371 + $0x28] sm:$0xff]
      %v920 = vld [vmem:[%s371 + $0x30] sm:$0xff]
      %v921 = vld [vmem:[%s371 + $0x38] sm:$0xff]
      %v922 = vld [vmem:[%s371 + $0x40] sm:$0xff]
      %v923 = vld [vmem:[%s371 + $0x48] sm:$0xff]
      %v924 = vld [vmem:[%s371 + $0x50] sm:$0xff]
      %v925 = vld [vmem:[%s371 + $0x58] sm:$0xff]
      %v926 = vld [vmem:[%s371 + $0x60] sm:$0xff]
      %v927 = vld [vmem:[%s371 + $0x68] sm:$0xff]
      %v928 = vld [vmem:[%s371 + $0x70] sm:$0xff]
      %v929 = vld [vmem:[%s371 + $0x78] sm:$0xff]
      %v930 = vld [vmem:[%s371 + $0x80] sm:$0xff]
      %v931 = vld [vmem:[%s371 + $0x88] sm:$0xff]
      %v932 = vld [vmem:[%s371 + $0x90] sm:$0xff]
      %v933 = vld [vmem:[%s371 + $0x98] sm:$0xff]
      %v934 = vld [vmem:[%s371 + $0xa0] sm:$0xff]
      %v935 = vld [vmem:[%s371 + $0xa8] sm:$0xff]
      %v936 = vld [vmem:[%s371 + $0xb0] sm:$0xff]
      %v937 = vld [vmem:[%s371 + $0xb8] sm:$0xff]
      %v938 = vld [vmem:[%s371 + $0xc0] sm:$0xff]
      %v939 = vld [vmem:[%s371 + $0xc8] sm:$0xff]
      %v940 = vld [vmem:[%s371 + $0xd0] sm:$0xff]
      %v941 = vld [vmem:[%s371 + $0xd8] sm:$0xff]
      %v942 = vld [vmem:[%s371 + $0xe0] sm:$0xff]
      %v943 = vld [vmem:[%s371 + $0xe8] sm:$0xff]
      %v944 = vld [vmem:[%s371 + $0xf0] sm:$0xff]
      %v945 = vld [vmem:[%s371 + $0xf8] sm:$0xff]
      %v946 = vadd.f32 %v914, %v882
      %v947 = vadd.f32 %v915, %v883
      %v948 = vadd.f32 %v916, %v884
      %v949 = vadd.f32 %v917, %v885
      %v950 = vadd.f32 %v918, %v886
      %v951 = vadd.f32 %v919, %v887
      %v952 = vadd.f32 %v920, %v888
      %v953 = vadd.f32 %v921, %v889
      %v954 = vadd.f32 %v922, %v890
      %v955 = vadd.f32 %v923, %v891
      %v956 = vadd.f32 %v924, %v892
      %v957 = vadd.f32 %v925, %v893
      %v958 = vadd.f32 %v926, %v894
      %v959 = vadd.f32 %v927, %v895
      %v960 = vadd.f32 %v928, %v896
      %v961 = vadd.f32 %v929, %v897
      %v962 = vadd.f32 %v930, %v898
      %v963 = vadd.f32 %v931, %v899
      %v964 = vadd.f32 %v932, %v900
      %v965 = vadd.f32 %v933, %v901
      %v966 = vadd.f32 %v934, %v902
      %v967 = vadd.f32 %v935, %v903
      %v968 = vadd.f32 %v936, %v904
      %v969 = vadd.f32 %v937, %v905
      %v970 = vadd.f32 %v938, %v906
      %v971 = vadd.f32 %v939, %v907
      %v972 = vadd.f32 %v940, %v908
      %v973 = vadd.f32 %v941, %v909
      %v974 = vadd.f32 %v942, %v910
      %v975 = vadd.f32 %v943, %v911
      %v976 = vadd.f32 %v944, %v912
      %v977 = vadd.f32 %v945, %v913
      %v978 = vpack.c.bf16 %v947, %v946
      %v979 = vpack.c.bf16 %v949, %v948
      %v980 = vpack.c.bf16 %v951, %v950
      %v981 = vpack.c.bf16 %v953, %v952
      %v982 = vpack.c.bf16 %v955, %v954
      %v983 = vpack.c.bf16 %v957, %v956
      %v984 = vpack.c.bf16 %v959, %v958
      %v985 = vpack.c.bf16 %v961, %v960
      %v986 = vpack.c.bf16 %v963, %v962
      %v987 = vpack.c.bf16 %v965, %v964
      %v988 = vpack.c.bf16 %v967, %v966
      %v989 = vpack.c.bf16 %v969, %v968
      %v990 = vpack.c.bf16 %v971, %v970
      %v991 = vpack.c.bf16 %v973, %v972
      %v992 = vpack.c.bf16 %v975, %v974
      %v993 = vpack.c.bf16 %v977, %v976
      %v994 = vld [vmem:[%s4] sm:$0xf]
      %v995 = vld [vmem:[%s4 + $0x4] sm:$0xf]
      %v996 = vld [vmem:[%s4 + $0x8] sm:$0xf]
      %v997 = vld [vmem:[%s4 + $0xc] sm:$0xf]
      %v998 = vld [vmem:[%s5] sm:$0x1]
      %v1000 = vlaneseq
      %v1001 = vshrl.u32 %v1000, 7
      %v1002 = vsub.s32 0, %v1001
      %v1003 = vrot.slane %v998, %v1002
      %v1009 = vunpack.c.l.b16 %v994
      %v1010 = vunpack.c.l.b16 %v995
      %v1011 = vunpack.c.l.b16 %v996
      %v1012 = vunpack.c.l.b16 %v997
      %v1013 = vpack.c.b16 %v1010, %v1009
      %v1014 = vpack.c.b16 %v1012, %v1011
      %v1018 = vsel %vm418, %v978, 0
      %v1021 = vsel %vm418, %v979, 0
      %v1024 = vsel %vm418, %v980, 0
      %v1027 = vsel %vm418, %v981, 0
      %v1030 = vsel %vm418, %v982, 0
      %v1033 = vsel %vm418, %v983, 0
      %v1036 = vsel %vm418, %v984, 0
      %v1039 = vsel %vm418, %v985, 0
      %v1042 = vsel %vm418, %v986, 0
      %v1045 = vsel %vm418, %v987, 0
      %v1048 = vsel %vm418, %v988, 0
      %v1051 = vsel %vm418, %v989, 0
      %v1054 = vsel %vm418, %v990, 0
      %v1057 = vsel %vm418, %v991, 0
      %v1060 = vsel %vm418, %v992, 0
      %v1063 = vsel %vm418, %v993, 0
      %1065 = vmatprep.subr.bf16.mxu0 0
      %1066 = vmatpush1.bf16.msra.mxu0 %v1013
      %1067 = vmatprep.subr.bf16.mxu0 0
      %1068 = vmatpush1.bf16.msra.mxu0 %v1014
      %1069 = vmatprep.subr.bf16.mxu0 0
      %1070 = vmatpush1.bf16.msra.mxu0 0
      %1071 = vmatprep.subr.bf16.mxu0 0
      %1072 = vmatpush1.bf16.msra.mxu0 0
      %1073 = vmatprep.subr.bf16.mxu0 0
      %1074 = vmatpush1.bf16.msra.mxu0 0
      %1075 = vmatprep.subr.bf16.mxu0 0
      %1076 = vmatpush1.bf16.msra.mxu0 0
      %1077 = vmatprep.subr.bf16.mxu0 0
      %1078 = vmatpush1.bf16.msra.mxu0 0
      %1079 = vmatprep.subr.bf16.mxu0 0
      %1080 = vmatpush1.bf16.msra.mxu0 0
      %1081 = vmatprep.subr.bf16.mxu0 0
      %1082 = vmatpush1.bf16.msra.mxu0 0
      %1083 = vmatprep.subr.bf16.mxu0 0
      %1084 = vmatpush1.bf16.msra.mxu0 0
      %1085 = vmatprep.subr.bf16.mxu0 0
      %1086 = vmatpush1.bf16.msra.mxu0 0
      %1087 = vmatprep.subr.bf16.mxu0 0
      %1088 = vmatpush1.bf16.msra.mxu0 0
      %1089 = vmatprep.subr.bf16.mxu0 0
      %1090 = vmatpush1.bf16.msra.mxu0 0
      %1091 = vmatprep.subr.bf16.mxu0 0
      %1092 = vmatpush1.bf16.msra.mxu0 0
      %1093 = vmatprep.subr.bf16.mxu0 0
      %1094 = vmatpush1.bf16.msra.mxu0 0
      %1095 = vmatprep.subr.bf16.mxu0 0
      %1096 = vmatpush1.bf16.msra.mxu0 0
      %1097 = vmatprep.mubr.bf16.mxu0 0
      %1098 = vmatmul.mubr.bf16.gmra.mrb[0].mxu0 %v1018
      %v1099 = vpop.f32.mrb[0].mxu0
      %v1100 = vadd.f32 %v1003, %v1099
      %v1101 = vpop.f32.mrb[0].mxu0
      %v1102 = vpop.f32.mrb[0].mxu0
      %v1103 = vadd.f32 %v1003, %v1102
      %v1104 = vpop.f32.mrb[0].mxu0
      %1105 = vmatprep.mubr.bf16.mxu0 0
      %1106 = vmatmul.mubr.bf16.gmra.mrb[0].mxu0 %v1021
      %v1107 = vpop.f32.mrb[0].mxu0
      %v1108 = vadd.f32 %v1003, %v1107
      %v1109 = vpop.f32.mrb[0].mxu0
      %v1110 = vpop.f32.mrb[0].mxu0
      %v1111 = vadd.f32 %v1003, %v1110
      %v1112 = vpop.f32.mrb[0].mxu0
      %1113 = vmatprep.mubr.bf16.mxu0 0
      %1114 = vmatmul.mubr.bf16.gmra.mrb[0].mxu0 %v1024
      %v1115 = vpop.f32.mrb[0].mxu0
      %v1116 = vadd.f32 %v1003, %v1115
      %v1117 = vpop.f32.mrb[0].mxu0
      %v1118 = vpop.f32.mrb[0].mxu0
      %v1119 = vadd.f32 %v1003, %v1118
      %v1120 = vpop.f32.mrb[0].mxu0
      %1121 = vmatprep.mubr.bf16.mxu0 0
      %1122 = vmatmul.mubr.bf16.gmra.mrb[0].mxu0 %v1027
      %v1123 = vpop.f32.mrb[0].mxu0
      %v1124 = vadd.f32 %v1003, %v1123
      %v1125 = vpop.f32.mrb[0].mxu0
      %v1126 = vpop.f32.mrb[0].mxu0
      %v1127 = vadd.f32 %v1003, %v1126
      %v1128 = vpop.f32.mrb[0].mxu0
      %1129 = vmatprep.mubr.bf16.mxu0 0
      %1130 = vmatmul.mubr.bf16.gmra.mrb[0].mxu0 %v1030
      %v1131 = vpop.f32.mrb[0].mxu0
      %v1132 = vadd.f32 %v1003, %v1131
      %v1133 = vpop.f32.mrb[0].mxu0
      %v1134 = vpop.f32.mrb[0].mxu0
      %v1135 = vadd.f32 %v1003, %v1134
      %v1136 = vpop.f32.mrb[0].mxu0
      %1137 = vmatprep.mubr.bf16.mxu0 0
      %1138 = vmatmul.mubr.bf16.gmra.mrb[0].mxu0 %v1033
      %v1139 = vpop.f32.mrb[0].mxu0
      %v1140 = vadd.f32 %v1003, %v1139
      %v1141 = vpop.f32.mrb[0].mxu0
      %v1142 = vpop.f32.mrb[0].mxu0
      %v1143 = vadd.f32 %v1003, %v1142
      %v1144 = vpop.f32.mrb[0].mxu0
      %1145 = vmatprep.mubr.bf16.mxu0 0
      %1146 = vmatmul.mubr.bf16.gmra.mrb[0].mxu0 %v1036
      %v1147 = vpop.f32.mrb[0].mxu0
      %v1148 = vadd.f32 %v1003, %v1147
      %v1149 = vpop.f32.mrb[0].mxu0
      %v1150 = vpop.f32.mrb[0].mxu0
      %v1151 = vadd.f32 %v1003, %v1150
      %v1152 = vpop.f32.mrb[0].mxu0
      %1153 = vmatprep.mubr.bf16.mxu0 0
      %1154 = vmatmul.mubr.bf16.gmra.mrb[0].mxu0 %v1039
      %v1155 = vpop.f32.mrb[0].mxu0
      %v1156 = vadd.f32 %v1003, %v1155
      %v1157 = vpop.f32.mrb[0].mxu0
      %v1158 = vpop.f32.mrb[0].mxu0
      %v1159 = vadd.f32 %v1003, %v1158
      %v1160 = vpop.f32.mrb[0].mxu0
      %1161 = vmatprep.mubr.bf16.mxu0 0
      %1162 = vmatmul.mubr.bf16.gmra.mrb[0].mxu0 %v1042
      %v1163 = vpop.f32.mrb[0].mxu0
      %v1164 = vadd.f32 %v1003, %v1163
      %v1165 = vpop.f32.mrb[0].mxu0
      %v1166 = vpop.f32.mrb[0].mxu0
      %v1167 = vadd.f32 %v1003, %v1166
      %v1168 = vpop.f32.mrb[0].mxu0
      %1169 = vmatprep.mubr.bf16.mxu0 0
      %1170 = vmatmul.mubr.bf16.gmra.mrb[0].mxu0 %v1045
      %v1171 = vpop.f32.mrb[0].mxu0
      %v1172 = vadd.f32 %v1003, %v1171
      %v1173 = vpop.f32.mrb[0].mxu0
      %v1174 = vpop.f32.mrb[0].mxu0
      %v1175 = vadd.f32 %v1003, %v1174
      %v1176 = vpop.f32.mrb[0].mxu0
      %1177 = vmatprep.mubr.bf16.mxu0 0
      %1178 = vmatmul.mubr.bf16.gmra.mrb[0].mxu0 %v1048
      %v1179 = vpop.f32.mrb[0].mxu0
      %v1180 = vadd.f32 %v1003, %v1179
      %v1181 = vpop.f32.mrb[0].mxu0
      %v1182 = vpop.f32.mrb[0].mxu0
      %v1183 = vadd.f32 %v1003, %v1182
      %v1184 = vpop.f32.mrb[0].mxu0
      %1185 = vmatprep.mubr.bf16.mxu0 0
      %1186 = vmatmul.mubr.bf16.gmra.mrb[0].mxu0 %v1051
      %v1187 = vpop.f32.mrb[0].mxu0
      %v1188 = vadd.f32 %v1003, %v1187
      %v1189 = vpop.f32.mrb[0].mxu0
      %v1190 = vpop.f32.mrb[0].mxu0
      %v1191 = vadd.f32 %v1003, %v1190
      %v1192 = vpop.f32.mrb[0].mxu0
      %1193 = vmatprep.mubr.bf16.mxu0 0
      %1194 = vmatmul.mubr.bf16.gmra.mrb[0].mxu0 %v1054
      %v1195 = vpop.f32.mrb[0].mxu0
      %v1196 = vadd.f32 %v1003, %v1195
      %v1197 = vpop.f32.mrb[0].mxu0
      %v1198 = vpop.f32.mrb[0].mxu0
      %v1199 = vadd.f32 %v1003, %v1198
      %v1200 = vpop.f32.mrb[0].mxu0
      %1201 = vmatprep.mubr.bf16.mxu0 0
      %1202 = vmatmul.mubr.bf16.gmra.mrb[0].mxu0 %v1057
      %v1203 = vpop.f32.mrb[0].mxu0
      %v1204 = vadd.f32 %v1003, %v1203
      %v1205 = vpop.f32.mrb[0].mxu0
      %v1206 = vpop.f32.mrb[0].mxu0
      %v1207 = vadd.f32 %v1003, %v1206
      %v1208 = vpop.f32.mrb[0].mxu0
      %1209 = vmatprep.mubr.bf16.mxu0 0
      %1210 = vmatmul.mubr.bf16.gmra.mrb[0].mxu0 %v1060
      %v1211 = vpop.f32.mrb[0].mxu0
      %v1212 = vadd.f32 %v1003, %v1211
      %v1213 = vpop.f32.mrb[0].mxu0
      %v1214 = vpop.f32.mrb[0].mxu0
      %v1215 = vadd.f32 %v1003, %v1214
      %v1216 = vpop.f32.mrb[0].mxu0
      %1217 = vmatprep.mubr.bf16.mxu0 0
      %1218 = vmatmul.mubr.bf16.gmra.mrb[0].mxu0 %v1063
      %v1219 = vpop.f32.mrb[0].mxu0
      %v1220 = vadd.f32 %v1003, %v1219
      %v1221 = vpop.f32.mrb[0].mxu0
      %v1222 = vpop.f32.mrb[0].mxu0
      %v1223 = vadd.f32 %v1003, %v1222
      %v1224 = vpop.f32.mrb[0].mxu0
      %1225 = vdwg.mxu0
      %v1226 = vxor.u32 %v1100, 2147483648
      %v1227 = vxor.u32 %v1103, 2147483648
      %v1228 = vxor.u32 %v1108, 2147483648
      %v1229 = vxor.u32 %v1111, 2147483648
      %v1230 = vxor.u32 %v1116, 2147483648
      %v1231 = vxor.u32 %v1119, 2147483648
      %v1232 = vxor.u32 %v1124, 2147483648
      %v1233 = vxor.u32 %v1127, 2147483648
      %v1234 = vxor.u32 %v1132, 2147483648
      %v1235 = vxor.u32 %v1135, 2147483648
      %v1236 = vxor.u32 %v1140, 2147483648
      %v1237 = vxor.u32 %v1143, 2147483648
      %v1238 = vxor.u32 %v1148, 2147483648
      %v1239 = vxor.u32 %v1151, 2147483648
      %v1240 = vxor.u32 %v1156, 2147483648
      %v1241 = vxor.u32 %v1159, 2147483648
      %v1242 = vxor.u32 %v1164, 2147483648
      %v1243 = vxor.u32 %v1167, 2147483648
      %v1244 = vxor.u32 %v1172, 2147483648
      %v1245 = vxor.u32 %v1175, 2147483648
      %v1246 = vxor.u32 %v1180, 2147483648
      %v1247 = vxor.u32 %v1183, 2147483648
      %v1248 = vxor.u32 %v1188, 2147483648
      %v1249 = vxor.u32 %v1191, 2147483648
      %v1250 = vxor.u32 %v1196, 2147483648
      %v1251 = vxor.u32 %v1199, 2147483648
      %v1252 = vxor.u32 %v1204, 2147483648
      %v1253 = vxor.u32 %v1207, 2147483648
      %v1254 = vxor.u32 %v1212, 2147483648
      %v1255 = vxor.u32 %v1215, 2147483648
      %v1256 = vxor.u32 %v1220, 2147483648
      %v1257 = vxor.u32 %v1223, 2147483648
      %v1258 = vmul.f32 %v1226, 1.442695
      %v1259 = vpow.pop %v1258
      %v1260 = vmul.f32 %v1227, 1.442695
      %v1261 = vpow.pop %v1260
      %v1262 = vmul.f32 %v1228, 1.442695
      %v1263 = vpow.pop %v1262
      %v1264 = vmul.f32 %v1229, 1.442695
      %v1265 = vpow.pop %v1264
      %v1266 = vmul.f32 %v1230, 1.442695
      %v1267 = vpow.pop %v1266
      %v1268 = vmul.f32 %v1231, 1.442695
      %v1269 = vpow.pop %v1268
      %v1270 = vmul.f32 %v1232, 1.442695
      %v1271 = vpow.pop %v1270
      %v1272 = vmul.f32 %v1233, 1.442695
      %v1273 = vpow.pop %v1272
      %v1274 = vmul.f32 %v1234, 1.442695
      %v1275 = vpow.pop %v1274
      %v1276 = vmul.f32 %v1235, 1.442695
      %v1277 = vpow.pop %v1276
      %v1278 = vmul.f32 %v1236, 1.442695
      %v1279 = vpow.pop %v1278
      %v1280 = vmul.f32 %v1237, 1.442695
      %v1281 = vpow.pop %v1280
      %v1282 = vmul.f32 %v1238, 1.442695
      %v1283 = vpow.pop %v1282
      %v1284 = vmul.f32 %v1239, 1.442695
      %v1285 = vpow.pop %v1284
      %v1286 = vmul.f32 %v1240, 1.442695
      %v1287 = vpow.pop %v1286
      %v1288 = vmul.f32 %v1241, 1.442695
      %v1289 = vpow.pop %v1288
      %v1290 = vmul.f32 %v1242, 1.442695
      %v1291 = vpow.pop %v1290
      %v1292 = vmul.f32 %v1243, 1.442695
      %v1293 = vpow.pop %v1292
      %v1294 = vmul.f32 %v1244, 1.442695
      %v1295 = vpow.pop %v1294
      %v1296 = vmul.f32 %v1245, 1.442695
      %v1297 = vpow.pop %v1296
      %v1298 = vmul.f32 %v1246, 1.442695
      %v1299 = vpow.pop %v1298
      %v1300 = vmul.f32 %v1247, 1.442695
      %v1301 = vpow.pop %v1300
      %v1302 = vmul.f32 %v1248, 1.442695
      %v1303 = vpow.pop %v1302
      %v1304 = vmul.f32 %v1249, 1.442695
      %v1305 = vpow.pop %v1304
      %v1306 = vmul.f32 %v1250, 1.442695
      %v1307 = vpow.pop %v1306
      %v1308 = vmul.f32 %v1251, 1.442695
      %v1309 = vpow.pop %v1308
      %v1310 = vmul.f32 %v1252, 1.442695
      %v1311 = vpow.pop %v1310
      %v1312 = vmul.f32 %v1253, 1.442695
      %v1313 = vpow.pop %v1312
      %v1314 = vmul.f32 %v1254, 1.442695
      %v1315 = vpow.pop %v1314
      %v1316 = vmul.f32 %v1255, 1.442695
      %v1317 = vpow.pop %v1316
      %v1318 = vmul.f32 %v1256, 1.442695
      %v1319 = vpow.pop %v1318
      %v1320 = vmul.f32 %v1257, 1.442695
      %v1321 = vpow.pop %v1320
      %v1322 = vadd.f32 %v1259, 1.0
      %v1323 = vadd.f32 %v1261, 1.0
      %v1324 = vadd.f32 %v1263, 1.0
      %v1325 = vadd.f32 %v1265, 1.0
      %v1326 = vadd.f32 %v1267, 1.0
      %v1327 = vadd.f32 %v1269, 1.0
      %v1328 = vadd.f32 %v1271, 1.0
      %v1329 = vadd.f32 %v1273, 1.0
      %v1330 = vadd.f32 %v1275, 1.0
      %v1331 = vadd.f32 %v1277, 1.0
      %v1332 = vadd.f32 %v1279, 1.0
      %v1333 = vadd.f32 %v1281, 1.0
      %v1334 = vadd.f32 %v1283, 1.0
      %v1335 = vadd.f32 %v1285, 1.0
      %v1336 = vadd.f32 %v1287, 1.0
      %v1337 = vadd.f32 %v1289, 1.0
      %v1338 = vadd.f32 %v1291, 1.0
      %v1339 = vadd.f32 %v1293, 1.0
      %v1340 = vadd.f32 %v1295, 1.0
      %v1341 = vadd.f32 %v1297, 1.0
      %v1342 = vadd.f32 %v1299, 1.0
      %v1343 = vadd.f32 %v1301, 1.0
      %v1344 = vadd.f32 %v1303, 1.0
      %v1345 = vadd.f32 %v1305, 1.0
      %v1346 = vadd.f32 %v1307, 1.0
      %v1347 = vadd.f32 %v1309, 1.0
      %v1348 = vadd.f32 %v1311, 1.0
      %v1349 = vadd.f32 %v1313, 1.0
      %v1350 = vadd.f32 %v1315, 1.0
      %v1351 = vadd.f32 %v1317, 1.0
      %v1352 = vadd.f32 %v1319, 1.0
      %v1353 = vadd.f32 %v1321, 1.0
      %v1354 = vrcp.pop %v1322
      %v1355 = vmul.f32 1.0, %v1354
      %v1356 = vrcp.pop %v1323
      %v1357 = vmul.f32 1.0, %v1356
      %v1358 = vrcp.pop %v1324
      %v1359 = vmul.f32 1.0, %v1358
      %v1360 = vrcp.pop %v1325
      %v1361 = vmul.f32 1.0, %v1360
      %v1362 = vrcp.pop %v1326
      %v1363 = vmul.f32 1.0, %v1362
      %v1364 = vrcp.pop %v1327
      %v1365 = vmul.f32 1.0, %v1364
      %v1366 = vrcp.pop %v1328
      %v1367 = vmul.f32 1.0, %v1366
      %v1368 = vrcp.pop %v1329
      %v1369 = vmul.f32 1.0, %v1368
      %v1370 = vrcp.pop %v1330
      %v1371 = vmul.f32 1.0, %v1370
      %v1372 = vrcp.pop %v1331
      %v1373 = vmul.f32 1.0, %v1372
      %v1374 = vrcp.pop %v1332
      %v1375 = vmul.f32 1.0, %v1374
      %v1376 = vrcp.pop %v1333
      %v1377 = vmul.f32 1.0, %v1376
      %v1378 = vrcp.pop %v1334
      %v1379 = vmul.f32 1.0, %v1378
      %v1380 = vrcp.pop %v1335
      %v1381 = vmul.f32 1.0, %v1380
      %v1382 = vrcp.pop %v1336
      %v1383 = vmul.f32 1.0, %v1382
      %v1384 = vrcp.pop %v1337
      %v1385 = vmul.f32 1.0, %v1384
      %v1386 = vrcp.pop %v1338
      %v1387 = vmul.f32 1.0, %v1386
      %v1388 = vrcp.pop %v1339
      %v1389 = vmul.f32 1.0, %v1388
      %v1390 = vrcp.pop %v1340
      %v1391 = vmul.f32 1.0, %v1390
      %v1392 = vrcp.pop %v1341
      %v1393 = vmul.f32 1.0, %v1392
      %v1394 = vrcp.pop %v1342
      %v1395 = vmul.f32 1.0, %v1394
      %v1396 = vrcp.pop %v1343
      %v1397 = vmul.f32 1.0, %v1396
      %v1398 = vrcp.pop %v1344
      %v1399 = vmul.f32 1.0, %v1398
      %v1400 = vrcp.pop %v1345
      %v1401 = vmul.f32 1.0, %v1400
      %v1402 = vrcp.pop %v1346
      %v1403 = vmul.f32 1.0, %v1402
      %v1404 = vrcp.pop %v1347
      %v1405 = vmul.f32 1.0, %v1404
      %v1406 = vrcp.pop %v1348
      %v1407 = vmul.f32 1.0, %v1406
      %v1408 = vrcp.pop %v1349
      %v1409 = vmul.f32 1.0, %v1408
      %v1410 = vrcp.pop %v1350
      %v1411 = vmul.f32 1.0, %v1410
      %v1412 = vrcp.pop %v1351
      %v1413 = vmul.f32 1.0, %v1412
      %v1414 = vrcp.pop %v1352
      %v1415 = vmul.f32 1.0, %v1414
      %v1416 = vrcp.pop %v1353
      %v1417 = vmul.f32 1.0, %v1416
      %v1418 = vmul.f32 %v1100, %v1355
      %v1419 = vmul.f32 %v1103, %v1357
      %v1420 = vmul.f32 %v1108, %v1359
      %v1421 = vmul.f32 %v1111, %v1361
      %v1422 = vmul.f32 %v1116, %v1363
      %v1423 = vmul.f32 %v1119, %v1365
      %v1424 = vmul.f32 %v1124, %v1367
      %v1425 = vmul.f32 %v1127, %v1369
      %v1426 = vmul.f32 %v1132, %v1371
      %v1427 = vmul.f32 %v1135, %v1373
      %v1428 = vmul.f32 %v1140, %v1375
      %v1429 = vmul.f32 %v1143, %v1377
      %v1430 = vmul.f32 %v1148, %v1379
      %v1431 = vmul.f32 %v1151, %v1381
      %v1432 = vmul.f32 %v1156, %v1383
      %v1433 = vmul.f32 %v1159, %v1385
      %v1434 = vmul.f32 %v1164, %v1387
      %v1435 = vmul.f32 %v1167, %v1389
      %v1436 = vmul.f32 %v1172, %v1391
      %v1437 = vmul.f32 %v1175, %v1393
      %v1438 = vmul.f32 %v1180, %v1395
      %v1439 = vmul.f32 %v1183, %v1397
      %v1440 = vmul.f32 %v1188, %v1399
      %v1441 = vmul.f32 %v1191, %v1401
      %v1442 = vmul.f32 %v1196, %v1403
      %v1443 = vmul.f32 %v1199, %v1405
      %v1444 = vmul.f32 %v1204, %v1407
      %v1445 = vmul.f32 %v1207, %v1409
      %v1446 = vmul.f32 %v1212, %v1411
      %v1447 = vmul.f32 %v1215, %v1413
      %v1448 = vmul.f32 %v1220, %v1415
      %v1449 = vmul.f32 %v1223, %v1417
      %v1450 = vpack.c.bf16 %v1419, %v1418
      %v1451 = vpack.c.bf16 %v1421, %v1420
      %v1452 = vpack.c.bf16 %v1423, %v1422
      %v1453 = vpack.c.bf16 %v1425, %v1424
      %v1454 = vpack.c.bf16 %v1427, %v1426
      %v1455 = vpack.c.bf16 %v1429, %v1428
      %v1456 = vpack.c.bf16 %v1431, %v1430
      %v1457 = vpack.c.bf16 %v1433, %v1432
      %v1458 = vpack.c.bf16 %v1435, %v1434
      %v1459 = vpack.c.bf16 %v1437, %v1436
      %v1460 = vpack.c.bf16 %v1439, %v1438
      %v1461 = vpack.c.bf16 %v1441, %v1440
      %v1462 = vpack.c.bf16 %v1443, %v1442
      %v1463 = vpack.c.bf16 %v1445, %v1444
      %v1464 = vpack.c.bf16 %v1447, %v1446
      %v1465 = vpack.c.bf16 %v1449, %v1448
      %v1466 = vld [vmem:[%s6] sm:$0xf]
      %v1467 = vld [vmem:[%s6 + $0x4] sm:$0xf]
      %v1468 = vld [vmem:[%s6 + $0x8] sm:$0xf]
      %v1469 = vld [vmem:[%s6 + $0xc] sm:$0xf]
      %v1470 = vld [vmem:[%s6 + $0x10] sm:$0xf]
      %v1471 = vld [vmem:[%s6 + $0x14] sm:$0xf]
      %v1472 = vld [vmem:[%s6 + $0x18] sm:$0xf]
      %v1473 = vld [vmem:[%s6 + $0x1c] sm:$0xf]
      %v1474 = vld [vmem:[%s6 + $0x20] sm:$0xf]
      %v1475 = vld [vmem:[%s6 + $0x24] sm:$0xf]
      %v1476 = vld [vmem:[%s6 + $0x28] sm:$0xf]
      %v1477 = vld [vmem:[%s6 + $0x2c] sm:$0xf]
      %v1478 = vld [vmem:[%s6 + $0x30] sm:$0xf]
      %v1479 = vld [vmem:[%s6 + $0x34] sm:$0xf]
      %v1480 = vld [vmem:[%s6 + $0x38] sm:$0xf]
      %v1481 = vld [vmem:[%s6 + $0x3c] sm:$0xf]
      %v1482 = vld [vmem:[%s7] sm:$0x1]
      %v1484 = vlaneseq
      %v1485 = vshrl.u32 %v1484, 7
      %v1486 = vsub.s32 0, %v1485
      %v1487 = vrot.slane %v1482, %v1486
      %v1505 = vunpack.c.l.b16 %v1466
      %v1506 = vunpack.c.l.b16 %v1467
      %v1507 = vunpack.c.l.b16 %v1468
      %v1508 = vunpack.c.l.b16 %v1469
      %v1509 = vunpack.c.l.b16 %v1470
      %v1510 = vunpack.c.l.b16 %v1471
      %v1511 = vunpack.c.l.b16 %v1472
      %v1512 = vunpack.c.l.b16 %v1473
      %v1513 = vunpack.c.l.b16 %v1474
      %v1514 = vunpack.c.l.b16 %v1475
      %v1515 = vunpack.c.l.b16 %v1476
      %v1516 = vunpack.c.l.b16 %v1477
      %v1517 = vunpack.c.l.b16 %v1478
      %v1518 = vunpack.c.l.b16 %v1479
      %v1519 = vunpack.c.l.b16 %v1480
      %v1520 = vunpack.c.l.b16 %v1481
      %v1521 = vpack.c.b16 %v1506, %v1505
      %v1522 = vpack.c.b16 %v1508, %v1507
      %v1523 = vpack.c.b16 %v1510, %v1509
      %v1524 = vpack.c.b16 %v1512, %v1511
      %v1525 = vpack.c.b16 %v1514, %v1513
      %v1526 = vpack.c.b16 %v1516, %v1515
      %v1527 = vpack.c.b16 %v1518, %v1517
      %v1528 = vpack.c.b16 %v1520, %v1519
      %1537 = vmatprep.subr.bf16.mxu0 0
      %1538 = vmatpush1.bf16.msra.mxu0 %v1521
      %1539 = vmatprep.subr.bf16.mxu0 0
      %1540 = vmatpush1.bf16.msra.mxu0 %v1522
      %1541 = vmatprep.subr.bf16.mxu0 0
      %1542 = vmatpush1.bf16.msra.mxu0 %v1523
      %1543 = vmatprep.subr.bf16.mxu0 0
      %1544 = vmatpush1.bf16.msra.mxu0 %v1524
      %1545 = vmatprep.subr.bf16.mxu0 0
      %1546 = vmatpush1.bf16.msra.mxu0 %v1525
      %1547 = vmatprep.subr.bf16.mxu0 0
      %1548 = vmatpush1.bf16.msra.mxu0 %v1526
      %1549 = vmatprep.subr.bf16.mxu0 0
      %1550 = vmatpush1.bf16.msra.mxu0 %v1527
      %1551 = vmatprep.subr.bf16.mxu0 0
      %1552 = vmatpush1.bf16.msra.mxu0 %v1528
      %1553 = vmatprep.subr.bf16.mxu0 0
      %1554 = vmatpush1.bf16.msra.mxu0 0
      %1555 = vmatprep.subr.bf16.mxu0 0
      %1556 = vmatpush1.bf16.msra.mxu0 0
      %1557 = vmatprep.subr.bf16.mxu0 0
      %1558 = vmatpush1.bf16.msra.mxu0 0
      %1559 = vmatprep.subr.bf16.mxu0 0
      %1560 = vmatpush1.bf16.msra.mxu0 0
      %1561 = vmatprep.subr.bf16.mxu0 0
      %1562 = vmatpush1.bf16.msra.mxu0 0
      %1563 = vmatprep.subr.bf16.mxu0 0
      %1564 = vmatpush1.bf16.msra.mxu0 0
      %1565 = vmatprep.subr.bf16.mxu0 0
      %1566 = vmatpush1.bf16.msra.mxu0 0
      %1567 = vmatprep.subr.bf16.mxu0 0
      %1568 = vmatpush1.bf16.msra.mxu0 0
      %1569 = vmatprep.mubr.bf16.mxu0 0
      %1570 = vmatmul.mubr.bf16.gmra.mrb[0].mxu0 %v1450
      %v1571 = vpop.f32.mrb[0].mxu0
      %v1572 = vadd.f32 %v1487, %v1571
      %v1573 = vpop.f32.mrb[0].mxu0
      %v1574 = vpop.f32.mrb[0].mxu0
      %v1575 = vadd.f32 %v1487, %v1574
      %v1576 = vpop.f32.mrb[0].mxu0
      %1577 = vmatprep.mubr.bf16.mxu0 0
      %1578 = vmatmul.mubr.bf16.gmra.mrb[0].mxu0 %v1451
      %v1579 = vpop.f32.mrb[0].mxu0
      %v1580 = vadd.f32 %v1487, %v1579
      %v1581 = vpop.f32.mrb[0].mxu0
      %v1582 = vpop.f32.mrb[0].mxu0
      %v1583 = vadd.f32 %v1487, %v1582
      %v1584 = vpop.f32.mrb[0].mxu0
      %1585 = vmatprep.mubr.bf16.mxu0 0
      %1586 = vmatmul.mubr.bf16.gmra.mrb[0].mxu0 %v1452
      %v1587 = vpop.f32.mrb[0].mxu0
      %v1588 = vadd.f32 %v1487, %v1587
      %v1589 = vpop.f32.mrb[0].mxu0
      %v1590 = vpop.f32.mrb[0].mxu0
      %v1591 = vadd.f32 %v1487, %v1590
      %v1592 = vpop.f32.mrb[0].mxu0
      %1593 = vmatprep.mubr.bf16.mxu0 0
      %1594 = vmatmul.mubr.bf16.gmra.mrb[0].mxu0 %v1453
      %v1595 = vpop.f32.mrb[0].mxu0
      %v1596 = vadd.f32 %v1487, %v1595
      %v1597 = vpop.f32.mrb[0].mxu0
      %v1598 = vpop.f32.mrb[0].mxu0
      %v1599 = vadd.f32 %v1487, %v1598
      %v1600 = vpop.f32.mrb[0].mxu0
      %1601 = vmatprep.mubr.bf16.mxu0 0
      %1602 = vmatmul.mubr.bf16.gmra.mrb[0].mxu0 %v1454
      %v1603 = vpop.f32.mrb[0].mxu0
      %v1604 = vadd.f32 %v1487, %v1603
      %v1605 = vpop.f32.mrb[0].mxu0
      %v1606 = vpop.f32.mrb[0].mxu0
      %v1607 = vadd.f32 %v1487, %v1606
      %v1608 = vpop.f32.mrb[0].mxu0
      %1609 = vmatprep.mubr.bf16.mxu0 0
      %1610 = vmatmul.mubr.bf16.gmra.mrb[0].mxu0 %v1455
      %v1611 = vpop.f32.mrb[0].mxu0
      %v1612 = vadd.f32 %v1487, %v1611
      %v1613 = vpop.f32.mrb[0].mxu0
      %v1614 = vpop.f32.mrb[0].mxu0
      %v1615 = vadd.f32 %v1487, %v1614
      %v1616 = vpop.f32.mrb[0].mxu0
      %1617 = vmatprep.mubr.bf16.mxu0 0
      %1618 = vmatmul.mubr.bf16.gmra.mrb[0].mxu0 %v1456
      %v1619 = vpop.f32.mrb[0].mxu0
      %v1620 = vadd.f32 %v1487, %v1619
      %v1621 = vpop.f32.mrb[0].mxu0
      %v1622 = vpop.f32.mrb[0].mxu0
      %v1623 = vadd.f32 %v1487, %v1622
      %v1624 = vpop.f32.mrb[0].mxu0
      %1625 = vmatprep.mubr.bf16.mxu0 0
      %1626 = vmatmul.mubr.bf16.gmra.mrb[0].mxu0 %v1457
      %v1627 = vpop.f32.mrb[0].mxu0
      %v1628 = vadd.f32 %v1487, %v1627
      %v1629 = vpop.f32.mrb[0].mxu0
      %v1630 = vpop.f32.mrb[0].mxu0
      %v1631 = vadd.f32 %v1487, %v1630
      %v1632 = vpop.f32.mrb[0].mxu0
      %1633 = vmatprep.mubr.bf16.mxu0 0
      %1634 = vmatmul.mubr.bf16.gmra.mrb[0].mxu0 %v1458
      %v1635 = vpop.f32.mrb[0].mxu0
      %v1636 = vadd.f32 %v1487, %v1635
      %v1637 = vpop.f32.mrb[0].mxu0
      %v1638 = vpop.f32.mrb[0].mxu0
      %v1639 = vadd.f32 %v1487, %v1638
      %v1640 = vpop.f32.mrb[0].mxu0
      %1641 = vmatprep.mubr.bf16.mxu0 0
      %1642 = vmatmul.mubr.bf16.gmra.mrb[0].mxu0 %v1459
      %v1643 = vpop.f32.mrb[0].mxu0
      %v1644 = vadd.f32 %v1487, %v1643
      %v1645 = vpop.f32.mrb[0].mxu0
      %v1646 = vpop.f32.mrb[0].mxu0
      %v1647 = vadd.f32 %v1487, %v1646
      %v1648 = vpop.f32.mrb[0].mxu0
      %1649 = vmatprep.mubr.bf16.mxu0 0
      %1650 = vmatmul.mubr.bf16.gmra.mrb[0].mxu0 %v1460
      %v1651 = vpop.f32.mrb[0].mxu0
      %v1652 = vadd.f32 %v1487, %v1651
      %v1653 = vpop.f32.mrb[0].mxu0
      %v1654 = vpop.f32.mrb[0].mxu0
      %v1655 = vadd.f32 %v1487, %v1654
      %v1656 = vpop.f32.mrb[0].mxu0
      %1657 = vmatprep.mubr.bf16.mxu0 0
      %1658 = vmatmul.mubr.bf16.gmra.mrb[0].mxu0 %v1461
      %v1659 = vpop.f32.mrb[0].mxu0
      %v1660 = vadd.f32 %v1487, %v1659
      %v1661 = vpop.f32.mrb[0].mxu0
      %v1662 = vpop.f32.mrb[0].mxu0
      %v1663 = vadd.f32 %v1487, %v1662
      %v1664 = vpop.f32.mrb[0].mxu0
      %1665 = vmatprep.mubr.bf16.mxu0 0
      %1666 = vmatmul.mubr.bf16.gmra.mrb[0].mxu0 %v1462
      %v1667 = vpop.f32.mrb[0].mxu0
      %v1668 = vadd.f32 %v1487, %v1667
      %v1669 = vpop.f32.mrb[0].mxu0
      %v1670 = vpop.f32.mrb[0].mxu0
      %v1671 = vadd.f32 %v1487, %v1670
      %v1672 = vpop.f32.mrb[0].mxu0
      %1673 = vmatprep.mubr.bf16.mxu0 0
      %1674 = vmatmul.mubr.bf16.gmra.mrb[0].mxu0 %v1463
      %v1675 = vpop.f32.mrb[0].mxu0
      %v1676 = vadd.f32 %v1487, %v1675
      %v1677 = vpop.f32.mrb[0].mxu0
      %v1678 = vpop.f32.mrb[0].mxu0
      %v1679 = vadd.f32 %v1487, %v1678
      %v1680 = vpop.f32.mrb[0].mxu0
      %1681 = vmatprep.mubr.bf16.mxu0 0
      %1682 = vmatmul.mubr.bf16.gmra.mrb[0].mxu0 %v1464
      %v1683 = vpop.f32.mrb[0].mxu0
      %v1684 = vadd.f32 %v1487, %v1683
      %v1685 = vpop.f32.mrb[0].mxu0
      %v1686 = vpop.f32.mrb[0].mxu0
      %v1687 = vadd.f32 %v1487, %v1686
      %v1688 = vpop.f32.mrb[0].mxu0
      %1689 = vmatprep.mubr.bf16.mxu0 0
      %1690 = vmatmul.mubr.bf16.gmra.mrb[0].mxu0 %v1465
      %v1691 = vpop.f32.mrb[0].mxu0
      %v1692 = vadd.f32 %v1487, %v1691
      %v1693 = vpop.f32.mrb[0].mxu0
      %v1694 = vpop.f32.mrb[0].mxu0
      %v1695 = vadd.f32 %v1487, %v1694
      %v1696 = vpop.f32.mrb[0].mxu0
      %1697 = vdwg.mxu0
      %v1698 = vsel %vm418, %v1572, 0.0
      %1699 = vadd.xlane.f32.xlu0 %v1698
      %v1700 = vpop.xlane.xlu0 %1699
      %v1701 = vsel %vm418, %v1575, 0.0
      %1702 = vadd.xlane.f32.xlu0 %v1701
      %v1703 = vpop.xlane.xlu0 %1702
      %v1704 = vsel %vm418, %v1580, 0.0
      %1705 = vadd.xlane.f32.xlu0 %v1704
      %v1706 = vpop.xlane.xlu0 %1705
      %v1707 = vsel %vm418, %v1583, 0.0
      %1708 = vadd.xlane.f32.xlu0 %v1707
      %v1709 = vpop.xlane.xlu0 %1708
      %v1710 = vsel %vm418, %v1588, 0.0
      %1711 = vadd.xlane.f32.xlu0 %v1710
      %v1712 = vpop.xlane.xlu0 %1711
      %v1713 = vsel %vm418, %v1591, 0.0
      %1714 = vadd.xlane.f32.xlu0 %v1713
      %v1715 = vpop.xlane.xlu0 %1714
      %v1716 = vsel %vm418, %v1596, 0.0
      %1717 = vadd.xlane.f32.xlu0 %v1716
      %v1718 = vpop.xlane.xlu0 %1717
      %v1719 = vsel %vm418, %v1599, 0.0
      %1720 = vadd.xlane.f32.xlu0 %v1719
      %v1721 = vpop.xlane.xlu0 %1720
      %v1722 = vsel %vm418, %v1604, 0.0
      %1723 = vadd.xlane.f32.xlu0 %v1722
      %v1724 = vpop.xlane.xlu0 %1723
      %v1725 = vsel %vm418, %v1607, 0.0
      %1726 = vadd.xlane.f32.xlu0 %v1725
      %v1727 = vpop.xlane.xlu0 %1726
      %v1728 = vsel %vm418, %v1612, 0.0
      %1729 = vadd.xlane.f32.xlu0 %v1728
      %v1730 = vpop.xlane.xlu0 %1729
      %v1731 = vsel %vm418, %v1615, 0.0
      %1732 = vadd.xlane.f32.xlu0 %v1731
      %v1733 = vpop.xlane.xlu0 %1732
      %v1734 = vsel %vm418, %v1620, 0.0
      %1735 = vadd.xlane.f32.xlu0 %v1734
      %v1736 = vpop.xlane.xlu0 %1735
      %v1737 = vsel %vm418, %v1623, 0.0
      %1738 = vadd.xlane.f32.xlu0 %v1737
      %v1739 = vpop.xlane.xlu0 %1738
      %v1740 = vsel %vm418, %v1628, 0.0
      %1741 = vadd.xlane.f32.xlu0 %v1740
      %v1742 = vpop.xlane.xlu0 %1741
      %v1743 = vsel %vm418, %v1631, 0.0
      %1744 = vadd.xlane.f32.xlu0 %v1743
      %v1745 = vpop.xlane.xlu0 %1744
      %v1746 = vsel %vm418, %v1636, 0.0
      %1747 = vadd.xlane.f32.xlu0 %v1746
      %v1748 = vpop.xlane.xlu0 %1747
      %v1749 = vsel %vm418, %v1639, 0.0
      %1750 = vadd.xlane.f32.xlu0 %v1749
      %v1751 = vpop.xlane.xlu0 %1750
      %v1752 = vsel %vm418, %v1644, 0.0
      %1753 = vadd.xlane.f32.xlu0 %v1752
      %v1754 = vpop.xlane.xlu0 %1753
      %v1755 = vsel %vm418, %v1647, 0.0
      %1756 = vadd.xlane.f32.xlu0 %v1755
      %v1757 = vpop.xlane.xlu0 %1756
      %v1758 = vsel %vm418, %v1652, 0.0
      %1759 = vadd.xlane.f32.xlu0 %v1758
      %v1760 = vpop.xlane.xlu0 %1759
      %v1761 = vsel %vm418, %v1655, 0.0
      %1762 = vadd.xlane.f32.xlu0 %v1761
      %v1763 = vpop.xlane.xlu0 %1762
      %v1764 = vsel %vm418, %v1660, 0.0
      %1765 = vadd.xlane.f32.xlu0 %v1764
      %v1766 = vpop.xlane.xlu0 %1765
      %v1767 = vsel %vm418, %v1663, 0.0
      %1768 = vadd.xlane.f32.xlu0 %v1767
      %v1769 = vpop.xlane.xlu0 %1768
      %v1770 = vsel %vm418, %v1668, 0.0
      %1771 = vadd.xlane.f32.xlu0 %v1770
      %v1772 = vpop.xlane.xlu0 %1771
      %v1773 = vsel %vm418, %v1671, 0.0
      %1774 = vadd.xlane.f32.xlu0 %v1773
      %v1775 = vpop.xlane.xlu0 %1774
      %v1776 = vsel %vm418, %v1676, 0.0
      %1777 = vadd.xlane.f32.xlu0 %v1776
      %v1778 = vpop.xlane.xlu0 %1777
      %v1779 = vsel %vm418, %v1679, 0.0
      %1780 = vadd.xlane.f32.xlu0 %v1779
      %v1781 = vpop.xlane.xlu0 %1780
      %v1782 = vsel %vm418, %v1684, 0.0
      %1783 = vadd.xlane.f32.xlu0 %v1782
      %v1784 = vpop.xlane.xlu0 %1783
      %v1785 = vsel %vm418, %v1687, 0.0
      %1786 = vadd.xlane.f32.xlu0 %v1785
      %v1787 = vpop.xlane.xlu0 %1786
      %v1788 = vsel %vm418, %v1692, 0.0
      %1789 = vadd.xlane.f32.xlu0 %v1788
      %v1790 = vpop.xlane.xlu0 %1789
      %v1791 = vsel %vm418, %v1695, 0.0
      %1792 = vadd.xlane.f32.xlu0 %v1791
      %v1793 = vpop.xlane.xlu0 %1792
      %v1794 = vmul.f32 %v1700, %v515
      %v1795 = vmul.f32 %v1703, %v515
      %v1796 = vmul.f32 %v1706, %v515
      %v1797 = vmul.f32 %v1709, %v515
      %v1798 = vmul.f32 %v1712, %v515
      %v1799 = vmul.f32 %v1715, %v515
      %v1800 = vmul.f32 %v1718, %v515
      %v1801 = vmul.f32 %v1721, %v515
      %v1802 = vmul.f32 %v1724, %v515
      %v1803 = vmul.f32 %v1727, %v515
      %v1804 = vmul.f32 %v1730, %v515
      %v1805 = vmul.f32 %v1733, %v515
      %v1806 = vmul.f32 %v1736, %v515
      %v1807 = vmul.f32 %v1739, %v515
      %v1808 = vmul.f32 %v1742, %v515
      %v1809 = vmul.f32 %v1745, %v515
      %v1810 = vmul.f32 %v1748, %v515
      %v1811 = vmul.f32 %v1751, %v515
      %v1812 = vmul.f32 %v1754, %v515
      %v1813 = vmul.f32 %v1757, %v515
      %v1814 = vmul.f32 %v1760, %v515
      %v1815 = vmul.f32 %v1763, %v515
      %v1816 = vmul.f32 %v1766, %v515
      %v1817 = vmul.f32 %v1769, %v515
      %v1818 = vmul.f32 %v1772, %v515
      %v1819 = vmul.f32 %v1775, %v515
      %v1820 = vmul.f32 %v1778, %v515
      %v1821 = vmul.f32 %v1781, %v515
      %v1822 = vmul.f32 %v1784, %v515
      %v1823 = vmul.f32 %v1787, %v515
      %v1824 = vmul.f32 %v1790, %v515
      %v1825 = vmul.f32 %v1793, %v515
      %v1826 = vsub.f32 %v1572, %v1794
      %v1827 = vsub.f32 %v1575, %v1795
      %v1828 = vsub.f32 %v1580, %v1796
      %v1829 = vsub.f32 %v1583, %v1797
      %v1830 = vsub.f32 %v1588, %v1798
      %v1831 = vsub.f32 %v1591, %v1799
      %v1832 = vsub.f32 %v1596, %v1800
      %v1833 = vsub.f32 %v1599, %v1801
      %v1834 = vsub.f32 %v1604, %v1802
      %v1835 = vsub.f32 %v1607, %v1803
      %v1836 = vsub.f32 %v1612, %v1804
      %v1837 = vsub.f32 %v1615, %v1805
      %v1838 = vsub.f32 %v1620, %v1806
      %v1839 = vsub.f32 %v1623, %v1807
      %v1840 = vsub.f32 %v1628, %v1808
      %v1841 = vsub.f32 %v1631, %v1809
      %v1842 = vsub.f32 %v1636, %v1810
      %v1843 = vsub.f32 %v1639, %v1811
      %v1844 = vsub.f32 %v1644, %v1812
      %v1845 = vsub.f32 %v1647, %v1813
      %v1846 = vsub.f32 %v1652, %v1814
      %v1847 = vsub.f32 %v1655, %v1815
      %v1848 = vsub.f32 %v1660, %v1816
      %v1849 = vsub.f32 %v1663, %v1817
      %v1850 = vsub.f32 %v1668, %v1818
      %v1851 = vsub.f32 %v1671, %v1819
      %v1852 = vsub.f32 %v1676, %v1820
      %v1853 = vsub.f32 %v1679, %v1821
      %v1854 = vsub.f32 %v1684, %v1822
      %v1855 = vsub.f32 %v1687, %v1823
      %v1856 = vsub.f32 %v1692, %v1824
      %v1857 = vsub.f32 %v1695, %v1825
      %v1858 = vmul.f32 %v1826, %v1826
      %v1859 = vmul.f32 %v1827, %v1827
      %v1860 = vmul.f32 %v1828, %v1828
      %v1861 = vmul.f32 %v1829, %v1829
      %v1862 = vmul.f32 %v1830, %v1830
      %v1863 = vmul.f32 %v1831, %v1831
      %v1864 = vmul.f32 %v1832, %v1832
      %v1865 = vmul.f32 %v1833, %v1833
      %v1866 = vmul.f32 %v1834, %v1834
      %v1867 = vmul.f32 %v1835, %v1835
      %v1868 = vmul.f32 %v1836, %v1836
      %v1869 = vmul.f32 %v1837, %v1837
      %v1870 = vmul.f32 %v1838, %v1838
      %v1871 = vmul.f32 %v1839, %v1839
      %v1872 = vmul.f32 %v1840, %v1840
      %v1873 = vmul.f32 %v1841, %v1841
      %v1874 = vmul.f32 %v1842, %v1842
      %v1875 = vmul.f32 %v1843, %v1843
      %v1876 = vmul.f32 %v1844, %v1844
      %v1877 = vmul.f32 %v1845, %v1845
      %v1878 = vmul.f32 %v1846, %v1846
      %v1879 = vmul.f32 %v1847, %v1847
      %v1880 = vmul.f32 %v1848, %v1848
      %v1881 = vmul.f32 %v1849, %v1849
      %v1882 = vmul.f32 %v1850, %v1850
      %v1883 = vmul.f32 %v1851, %v1851
      %v1884 = vmul.f32 %v1852, %v1852
      %v1885 = vmul.f32 %v1853, %v1853
      %v1886 = vmul.f32 %v1854, %v1854
      %v1887 = vmul.f32 %v1855, %v1855
      %v1888 = vmul.f32 %v1856, %v1856
      %v1889 = vmul.f32 %v1857, %v1857
      %v1890 = vsel %vm418, %v1858, 0.0
      %1891 = vadd.xlane.f32.xlu0 %v1890
      %v1892 = vpop.xlane.xlu0 %1891
      %v1893 = vsel %vm418, %v1859, 0.0
      %1894 = vadd.xlane.f32.xlu0 %v1893
      %v1895 = vpop.xlane.xlu0 %1894
      %v1896 = vsel %vm418, %v1860, 0.0
      %1897 = vadd.xlane.f32.xlu0 %v1896
      %v1898 = vpop.xlane.xlu0 %1897
      %v1899 = vsel %vm418, %v1861, 0.0
      %1900 = vadd.xlane.f32.xlu0 %v1899
      %v1901 = vpop.xlane.xlu0 %1900
      %v1902 = vsel %vm418, %v1862, 0.0
      %1903 = vadd.xlane.f32.xlu0 %v1902
      %v1904 = vpop.xlane.xlu0 %1903
      %v1905 = vsel %vm418, %v1863, 0.0
      %1906 = vadd.xlane.f32.xlu0 %v1905
      %v1907 = vpop.xlane.xlu0 %1906
      %v1908 = vsel %vm418, %v1864, 0.0
      %1909 = vadd.xlane.f32.xlu0 %v1908
      %v1910 = vpop.xlane.xlu0 %1909
      %v1911 = vsel %vm418, %v1865, 0.0
      %1912 = vadd.xlane.f32.xlu0 %v1911
      %v1913 = vpop.xlane.xlu0 %1912
      %v1914 = vsel %vm418, %v1866, 0.0
      %1915 = vadd.xlane.f32.xlu0 %v1914
      %v1916 = vpop.xlane.xlu0 %1915
      %v1917 = vsel %vm418, %v1867, 0.0
      %1918 = vadd.xlane.f32.xlu0 %v1917
      %v1919 = vpop.xlane.xlu0 %1918
      %v1920 = vsel %vm418, %v1868, 0.0
      %1921 = vadd.xlane.f32.xlu0 %v1920
      %v1922 = vpop.xlane.xlu0 %1921
      %v1923 = vsel %vm418, %v1869, 0.0
      %1924 = vadd.xlane.f32.xlu0 %v1923
      %v1925 = vpop.xlane.xlu0 %1924
      %v1926 = vsel %vm418, %v1870, 0.0
      %1927 = vadd.xlane.f32.xlu0 %v1926
      %v1928 = vpop.xlane.xlu0 %1927
      %v1929 = vsel %vm418, %v1871, 0.0
      %1930 = vadd.xlane.f32.xlu0 %v1929
      %v1931 = vpop.xlane.xlu0 %1930
      %v1932 = vsel %vm418, %v1872, 0.0
      %1933 = vadd.xlane.f32.xlu0 %v1932
      %v1934 = vpop.xlane.xlu0 %1933
      %v1935 = vsel %vm418, %v1873, 0.0
      %1936 = vadd.xlane.f32.xlu0 %v1935
      %v1937 = vpop.xlane.xlu0 %1936
      %v1938 = vsel %vm418, %v1874, 0.0
      %1939 = vadd.xlane.f32.xlu0 %v1938
      %v1940 = vpop.xlane.xlu0 %1939
      %v1941 = vsel %vm418, %v1875, 0.0
      %1942 = vadd.xlane.f32.xlu0 %v1941
      %v1943 = vpop.xlane.xlu0 %1942
      %v1944 = vsel %vm418, %v1876, 0.0
      %1945 = vadd.xlane.f32.xlu0 %v1944
      %v1946 = vpop.xlane.xlu0 %1945
      %v1947 = vsel %vm418, %v1877, 0.0
      %1948 = vadd.xlane.f32.xlu0 %v1947
      %v1949 = vpop.xlane.xlu0 %1948
      %v1950 = vsel %vm418, %v1878, 0.0
      %1951 = vadd.xlane.f32.xlu0 %v1950
      %v1952 = vpop.xlane.xlu0 %1951
      %v1953 = vsel %vm418, %v1879, 0.0
      %1954 = vadd.xlane.f32.xlu0 %v1953
      %v1955 = vpop.xlane.xlu0 %1954
      %v1956 = vsel %vm418, %v1880, 0.0
      %1957 = vadd.xlane.f32.xlu0 %v1956
      %v1958 = vpop.xlane.xlu0 %1957
      %v1959 = vsel %vm418, %v1881, 0.0
      %1960 = vadd.xlane.f32.xlu0 %v1959
      %v1961 = vpop.xlane.xlu0 %1960
      %v1962 = vsel %vm418, %v1882, 0.0
      %1963 = vadd.xlane.f32.xlu0 %v1962
      %v1964 = vpop.xlane.xlu0 %1963
      %v1965 = vsel %vm418, %v1883, 0.0
      %1966 = vadd.xlane.f32.xlu0 %v1965
      %v1967 = vpop.xlane.xlu0 %1966
      %v1968 = vsel %vm418, %v1884, 0.0
      %1969 = vadd.xlane.f32.xlu0 %v1968
      %v1970 = vpop.xlane.xlu0 %1969
      %v1971 = vsel %vm418, %v1885, 0.0
      %1972 = vadd.xlane.f32.xlu0 %v1971
      %v1973 = vpop.xlane.xlu0 %1972
      %v1974 = vsel %vm418, %v1886, 0.0
      %1975 = vadd.xlane.f32.xlu0 %v1974
      %v1976 = vpop.xlane.xlu0 %1975
      %v1977 = vsel %vm418, %v1887, 0.0
      %1978 = vadd.xlane.f32.xlu0 %v1977
      %v1979 = vpop.xlane.xlu0 %1978
      %v1980 = vsel %vm418, %v1888, 0.0
      %1981 = vadd.xlane.f32.xlu0 %v1980
      %v1982 = vpop.xlane.xlu0 %1981
      %v1983 = vsel %vm418, %v1889, 0.0
      %1984 = vadd.xlane.f32.xlu0 %v1983
      %v1985 = vpop.xlane.xlu0 %1984
      %v1986 = vmul.f32 %v1892, %v515
      %v1987 = vmul.f32 %v1895, %v515
      %v1988 = vmul.f32 %v1898, %v515
      %v1989 = vmul.f32 %v1901, %v515
      %v1990 = vmul.f32 %v1904, %v515
      %v1991 = vmul.f32 %v1907, %v515
      %v1992 = vmul.f32 %v1910, %v515
      %v1993 = vmul.f32 %v1913, %v515
      %v1994 = vmul.f32 %v1916, %v515
      %v1995 = vmul.f32 %v1919, %v515
      %v1996 = vmul.f32 %v1922, %v515
      %v1997 = vmul.f32 %v1925, %v515
      %v1998 = vmul.f32 %v1928, %v515
      %v1999 = vmul.f32 %v1931, %v515
      %v2000 = vmul.f32 %v1934, %v515
      %v2001 = vmul.f32 %v1937, %v515
      %v2002 = vmul.f32 %v1940, %v515
      %v2003 = vmul.f32 %v1943, %v515
      %v2004 = vmul.f32 %v1946, %v515
      %v2005 = vmul.f32 %v1949, %v515
      %v2006 = vmul.f32 %v1952, %v515
      %v2007 = vmul.f32 %v1955, %v515
      %v2008 = vmul.f32 %v1958, %v515
      %v2009 = vmul.f32 %v1961, %v515
      %v2010 = vmul.f32 %v1964, %v515
      %v2011 = vmul.f32 %v1967, %v515
      %v2012 = vmul.f32 %v1970, %v515
      %v2013 = vmul.f32 %v1973, %v515
      %v2014 = vmul.f32 %v1976, %v515
      %v2015 = vmul.f32 %v1979, %v515
      %v2016 = vmul.f32 %v1982, %v515
      %v2017 = vmul.f32 %v1985, %v515
      %v2018 = vadd.f32 %v1986, 1e-05
      %v2019 = vadd.f32 %v1987, 1e-05
      %v2020 = vadd.f32 %v1988, 1e-05
      %v2021 = vadd.f32 %v1989, 1e-05
      %v2022 = vadd.f32 %v1990, 1e-05
      %v2023 = vadd.f32 %v1991, 1e-05
      %v2024 = vadd.f32 %v1992, 1e-05
      %v2025 = vadd.f32 %v1993, 1e-05
      %v2026 = vadd.f32 %v1994, 1e-05
      %v2027 = vadd.f32 %v1995, 1e-05
      %v2028 = vadd.f32 %v1996, 1e-05
      %v2029 = vadd.f32 %v1997, 1e-05
      %v2030 = vadd.f32 %v1998, 1e-05
      %v2031 = vadd.f32 %v1999, 1e-05
      %v2032 = vadd.f32 %v2000, 1e-05
      %v2033 = vadd.f32 %v2001, 1e-05
      %v2034 = vadd.f32 %v2002, 1e-05
      %v2035 = vadd.f32 %v2003, 1e-05
      %v2036 = vadd.f32 %v2004, 1e-05
      %v2037 = vadd.f32 %v2005, 1e-05
      %v2038 = vadd.f32 %v2006, 1e-05
      %v2039 = vadd.f32 %v2007, 1e-05
      %v2040 = vadd.f32 %v2008, 1e-05
      %v2041 = vadd.f32 %v2009, 1e-05
      %v2042 = vadd.f32 %v2010, 1e-05
      %v2043 = vadd.f32 %v2011, 1e-05
      %v2044 = vadd.f32 %v2012, 1e-05
      %v2045 = vadd.f32 %v2013, 1e-05
      %v2046 = vadd.f32 %v2014, 1e-05
      %v2047 = vadd.f32 %v2015, 1e-05
      %v2048 = vadd.f32 %v2016, 1e-05
      %v2049 = vadd.f32 %v2017, 1e-05
      %v2050 = vrsqrt.pop %v2018
      %v2051 = vrsqrt.pop %v2019
      %v2052 = vrsqrt.pop %v2020
      %v2053 = vrsqrt.pop %v2021
      %v2054 = vrsqrt.pop %v2022
      %v2055 = vrsqrt.pop %v2023
      %v2056 = vrsqrt.pop %v2024
      %v2057 = vrsqrt.pop %v2025
      %v2058 = vrsqrt.pop %v2026
      %v2059 = vrsqrt.pop %v2027
      %v2060 = vrsqrt.pop %v2028
      %v2061 = vrsqrt.pop %v2029
      %v2062 = vrsqrt.pop %v2030
      %v2063 = vrsqrt.pop %v2031
      %v2064 = vrsqrt.pop %v2032
      %v2065 = vrsqrt.pop %v2033
      %v2066 = vrsqrt.pop %v2034
      %v2067 = vrsqrt.pop %v2035
      %v2068 = vrsqrt.pop %v2036
      %v2069 = vrsqrt.pop %v2037
      %v2070 = vrsqrt.pop %v2038
      %v2071 = vrsqrt.pop %v2039
      %v2072 = vrsqrt.pop %v2040
      %v2073 = vrsqrt.pop %v2041
      %v2074 = vrsqrt.pop %v2042
      %v2075 = vrsqrt.pop %v2043
      %v2076 = vrsqrt.pop %v2044
      %v2077 = vrsqrt.pop %v2045
      %v2078 = vrsqrt.pop %v2046
      %v2079 = vrsqrt.pop %v2047
      %v2080 = vrsqrt.pop %v2048
      %v2081 = vrsqrt.pop %v2049
      %v2082 = vmul.f32 %v1826, %v2050
      %v2083 = vmul.f32 %v1827, %v2051
      %v2084 = vmul.f32 %v1828, %v2052
      %v2085 = vmul.f32 %v1829, %v2053
      %v2086 = vmul.f32 %v1830, %v2054
      %v2087 = vmul.f32 %v1831, %v2055
      %v2088 = vmul.f32 %v1832, %v2056
      %v2089 = vmul.f32 %v1833, %v2057
      %v2090 = vmul.f32 %v1834, %v2058
      %v2091 = vmul.f32 %v1835, %v2059
      %v2092 = vmul.f32 %v1836, %v2060
      %v2093 = vmul.f32 %v1837, %v2061
      %v2094 = vmul.f32 %v1838, %v2062
      %v2095 = vmul.f32 %v1839, %v2063
      %v2096 = vmul.f32 %v1840, %v2064
      %v2097 = vmul.f32 %v1841, %v2065
      %v2098 = vmul.f32 %v1842, %v2066
      %v2099 = vmul.f32 %v1843, %v2067
      %v2100 = vmul.f32 %v1844, %v2068
      %v2101 = vmul.f32 %v1845, %v2069
      %v2102 = vmul.f32 %v1846, %v2070
      %v2103 = vmul.f32 %v1847, %v2071
      %v2104 = vmul.f32 %v1848, %v2072
      %v2105 = vmul.f32 %v1849, %v2073
      %v2106 = vmul.f32 %v1850, %v2074
      %v2107 = vmul.f32 %v1851, %v2075
      %v2108 = vmul.f32 %v1852, %v2076
      %v2109 = vmul.f32 %v1853, %v2077
      %v2110 = vmul.f32 %v1854, %v2078
      %v2111 = vmul.f32 %v1855, %v2079
      %v2112 = vmul.f32 %v1856, %v2080
      %v2113 = vmul.f32 %v1857, %v2081
      %v2114 = vld [vmem:[%s8] sm:$0x1]
      %v2116 = vlaneseq
      %v2117 = vshrl.u32 %v2116, 7
      %v2118 = vsub.s32 0, %v2117
      %v2119 = vrot.slane %v2114, %v2118
      %v2121 = vmul.f32 %v2082, %v2119
      %v2122 = vmul.f32 %v2083, %v2119
      %v2123 = vmul.f32 %v2084, %v2119
      %v2124 = vmul.f32 %v2085, %v2119
      %v2125 = vmul.f32 %v2086, %v2119
      %v2126 = vmul.f32 %v2087, %v2119
      %v2127 = vmul.f32 %v2088, %v2119
      %v2128 = vmul.f32 %v2089, %v2119
      %v2129 = vmul.f32 %v2090, %v2119
      %v2130 = vmul.f32 %v2091, %v2119
      %v2131 = vmul.f32 %v2092, %v2119
      %v2132 = vmul.f32 %v2093, %v2119
      %v2133 = vmul.f32 %v2094, %v2119
      %v2134 = vmul.f32 %v2095, %v2119
      %v2135 = vmul.f32 %v2096, %v2119
      %v2136 = vmul.f32 %v2097, %v2119
      %v2137 = vmul.f32 %v2098, %v2119
      %v2138 = vmul.f32 %v2099, %v2119
      %v2139 = vmul.f32 %v2100, %v2119
      %v2140 = vmul.f32 %v2101, %v2119
      %v2141 = vmul.f32 %v2102, %v2119
      %v2142 = vmul.f32 %v2103, %v2119
      %v2143 = vmul.f32 %v2104, %v2119
      %v2144 = vmul.f32 %v2105, %v2119
      %v2145 = vmul.f32 %v2106, %v2119
      %v2146 = vmul.f32 %v2107, %v2119
      %v2147 = vmul.f32 %v2108, %v2119
      %v2148 = vmul.f32 %v2109, %v2119
      %v2149 = vmul.f32 %v2110, %v2119
      %v2150 = vmul.f32 %v2111, %v2119
      %v2151 = vmul.f32 %v2112, %v2119
      %v2152 = vmul.f32 %v2113, %v2119
      %v2153 = vld [vmem:[%s9] sm:$0x1]
      %v2155 = vlaneseq
      %v2156 = vshrl.u32 %v2155, 7
      %v2157 = vsub.s32 0, %v2156
      %v2158 = vrot.slane %v2153, %v2157
      %v2160 = vadd.f32 %v2121, %v2158
      %v2161 = vadd.f32 %v2122, %v2158
      %v2162 = vadd.f32 %v2123, %v2158
      %v2163 = vadd.f32 %v2124, %v2158
      %v2164 = vadd.f32 %v2125, %v2158
      %v2165 = vadd.f32 %v2126, %v2158
      %v2166 = vadd.f32 %v2127, %v2158
      %v2167 = vadd.f32 %v2128, %v2158
      %v2168 = vadd.f32 %v2129, %v2158
      %v2169 = vadd.f32 %v2130, %v2158
      %v2170 = vadd.f32 %v2131, %v2158
      %v2171 = vadd.f32 %v2132, %v2158
      %v2172 = vadd.f32 %v2133, %v2158
      %v2173 = vadd.f32 %v2134, %v2158
      %v2174 = vadd.f32 %v2135, %v2158
      %v2175 = vadd.f32 %v2136, %v2158
      %v2176 = vadd.f32 %v2137, %v2158
      %v2177 = vadd.f32 %v2138, %v2158
      %v2178 = vadd.f32 %v2139, %v2158
      %v2179 = vadd.f32 %v2140, %v2158
      %v2180 = vadd.f32 %v2141, %v2158
      %v2181 = vadd.f32 %v2142, %v2158
      %v2182 = vadd.f32 %v2143, %v2158
      %v2183 = vadd.f32 %v2144, %v2158
      %v2184 = vadd.f32 %v2145, %v2158
      %v2185 = vadd.f32 %v2146, %v2158
      %v2186 = vadd.f32 %v2147, %v2158
      %v2187 = vadd.f32 %v2148, %v2158
      %v2188 = vadd.f32 %v2149, %v2158
      %v2189 = vadd.f32 %v2150, %v2158
      %v2190 = vadd.f32 %v2151, %v2158
      %v2191 = vadd.f32 %v2152, %v2158
      %v2192 = vadd.f32 %v946, %v2160
      %v2193 = vadd.f32 %v947, %v2161
      %v2194 = vadd.f32 %v948, %v2162
      %v2195 = vadd.f32 %v949, %v2163
      %v2196 = vadd.f32 %v950, %v2164
      %v2197 = vadd.f32 %v951, %v2165
      %v2198 = vadd.f32 %v952, %v2166
      %v2199 = vadd.f32 %v953, %v2167
      %v2200 = vadd.f32 %v954, %v2168
      %v2201 = vadd.f32 %v955, %v2169
      %v2202 = vadd.f32 %v956, %v2170
      %v2203 = vadd.f32 %v957, %v2171
      %v2204 = vadd.f32 %v958, %v2172
      %v2205 = vadd.f32 %v959, %v2173
      %v2206 = vadd.f32 %v960, %v2174
      %v2207 = vadd.f32 %v961, %v2175
      %v2208 = vadd.f32 %v962, %v2176
      %v2209 = vadd.f32 %v963, %v2177
      %v2210 = vadd.f32 %v964, %v2178
      %v2211 = vadd.f32 %v965, %v2179
      %v2212 = vadd.f32 %v966, %v2180
      %v2213 = vadd.f32 %v967, %v2181
      %v2214 = vadd.f32 %v968, %v2182
      %v2215 = vadd.f32 %v969, %v2183
      %v2216 = vadd.f32 %v970, %v2184
      %v2217 = vadd.f32 %v971, %v2185
      %v2218 = vadd.f32 %v972, %v2186
      %v2219 = vadd.f32 %v973, %v2187
      %v2220 = vadd.f32 %v974, %v2188
      %v2221 = vadd.f32 %v975, %v2189
      %v2222 = vadd.f32 %v976, %v2190
      %v2223 = vadd.f32 %v977, %v2191
      %2224 = vst.msk [vmem:[%s383] sm:$0xff] %vm418, %v2192
      %2225 = vst.msk [vmem:[%s383 + $0x8] sm:$0xff] %vm418, %v2193
      %2226 = vst.msk [vmem:[%s383 + $0x10] sm:$0xff] %vm418, %v2194
      %2227 = vst.msk [vmem:[%s383 + $0x18] sm:$0xff] %vm418, %v2195
      %2228 = vst.msk [vmem:[%s383 + $0x20] sm:$0xff] %vm418, %v2196
      %2229 = vst.msk [vmem:[%s383 + $0x28] sm:$0xff] %vm418, %v2197
      %2230 = vst.msk [vmem:[%s383 + $0x30] sm:$0xff] %vm418, %v2198
      %2231 = vst.msk [vmem:[%s383 + $0x38] sm:$0xff] %vm418, %v2199
      %2232 = vst.msk [vmem:[%s383 + $0x40] sm:$0xff] %vm418, %v2200
      %2233 = vst.msk [vmem:[%s383 + $0x48] sm:$0xff] %vm418, %v2201
      %2234 = vst.msk [vmem:[%s383 + $0x50] sm:$0xff] %vm418, %v2202
      %2235 = vst.msk [vmem:[%s383 + $0x58] sm:$0xff] %vm418, %v2203
      %2236 = vst.msk [vmem:[%s383 + $0x60] sm:$0xff] %vm418, %v2204
      %2237 = vst.msk [vmem:[%s383 + $0x68] sm:$0xff] %vm418, %v2205
      %2238 = vst.msk [vmem:[%s383 + $0x70] sm:$0xff] %vm418, %v2206
      %2239 = vst.msk [vmem:[%s383 + $0x78] sm:$0xff] %vm418, %v2207
      %2240 = vst.msk [vmem:[%s383 + $0x80] sm:$0xff] %vm418, %v2208
      %2241 = vst.msk [vmem:[%s383 + $0x88] sm:$0xff] %vm418, %v2209
      %2242 = vst.msk [vmem:[%s383 + $0x90] sm:$0xff] %vm418, %v2210
      %2243 = vst.msk [vmem:[%s383 + $0x98] sm:$0xff] %vm418, %v2211
      %2244 = vst.msk [vmem:[%s383 + $0xa0] sm:$0xff] %vm418, %v2212
      %2245 = vst.msk [vmem:[%s383 + $0xa8] sm:$0xff] %vm418, %v2213
      %2246 = vst.msk [vmem:[%s383 + $0xb0] sm:$0xff] %vm418, %v2214
      %2247 = vst.msk [vmem:[%s383 + $0xb8] sm:$0xff] %vm418, %v2215
      %2248 = vst.msk [vmem:[%s383 + $0xc0] sm:$0xff] %vm418, %v2216
      %2249 = vst.msk [vmem:[%s383 + $0xc8] sm:$0xff] %vm418, %v2217
      %2250 = vst.msk [vmem:[%s383 + $0xd0] sm:$0xff] %vm418, %v2218
      %2251 = vst.msk [vmem:[%s383 + $0xd8] sm:$0xff] %vm418, %v2219
      %2252 = vst.msk [vmem:[%s383 + $0xe0] sm:$0xff] %vm418, %v2220
      %2253 = vst.msk [vmem:[%s383 + $0xe8] sm:$0xff] %vm418, %v2221
      %2254 = vst.msk [vmem:[%s383 + $0xf0] sm:$0xff] %vm418, %v2222
      %2255 = vst.msk [vmem:[%s383 + $0xf8] sm:$0xff] %vm418, %v2223
      %s2256 = smul.u32 32, %s21
      %p2257 = scmp.lt.s32.totalorder %s2256, 63
      %s2258 = scalar_select %p2257, %s2256, 63
      %s2259 = smul.addr %s2258, 8
      %s2260 = scalar_lea.vmem %s10, %s2259
      // Predicated region
      $region61: #{forward.7} parent=59 // pred_check
        %p2261 = pneg %p259
      $region62: #{forward.7} parent=59 // pred_check_branch
        %2263 = sbr.rel (%p2261) target = $region64
      $region63: #{forward.7} parent=59 // pred_region
        %s2264 = smul.u32 32, %s21
      $region64: #{forward.7} parent=59 // pred_fallthru
        _
    $region60: #{forward.7} parent=5 // pred_fallthru
      _
    %p2265 = scmp.le.s32.totalorder 2, %s16
    // Predicated region
    $region65: #{forward.7} parent=5 // pred_check
      %p2266 = pneg %p2265
    $region66: #{forward.7} parent=5 // pred_check_branch
      %2268 = sbr.rel (%p2266) target = $region68
    $region67: #{forward.7} parent=5 // pred_region
      %s2269 = ssub.s32 %s16, 2
      // Predicated region
      $region69: #{forward.7} parent=67 // pred_check
        %p2270 = pneg %p265
      $region70: #{forward.7} parent=67 // pred_check_branch
        %2272 = sbr.rel (%p2270) target = $region72
      $region71: #{forward.7} parent=67 // pred_region
        %s2273 = smul.u32 32, %s22
        %p2274 = scmp.lt.s32.totalorder %s2273, 63
        %s2275 = scalar_select %p2274, %s2273, 63
        %s2276 = smul.addr %s2275, 8
        %s2277 = scalar_lea.vmem %s10, %s2276
      $region72: #{forward.7} parent=67 // pred_fallthru
        _
    $region68: #{forward.7} parent=5 // pred_fallthru
      _
  $region6: #{forward.7} parent=0 // loop_footer
    %s20 = sadd.s32 1, %s16
  $region7: #{forward.7} parent=0 // loop_footer_branch
    %15 = sbr.rel target = $region3
  $region8: #{forward.7} parent=0 // loop_exit
    _

// kernel: forward.9
$region0: #{forward.9}
  #allocation0 [shape = 'u32[]', space=smem, size = 0x4, offset = 0x4, fixed_abs, tag = 'smem constant byte address 0x4 - core index']
  #allocation1 [shape = 'u32[144,128]{1,0:T(1,128)}', space=vmem, size = 0x12000, scoped, tag = 'internal scratch']
  %s0 = inlined_call_operand.vmem [shape: bf16[512,32], index: 0, kind: input, shape index: {}]
  %s1 = inlined_call_operand.vmem [shape: bf16[512,32], index: 1, kind: input, shape index: {}]
  %s2 = inlined_call_operand.vmem [shape: bf16[32,32], index: 2, kind: input, shape index: {}]
  %s3 = inlined_call_operand.vmem [shape: bf16[32,32], index: 3, kind: input, shape index: {}]
  %s4 = inlined_call_operand.vmem [shape: f32[1,32], index: 4, kind: input, shape index: {}]
  %s5 = inlined_call_operand.vmem [shape: f32[1,32], index: 5, kind: input, shape index: {}]
  %s6 = inlined_call_operand.vmem [shape: f32[512,32], index: 6, kind: output, shape index: {}]
  %s7 = sld [smem:[#allocation0]]
  $region57: #{forward.9} parent=0
    _
  %s9 = ssub.s32 1, %s7
  %s10 = scalar_select 0, %s9, %s7
  loop: start=0, step=1, limit=4
  $region2: #{forward.9} parent=0 // loop_pre_header
    _
  $region3: #{forward.9} parent=0 // loop_header
    %s12 = sphi 0, %s16
    %p13 = scmp.ge.s32.totalorder %s12, 4
    %s22 = sphi 0, %s24
    %s25 = sphi 0, %s22
    %s26 = sphi 0, %s25
    %s42 = sphi 0, %s26
    %s48 = sphi 0, %s50
    %s51 = sphi 0, %s48
    %s52 = sphi 0, %s51
    %s68 = sphi 0, %s52
    %s72 = sphi 0, %s72
    %s74 = sphi 0, %s72
    %s75 = sphi 0, %s74
    %s89 = sphi 0, %s75
    %s93 = sphi 0, %s93
    %s95 = sphi 0, %s93
    %s96 = sphi 0, %s95
    %s110 = sphi 0, %s96
    %s114 = sphi 0, %s114
    %s116 = sphi 0, %s114
    %s117 = sphi 0, %s116
    %s131 = sphi 0, %s117
    %s135 = sphi 0, %s135
    %s137 = sphi 0, %s135
    %s138 = sphi 0, %s137
    %s152 = sphi 0, %s138
    %s158 = sphi 0, %s160
    %s161 = sphi 0, %s158
    %s162 = sphi 0, %s161
    %s178 = sphi 0, %s162
  $region4: #{forward.9} parent=0 // loop_header_branch
    %15 = sbr.rel (%p13) target = $region8
  $region5: #{forward.9} parent=0 // loop_body
    %s17 = ssub.s32 %s12, 1
    %s18 = ssub.s32 %s12, 2
    %s19 = sadd.s32 %s12, 1
    %s20 = ssub.s32 %s12, %s19
    %p21 = scmp.eq.s32.totalorder %s20, 0
    %s23 = sadd.s32 %s22, 1
    %s24 = scalar_select %p21, %s22, %s23
    %p27 = pneg %p21
    %p28 = scmp.eq.s32.totalorder %s12, 1
    %p29 = por %p27, %p28
    %p30 = scmp.ne.s32.totalorder %s22, %s25
    %p31 = scmp.eq.s32.totalorder %s12, 0
    %p32 = por %p30, %p31
    %p33 = scmp.ne.s32.totalorder %s22, %s25
    %p34 = scmp.eq.s32.totalorder %s17, 1
    %p35 = por %p33, %p34
    %p36 = scmp.ne.s32.totalorder %s25, %s26
    %p37 = scmp.eq.s32.totalorder %s17, 0
    %p38 = por %p36, %p37
    %p39 = scmp.ne.s32.totalorder %s25, %s26
    %p40 = scmp.eq.s32.totalorder %s18, 1
    %p41 = por %p39, %p40
    %p43 = scmp.ne.s32.totalorder %s26, %s42
    %p44 = scmp.eq.s32.totalorder %s18, 0
    %p45 = por %p43, %p44
    %s46 = ssub.s32 %s12, %s19
    %p47 = scmp.eq.s32.totalorder %s46, 0
    %s49 = sadd.s32 %s48, 1
    %s50 = scalar_select %p47, %s48, %s49
    %p53 = pneg %p47
    %p54 = scmp.eq.s32.totalorder %s12, 1
    %p55 = por %p53, %p54
    %p56 = scmp.ne.s32.totalorder %s48, %s51
    %p57 = scmp.eq.s32.totalorder %s12, 0
    %p58 = por %p56, %p57
    %p59 = scmp.ne.s32.totalorder %s48, %s51
    %p60 = scmp.eq.s32.totalorder %s17, 1
    %p61 = por %p59, %p60
    %p62 = scmp.ne.s32.totalorder %s51, %s52
    %p63 = scmp.eq.s32.totalorder %s17, 0
    %p64 = por %p62, %p63
    %p65 = scmp.ne.s32.totalorder %s51, %s52
    %p66 = scmp.eq.s32.totalorder %s18, 1
    %p67 = por %p65, %p66
    %p69 = scmp.ne.s32.totalorder %s52, %s68
    %p70 = scmp.eq.s32.totalorder %s18, 0
    %p71 = por %p69, %p70
    %s73 = sadd.s32 %s72, 1
    %p76 = scmp.eq.s32.totalorder %s12, 1
    %p77 = scmp.ne.s32.totalorder %s72, %s74
    %p78 = scmp.eq.s32.totalorder %s12, 0
    %p79 = por %p77, %p78
    %p80 = scmp.ne.s32.totalorder %s72, %s74
    %p81 = scmp.eq.s32.totalorder %s17, 1
    %p82 = por %p80, %p81
    %p83 = scmp.ne.s32.totalorder %s74, %s75
    %p84 = scmp.eq.s32.totalorder %s17, 0
    %p85 = por %p83, %p84
    %p86 = scmp.ne.s32.totalorder %s74, %s75
    %p87 = scmp.eq.s32.totalorder %s18, 1
    %p88 = por %p86, %p87
    %p90 = scmp.ne.s32.totalorder %s75, %s89
    %p91 = scmp.eq.s32.totalorder %s18, 0
    %p92 = por %p90, %p91
    %s94 = sadd.s32 %s93, 1
    %p97 = scmp.eq.s32.totalorder %s12, 1
    %p98 = scmp.ne.s32.totalorder %s93, %s95
    %p99 = scmp.eq.s32.totalorder %s12, 0
    %p100 = por %p98, %p99
    %p101 = scmp.ne.s32.totalorder %s93, %s95
    %p102 = scmp.eq.s32.totalorder %s17, 1
    %p103 = por %p101, %p102
    %p104 = scmp.ne.s32.totalorder %s95, %s96
    %p105 = scmp.eq.s32.totalorder %s17, 0
    %p106 = por %p104, %p105
    %p107 = scmp.ne.s32.totalorder %s95, %s96
    %p108 = scmp.eq.s32.totalorder %s18, 1
    %p109 = por %p107, %p108
    %p111 = scmp.ne.s32.totalorder %s96, %s110
    %p112 = scmp.eq.s32.totalorder %s18, 0
    %p113 = por %p111, %p112
    %s115 = sadd.s32 %s114, 1
    %p118 = scmp.eq.s32.totalorder %s12, 1
    %p119 = scmp.ne.s32.totalorder %s114, %s116
    %p120 = scmp.eq.s32.totalorder %s12, 0
    %p121 = por %p119, %p120
    %p122 = scmp.ne.s32.totalorder %s114, %s116
    %p123 = scmp.eq.s32.totalorder %s17, 1
    %p124 = por %p122, %p123
    %p125 = scmp.ne.s32.totalorder %s116, %s117
    %p126 = scmp.eq.s32.totalorder %s17, 0
    %p127 = por %p125, %p126
    %p128 = scmp.ne.s32.totalorder %s116, %s117
    %p129 = scmp.eq.s32.totalorder %s18, 1
    %p130 = por %p128, %p129
    %p132 = scmp.ne.s32.totalorder %s117, %s131
    %p133 = scmp.eq.s32.totalorder %s18, 0
    %p134 = por %p132, %p133
    %s136 = sadd.s32 %s135, 1
    %p139 = scmp.eq.s32.totalorder %s12, 1
    %p140 = scmp.ne.s32.totalorder %s135, %s137
    %p141 = scmp.eq.s32.totalorder %s12, 0
    %p142 = por %p140, %p141
    %p143 = scmp.ne.s32.totalorder %s135, %s137
    %p144 = scmp.eq.s32.totalorder %s17, 1
    %p145 = por %p143, %p144
    %p146 = scmp.ne.s32.totalorder %s137, %s138
    %p147 = scmp.eq.s32.totalorder %s17, 0
    %p148 = por %p146, %p147
    %p149 = scmp.ne.s32.totalorder %s137, %s138
    %p150 = scmp.eq.s32.totalorder %s18, 1
    %p151 = por %p149, %p150
    %p153 = scmp.ne.s32.totalorder %s138, %s152
    %p154 = scmp.eq.s32.totalorder %s18, 0
    %p155 = por %p153, %p154
    %s156 = ssub.s32 %s12, %s19
    %p157 = scmp.eq.s32.totalorder %s156, 0
    %s159 = sadd.s32 %s158, 1
    %s160 = scalar_select %p157, %s158, %s159
    %p163 = pneg %p157
    %p164 = scmp.eq.s32.totalorder %s12, 1
    %p165 = por %p163, %p164
    %p166 = scmp.ne.s32.totalorder %s158, %s161
    %p167 = scmp.eq.s32.totalorder %s12, 0
    %p168 = por %p166, %p167
    %p169 = scmp.ne.s32.totalorder %s158, %s161
    %p170 = scmp.eq.s32.totalorder %s17, 1
    %p171 = por %p169, %p170
    %p172 = scmp.ne.s32.totalorder %s161, %s162
    %p173 = scmp.eq.s32.totalorder %s17, 0
    %p174 = por %p172, %p173
    %p175 = scmp.ne.s32.totalorder %s161, %s162
    %p176 = scmp.eq.s32.totalorder %s18, 1
    %p177 = por %p175, %p176
    %p179 = scmp.ne.s32.totalorder %s162, %s178
    %p180 = scmp.eq.s32.totalorder %s18, 0
    %p181 = por %p179, %p180
    %p182 = scmp.le.s32.totalorder 1, %s12
    %p183 = scmp.lt.s32.totalorder %s12, 3
    %p184 = pnand %p182, %p183
    %p185 = pneg %p184
    // Predicated region
    $region9: #{forward.9} parent=5 // pred_check
      _
    $region10: #{forward.9} parent=5 // pred_check_branch
      %187 = sbr.rel (%p184) target = $region12
    $region11: #{forward.9} parent=5 // pred_region
      %s188 = ssub.s32 %s12, 1
      // Predicated region
      $region13: #{forward.9} parent=11 // pred_check
        %p189 = pneg %p85
      $region14: #{forward.9} parent=11 // pred_check_branch
        %191 = sbr.rel (%p189) target = $region16
      $region15: #{forward.9} parent=11 // pred_region
        _
      $region16: #{forward.9} parent=11 // pred_fallthru
        _
      // Predicated region
      $region17: #{forward.9} parent=11 // pred_check
        %p192 = pneg %p106
      $region18: #{forward.9} parent=11 // pred_check_branch
        %194 = sbr.rel (%p192) target = $region20
      $region19: #{forward.9} parent=11 // pred_region
        _
      $region20: #{forward.9} parent=11 // pred_fallthru
        _
      // Predicated region
      $region21: #{forward.9} parent=11 // pred_check
        %p195 = pneg %p127
      $region22: #{forward.9} parent=11 // pred_check_branch
        %197 = sbr.rel (%p195) target = $region24
      $region23: #{forward.9} parent=11 // pred_region
        _
      $region24: #{forward.9} parent=11 // pred_fallthru
        _
      // Predicated region
      $region25: #{forward.9} parent=11 // pred_check
        %p198 = pneg %p148
      $region26: #{forward.9} parent=11 // pred_check_branch
        %200 = sbr.rel (%p198) target = $region28
      $region27: #{forward.9} parent=11 // pred_region
        _
      $region28: #{forward.9} parent=11 // pred_fallthru
        _
    $region12: #{forward.9} parent=5 // pred_fallthru
      _
    %p201 = scmp.lt.s32.totalorder %s12, 2
    // Predicated region
    $region29: #{forward.9} parent=5 // pred_check
      %p202 = pneg %p201
    $region30: #{forward.9} parent=5 // pred_check_branch
      %204 = sbr.rel (%p202) target = $region32
    $region31: #{forward.9} parent=5 // pred_region
      // Predicated region
      $region33: #{forward.9} parent=31 // pred_check
        %p205 = pneg %p32
      $region34: #{forward.9} parent=31 // pred_check_branch
        %207 = sbr.rel (%p205) target = $region36
      $region35: #{forward.9} parent=31 // pred_region
        %s208 = smul.u32 32, %s12
        %p209 = scmp.lt.s32.totalorder %s208, 63
        %s210 = scalar_select %p209, %s208, 63
        %s211 = smul.addr %s210, 4
        %s212 = scalar_lea.vmem %s0, %s211
        %s213 = smul.u32 32, %s12
      $region36: #{forward.9} parent=31 // pred_fallthru
        _
      // Predicated region
      $region37: #{forward.9} parent=31 // pred_check
        %p214 = pneg %p58
      $region38: #{forward.9} parent=31 // pred_check_branch
        %216 = sbr.rel (%p214) target = $region40
      $region39: #{forward.9} parent=31 // pred_region
        %s217 = smul.u32 32, %s12
        %p218 = scmp.lt.s32.totalorder %s217, 63
        %s219 = scalar_select %p218, %s217, 63
        %s220 = smul.addr %s219, 4
        %s221 = scalar_lea.vmem %s1, %s220
        %s222 = smul.u32 32, %s12
      $region40: #{forward.9} parent=31 // pred_fallthru
        _
    $region32: #{forward.9} parent=5 // pred_fallthru
      _
    %p223 = scmp.le.s32.totalorder 1, %s12
    %p224 = scmp.lt.s32.totalorder %s12, 3
    %p225 = pnand %p223, %p224
    %p226 = pneg %p225
    // Predicated region
    $region41: #{forward.9} parent=5 // pred_check
      _
    $region42: #{forward.9} parent=5 // pred_check_branch
      %228 = sbr.rel (%p225) target = $region44
    $region43: #{forward.9} parent=5 // pred_region
      %s229 = ssub.s32 %s12, 1
      %s230 = smul.u32 32, %s17
      %p231 = scmp.lt.s32.totalorder %s230, 63
      %s232 = scalar_select %p231, %s230, 63
      %s233 = smul.addr %s232, 4
      %s234 = scalar_lea.vmem %s0, %s233
      %p235 = pneg %p38
      %p236 = pneg %p35
      %s237 = smul.u32 32, %s17
      %p238 = scmp.lt.s32.totalorder %s237, 63
      %s239 = scalar_select %p238, %s237, 63
      %s240 = smul.addr %s239, 4
      %s241 = scalar_lea.vmem %s1, %s240
      %p242 = pneg %p64
      %p243 = pneg %p61
      %p244 = pneg %p85
      %p245 = pneg %p82
      %p246 = pneg %p106
      %p247 = pneg %p103
      %p248 = pneg %p127
      %p249 = pneg %p124
      %p250 = pneg %p148
      %p251 = pneg %p145
      %p252 = pneg %p174
      %p253 = pneg %p171
      %s254 = smul.u32 32, %s17
      %p255 = scmp.lt.s32.totalorder %s254, 63
      %s256 = scalar_select %p255, %s254, 63
      %s257 = smul.addr %s256, 8
      %s258 = scalar_lea.vmem %s6, %s257
      %s259 = smul.u32 32, %s17
      %p260 = scmp.lt.s32.totalorder %s259, 63
      %s261 = scalar_select %p260, %s259, 63
      %s262 = smul.addr %s261, 4
      %s263 = scalar_lea.vmem %s0, %s262
      %s264 = smul.u32 32, %s17
      %s265 = smul.u32 32, %s17
      %p266 = scmp.lt.s32.totalorder %s265, 63
      %s267 = scalar_select %p266, %s265, 63
      %s268 = smul.addr %s267, 4
      %s269 = scalar_lea.vmem %s1, %s268
      %s270 = smul.u32 32, %s17
      %s271 = smul.u32 32, %s17
      %p272 = scmp.lt.s32.totalorder %s271, 63
      %s273 = scalar_select %p272, %s271, 63
      %s274 = smul.addr %s273, 8
      %s275 = scalar_lea.vmem %s6, %s274
      %s276 = smul.u32 32, %s17
      %v278 = vld [vmem:[%s263] sm:$0xf]
      %v279 = vld [vmem:[%s263 + $0x4] sm:$0xf]
      %v280 = vld [vmem:[%s263 + $0x8] sm:$0xf]
      %v281 = vld [vmem:[%s263 + $0xc] sm:$0xf]
      %v282 = vld [vmem:[%s263 + $0x10] sm:$0xf]
      %v283 = vld [vmem:[%s263 + $0x14] sm:$0xf]
      %v284 = vld [vmem:[%s263 + $0x18] sm:$0xf]
      %v285 = vld [vmem:[%s263 + $0x1c] sm:$0xf]
      %v286 = vld [vmem:[%s263 + $0x20] sm:$0xf]
      %v287 = vld [vmem:[%s263 + $0x24] sm:$0xf]
      %v288 = vld [vmem:[%s263 + $0x28] sm:$0xf]
      %v289 = vld [vmem:[%s263 + $0x2c] sm:$0xf]
      %v290 = vld [vmem:[%s263 + $0x30] sm:$0xf]
      %v291 = vld [vmem:[%s263 + $0x34] sm:$0xf]
      %v292 = vld [vmem:[%s263 + $0x38] sm:$0xf]
      %v293 = vld [vmem:[%s263 + $0x3c] sm:$0xf]
      %v294 = vld [vmem:[%s263 + $0x40] sm:$0xf]
      %v295 = vld [vmem:[%s263 + $0x44] sm:$0xf]
      %v296 = vld [vmem:[%s263 + $0x48] sm:$0xf]
      %v297 = vld [vmem:[%s263 + $0x4c] sm:$0xf]
      %v298 = vld [vmem:[%s263 + $0x50] sm:$0xf]
      %v299 = vld [vmem:[%s263 + $0x54] sm:$0xf]
      %v300 = vld [vmem:[%s263 + $0x58] sm:$0xf]
      %v301 = vld [vmem:[%s263 + $0x5c] sm:$0xf]
      %v302 = vld [vmem:[%s263 + $0x60] sm:$0xf]
      %v303 = vld [vmem:[%s263 + $0x64] sm:$0xf]
      %v304 = vld [vmem:[%s263 + $0x68] sm:$0xf]
      %v305 = vld [vmem:[%s263 + $0x6c] sm:$0xf]
      %v306 = vld [vmem:[%s263 + $0x70] sm:$0xf]
      %v307 = vld [vmem:[%s263 + $0x74] sm:$0xf]
      %v308 = vld [vmem:[%s263 + $0x78] sm:$0xf]
      %v309 = vld [vmem:[%s263 + $0x7c] sm:$0xf]
      %v310 = vld [vmem:[%s2] sm:$0xf]
      %v311 = vld [vmem:[%s2 + $0x4] sm:$0xf]
      %v312 = vld [vmem:[%s2 + $0x8] sm:$0xf]
      %v313 = vld [vmem:[%s2 + $0xc] sm:$0xf]
      %v314 = vld [vmem:[%s269] sm:$0xf]
      %v315 = vld [vmem:[%s269 + $0x4] sm:$0xf]
      %v316 = vld [vmem:[%s269 + $0x8] sm:$0xf]
      %v317 = vld [vmem:[%s269 + $0xc] sm:$0xf]
      %v318 = vld [vmem:[%s269 + $0x10] sm:$0xf]
      %v319 = vld [vmem:[%s269 + $0x14] sm:$0xf]
      %v320 = vld [vmem:[%s269 + $0x18] sm:$0xf]
      %v321 = vld [vmem:[%s269 + $0x1c] sm:$0xf]
      %v322 = vld [vmem:[%s269 + $0x20] sm:$0xf]
      %v323 = vld [vmem:[%s269 + $0x24] sm:$0xf]
      %v324 = vld [vmem:[%s269 + $0x28] sm:$0xf]
      %v325 = vld [vmem:[%s269 + $0x2c] sm:$0xf]
      %v326 = vld [vmem:[%s269 + $0x30] sm:$0xf]
      %v327 = vld [vmem:[%s269 + $0x34] sm:$0xf]
      %v328 = vld [vmem:[%s269 + $0x38] sm:$0xf]
      %v329 = vld [vmem:[%s269 + $0x3c] sm:$0xf]
      %v330 = vld [vmem:[%s269 + $0x40] sm:$0xf]
      %v331 = vld [vmem:[%s269 + $0x44] sm:$0xf]
      %v332 = vld [vmem:[%s269 + $0x48] sm:$0xf]
      %v333 = vld [vmem:[%s269 + $0x4c] sm:$0xf]
      %v334 = vld [vmem:[%s269 + $0x50] sm:$0xf]
      %v335 = vld [vmem:[%s269 + $0x54] sm:$0xf]
      %v336 = vld [vmem:[%s269 + $0x58] sm:$0xf]
      %v337 = vld [vmem:[%s269 + $0x5c] sm:$0xf]
      %v338 = vld [vmem:[%s269 + $0x60] sm:$0xf]
      %v339 = vld [vmem:[%s269 + $0x64] sm:$0xf]
      %v340 = vld [vmem:[%s269 + $0x68] sm:$0xf]
      %v341 = vld [vmem:[%s269 + $0x6c] sm:$0xf]
      %v342 = vld [vmem:[%s269 + $0x70] sm:$0xf]
      %v343 = vld [vmem:[%s269 + $0x74] sm:$0xf]
      %v344 = vld [vmem:[%s269 + $0x78] sm:$0xf]
      %v345 = vld [vmem:[%s269 + $0x7c] sm:$0xf]
      %v346 = vld [vmem:[%s3] sm:$0xf]
      %v347 = vld [vmem:[%s3 + $0x4] sm:$0xf]
      %v348 = vld [vmem:[%s3 + $0x8] sm:$0xf]
      %v349 = vld [vmem:[%s3 + $0xc] sm:$0xf]
      %v382 = vunpack.c.l.b16 %v314
      %v383 = vunpack.c.l.b16 %v315
      %v384 = vunpack.c.l.b16 %v316
      %v385 = vunpack.c.l.b16 %v317
      %v386 = vunpack.c.l.b16 %v318
      %v387 = vunpack.c.l.b16 %v319
      %v388 = vunpack.c.l.b16 %v320
      %v389 = vunpack.c.l.b16 %v321
      %v390 = vunpack.c.l.b16 %v322
      %v391 = vunpack.c.l.b16 %v323
      %v392 = vunpack.c.l.b16 %v324
      %v393 = vunpack.c.l.b16 %v325
      %v394 = vunpack.c.l.b16 %v326
      %v395 = vunpack.c.l.b16 %v327
      %v396 = vunpack.c.l.b16 %v328
      %v397 = vunpack.c.l.b16 %v329
      %v398 = vunpack.c.l.b16 %v330
      %v399 = vunpack.c.l.b16 %v331
      %v400 = vunpack.c.l.b16 %v332
      %v401 = vunpack.c.l.b16 %v333
      %v402 = vunpack.c.l.b16 %v334
      %v403 = vunpack.c.l.b16 %v335
      %v404 = vunpack.c.l.b16 %v336
      %v405 = vunpack.c.l.b16 %v337
      %v406 = vunpack.c.l.b16 %v338
      %v407 = vunpack.c.l.b16 %v339
      %v408 = vunpack.c.l.b16 %v340
      %v409 = vunpack.c.l.b16 %v341
      %v410 = vunpack.c.l.b16 %v342
      %v411 = vunpack.c.l.b16 %v343
      %v412 = vunpack.c.l.b16 %v344
      %v413 = vunpack.c.l.b16 %v345
      %v414 = vpack.c.b16 %v383, %v382
      %v415 = vpack.c.b16 %v385, %v384
      %v416 = vpack.c.b16 %v387, %v386
      %v417 = vpack.c.b16 %v389, %v388
      %v418 = vpack.c.b16 %v391, %v390
      %v419 = vpack.c.b16 %v393, %v392
      %v420 = vpack.c.b16 %v395, %v394
      %v421 = vpack.c.b16 %v397, %v396
      %v422 = vpack.c.b16 %v399, %v398
      %v423 = vpack.c.b16 %v401, %v400
      %v424 = vpack.c.b16 %v403, %v402
      %v425 = vpack.c.b16 %v405, %v404
      %v426 = vpack.c.b16 %v407, %v406
      %v427 = vpack.c.b16 %v409, %v408
      %v428 = vpack.c.b16 %v411, %v410
      %v429 = vpack.c.b16 %v413, %v412
      %v434 = vunpack.c.l.b16 %v346
      %v435 = vunpack.c.l.b16 %v347
      %v436 = vunpack.c.l.b16 %v348
      %v437 = vunpack.c.l.b16 %v349
      %v438 = vpack.c.b16 %v435, %v434
      %v439 = vpack.c.b16 %v437, %v436
      %vm442 = vcmask 261120
      %v444 = vsel %vm442, %v414, 0
      %v447 = vsel %vm442, %v415, 0
      %v450 = vsel %vm442, %v416, 0
      %v453 = vsel %vm442, %v417, 0
      %v456 = vsel %vm442, %v418, 0
      %v459 = vsel %vm442, %v419, 0
      %v462 = vsel %vm442, %v420, 0
      %v465 = vsel %vm442, %v421, 0
      %v468 = vsel %vm442, %v422, 0
      %v471 = vsel %vm442, %v423, 0
      %v474 = vsel %vm442, %v424, 0
      %v477 = vsel %vm442, %v425, 0
      %v480 = vsel %vm442, %v426, 0
      %v483 = vsel %vm442, %v427, 0
      %v486 = vsel %vm442, %v428, 0
      %v489 = vsel %vm442, %v429, 0
      %491 = vmatprep.subr.bf16.mxu0 0
      %492 = vmatpush1.bf16.msra.mxu0 %v438
      %493 = vmatprep.subr.bf16.mxu0 0
      %494 = vmatpush1.bf16.msra.mxu0 %v439
      %495 = vmatprep.subr.bf16.mxu0 0
      %496 = vmatpush1.bf16.msra.mxu0 0
      %497 = vmatprep.subr.bf16.mxu0 0
      %498 = vmatpush1.bf16.msra.mxu0 0
      %499 = vmatprep.subr.bf16.mxu0 0
      %500 = vmatpush1.bf16.msra.mxu0 0
      %501 = vmatprep.subr.bf16.mxu0 0
      %502 = vmatpush1.bf16.msra.mxu0 0
      %503 = vmatprep.subr.bf16.mxu0 0
      %504 = vmatpush1.bf16.msra.mxu0 0
      %505 = vmatprep.subr.bf16.mxu0 0
      %506 = vmatpush1.bf16.msra.mxu0 0
      %507 = vmatprep.subr.bf16.mxu0 0
      %508 = vmatpush1.bf16.msra.mxu0 0
      %509 = vmatprep.subr.bf16.mxu0 0
      %510 = vmatpush1.bf16.msra.mxu0 0
      %511 = vmatprep.subr.bf16.mxu0 0
      %512 = vmatpush1.bf16.msra.mxu0 0
      %513 = vmatprep.subr.bf16.mxu0 0
      %514 = vmatpush1.bf16.msra.mxu0 0
      %515 = vmatprep.subr.bf16.mxu0 0
      %516 = vmatpush1.bf16.msra.mxu0 0
      %517 = vmatprep.subr.bf16.mxu0 0
      %518 = vmatpush1.bf16.msra.mxu0 0
      %519 = vmatprep.subr.bf16.mxu0 0
      %520 = vmatpush1.bf16.msra.mxu0 0
      %521 = vmatprep.subr.bf16.mxu0 0
      %522 = vmatpush1.bf16.msra.mxu0 0
      %523 = vmatprep.mubr.bf16.mxu0 0
      %524 = vmatmul.mubr.bf16.gmra.mrb[0].mxu0 %v444
      %v525 = vpop.f32.mrb[0].mxu0
      %v526 = vadd.f32 0.0, %v525
      %v527 = vpop.f32.mrb[0].mxu0
      %v528 = vpop.f32.mrb[0].mxu0
      %v529 = vadd.f32 0.0, %v528
      %v530 = vpop.f32.mrb[0].mxu0
      %531 = vmatprep.mubr.bf16.mxu0 0
      %532 = vmatmul.mubr.bf16.gmra.mrb[0].mxu0 %v447
      %v533 = vpop.f32.mrb[0].mxu0
      %v534 = vadd.f32 0.0, %v533
      %v535 = vpop.f32.mrb[0].mxu0
      %v536 = vpop.f32.mrb[0].mxu0
      %v537 = vadd.f32 0.0, %v536
      %v538 = vpop.f32.mrb[0].mxu0
      %539 = vmatprep.mubr.bf16.mxu0 0
      %540 = vmatmul.mubr.bf16.gmra.mrb[0].mxu0 %v450
      %v541 = vpop.f32.mrb[0].mxu0
      %v542 = vadd.f32 0.0, %v541
      %v543 = vpop.f32.mrb[0].mxu0
      %v544 = vpop.f32.mrb[0].mxu0
      %v545 = vadd.f32 0.0, %v544
      %v546 = vpop.f32.mrb[0].mxu0
      %547 = vmatprep.mubr.bf16.mxu0 0
      %548 = vmatmul.mubr.bf16.gmra.mrb[0].mxu0 %v453
      %v549 = vpop.f32.mrb[0].mxu0
      %v550 = vadd.f32 0.0, %v549
      %v551 = vpop.f32.mrb[0].mxu0
      %v552 = vpop.f32.mrb[0].mxu0
      %v553 = vadd.f32 0.0, %v552
      %v554 = vpop.f32.mrb[0].mxu0
      %555 = vmatprep.mubr.bf16.mxu0 0
      %556 = vmatmul.mubr.bf16.gmra.mrb[0].mxu0 %v456
      %v557 = vpop.f32.mrb[0].mxu0
      %v558 = vadd.f32 0.0, %v557
      %v559 = vpop.f32.mrb[0].mxu0
      %v560 = vpop.f32.mrb[0].mxu0
      %v561 = vadd.f32 0.0, %v560
      %v562 = vpop.f32.mrb[0].mxu0
      %563 = vmatprep.mubr.bf16.mxu0 0
      %564 = vmatmul.mubr.bf16.gmra.mrb[0].mxu0 %v459
      %v565 = vpop.f32.mrb[0].mxu0
      %v566 = vadd.f32 0.0, %v565
      %v567 = vpop.f32.mrb[0].mxu0
      %v568 = vpop.f32.mrb[0].mxu0
      %v569 = vadd.f32 0.0, %v568
      %v570 = vpop.f32.mrb[0].mxu0
      %571 = vmatprep.mubr.bf16.mxu0 0
      %572 = vmatmul.mubr.bf16.gmra.mrb[0].mxu0 %v462
      %v573 = vpop.f32.mrb[0].mxu0
      %v574 = vadd.f32 0.0, %v573
      %v575 = vpop.f32.mrb[0].mxu0
      %v576 = vpop.f32.mrb[0].mxu0
      %v577 = vadd.f32 0.0, %v576
      %v578 = vpop.f32.mrb[0].mxu0
      %579 = vmatprep.mubr.bf16.mxu0 0
      %580 = vmatmul.mubr.bf16.gmra.mrb[0].mxu0 %v465
      %v581 = vpop.f32.mrb[0].mxu0
      %v582 = vadd.f32 0.0, %v581
      %v583 = vpop.f32.mrb[0].mxu0
      %v584 = vpop.f32.mrb[0].mxu0
      %v585 = vadd.f32 0.0, %v584
      %v586 = vpop.f32.mrb[0].mxu0
      %587 = vmatprep.mubr.bf16.mxu0 0
      %588 = vmatmul.mubr.bf16.gmra.mrb[0].mxu0 %v468
      %v589 = vpop.f32.mrb[0].mxu0
      %v590 = vadd.f32 0.0, %v589
      %v591 = vpop.f32.mrb[0].mxu0
      %v592 = vpop.f32.mrb[0].mxu0
      %v593 = vadd.f32 0.0, %v592
      %v594 = vpop.f32.mrb[0].mxu0
      %595 = vmatprep.mubr.bf16.mxu0 0
      %596 = vmatmul.mubr.bf16.gmra.mrb[0].mxu0 %v471
      %v597 = vpop.f32.mrb[0].mxu0
      %v598 = vadd.f32 0.0, %v597
      %v599 = vpop.f32.mrb[0].mxu0
      %v600 = vpop.f32.mrb[0].mxu0
      %v601 = vadd.f32 0.0, %v600
      %v602 = vpop.f32.mrb[0].mxu0
      %603 = vmatprep.mubr.bf16.mxu0 0
      %604 = vmatmul.mubr.bf16.gmra.mrb[0].mxu0 %v474
      %v605 = vpop.f32.mrb[0].mxu0
      %v606 = vadd.f32 0.0, %v605
      %v607 = vpop.f32.mrb[0].mxu0
      %v608 = vpop.f32.mrb[0].mxu0
      %v609 = vadd.f32 0.0, %v608
      %v610 = vpop.f32.mrb[0].mxu0
      %611 = vmatprep.mubr.bf16.mxu0 0
      %612 = vmatmul.mubr.bf16.gmra.mrb[0].mxu0 %v477
      %v613 = vpop.f32.mrb[0].mxu0
      %v614 = vadd.f32 0.0, %v613
      %v615 = vpop.f32.mrb[0].mxu0
      %v616 = vpop.f32.mrb[0].mxu0
      %v617 = vadd.f32 0.0, %v616
      %v618 = vpop.f32.mrb[0].mxu0
      %619 = vmatprep.mubr.bf16.mxu0 0
      %620 = vmatmul.mubr.bf16.gmra.mrb[0].mxu0 %v480
      %v621 = vpop.f32.mrb[0].mxu0
      %v622 = vadd.f32 0.0, %v621
      %v623 = vpop.f32.mrb[0].mxu0
      %v624 = vpop.f32.mrb[0].mxu0
      %v625 = vadd.f32 0.0, %v624
      %v626 = vpop.f32.mrb[0].mxu0
      %627 = vmatprep.mubr.bf16.mxu0 0
      %628 = vmatmul.mubr.bf16.gmra.mrb[0].mxu0 %v483
      %v629 = vpop.f32.mrb[0].mxu0
      %v630 = vadd.f32 0.0, %v629
      %v631 = vpop.f32.mrb[0].mxu0
      %v632 = vpop.f32.mrb[0].mxu0
      %v633 = vadd.f32 0.0, %v632
      %v634 = vpop.f32.mrb[0].mxu0
      %635 = vmatprep.mubr.bf16.mxu0 0
      %636 = vmatmul.mubr.bf16.gmra.mrb[0].mxu0 %v486
      %v637 = vpop.f32.mrb[0].mxu0
      %v638 = vadd.f32 0.0, %v637
      %v639 = vpop.f32.mrb[0].mxu0
      %v640 = vpop.f32.mrb[0].mxu0
      %v641 = vadd.f32 0.0, %v640
      %v642 = vpop.f32.mrb[0].mxu0
      %643 = vmatprep.mubr.bf16.mxu0 0
      %644 = vmatmul.mubr.bf16.gmra.mrb[0].mxu0 %v489
      %v645 = vpop.f32.mrb[0].mxu0
      %v646 = vadd.f32 0.0, %v645
      %v647 = vpop.f32.mrb[0].mxu0
      %v648 = vpop.f32.mrb[0].mxu0
      %v649 = vadd.f32 0.0, %v648
      %v650 = vpop.f32.mrb[0].mxu0
      %651 = vdwg.mxu0
      %v684 = vunpack.c.l.b16 %v278
      %v685 = vunpack.c.l.b16 %v279
      %v686 = vunpack.c.l.b16 %v280
      %v687 = vunpack.c.l.b16 %v281
      %v688 = vunpack.c.l.b16 %v282
      %v689 = vunpack.c.l.b16 %v283
      %v690 = vunpack.c.l.b16 %v284
      %v691 = vunpack.c.l.b16 %v285
      %v692 = vunpack.c.l.b16 %v286
      %v693 = vunpack.c.l.b16 %v287
      %v694 = vunpack.c.l.b16 %v288
      %v695 = vunpack.c.l.b16 %v289
      %v696 = vunpack.c.l.b16 %v290
      %v697 = vunpack.c.l.b16 %v291
      %v698 = vunpack.c.l.b16 %v292
      %v699 = vunpack.c.l.b16 %v293
      %v700 = vunpack.c.l.b16 %v294
      %v701 = vunpack.c.l.b16 %v295
      %v702 = vunpack.c.l.b16 %v296
      %v703 = vunpack.c.l.b16 %v297
      %v704 = vunpack.c.l.b16 %v298
      %v705 = vunpack.c.l.b16 %v299
      %v706 = vunpack.c.l.b16 %v300
      %v707 = vunpack.c.l.b16 %v301
      %v708 = vunpack.c.l.b16 %v302
      %v709 = vunpack.c.l.b16 %v303
      %v710 = vunpack.c.l.b16 %v304
      %v711 = vunpack.c.l.b16 %v305
      %v712 = vunpack.c.l.b16 %v306
      %v713 = vunpack.c.l.b16 %v307
      %v714 = vunpack.c.l.b16 %v308
      %v715 = vunpack.c.l.b16 %v309
      %v716 = vpack.c.b16 %v685, %v684
      %v717 = vpack.c.b16 %v687, %v686
      %v718 = vpack.c.b16 %v689, %v688
      %v719 = vpack.c.b16 %v691, %v690
      %v720 = vpack.c.b16 %v693, %v692
      %v721 = vpack.c.b16 %v695, %v694
      %v722 = vpack.c.b16 %v697, %v696
      %v723 = vpack.c.b16 %v699, %v698
      %v724 = vpack.c.b16 %v701, %v700
      %v725 = vpack.c.b16 %v703, %v702
      %v726 = vpack.c.b16 %v705, %v704
      %v727 = vpack.c.b16 %v707, %v706
      %v728 = vpack.c.b16 %v709, %v708
      %v729 = vpack.c.b16 %v711, %v710
      %v730 = vpack.c.b16 %v713, %v712
      %v731 = vpack.c.b16 %v715, %v714
      %v736 = vunpack.c.l.b16 %v310
      %v737 = vunpack.c.l.b16 %v311
      %v738 = vunpack.c.l.b16 %v312
      %v739 = vunpack.c.l.b16 %v313
      %v740 = vpack.c.b16 %v737, %v736
      %v741 = vpack.c.b16 %v739, %v738
      %v745 = vsel %vm442, %v716, 0
      %v748 = vsel %vm442, %v717, 0
      %v751 = vsel %vm442, %v718, 0
      %v754 = vsel %vm442, %v719, 0
      %v757 = vsel %vm442, %v720, 0
      %v760 = vsel %vm442, %v721, 0
      %v763 = vsel %vm442, %v722, 0
      %v766 = vsel %vm442, %v723, 0
      %v769 = vsel %vm442, %v724, 0
      %v772 = vsel %vm442, %v725, 0
      %v775 = vsel %vm442, %v726, 0
      %v778 = vsel %vm442, %v727, 0
      %v781 = vsel %vm442, %v728, 0
      %v784 = vsel %vm442, %v729, 0
      %v787 = vsel %vm442, %v730, 0
      %v790 = vsel %vm442, %v731, 0
      %792 = vmatprep.subr.bf16.mxu0 0
      %793 = vmatpush1.bf16.msra.mxu0 %v740
      %794 = vmatprep.subr.bf16.mxu0 0
      %795 = vmatpush1.bf16.msra.mxu0 %v741
      %796 = vmatprep.subr.bf16.mxu0 0
      %797 = vmatpush1.bf16.msra.mxu0 0
      %798 = vmatprep.subr.bf16.mxu0 0
      %799 = vmatpush1.bf16.msra.mxu0 0
      %800 = vmatprep.subr.bf16.mxu0 0
      %801 = vmatpush1.bf16.msra.mxu0 0
      %802 = vmatprep.subr.bf16.mxu0 0
      %803 = vmatpush1.bf16.msra.mxu0 0
      %804 = vmatprep.subr.bf16.mxu0 0
      %805 = vmatpush1.bf16.msra.mxu0 0
      %806 = vmatprep.subr.bf16.mxu0 0
      %807 = vmatpush1.bf16.msra.mxu0 0
      %808 = vmatprep.subr.bf16.mxu0 0
      %809 = vmatpush1.bf16.msra.mxu0 0
      %810 = vmatprep.subr.bf16.mxu0 0
      %811 = vmatpush1.bf16.msra.mxu0 0
      %812 = vmatprep.subr.bf16.mxu0 0
      %813 = vmatpush1.bf16.msra.mxu0 0
      %814 = vmatprep.subr.bf16.mxu0 0
      %815 = vmatpush1.bf16.msra.mxu0 0
      %816 = vmatprep.subr.bf16.mxu0 0
      %817 = vmatpush1.bf16.msra.mxu0 0
      %818 = vmatprep.subr.bf16.mxu0 0
      %819 = vmatpush1.bf16.msra.mxu0 0
      %820 = vmatprep.subr.bf16.mxu0 0
      %821 = vmatpush1.bf16.msra.mxu0 0
      %822 = vmatprep.subr.bf16.mxu0 0
      %823 = vmatpush1.bf16.msra.mxu0 0
      %824 = vmatprep.mubr.bf16.mxu0 0
      %825 = vmatmul.mubr.bf16.gmra.mrb[0].mxu0 %v745
      %v826 = vpop.f32.mrb[0].mxu0
      %v827 = vadd.f32 %v526, %v826
      %v828 = vpop.f32.mrb[0].mxu0
      %v829 = vpop.f32.mrb[0].mxu0
      %v830 = vadd.f32 %v529, %v829
      %v831 = vpop.f32.mrb[0].mxu0
      %832 = vmatprep.mubr.bf16.mxu0 0
      %833 = vmatmul.mubr.bf16.gmra.mrb[0].mxu0 %v748
      %v834 = vpop.f32.mrb[0].mxu0
      %v835 = vadd.f32 %v534, %v834
      %v836 = vpop.f32.mrb[0].mxu0
      %v837 = vpop.f32.mrb[0].mxu0
      %v838 = vadd.f32 %v537, %v837
      %v839 = vpop.f32.mrb[0].mxu0
      %840 = vmatprep.mubr.bf16.mxu0 0
      %841 = vmatmul.mubr.bf16.gmra.mrb[0].mxu0 %v751
      %v842 = vpop.f32.mrb[0].mxu0
      %v843 = vadd.f32 %v542, %v842
      %v844 = vpop.f32.mrb[0].mxu0
      %v845 = vpop.f32.mrb[0].mxu0
      %v846 = vadd.f32 %v545, %v845
      %v847 = vpop.f32.mrb[0].mxu0
      %848 = vmatprep.mubr.bf16.mxu0 0
      %849 = vmatmul.mubr.bf16.gmra.mrb[0].mxu0 %v754
      %v850 = vpop.f32.mrb[0].mxu0
      %v851 = vadd.f32 %v550, %v850
      %v852 = vpop.f32.mrb[0].mxu0
      %v853 = vpop.f32.mrb[0].mxu0
      %v854 = vadd.f32 %v553, %v853
      %v855 = vpop.f32.mrb[0].mxu0
      %856 = vmatprep.mubr.bf16.mxu0 0
      %857 = vmatmul.mubr.bf16.gmra.mrb[0].mxu0 %v757
      %v858 = vpop.f32.mrb[0].mxu0
      %v859 = vadd.f32 %v558, %v858
      %v860 = vpop.f32.mrb[0].mxu0
      %v861 = vpop.f32.mrb[0].mxu0
      %v862 = vadd.f32 %v561, %v861
      %v863 = vpop.f32.mrb[0].mxu0
      %864 = vmatprep.mubr.bf16.mxu0 0
      %865 = vmatmul.mubr.bf16.gmra.mrb[0].mxu0 %v760
      %v866 = vpop.f32.mrb[0].mxu0
      %v867 = vadd.f32 %v566, %v866
      %v868 = vpop.f32.mrb[0].mxu0
      %v869 = vpop.f32.mrb[0].mxu0
      %v870 = vadd.f32 %v569, %v869
      %v871 = vpop.f32.mrb[0].mxu0
      %872 = vmatprep.mubr.bf16.mxu0 0
      %873 = vmatmul.mubr.bf16.gmra.mrb[0].mxu0 %v763
      %v874 = vpop.f32.mrb[0].mxu0
      %v875 = vadd.f32 %v574, %v874
      %v876 = vpop.f32.mrb[0].mxu0
      %v877 = vpop.f32.mrb[0].mxu0
      %v878 = vadd.f32 %v577, %v877
      %v879 = vpop.f32.mrb[0].mxu0
      %880 = vmatprep.mubr.bf16.mxu0 0
      %881 = vmatmul.mubr.bf16.gmra.mrb[0].mxu0 %v766
      %v882 = vpop.f32.mrb[0].mxu0
      %v883 = vadd.f32 %v582, %v882
      %v884 = vpop.f32.mrb[0].mxu0
      %v885 = vpop.f32.mrb[0].mxu0
      %v886 = vadd.f32 %v585, %v885
      %v887 = vpop.f32.mrb[0].mxu0
      %888 = vmatprep.mubr.bf16.mxu0 0
      %889 = vmatmul.mubr.bf16.gmra.mrb[0].mxu0 %v769
      %v890 = vpop.f32.mrb[0].mxu0
      %v891 = vadd.f32 %v590, %v890
      %v892 = vpop.f32.mrb[0].mxu0
      %v893 = vpop.f32.mrb[0].mxu0
      %v894 = vadd.f32 %v593, %v893
      %v895 = vpop.f32.mrb[0].mxu0
      %896 = vmatprep.mubr.bf16.mxu0 0
      %897 = vmatmul.mubr.bf16.gmra.mrb[0].mxu0 %v772
      %v898 = vpop.f32.mrb[0].mxu0
      %v899 = vadd.f32 %v598, %v898
      %v900 = vpop.f32.mrb[0].mxu0
      %v901 = vpop.f32.mrb[0].mxu0
      %v902 = vadd.f32 %v601, %v901
      %v903 = vpop.f32.mrb[0].mxu0
      %904 = vmatprep.mubr.bf16.mxu0 0
      %905 = vmatmul.mubr.bf16.gmra.mrb[0].mxu0 %v775
      %v906 = vpop.f32.mrb[0].mxu0
      %v907 = vadd.f32 %v606, %v906
      %v908 = vpop.f32.mrb[0].mxu0
      %v909 = vpop.f32.mrb[0].mxu0
      %v910 = vadd.f32 %v609, %v909
      %v911 = vpop.f32.mrb[0].mxu0
      %912 = vmatprep.mubr.bf16.mxu0 0
      %913 = vmatmul.mubr.bf16.gmra.mrb[0].mxu0 %v778
      %v914 = vpop.f32.mrb[0].mxu0
      %v915 = vadd.f32 %v614, %v914
      %v916 = vpop.f32.mrb[0].mxu0
      %v917 = vpop.f32.mrb[0].mxu0
      %v918 = vadd.f32 %v617, %v917
      %v919 = vpop.f32.mrb[0].mxu0
      %920 = vmatprep.mubr.bf16.mxu0 0
      %921 = vmatmul.mubr.bf16.gmra.mrb[0].mxu0 %v781
      %v922 = vpop.f32.mrb[0].mxu0
      %v923 = vadd.f32 %v622, %v922
      %v924 = vpop.f32.mrb[0].mxu0
      %v925 = vpop.f32.mrb[0].mxu0
      %v926 = vadd.f32 %v625, %v925
      %v927 = vpop.f32.mrb[0].mxu0
      %928 = vmatprep.mubr.bf16.mxu0 0
      %929 = vmatmul.mubr.bf16.gmra.mrb[0].mxu0 %v784
      %v930 = vpop.f32.mrb[0].mxu0
      %v931 = vadd.f32 %v630, %v930
      %v932 = vpop.f32.mrb[0].mxu0
      %v933 = vpop.f32.mrb[0].mxu0
      %v934 = vadd.f32 %v633, %v933
      %v935 = vpop.f32.mrb[0].mxu0
      %936 = vmatprep.mubr.bf16.mxu0 0
      %937 = vmatmul.mubr.bf16.gmra.mrb[0].mxu0 %v787
      %v938 = vpop.f32.mrb[0].mxu0
      %v939 = vadd.f32 %v638, %v938
      %v940 = vpop.f32.mrb[0].mxu0
      %v941 = vpop.f32.mrb[0].mxu0
      %v942 = vadd.f32 %v641, %v941
      %v943 = vpop.f32.mrb[0].mxu0
      %944 = vmatprep.mubr.bf16.mxu0 0
      %945 = vmatmul.mubr.bf16.gmra.mrb[0].mxu0 %v790
      %v946 = vpop.f32.mrb[0].mxu0
      %v947 = vadd.f32 %v646, %v946
      %v948 = vpop.f32.mrb[0].mxu0
      %v949 = vpop.f32.mrb[0].mxu0
      %v950 = vadd.f32 %v649, %v949
      %v951 = vpop.f32.mrb[0].mxu0
      %952 = vdwg.mxu0
      %v953 = vld [vmem:[%s4] sm:$0x1]
      %v955 = vlaneseq
      %v956 = vshrl.u32 %v955, 7
      %v957 = vsub.s32 0, %v956
      %v958 = vrot.slane %v953, %v957
      %v960 = vmul.f32 %v827, %v958
      %v961 = vmul.f32 %v830, %v958
      %v962 = vmul.f32 %v835, %v958
      %v963 = vmul.f32 %v838, %v958
      %v964 = vmul.f32 %v843, %v958
      %v965 = vmul.f32 %v846, %v958
      %v966 = vmul.f32 %v851, %v958
      %v967 = vmul.f32 %v854, %v958
      %v968 = vmul.f32 %v859, %v958
      %v969 = vmul.f32 %v862, %v958
      %v970 = vmul.f32 %v867, %v958
      %v971 = vmul.f32 %v870, %v958
      %v972 = vmul.f32 %v875, %v958
      %v973 = vmul.f32 %v878, %v958
      %v974 = vmul.f32 %v883, %v958
      %v975 = vmul.f32 %v886, %v958
      %v976 = vmul.f32 %v891, %v958
      %v977 = vmul.f32 %v894, %v958
      %v978 = vmul.f32 %v899, %v958
      %v979 = vmul.f32 %v902, %v958
      %v980 = vmul.f32 %v907, %v958
      %v981 = vmul.f32 %v910, %v958
      %v982 = vmul.f32 %v915, %v958
      %v983 = vmul.f32 %v918, %v958
      %v984 = vmul.f32 %v923, %v958
      %v985 = vmul.f32 %v926, %v958
      %v986 = vmul.f32 %v931, %v958
      %v987 = vmul.f32 %v934, %v958
      %v988 = vmul.f32 %v939, %v958
      %v989 = vmul.f32 %v942, %v958
      %v990 = vmul.f32 %v947, %v958
      %v991 = vmul.f32 %v950, %v958
      %v992 = vld [vmem:[%s5] sm:$0x1]
      %v994 = vlaneseq
      %v995 = vshrl.u32 %v994, 7
      %v996 = vsub.s32 0, %v995
      %v997 = vrot.slane %v992, %v996
      %v999 = vadd.f32 %v960, %v997
      %v1000 = vadd.f32 %v961, %v997
      %v1001 = vadd.f32 %v962, %v997
      %v1002 = vadd.f32 %v963, %v997
      %v1003 = vadd.f32 %v964, %v997
      %v1004 = vadd.f32 %v965, %v997
      %v1005 = vadd.f32 %v966, %v997
      %v1006 = vadd.f32 %v967, %v997
      %v1007 = vadd.f32 %v968, %v997
      %v1008 = vadd.f32 %v969, %v997
      %v1009 = vadd.f32 %v970, %v997
      %v1010 = vadd.f32 %v971, %v997
      %v1011 = vadd.f32 %v972, %v997
      %v1012 = vadd.f32 %v973, %v997
      %v1013 = vadd.f32 %v974, %v997
      %v1014 = vadd.f32 %v975, %v997
      %v1015 = vadd.f32 %v976, %v997
      %v1016 = vadd.f32 %v977, %v997
      %v1017 = vadd.f32 %v978, %v997
      %v1018 = vadd.f32 %v979, %v997
      %v1019 = vadd.f32 %v980, %v997
      %v1020 = vadd.f32 %v981, %v997
      %v1021 = vadd.f32 %v982, %v997
      %v1022 = vadd.f32 %v983, %v997
      %v1023 = vadd.f32 %v984, %v997
      %v1024 = vadd.f32 %v985, %v997
      %v1025 = vadd.f32 %v986, %v997
      %v1026 = vadd.f32 %v987, %v997
      %v1027 = vadd.f32 %v988, %v997
      %v1028 = vadd.f32 %v989, %v997
      %v1029 = vadd.f32 %v990, %v997
      %v1030 = vadd.f32 %v991, %v997
      %v1031 = vxor.u32 %v999, 2147483648
      %v1032 = vxor.u32 %v1000, 2147483648
      %v1033 = vxor.u32 %v1001, 2147483648
      %v1034 = vxor.u32 %v1002, 2147483648
      %v1035 = vxor.u32 %v1003, 2147483648
      %v1036 = vxor.u32 %v1004, 2147483648
      %v1037 = vxor.u32 %v1005, 2147483648
      %v1038 = vxor.u32 %v1006, 2147483648
      %v1039 = vxor.u32 %v1007, 2147483648
      %v1040 = vxor.u32 %v1008, 2147483648
      %v1041 = vxor.u32 %v1009, 2147483648
      %v1042 = vxor.u32 %v1010, 2147483648
      %v1043 = vxor.u32 %v1011, 2147483648
      %v1044 = vxor.u32 %v1012, 2147483648
      %v1045 = vxor.u32 %v1013, 2147483648
      %v1046 = vxor.u32 %v1014, 2147483648
      %v1047 = vxor.u32 %v1015, 2147483648
      %v1048 = vxor.u32 %v1016, 2147483648
      %v1049 = vxor.u32 %v1017, 2147483648
      %v1050 = vxor.u32 %v1018, 2147483648
      %v1051 = vxor.u32 %v1019, 2147483648
      %v1052 = vxor.u32 %v1020, 2147483648
      %v1053 = vxor.u32 %v1021, 2147483648
      %v1054 = vxor.u32 %v1022, 2147483648
      %v1055 = vxor.u32 %v1023, 2147483648
      %v1056 = vxor.u32 %v1024, 2147483648
      %v1057 = vxor.u32 %v1025, 2147483648
      %v1058 = vxor.u32 %v1026, 2147483648
      %v1059 = vxor.u32 %v1027, 2147483648
      %v1060 = vxor.u32 %v1028, 2147483648
      %v1061 = vxor.u32 %v1029, 2147483648
      %v1062 = vxor.u32 %v1030, 2147483648
      %v1063 = vmul.f32 %v1031, 1.442695
      %v1064 = vpow.pop %v1063
      %v1065 = vmul.f32 %v1032, 1.442695
      %v1066 = vpow.pop %v1065
      %v1067 = vmul.f32 %v1033, 1.442695
      %v1068 = vpow.pop %v1067
      %v1069 = vmul.f32 %v1034, 1.442695
      %v1070 = vpow.pop %v1069
      %v1071 = vmul.f32 %v1035, 1.442695
      %v1072 = vpow.pop %v1071
      %v1073 = vmul.f32 %v1036, 1.442695
      %v1074 = vpow.pop %v1073
      %v1075 = vmul.f32 %v1037, 1.442695
      %v1076 = vpow.pop %v1075
      %v1077 = vmul.f32 %v1038, 1.442695
      %v1078 = vpow.pop %v1077
      %v1079 = vmul.f32 %v1039, 1.442695
      %v1080 = vpow.pop %v1079
      %v1081 = vmul.f32 %v1040, 1.442695
      %v1082 = vpow.pop %v1081
      %v1083 = vmul.f32 %v1041, 1.442695
      %v1084 = vpow.pop %v1083
      %v1085 = vmul.f32 %v1042, 1.442695
      %v1086 = vpow.pop %v1085
      %v1087 = vmul.f32 %v1043, 1.442695
      %v1088 = vpow.pop %v1087
      %v1089 = vmul.f32 %v1044, 1.442695
      %v1090 = vpow.pop %v1089
      %v1091 = vmul.f32 %v1045, 1.442695
      %v1092 = vpow.pop %v1091
      %v1093 = vmul.f32 %v1046, 1.442695
      %v1094 = vpow.pop %v1093
      %v1095 = vmul.f32 %v1047, 1.442695
      %v1096 = vpow.pop %v1095
      %v1097 = vmul.f32 %v1048, 1.442695
      %v1098 = vpow.pop %v1097
      %v1099 = vmul.f32 %v1049, 1.442695
      %v1100 = vpow.pop %v1099
      %v1101 = vmul.f32 %v1050, 1.442695
      %v1102 = vpow.pop %v1101
      %v1103 = vmul.f32 %v1051, 1.442695
      %v1104 = vpow.pop %v1103
      %v1105 = vmul.f32 %v1052, 1.442695
      %v1106 = vpow.pop %v1105
      %v1107 = vmul.f32 %v1053, 1.442695
      %v1108 = vpow.pop %v1107
      %v1109 = vmul.f32 %v1054, 1.442695
      %v1110 = vpow.pop %v1109
      %v1111 = vmul.f32 %v1055, 1.442695
      %v1112 = vpow.pop %v1111
      %v1113 = vmul.f32 %v1056, 1.442695
      %v1114 = vpow.pop %v1113
      %v1115 = vmul.f32 %v1057, 1.442695
      %v1116 = vpow.pop %v1115
      %v1117 = vmul.f32 %v1058, 1.442695
      %v1118 = vpow.pop %v1117
      %v1119 = vmul.f32 %v1059, 1.442695
      %v1120 = vpow.pop %v1119
      %v1121 = vmul.f32 %v1060, 1.442695
      %v1122 = vpow.pop %v1121
      %v1123 = vmul.f32 %v1061, 1.442695
      %v1124 = vpow.pop %v1123
      %v1125 = vmul.f32 %v1062, 1.442695
      %v1126 = vpow.pop %v1125
      %v1127 = vadd.f32 %v1064, 1.0
      %v1128 = vadd.f32 %v1066, 1.0
      %v1129 = vadd.f32 %v1068, 1.0
      %v1130 = vadd.f32 %v1070, 1.0
      %v1131 = vadd.f32 %v1072, 1.0
      %v1132 = vadd.f32 %v1074, 1.0
      %v1133 = vadd.f32 %v1076, 1.0
      %v1134 = vadd.f32 %v1078, 1.0
      %v1135 = vadd.f32 %v1080, 1.0
      %v1136 = vadd.f32 %v1082, 1.0
      %v1137 = vadd.f32 %v1084, 1.0
      %v1138 = vadd.f32 %v1086, 1.0
      %v1139 = vadd.f32 %v1088, 1.0
      %v1140 = vadd.f32 %v1090, 1.0
      %v1141 = vadd.f32 %v1092, 1.0
      %v1142 = vadd.f32 %v1094, 1.0
      %v1143 = vadd.f32 %v1096, 1.0
      %v1144 = vadd.f32 %v1098, 1.0
      %v1145 = vadd.f32 %v1100, 1.0
      %v1146 = vadd.f32 %v1102, 1.0
      %v1147 = vadd.f32 %v1104, 1.0
      %v1148 = vadd.f32 %v1106, 1.0
      %v1149 = vadd.f32 %v1108, 1.0
      %v1150 = vadd.f32 %v1110, 1.0
      %v1151 = vadd.f32 %v1112, 1.0
      %v1152 = vadd.f32 %v1114, 1.0
      %v1153 = vadd.f32 %v1116, 1.0
      %v1154 = vadd.f32 %v1118, 1.0
      %v1155 = vadd.f32 %v1120, 1.0
      %v1156 = vadd.f32 %v1122, 1.0
      %v1157 = vadd.f32 %v1124, 1.0
      %v1158 = vadd.f32 %v1126, 1.0
      %v1159 = vrcp.pop %v1127
      %v1160 = vmul.f32 1.0, %v1159
      %v1161 = vrcp.pop %v1128
      %v1162 = vmul.f32 1.0, %v1161
      %v1163 = vrcp.pop %v1129
      %v1164 = vmul.f32 1.0, %v1163
      %v1165 = vrcp.pop %v1130
      %v1166 = vmul.f32 1.0, %v1165
      %v1167 = vrcp.pop %v1131
      %v1168 = vmul.f32 1.0, %v1167
      %v1169 = vrcp.pop %v1132
      %v1170 = vmul.f32 1.0, %v1169
      %v1171 = vrcp.pop %v1133
      %v1172 = vmul.f32 1.0, %v1171
      %v1173 = vrcp.pop %v1134
      %v1174 = vmul.f32 1.0, %v1173
      %v1175 = vrcp.pop %v1135
      %v1176 = vmul.f32 1.0, %v1175
      %v1177 = vrcp.pop %v1136
      %v1178 = vmul.f32 1.0, %v1177
      %v1179 = vrcp.pop %v1137
      %v1180 = vmul.f32 1.0, %v1179
      %v1181 = vrcp.pop %v1138
      %v1182 = vmul.f32 1.0, %v1181
      %v1183 = vrcp.pop %v1139
      %v1184 = vmul.f32 1.0, %v1183
      %v1185 = vrcp.pop %v1140
      %v1186 = vmul.f32 1.0, %v1185
      %v1187 = vrcp.pop %v1141
      %v1188 = vmul.f32 1.0, %v1187
      %v1189 = vrcp.pop %v1142
      %v1190 = vmul.f32 1.0, %v1189
      %v1191 = vrcp.pop %v1143
      %v1192 = vmul.f32 1.0, %v1191
      %v1193 = vrcp.pop %v1144
      %v1194 = vmul.f32 1.0, %v1193
      %v1195 = vrcp.pop %v1145
      %v1196 = vmul.f32 1.0, %v1195
      %v1197 = vrcp.pop %v1146
      %v1198 = vmul.f32 1.0, %v1197
      %v1199 = vrcp.pop %v1147
      %v1200 = vmul.f32 1.0, %v1199
      %v1201 = vrcp.pop %v1148
      %v1202 = vmul.f32 1.0, %v1201
      %v1203 = vrcp.pop %v1149
      %v1204 = vmul.f32 1.0, %v1203
      %v1205 = vrcp.pop %v1150
      %v1206 = vmul.f32 1.0, %v1205
      %v1207 = vrcp.pop %v1151
      %v1208 = vmul.f32 1.0, %v1207
      %v1209 = vrcp.pop %v1152
      %v1210 = vmul.f32 1.0, %v1209
      %v1211 = vrcp.pop %v1153
      %v1212 = vmul.f32 1.0, %v1211
      %v1213 = vrcp.pop %v1154
      %v1214 = vmul.f32 1.0, %v1213
      %v1215 = vrcp.pop %v1155
      %v1216 = vmul.f32 1.0, %v1215
      %v1217 = vrcp.pop %v1156
      %v1218 = vmul.f32 1.0, %v1217
      %v1219 = vrcp.pop %v1157
      %v1220 = vmul.f32 1.0, %v1219
      %v1221 = vrcp.pop %v1158
      %v1222 = vmul.f32 1.0, %v1221
      %v1223 = vmul.f32 %v999, %v1160
      %v1224 = vmul.f32 %v1000, %v1162
      %v1225 = vmul.f32 %v1001, %v1164
      %v1226 = vmul.f32 %v1002, %v1166
      %v1227 = vmul.f32 %v1003, %v1168
      %v1228 = vmul.f32 %v1004, %v1170
      %v1229 = vmul.f32 %v1005, %v1172
      %v1230 = vmul.f32 %v1006, %v1174
      %v1231 = vmul.f32 %v1007, %v1176
      %v1232 = vmul.f32 %v1008, %v1178
      %v1233 = vmul.f32 %v1009, %v1180
      %v1234 = vmul.f32 %v1010, %v1182
      %v1235 = vmul.f32 %v1011, %v1184
      %v1236 = vmul.f32 %v1012, %v1186
      %v1237 = vmul.f32 %v1013, %v1188
      %v1238 = vmul.f32 %v1014, %v1190
      %v1239 = vmul.f32 %v1015, %v1192
      %v1240 = vmul.f32 %v1016, %v1194
      %v1241 = vmul.f32 %v1017, %v1196
      %v1242 = vmul.f32 %v1018, %v1198
      %v1243 = vmul.f32 %v1019, %v1200
      %v1244 = vmul.f32 %v1020, %v1202
      %v1245 = vmul.f32 %v1021, %v1204
      %v1246 = vmul.f32 %v1022, %v1206
      %v1247 = vmul.f32 %v1023, %v1208
      %v1248 = vmul.f32 %v1024, %v1210
      %v1249 = vmul.f32 %v1025, %v1212
      %v1250 = vmul.f32 %v1026, %v1214
      %v1251 = vmul.f32 %v1027, %v1216
      %v1252 = vmul.f32 %v1028, %v1218
      %v1253 = vmul.f32 %v1029, %v1220
      %v1254 = vmul.f32 %v1030, %v1222
      %1255 = vst.msk [vmem:[%s275] sm:$0xff] %vm442, %v1223
      %1256 = vst.msk [vmem:[%s275 + $0x8] sm:$0xff] %vm442, %v1224
      %1257 = vst.msk [vmem:[%s275 + $0x10] sm:$0xff] %vm442, %v1225
      %1258 = vst.msk [vmem:[%s275 + $0x18] sm:$0xff] %vm442, %v1226
      %1259 = vst.msk [vmem:[%s275 + $0x20] sm:$0xff] %vm442, %v1227
      %1260 = vst.msk [vmem:[%s275 + $0x28] sm:$0xff] %vm442, %v1228
      %1261 = vst.msk [vmem:[%s275 + $0x30] sm:$0xff] %vm442, %v1229
      %1262 = vst.msk [vmem:[%s275 + $0x38] sm:$0xff] %vm442, %v1230
      %1263 = vst.msk [vmem:[%s275 + $0x40] sm:$0xff] %vm442, %v1231
      %1264 = vst.msk [vmem:[%s275 + $0x48] sm:$0xff] %vm442, %v1232
      %1265 = vst.msk [vmem:[%s275 + $0x50] sm:$0xff] %vm442, %v1233
      %1266 = vst.msk [vmem:[%s275 + $0x58] sm:$0xff] %vm442, %v1234
      %1267 = vst.msk [vmem:[%s275 + $0x60] sm:$0xff] %vm442, %v1235
      %1268 = vst.msk [vmem:[%s275 + $0x68] sm:$0xff] %vm442, %v1236
      %1269 = vst.msk [vmem:[%s275 + $0x70] sm:$0xff] %vm442, %v1237
      %1270 = vst.msk [vmem:[%s275 + $0x78] sm:$0xff] %vm442, %v1238
      %1271 = vst.msk [vmem:[%s275 + $0x80] sm:$0xff] %vm442, %v1239
      %1272 = vst.msk [vmem:[%s275 + $0x88] sm:$0xff] %vm442, %v1240
      %1273 = vst.msk [vmem:[%s275 + $0x90] sm:$0xff] %vm442, %v1241
      %1274 = vst.msk [vmem:[%s275 + $0x98] sm:$0xff] %vm442, %v1242
      %1275 = vst.msk [vmem:[%s275 + $0xa0] sm:$0xff] %vm442, %v1243
      %1276 = vst.msk [vmem:[%s275 + $0xa8] sm:$0xff] %vm442, %v1244
      %1277 = vst.msk [vmem:[%s275 + $0xb0] sm:$0xff] %vm442, %v1245
      %1278 = vst.msk [vmem:[%s275 + $0xb8] sm:$0xff] %vm442, %v1246
      %1279 = vst.msk [vmem:[%s275 + $0xc0] sm:$0xff] %vm442, %v1247
      %1280 = vst.msk [vmem:[%s275 + $0xc8] sm:$0xff] %vm442, %v1248
      %1281 = vst.msk [vmem:[%s275 + $0xd0] sm:$0xff] %vm442, %v1249
      %1282 = vst.msk [vmem:[%s275 + $0xd8] sm:$0xff] %vm442, %v1250
      %1283 = vst.msk [vmem:[%s275 + $0xe0] sm:$0xff] %vm442, %v1251
      %1284 = vst.msk [vmem:[%s275 + $0xe8] sm:$0xff] %vm442, %v1252
      %1285 = vst.msk [vmem:[%s275 + $0xf0] sm:$0xff] %vm442, %v1253
      %1286 = vst.msk [vmem:[%s275 + $0xf8] sm:$0xff] %vm442, %v1254
      %s1287 = smul.u32 32, %s17
      %p1288 = scmp.lt.s32.totalorder %s1287, 63
      %s1289 = scalar_select %p1288, %s1287, 63
      %s1290 = smul.addr %s1289, 8
      %s1291 = scalar_lea.vmem %s6, %s1290
      // Predicated region
      $region45: #{forward.9} parent=43 // pred_check
        %p1292 = pneg %p171
      $region46: #{forward.9} parent=43 // pred_check_branch
        %1294 = sbr.rel (%p1292) target = $region48
      $region47: #{forward.9} parent=43 // pred_region
        %s1295 = smul.u32 32, %s17
      $region48: #{forward.9} parent=43 // pred_fallthru
        _
    $region44: #{forward.9} parent=5 // pred_fallthru
      _
    %p1296 = scmp.le.s32.totalorder 2, %s12
    // Predicated region
    $region49: #{forward.9} parent=5 // pred_check
      %p1297 = pneg %p1296
    $region50: #{forward.9} parent=5 // pred_check_branch
      %1299 = sbr.rel (%p1297) target = $region52
    $region51: #{forward.9} parent=5 // pred_region
      %s1300 = ssub.s32 %s12, 2
      // Predicated region
      $region53: #{forward.9} parent=51 // pred_check
        %p1301 = pneg %p177
      $region54: #{forward.9} parent=51 // pred_check_branch
        %1303 = sbr.rel (%p1301) target = $region56
      $region55: #{forward.9} parent=51 // pred_region
        %s1304 = smul.u32 32, %s18
        %p1305 = scmp.lt.s32.totalorder %s1304, 63
        %s1306 = scalar_select %p1305, %s1304, 63
        %s1307 = smul.addr %s1306, 8
        %s1308 = scalar_lea.vmem %s6, %s1307
      $region56: #{forward.9} parent=51 // pred_fallthru
        _
    $region52: #{forward.9} parent=5 // pred_fallthru
      _
  $region6: #{forward.9} parent=0 // loop_footer
    %s16 = sadd.s32 1, %s12
  $region7: #{forward.9} parent=0 // loop_footer_branch
    %11 = sbr.rel target = $region3
  $region8: #{forward.9} parent=0 // loop_exit
    _

</llo_original>
